<compile_context>
chip_gen: v7x
topology: tpu7x:2x2x1
jax: 0.10.0
libtpu: 0.0.40
codegen_flags: <defaults>
</compile_context>

<pallas_src>
import functools

import jax
import jax.numpy as jnp
from jax.experimental import pallas as pl
from jax.experimental.pallas import tpu as pltpu


LANE = 128


def _round_up(n, m):
    return ((n + m - 1) // m) * m


def _choose_tiling(m):
    """Pick an M tile: large tiles to amortize per-grid-step overhead, but keep
    >=2 grid steps when possible so v7x can shard the grid across its 2 TCs."""
    for tm in (512, 256, 128, 64, 32, 16, 8):
        if m >= 2 * tm:
            return tm, _round_up(m, tm)
    mp = _round_up(max(m, 8), 8)
    return mp, mp


def _vmem_limit(block_bytes):
    # Double-buffered pipeline blocks + headroom; clamped to a range valid on
    # v5e / v6e (128 MiB VMEM) and v7x (64 MiB VMEM per core).
    need = 2 * block_bytes + (4 << 20)
    return int(min(max(need, 32 << 20), 48 << 20))


# ----------------------------------------------------------------------------
# Pallas kernels (fused matmul -> folded-BN bias -> SiLU [-> +residual])
# ----------------------------------------------------------------------------
def _mm_bias_silu_kernel(x_ref, w_ref, b_ref, o_ref):
    # (tm, Cin) @ (Cin, Cout) on the MXU in bf16, f32 accumulation.
    y = jnp.dot(x_ref[...], w_ref[...], preferred_element_type=jnp.float32)
    y = y + b_ref[...]                     # folded BatchNorm bias
    y = y * jax.nn.sigmoid(y)              # SiLU
    o_ref[...] = y.astype(o_ref.dtype)


def _dual_mm_bias_silu_kernel(x_ref, w1_ref, b1_ref, w2_ref, b2_ref,
                              o1_ref, o2_ref):
    # Fused cv1 & cv2: one x tile, two matmuls, two outputs (x read from HBM once).
    x = x_ref[...]
    y1 = jnp.dot(x, w1_ref[...], preferred_element_type=jnp.float32) + b1_ref[...]
    y1 = y1 * jax.nn.sigmoid(y1)
    o1_ref[...] = y1.astype(o1_ref.dtype)
    y2 = jnp.dot(x, w2_ref[...], preferred_element_type=jnp.float32) + b2_ref[...]
    y2 = y2 * jax.nn.sigmoid(y2)
    o2_ref[...] = y2.astype(o2_ref.dtype)


def _mm2_bias_silu_kernel(a_ref, c_ref, wa_ref, wc_ref, b_ref, o_ref):
    # Fused concat([a, c], channel) @ W  ==  a @ W_top + c @ W_bot   (cv3).
    y = jnp.dot(a_ref[...], wa_ref[...], preferred_element_type=jnp.float32)
    y = y + jnp.dot(c_ref[...], wc_ref[...], preferred_element_type=jnp.float32)
    y = y + b_ref[...]
    y = y * jax.nn.sigmoid(y)
    o_ref[...] = y.astype(o_ref.dtype)


def _conv3x3_bias_silu_kernel(x_ref, w_ref, b_ref, o_ref):
    # x_ref: (1, H+2, W+2, Cin) bf16 (spatially padded), w_ref: (9, Cin, Cout) bf16.
    _, hp, wp, cin = x_ref.shape
    hh, ww = hp - 2, wp - 2
    cout = o_ref.shape[-1]
    acc = jnp.zeros((hh * ww, cout), jnp.float32)
    for kh in range(3):
        for kw in range(3):
            xs = x_ref[0, kh:kh + hh, kw:kw + ww, :].reshape(hh * ww, cin)
            acc = acc + jnp.dot(xs, w_ref[kh * 3 + kw],
                                preferred_element_type=jnp.float32)
    y = acc + b_ref[...]
    y = y * jax.nn.sigmoid(y)
    o_ref[...] = y.reshape(1, hh, ww, cout).astype(o_ref.dtype)


def _conv3x3_bias_silu_add_kernel(x_ref, w_ref, b_ref, r_ref, o_ref):
    _, hp, wp, cin = x_ref.shape
    hh, ww = hp - 2, wp - 2
    cout = o_ref.shape[-1]
    acc = jnp.zeros((hh * ww, cout), jnp.float32)
    for kh in range(3):
        for kw in range(3):
            xs = x_ref[0, kh:kh + hh, kw:kw + ww, :].reshape(hh * ww, cin)
            acc = acc + jnp.dot(xs, w_ref[kh * 3 + kw],
                                preferred_element_type=jnp.float32)
    y = acc + b_ref[...]
    y = y * jax.nn.sigmoid(y)
    y = y + r_ref[...].reshape(hh * ww, cout).astype(jnp.float32)   # shortcut add
    o_ref[...] = y.reshape(1, hh, ww, cout).astype(o_ref.dtype)


# ----------------------------------------------------------------------------
# Wrappers (NHWC, channel-padded, bf16 activations)
# ----------------------------------------------------------------------------
def conv1x1_bn_silu(x4d, params):
    w, bias = params                                 # (Cin_p, Cout_p) bf16, (1, Cout_p) f32
    n, h, wd, cin = x4d.shape
    cout = w.shape[1]
    m = n * h * wd
    x2 = x4d.reshape(m, cin)
    tm, mp = _choose_tiling(m)
    if mp != m:
        x2 = jnp.pad(x2, ((0, mp - m), (0, 0)))
    blk_bytes = tm * cin * 2 + cin * cout * 2 + cout * 4 + tm * cout * 2
    out = pl.pallas_call(
        _mm_bias_silu_kernel,
        out_shape=jax.ShapeDtypeStruct((mp, cout), jnp.bfloat16),
        grid_spec=pl.GridSpec(
            grid=(mp // tm,),
            in_specs=[pl.BlockSpec((tm, cin), lambda i: (i, 0)),
                      pl.BlockSpec((cin, cout), lambda i: (0, 0)),
                      pl.BlockSpec((1, cout), lambda i: (0, 0))],
            out_specs=pl.BlockSpec((tm, cout), lambda i: (i, 0))),
        compiler_params=pltpu.CompilerParams(
            dimension_semantics=("parallel",),
            vmem_limit_bytes=_vmem_limit(blk_bytes)),
    )(x2, w, bias)
    if mp != m:
        out = out[:m]
    return out.reshape(n, h, wd, cout)


def dual_conv1x1_bn_silu(x4d, params1, params2):
    """Fused cv1 & cv2: both 1x1 Conv+BN+SiLU share the same input; read it once."""
    w1, b1 = params1
    w2, b2 = params2
    n, h, wd, cin = x4d.shape
    c1out, c2out = w1.shape[1], w2.shape[1]
    m = n * h * wd
    x2 = x4d.reshape(m, cin)
    tm, mp = _choose_tiling(m)
    if mp != m:
        x2 = jnp.pad(x2, ((0, mp - m), (0, 0)))
    blk_bytes = (tm * cin * 2 + cin * (c1out + c2out) * 2 + (c1out + c2out) * 4
                 + tm * (c1out + c2out) * 2)
    o1, o2 = pl.pallas_call(
        _dual_mm_bias_silu_kernel,
        out_shape=(jax.ShapeDtypeStruct((mp, c1out), jnp.bfloat16),
                   jax.ShapeDtypeStruct((mp, c2out), jnp.bfloat16)),
        grid_spec=pl.GridSpec(
            grid=(mp // tm,),
            in_specs=[pl.BlockSpec((tm, cin), lambda i: (i, 0)),
                      pl.BlockSpec((cin, c1out), lambda i: (0, 0)),
                      pl.BlockSpec((1, c1out), lambda i: (0, 0)),
                      pl.BlockSpec((cin, c2out), lambda i: (0, 0)),
                      pl.BlockSpec((1, c2out), lambda i: (0, 0))],
            out_specs=(pl.BlockSpec((tm, c1out), lambda i: (i, 0)),
                       pl.BlockSpec((tm, c2out), lambda i: (i, 0)))),
        compiler_params=pltpu.CompilerParams(
            dimension_semantics=("parallel",),
            vmem_limit_bytes=_vmem_limit(blk_bytes)),
    )(x2, w1, b1, w2, b2)
    if mp != m:
        o1, o2 = o1[:m], o2[:m]
    return o1.reshape(n, h, wd, c1out), o2.reshape(n, h, wd, c2out)


def concat_conv1x1_bn_silu(a4d, c4d, params):
    """Fused torch.cat((a, c), channel) followed by a 1x1 Conv+BN+SiLU (cv3)."""
    wa, wc, bias = params
    n, h, wd, cin = a4d.shape
    cout = wa.shape[1]
    m = n * h * wd
    a2 = a4d.reshape(m, cin)
    c2 = c4d.reshape(m, cin)
    tm, mp = _choose_tiling(m)
    if mp != m:
        a2 = jnp.pad(a2, ((0, mp - m), (0, 0)))
        c2 = jnp.pad(c2, ((0, mp - m), (0, 0)))
    blk_bytes = 2 * tm * cin * 2 + 2 * cin * cout * 2 + cout * 4 + tm * cout * 2
    out = pl.pallas_call(
        _mm2_bias_silu_kernel,
        out_shape=jax.ShapeDtypeStruct((mp, cout), jnp.bfloat16),
        grid_spec=pl.GridSpec(
            grid=(mp // tm,),
            in_specs=[pl.BlockSpec((tm, cin), lambda i: (i, 0)),
                      pl.BlockSpec((tm, cin), lambda i: (i, 0)),
                      pl.BlockSpec((cin, cout), lambda i: (0, 0)),
                      pl.BlockSpec((cin, cout), lambda i: (0, 0)),
                      pl.BlockSpec((1, cout), lambda i: (0, 0))],
            out_specs=pl.BlockSpec((tm, cout), lambda i: (i, 0))),
        compiler_params=pltpu.CompilerParams(
            dimension_semantics=("parallel",),
            vmem_limit_bytes=_vmem_limit(blk_bytes)),
    )(a2, c2, wa, wc, bias)
    if mp != m:
        out = out[:m]
    return out.reshape(n, h, wd, cout)


def conv3x3_bn_silu(x4d, params, residual=None):
    """3x3 / stride 1 / pad 1 Conv+BN+SiLU (+ fused residual). Grid over batch;
    the 9 taps are accumulated in-kernel from the spatially padded image."""
    # TODO(synk): row-tile (with halo) the 3x3 kernel for feature maps too large
    #             to hold one padded image block per grid step in VMEM.
    w, bias = params                                 # (9, Cin_p, Cout_p), (1, Cout_p)
    n, h, wd, cin = x4d.shape
    cout = w.shape[-1]
    xp = jnp.pad(x4d, ((0, 0), (1, 1), (1, 1), (0, 0)))
    in_specs = [pl.BlockSpec((1, h + 2, wd + 2, cin), lambda b: (b, 0, 0, 0)),
                pl.BlockSpec((9, cin, cout), lambda b: (0, 0, 0)),
                pl.BlockSpec((1, cout), lambda b: (0, 0))]
    args = [xp, w, bias]
    kernel = _conv3x3_bias_silu_kernel
    if residual is not None:
        in_specs.append(pl.BlockSpec((1, h, wd, cout), lambda b: (b, 0, 0, 0)))
        args.append(residual)
        kernel = _conv3x3_bias_silu_add_kernel
    blk_bytes = ((h + 2) * (wd + 2) * cin * 2 + 9 * cin * cout * 2 + cout * 4
                 + h * wd * cout * 2 + h * wd * cout * 4
                 + (h * wd * cout * 2 if residual is not None else 0))
    return pl.pallas_call(
        kernel,
        out_shape=jax.ShapeDtypeStruct((n, h, wd, cout), jnp.bfloat16),
        grid_spec=pl.GridSpec(
            grid=(n,),
            in_specs=in_specs,
            out_specs=pl.BlockSpec((1, h, wd, cout), lambda b: (b, 0, 0, 0))),
        compiler_params=pltpu.CompilerParams(
            dimension_semantics=("parallel",),
            vmem_limit_bytes=_vmem_limit(blk_bytes)),
    )(*args)


# ----------------------------------------------------------------------------
# Deterministic parameter construction (synthetic Conv + BatchNorm2d, eval mode)
# ----------------------------------------------------------------------------
def _make_conv_params(key, cin, cout, k):
    """Returns BN-folded (weight, bias): w_f = w * scale, bias = beta - mean*scale."""
    k_w, k_g, k_b, k_m, k_v = jax.random.split(key, 5)
    shape = (cin, cout) if k == 1 else (k, k, cin, cout)
    w = 0.1 * jax.random.normal(k_w, shape, dtype=jnp.float32)
    gamma = jax.random.uniform(k_g, (cout,), minval=0.5, maxval=1.5, dtype=jnp.float32)
    beta = 0.1 * jax.random.normal(k_b, (cout,), dtype=jnp.float32)
    run_mean = 0.1 * jax.random.normal(k_m, (cout,), dtype=jnp.float32)
    run_var = jax.random.uniform(k_v, (cout,), minval=0.5, maxval=1.5, dtype=jnp.float32)
    eps = 1e-3
    scale = gamma / jnp.sqrt(run_var + eps)
    return w * scale, beta - run_mean * scale


def _pad_conv1x1(w, bias):
    cin, cout = w.shape
    cin_p, cout_p = _round_up(cin, LANE), _round_up(cout, LANE)
    w_p = jnp.zeros((cin_p, cout_p), jnp.bfloat16).at[:cin, :cout].set(w.astype(jnp.bfloat16))
    b_p = jnp.zeros((1, cout_p), jnp.float32).at[0, :cout].set(bias)
    return w_p, b_p


def _pad_conv3x3(w, bias):
    kh, kw, cin, cout = w.shape
    cin_p, cout_p = _round_up(cin, LANE), _round_up(cout, LANE)
    w_p = jnp.zeros((kh * kw, cin_p, cout_p), jnp.bfloat16).at[:, :cin, :cout].set(
        w.reshape(kh * kw, cin, cout).astype(jnp.bfloat16))
    b_p = jnp.zeros((1, cout_p), jnp.float32).at[0, :cout].set(bias)
    return w_p, b_p


def make_c3_params(key, c1, c2, n=1, e=0.5):
    c_ = int(c2 * e)
    c_p, c2_p = _round_up(c_, LANE), _round_up(c2, LANE)
    keys = jax.random.split(key, 3 + 2 * n)
    cv1 = _pad_conv1x1(*_make_conv_params(keys[0], c1, c_, 1))
    cv2 = _pad_conv1x1(*_make_conv_params(keys[1], c1, c_, 1))
    # cv3: split the (2c_, c2) weight into the halves acting on m(cv1(x)) and cv2(x).
    w3, b3 = _make_conv_params(keys[2], 2 * c_, c2, 1)
    wt = jnp.zeros((c_p, c2_p), jnp.bfloat16).at[:c_, :c2].set(w3[:c_].astype(jnp.bfloat16))
    wb = jnp.zeros((c_p, c2_p), jnp.bfloat16).at[:c_, :c2].set(w3[c_:].astype(jnp.bfloat16))
    b3p = jnp.zeros((1, c2_p), jnp.float32).at[0, :c2].set(b3)
    m = []
    for i in range(n):
        p1 = _pad_conv1x1(*_make_conv_params(keys[3 + 2 * i], c_, c_, 1))   # Bottleneck e=1.0
        p2 = _pad_conv3x3(*_make_conv_params(keys[4 + 2 * i], c_, c_, 3))
        m.append((p1, p2))
    return {"cv1": cv1, "cv2": cv2, "cv3": (wt, wb, b3p), "m": m}


# ----------------------------------------------------------------------------
# C3 forward (matches the PyTorch module; public I/O is NCHW / f32)
# ----------------------------------------------------------------------------
@functools.partial(jax.jit, static_argnames=("c2", "shortcut"))
def c3_forward(x_nchw, params, c2, shortcut=True):
    x = jnp.transpose(x_nchw, (0, 2, 3, 1))            # NCHW -> NHWC
    c1 = x.shape[-1]
    c1_pad = params["cv1"][0].shape[0]
    if c1_pad != c1:
        x = jnp.pad(x, ((0, 0), (0, 0), (0, 0), (0, c1_pad - c1)))
    x = x.astype(jnp.bfloat16)

    # cv1 & cv2 fused: x is read once, two lane-dense outputs.
    b, y2 = dual_conv1x1_bn_silu(x, params["cv1"], params["cv2"])
    for (p1, p2) in params["m"]:                        # Bottleneck chain (e=1.0)
        h = conv1x1_bn_silu(b, p1)
        b = conv3x3_bn_silu(h, p2, residual=b if shortcut else None)
    out = concat_conv1x1_bn_silu(b, y2, params["cv3"])  # fused cat + cv3

    out = out[..., :c2].astype(x_nchw.dtype)
    return jnp.transpose(out, (0, 3, 1, 2))             # NHWC -> NCHW


# ----------------------------------------------------------------------------
# Plain-JAX reference (same folded/padded params) for a loose numerical check
# ----------------------------------------------------------------------------
def _ref_forward(x_nchw, params, c2, shortcut=True):
    x = jnp.transpose(x_nchw, (0, 2, 3, 1)).astype(jnp.float32)
    c1_pad = params["cv1"][0].shape[0]
    x = jnp.pad(x, ((0, 0), (0, 0), (0, 0), (0, c1_pad - x.shape[-1])))

    def conv1(z, p):
        w, bb = p
        y = jnp.einsum("nhwc,cd->nhwd", z, w.astype(jnp.float32)) + bb[0]
        return y * jax.nn.sigmoid(y)

    def conv3(z, p, res):
        w, bb = p
        zp = jnp.pad(z, ((0, 0), (1, 1), (1, 1), (0, 0)))
        hh, ww = z.shape[1], z.shape[2]
        acc = jnp.zeros(z.shape[:3] + (w.shape[-1],), jnp.float32)
        for kh in range(3):
            for kw in range(3):
                acc = acc + jnp.einsum("nhwc,cd->nhwd",
                                       zp[:, kh:kh + hh, kw:kw + ww, :],
                                       w[kh * 3 + kw].astype(jnp.float32))
        y = acc + bb[0]
        y = y * jax.nn.sigmoid(y)
        return y + res if res is not None else y

    b = conv1(x, params["cv1"])
    for (p1, p2) in params["m"]:
        h = conv1(b, p1)
        b = conv3(h, p2, b if shortcut else None)
    y2 = conv1(x, params["cv2"])
    wt, wb, b3 = params["cv3"]
    y = (jnp.einsum("nhwc,cd->nhwd", b, wt.astype(jnp.float32))
         + jnp.einsum("nhwc,cd->nhwd", y2, wb.astype(jnp.float32)) + b3[0])
    y = y * jax.nn.sigmoid(y)
    return jnp.transpose(y[..., :c2], (0, 3, 1, 2))


if __name__ == "__main__":
    # C3(c1=4, c2=4, n=1, shortcut=True, e=0.5)  -> c_ = 2
    N, C1, C2, H, W = 2, 4, 4, 16, 16
    key = jax.random.PRNGKey(0)
    k_x, k_p = jax.random.split(key)
    x = jax.random.normal(k_x, (N, C1, H, W), dtype=jnp.float32)
    params = make_c3_params(k_p, C1, C2, n=1, e=0.5)

    out = c3_forward(x, params, c2=C2, shortcut=True)
    out = jax.block_until_ready(out)
    assert out.shape == (N, C2, H, W), out.shape
    assert bool(jnp.all(jnp.isfinite(out)))

    ref = _ref_forward(x, params, C2, shortcut=True)
    max_err = float(jnp.max(jnp.abs(out.astype(jnp.float32) - ref)))
    assert max_err < 5e-2, f"numerical mismatch vs reference: {max_err}"

    print("KERNEL_OK")
</pallas_src>

<mosaic_0001>
module attributes {stable_mosaic.version = 11 : i64} {
  func.func @_dual_mm_bias_silu_kernel(%arg0: i32, %arg1: memref<256x128xbf16, #tpu.memory_space<vmem>>, %arg2: memref<128x128xbf16, #tpu.memory_space<vmem>>, %arg3: memref<1x128xf32, #tpu.memory_space<vmem>>, %arg4: memref<128x128xbf16, #tpu.memory_space<vmem>>, %arg5: memref<1x128xf32, #tpu.memory_space<vmem>>, %arg6: memref<256x128xbf16, #tpu.memory_space<vmem>>, %arg7: memref<256x128xbf16, #tpu.memory_space<vmem>>) attributes {dimension_semantics = [#tpu.dimension_semantics<parallel>], iteration_bounds = array<i64: 2>, scalar_prefetch = 0 : i64, scratch_operands = 0 : i64, tpu.core_type = #tpu.core_type<tc>, window_params = [{transform_indices = @transform_0, window_bounds = array<i64: 256, 128>}, {pipeline_mode = #tpu.pipeline_mode<synchronous>, transform_indices = @transform_1, window_bounds = array<i64: 128, 128>}, {pipeline_mode = #tpu.pipeline_mode<synchronous>, transform_indices = @transform_2, window_bounds = array<i64: 1, 128>}, {pipeline_mode = #tpu.pipeline_mode<synchronous>, transform_indices = @transform_3, window_bounds = array<i64: 128, 128>}, {pipeline_mode = #tpu.pipeline_mode<synchronous>, transform_indices = @transform_4, window_bounds = array<i64: 1, 128>}, {transform_indices = @transform_5, window_bounds = array<i64: 256, 128>}, {transform_indices = @transform_6, window_bounds = array<i64: 256, 128>}]} {
    %c0 = arith.constant 0 : index
    %c0_0 = arith.constant 0 : index
    %0 = vector.load %arg1[%c0, %c0_0] : memref<256x128xbf16, #tpu.memory_space<vmem>>, vector<256x128xbf16>
    %c0_1 = arith.constant 0 : index
    %c0_2 = arith.constant 0 : index
    %1 = vector.load %arg2[%c0_1, %c0_2] : memref<128x128xbf16, #tpu.memory_space<vmem>>, vector<128x128xbf16>
    %cst = arith.constant dense<0.000000e+00> : vector<256x128xf32>
    %2 = tpu.matmul %0, %1, %cst {dimension_numbers = #tpu.dot_dimension_numbers<[1], [0], [0], [1], [0, 0, 1, 1], [], []>} : vector<256x128xbf16>, vector<128x128xbf16>, vector<256x128xf32> -> vector<256x128xf32>
    %c0_3 = arith.constant 0 : index
    %c0_4 = arith.constant 0 : index
    %3 = vector.load %arg3[%c0_3, %c0_4] : memref<1x128xf32, #tpu.memory_space<vmem>>, vector<1x128xf32>
    %4 = vector.broadcast %3 : vector<1x128xf32> to vector<256x128xf32>
    %5 = arith.addf %2, %4 : vector<256x128xf32>
    %6 = arith.negf %5 : vector<256x128xf32>
    %7 = math.exp %6 : vector<256x128xf32>
    %cst_5 = arith.constant 1.000000e+00 : f32
    %8 = vector.broadcast %cst_5 : f32 to vector<256x128xf32>
    %9 = arith.addf %8, %7 : vector<256x128xf32>
    %10 = arith.divf %8, %9 : vector<256x128xf32>
    %11 = arith.mulf %5, %10 : vector<256x128xf32>
    %12 = arith.truncf %11 : vector<256x128xf32> to vector<256x128xbf16>
    %c0_6 = arith.constant 0 : index
    %c0_7 = arith.constant 0 : index
    %13 = vector.load %arg6[%c0_6, %c0_7] : memref<256x128xbf16, #tpu.memory_space<vmem>>, vector<256x128xbf16>
    tpu.vector_store %arg6[%c0_6, %c0_7], %12 {strides = array<i32>} : memref<256x128xbf16, #tpu.memory_space<vmem>>, vector<256x128xbf16>,
    %c0_8 = arith.constant 0 : index
    %c0_9 = arith.constant 0 : index
    %14 = vector.load %arg4[%c0_8, %c0_9] : memref<128x128xbf16, #tpu.memory_space<vmem>>, vector<128x128xbf16>
    %cst_10 = arith.constant dense<0.000000e+00> : vector<256x128xf32>
    %15 = tpu.matmul %0, %14, %cst_10 {dimension_numbers = #tpu.dot_dimension_numbers<[1], [0], [0], [1], [0, 0, 1, 1], [], []>} : vector<256x128xbf16>, vector<128x128xbf16>, vector<256x128xf32> -> vector<256x128xf32>
    %c0_11 = arith.constant 0 : index
    %c0_12 = arith.constant 0 : index
    %16 = vector.load %arg5[%c0_11, %c0_12] : memref<1x128xf32, #tpu.memory_space<vmem>>, vector<1x128xf32>
    %17 = vector.broadcast %16 : vector<1x128xf32> to vector<256x128xf32>
    %18 = arith.addf %15, %17 : vector<256x128xf32>
    %19 = arith.negf %18 : vector<256x128xf32>
    %20 = math.exp %19 : vector<256x128xf32>
    %cst_13 = arith.constant 1.000000e+00 : f32
    %21 = vector.broadcast %cst_13 : f32 to vector<256x128xf32>
    %22 = arith.addf %21, %20 : vector<256x128xf32>
    %23 = arith.divf %21, %22 : vector<256x128xf32>
    %24 = arith.mulf %18, %23 : vector<256x128xf32>
    %25 = arith.truncf %24 : vector<256x128xf32> to vector<256x128xbf16>
    %c0_14 = arith.constant 0 : index
    %c0_15 = arith.constant 0 : index
    %26 = vector.load %arg7[%c0_14, %c0_15] : memref<256x128xbf16, #tpu.memory_space<vmem>>, vector<256x128xbf16>
    tpu.vector_store %arg7[%c0_14, %c0_15], %25 {strides = array<i32>} : memref<256x128xbf16, #tpu.memory_space<vmem>>, vector<256x128xbf16>,
    return
  }
  func.func @transform_0(%arg0: i32) -> (i32, i32) {
    %c0_i32 = arith.constant 0 : i32
    %c0_i32_0 = arith.constant 0 : i32
    return %arg0, %c0_i32 : i32, i32
  }
  func.func @transform_1(%arg0: i32) -> (i32, i32) {
    %c0_i32 = arith.constant 0 : i32
    %c0_i32_0 = arith.constant 0 : i32
    %c0_i32_1 = arith.constant 0 : i32
    return %c0_i32, %c0_i32_0 : i32, i32
  }
  func.func @transform_2(%arg0: i32) -> (i32, i32) {
    %c0_i32 = arith.constant 0 : i32
    %c0_i32_0 = arith.constant 0 : i32
    %c0_i32_1 = arith.constant 0 : i32
    return %c0_i32, %c0_i32_0 : i32, i32
  }
  func.func @transform_3(%arg0: i32) -> (i32, i32) {
    %c0_i32 = arith.constant 0 : i32
    %c0_i32_0 = arith.constant 0 : i32
    %c0_i32_1 = arith.constant 0 : i32
    return %c0_i32, %c0_i32_0 : i32, i32
  }
  func.func @transform_4(%arg0: i32) -> (i32, i32) {
    %c0_i32 = arith.constant 0 : i32
    %c0_i32_0 = arith.constant 0 : i32
    %c0_i32_1 = arith.constant 0 : i32
    return %c0_i32, %c0_i32_0 : i32, i32
  }
  func.func @transform_5(%arg0: i32) -> (i32, i32) {
    %c0_i32 = arith.constant 0 : i32
    %c0_i32_0 = arith.constant 0 : i32
    return %arg0, %c0_i32 : i32, i32
  }
  func.func @transform_6(%arg0: i32) -> (i32, i32) {
    %c0_i32 = arith.constant 0 : i32
    %c0_i32_0 = arith.constant 0 : i32
    return %arg0, %c0_i32 : i32, i32
  }
}

module attributes {stable_mosaic.version = 11 : i64} {
  func.func @_conv3x3_bias_silu_add_kernel(%arg0: i32, %arg1: memref<1x18x18x128xbf16, #tpu.memory_space<vmem>>, %arg2: memref<9x128x128xbf16, #tpu.memory_space<vmem>>, %arg3: memref<1x128xf32, #tpu.memory_space<vmem>>, %arg4: memref<1x16x16x128xbf16, #tpu.memory_space<vmem>>, %arg5: memref<1x16x16x128xbf16, #tpu.memory_space<vmem>>) attributes {dimension_semantics = [#tpu.dimension_semantics<parallel>], iteration_bounds = array<i64: 2>, scalar_prefetch = 0 : i64, scratch_operands = 0 : i64, tpu.core_type = #tpu.core_type<tc>, window_params = [{transform_indices = @transform_0, window_bounds = array<i64: 1, 18, 18, 128>}, {pipeline_mode = #tpu.pipeline_mode<synchronous>, transform_indices = @transform_1, window_bounds = array<i64: 9, 128, 128>}, {pipeline_mode = #tpu.pipeline_mode<synchronous>, transform_indices = @transform_2, window_bounds = array<i64: 1, 128>}, {transform_indices = @transform_3, window_bounds = array<i64: 1, 16, 16, 128>}, {transform_indices = @transform_4, window_bounds = array<i64: 1, 16, 16, 128>}]} {
    %cst = arith.constant 0.000000e+00 : f32
    %0 = vector.broadcast %cst : f32 to vector<256x128xf32>
    %c0 = arith.constant 0 : index
    %c0_0 = arith.constant 0 : index
    %c0_1 = arith.constant 0 : index
    %c0_2 = arith.constant 0 : index
    %1 = vector.load %arg1[%c0, %c0_0, %c0_1, %c0_2] : memref<1x18x18x128xbf16, #tpu.memory_space<vmem>>, vector<1x16x16x128xbf16>
    %2 = vector.shape_cast %1 : vector<1x16x16x128xbf16> to vector<16x16x128xbf16>
    %3 = vector.shape_cast %2 : vector<16x16x128xbf16> to vector<256x128xbf16>
    %c0_3 = arith.constant 0 : index
    %c0_4 = arith.constant 0 : index
    %c0_5 = arith.constant 0 : index
    %4 = vector.load %arg2[%c0_3, %c0_4, %c0_5] : memref<9x128x128xbf16, #tpu.memory_space<vmem>>, vector<1x128x128xbf16>
    %5 = vector.shape_cast %4 : vector<1x128x128xbf16> to vector<128x128xbf16>
    %cst_6 = arith.constant dense<0.000000e+00> : vector<256x128xf32>
    %6 = tpu.matmul %3, %5, %cst_6 {dimension_numbers = #tpu.dot_dimension_numbers<[1], [0], [0], [1], [0, 0, 1, 1], [], []>} : vector<256x128xbf16>, vector<128x128xbf16>, vector<256x128xf32> -> vector<256x128xf32>
    %7 = arith.addf %0, %6 : vector<256x128xf32>
    %c0_7 = arith.constant 0 : index
    %c0_8 = arith.constant 0 : index
    %c1 = arith.constant 1 : index
    %c0_9 = arith.constant 0 : index
    %8 = vector.load %arg1[%c0_7, %c0_8, %c1, %c0_9] : memref<1x18x18x128xbf16, #tpu.memory_space<vmem>>, vector<1x16x16x128xbf16>
    %9 = vector.shape_cast %8 : vector<1x16x16x128xbf16> to vector<16x16x128xbf16>
    %10 = vector.shape_cast %9 : vector<16x16x128xbf16> to vector<256x128xbf16>
    %c1_10 = arith.constant 1 : index
    %c0_11 = arith.constant 0 : index
    %c0_12 = arith.constant 0 : index
    %11 = vector.load %arg2[%c1_10, %c0_11, %c0_12] : memref<9x128x128xbf16, #tpu.memory_space<vmem>>, vector<1x128x128xbf16>
    %12 = vector.shape_cast %11 : vector<1x128x128xbf16> to vector<128x128xbf16>
    %cst_13 = arith.constant dense<0.000000e+00> : vector<256x128xf32>
    %13 = tpu.matmul %10, %12, %cst_13 {dimension_numbers = #tpu.dot_dimension_numbers<[1], [0], [0], [1], [0, 0, 1, 1], [], []>} : vector<256x128xbf16>, vector<128x128xbf16>, vector<256x128xf32> -> vector<256x128xf32>
    %14 = arith.addf %7, %13 : vector<256x128xf32>
    %c0_14 = arith.constant 0 : index
    %c0_15 = arith.constant 0 : index
    %c2 = arith.constant 2 : index
    %c0_16 = arith.constant 0 : index
    %15 = vector.load %arg1[%c0_14, %c0_15, %c2, %c0_16] : memref<1x18x18x128xbf16, #tpu.memory_space<vmem>>, vector<1x16x16x128xbf16>
    %16 = vector.shape_cast %15 : vector<1x16x16x128xbf16> to vector<16x16x128xbf16>
    %17 = vector.shape_cast %16 : vector<16x16x128xbf16> to vector<256x128xbf16>
    %c2_17 = arith.constant 2 : index
    %c0_18 = arith.constant 0 : index
    %c0_19 = arith.constant 0 : index
    %18 = vector.load %arg2[%c2_17, %c0_18, %c0_19] : memref<9x128x128xbf16, #tpu.memory_space<vmem>>, vector<1x128x128xbf16>
    %19 = vector.shape_cast %18 : vector<1x128x128xbf16> to vector<128x128xbf16>
    %cst_20 = arith.constant dense<0.000000e+00> : vector<256x128xf32>
    %20 = tpu.matmul %17, %19, %cst_20 {dimension_numbers = #tpu.dot_dimension_numbers<[1], [0], [0], [1], [0, 0, 1, 1], [], []>} : vector<256x128xbf16>, vector<128x128xbf16>, vector<256x128xf32> -> vector<256x128xf32>
    %21 = arith.addf %14, %20 : vector<256x128xf32>
    %c0_21 = arith.constant 0 : index
    %c1_22 = arith.constant 1 : index
    %c0_23 = arith.constant 0 : index
    %c0_24 = arith.constant 0 : index
    %22 = vector.load %arg1[%c0_21, %c1_22, %c0_23, %c0_24] : memref<1x18x18x128xbf16, #tpu.memory_space<vmem>>, vector<1x16x16x128xbf16>
    %23 = vector.shape_cast %22 : vector<1x16x16x128xbf16> to vector<16x16x128xbf16>
    %24 = vector.shape_cast %23 : vector<16x16x128xbf16> to vector<256x128xbf16>
    %c3 = arith.constant 3 : index
    %c0_25 = arith.constant 0 : index
    %c0_26 = arith.constant 0 : index
    %25 = vector.load %arg2[%c3, %c0_25, %c0_26] : memref<9x128x128xbf16, #tpu.memory_space<vmem>>, vector<1x128x128xbf16>
    %26 = vector.shape_cast %25 : vector<1x128x128xbf16> to vector<128x128xbf16>
    %cst_27 = arith.constant dense<0.000000e+00> : vector<256x128xf32>
    %27 = tpu.matmul %24, %26, %cst_27 {dimension_numbers = #tpu.dot_dimension_numbers<[1], [0], [0], [1], [0, 0, 1, 1], [], []>} : vector<256x128xbf16>, vector<128x128xbf16>, vector<256x128xf32> -> vector<256x128xf32>
    %28 = arith.addf %21, %27 : vector<256x128xf32>
    %c0_28 = arith.constant 0 : index
    %c1_29 = arith.constant 1 : index
    %c1_30 = arith.constant 1 : index
    %c0_31 = arith.constant 0 : index
    %29 = vector.load %arg1[%c0_28, %c1_29, %c1_30, %c0_31] : memref<1x18x18x128xbf16, #tpu.memory_space<vmem>>, vector<1x16x16x128xbf16>
    %30 = vector.shape_cast %29 : vector<1x16x16x128xbf16> to vector<16x16x128xbf16>
    %31 = vector.shape_cast %30 : vector<16x16x128xbf16> to vector<256x128xbf16>
    %c4 = arith.constant 4 : index
    %c0_32 = arith.constant 0 : index
    %c0_33 = arith.constant 0 : index
    %32 = vector.load %arg2[%c4, %c0_32, %c0_33] : memref<9x128x128xbf16, #tpu.memory_space<vmem>>, vector<1x128x128xbf16>
    %33 = vector.shape_cast %32 : vector<1x128x128xbf16> to vector<128x128xbf16>
    %cst_34 = arith.constant dense<0.000000e+00> : vector<256x128xf32>
    %34 = tpu.matmul %31, %33, %cst_34 {dimension_numbers = #tpu.dot_dimension_numbers<[1], [0], [0], [1], [0, 0, 1, 1], [], []>} : vector<256x128xbf16>, vector<128x128xbf16>, vector<256x128xf32> -> vector<256x128xf32>
    %35 = arith.addf %28, %34 : vector<256x128xf32>
    %c0_35 = arith.constant 0 : index
    %c1_36 = arith.constant 1 : index
    %c2_37 = arith.constant 2 : index
    %c0_38 = arith.constant 0 : index
    %36 = vector.load %arg1[%c0_35, %c1_36, %c2_37, %c0_38] : memref<1x18x18x128xbf16, #tpu.memory_space<vmem>>, vector<1x16x16x128xbf16>
    %37 = vector.shape_cast %36 : vector<1x16x16x128xbf16> to vector<16x16x128xbf16>
    %38 = vector.shape_cast %37 : vector<16x16x128xbf16> to vector<256x128xbf16>
    %c5 = arith.constant 5 : index
    %c0_39 = arith.constant 0 : index
    %c0_40 = arith.constant 0 : index
    %39 = vector.load %arg2[%c5, %c0_39, %c0_40] : memref<9x128x128xbf16, #tpu.memory_space<vmem>>, vector<1x128x128xbf16>
    %40 = vector.shape_cast %39 : vector<1x128x128xbf16> to vector<128x128xbf16>
    %cst_41 = arith.constant dense<0.000000e+00> : vector<256x128xf32>
    %41 = tpu.matmul %38, %40, %cst_41 {dimension_numbers = #tpu.dot_dimension_numbers<[1], [0], [0], [1], [0, 0, 1, 1], [], []>} : vector<256x128xbf16>, vector<128x128xbf16>, vector<256x128xf32> -> vector<256x128xf32>
    %42 = arith.addf %35, %41 : vector<256x128xf32>
    %c0_42 = arith.constant 0 : index
    %c2_43 = arith.constant 2 : index
    %c0_44 = arith.constant 0 : index
    %c0_45 = arith.constant 0 : index
    %43 = vector.load %arg1[%c0_42, %c2_43, %c0_44, %c0_45] : memref<1x18x18x128xbf16, #tpu.memory_space<vmem>>, vector<1x16x16x128xbf16>
    %44 = vector.shape_cast %43 : vector<1x16x16x128xbf16> to vector<16x16x128xbf16>
    %45 = vector.shape_cast %44 : vector<16x16x128xbf16> to vector<256x128xbf16>
    %c6 = arith.constant 6 : index
    %c0_46 = arith.constant 0 : index
    %c0_47 = arith.constant 0 : index
    %46 = vector.load %arg2[%c6, %c0_46, %c0_47] : memref<9x128x128xbf16, #tpu.memory_space<vmem>>, vector<1x128x128xbf16>
    %47 = vector.shape_cast %46 : vector<1x128x128xbf16> to vector<128x128xbf16>
    %cst_48 = arith.constant dense<0.000000e+00> : vector<256x128xf32>
    %48 = tpu.matmul %45, %47, %cst_48 {dimension_numbers = #tpu.dot_dimension_numbers<[1], [0], [0], [1], [0, 0, 1, 1], [], []>} : vector<256x128xbf16>, vector<128x128xbf16>, vector<256x128xf32> -> vector<256x128xf32>
    %49 = arith.addf %42, %48 : vector<256x128xf32>
    %c0_49 = arith.constant 0 : index
    %c2_50 = arith.constant 2 : index
    %c1_51 = arith.constant 1 : index
    %c0_52 = arith.constant 0 : index
    %50 = vector.load %arg1[%c0_49, %c2_50, %c1_51, %c0_52] : memref<1x18x18x128xbf16, #tpu.memory_space<vmem>>, vector<1x16x16x128xbf16>
    %51 = vector.shape_cast %50 : vector<1x16x16x128xbf16> to vector<16x16x128xbf16>
    %52 = vector.shape_cast %51 : vector<16x16x128xbf16> to vector<256x128xbf16>
    %c7 = arith.constant 7 : index
    %c0_53 = arith.constant 0 : index
    %c0_54 = arith.constant 0 : index
    %53 = vector.load %arg2[%c7, %c0_53, %c0_54] : memref<9x128x128xbf16, #tpu.memory_space<vmem>>, vector<1x128x128xbf16>
    %54 = vector.shape_cast %53 : vector<1x128x128xbf16> to vector<128x128xbf16>
    %cst_55 = arith.constant dense<0.000000e+00> : vector<256x128xf32>
    %55 = tpu.matmul %52, %54, %cst_55 {dimension_numbers = #tpu.dot_dimension_numbers<[1], [0], [0], [1], [0, 0, 1, 1], [], []>} : vector<256x128xbf16>, vector<128x128xbf16>, vector<256x128xf32> -> vector<256x128xf32>
    %56 = arith.addf %49, %55 : vector<256x128xf32>
    %c0_56 = arith.constant 0 : index
    %c2_57 = arith.constant 2 : index
    %c2_58 = arith.constant 2 : index
    %c0_59 = arith.constant 0 : index
    %57 = vector.load %arg1[%c0_56, %c2_57, %c2_58, %c0_59] : memref<1x18x18x128xbf16, #tpu.memory_space<vmem>>, vector<1x16x16x128xbf16>
    %58 = vector.shape_cast %57 : vector<1x16x16x128xbf16> to vector<16x16x128xbf16>
    %59 = vector.shape_cast %58 : vector<16x16x128xbf16> to vector<256x128xbf16>
    %c8 = arith.constant 8 : index
    %c0_60 = arith.constant 0 : index
    %c0_61 = arith.constant 0 : index
    %60 = vector.load %arg2[%c8, %c0_60, %c0_61] : memref<9x128x128xbf16, #tpu.memory_space<vmem>>, vector<1x128x128xbf16>
    %61 = vector.shape_cast %60 : vector<1x128x128xbf16> to vector<128x128xbf16>
    %cst_62 = arith.constant dense<0.000000e+00> : vector<256x128xf32>
    %62 = tpu.matmul %59, %61, %cst_62 {dimension_numbers = #tpu.dot_dimension_numbers<[1], [0], [0], [1], [0, 0, 1, 1], [], []>} : vector<256x128xbf16>, vector<128x128xbf16>, vector<256x128xf32> -> vector<256x128xf32>
    %63 = arith.addf %56, %62 : vector<256x128xf32>
    %c0_63 = arith.constant 0 : index
    %c0_64 = arith.constant 0 : index
    %64 = vector.load %arg3[%c0_63, %c0_64] : memref<1x128xf32, #tpu.memory_space<vmem>>, vector<1x128xf32>
    %65 = vector.broadcast %64 : vector<1x128xf32> to vector<256x128xf32>
    %66 = arith.addf %63, %65 : vector<256x128xf32>
    %67 = arith.negf %66 : vector<256x128xf32>
    %68 = math.exp %67 : vector<256x128xf32>
    %cst_65 = arith.constant 1.000000e+00 : f32
    %69 = vector.broadcast %cst_65 : f32 to vector<256x128xf32>
    %70 = arith.addf %69, %68 : vector<256x128xf32>
    %71 = arith.divf %69, %70 : vector<256x128xf32>
    %72 = arith.mulf %66, %71 : vector<256x128xf32>
    %c0_66 = arith.constant 0 : index
    %c0_67 = arith.constant 0 : index
    %c0_68 = arith.constant 0 : index
    %c0_69 = arith.constant 0 : index
    %73 = vector.load %arg4[%c0_66, %c0_67, %c0_68, %c0_69] : memref<1x16x16x128xbf16, #tpu.memory_space<vmem>>, vector<1x16x16x128xbf16>
    %74 = vector.shape_cast %73 : vector<1x16x16x128xbf16> to vector<256x128xbf16>
    %75 = arith.extf %74 : vector<256x128xbf16> to vector<256x128xf32>
    %76 = arith.addf %72, %75 : vector<256x128xf32>
    %77 = vector.shape_cast %76 : vector<256x128xf32> to vector<1x16x16x128xf32>
    %78 = arith.truncf %77 : vector<1x16x16x128xf32> to vector<1x16x16x128xbf16>
    %c0_70 = arith.constant 0 : index
    %c0_71 = arith.constant 0 : index
    %c0_72 = arith.constant 0 : index
    %c0_73 = arith.constant 0 : index
    %79 = vector.load %arg5[%c0_70, %c0_71, %c0_72, %c0_73] : memref<1x16x16x128xbf16, #tpu.memory_space<vmem>>, vector<1x16x16x128xbf16>
    tpu.vector_store %arg5[%c0_70, %c0_71, %c0_72, %c0_73], %78 {strides = array<i32>} : memref<1x16x16x128xbf16, #tpu.memory_space<vmem>>, vector<1x16x16x128xbf16>,
    return
  }
  func.func @transform_0(%arg0: i32) -> (i32, i32, i32, i32) {
    %c0_i32 = arith.constant 0 : i32
    %c0_i32_0 = arith.constant 0 : i32
    %c0_i32_1 = arith.constant 0 : i32
    %c0_i32_2 = arith.constant 0 : i32
    return %arg0, %c0_i32, %c0_i32_0, %c0_i32_1 : i32, i32, i32, i32
  }
  func.func @transform_1(%arg0: i32) -> (i32, i32, i32) {
    %c0_i32 = arith.constant 0 : i32
    %c0_i32_0 = arith.constant 0 : i32
    %c0_i32_1 = arith.constant 0 : i32
    %c0_i32_2 = arith.constant 0 : i32
    return %c0_i32, %c0_i32_0, %c0_i32_1 : i32, i32, i32
  }
  func.func @transform_2(%arg0: i32) -> (i32, i32) {
    %c0_i32 = arith.constant 0 : i32
    %c0_i32_0 = arith.constant 0 : i32
    %c0_i32_1 = arith.constant 0 : i32
    return %c0_i32, %c0_i32_0 : i32, i32
  }
  func.func @transform_3(%arg0: i32) -> (i32, i32, i32, i32) {
    %c0_i32 = arith.constant 0 : i32
    %c0_i32_0 = arith.constant 0 : i32
    %c0_i32_1 = arith.constant 0 : i32
    %c0_i32_2 = arith.constant 0 : i32
    return %arg0, %c0_i32, %c0_i32_0, %c0_i32_1 : i32, i32, i32, i32
  }
  func.func @transform_4(%arg0: i32) -> (i32, i32, i32, i32) {
    %c0_i32 = arith.constant 0 : i32
    %c0_i32_0 = arith.constant 0 : i32
    %c0_i32_1 = arith.constant 0 : i32
    %c0_i32_2 = arith.constant 0 : i32
    return %arg0, %c0_i32, %c0_i32_0, %c0_i32_1 : i32, i32, i32, i32
  }
}

module attributes {stable_mosaic.version = 11 : i64} {
  func.func @_mm_bias_silu_kernel(%arg0: i32, %arg1: memref<256x128xbf16, #tpu.memory_space<vmem>>, %arg2: memref<128x128xbf16, #tpu.memory_space<vmem>>, %arg3: memref<1x128xf32, #tpu.memory_space<vmem>>, %arg4: memref<256x128xbf16, #tpu.memory_space<vmem>>) attributes {dimension_semantics = [#tpu.dimension_semantics<parallel>], iteration_bounds = array<i64: 2>, scalar_prefetch = 0 : i64, scratch_operands = 0 : i64, tpu.core_type = #tpu.core_type<tc>, window_params = [{transform_indices = @transform_0, window_bounds = array<i64: 256, 128>}, {pipeline_mode = #tpu.pipeline_mode<synchronous>, transform_indices = @transform_1, window_bounds = array<i64: 128, 128>}, {pipeline_mode = #tpu.pipeline_mode<synchronous>, transform_indices = @transform_2, window_bounds = array<i64: 1, 128>}, {transform_indices = @transform_3, window_bounds = array<i64: 256, 128>}]} {
    %c0 = arith.constant 0 : index
    %c0_0 = arith.constant 0 : index
    %0 = vector.load %arg1[%c0, %c0_0] : memref<256x128xbf16, #tpu.memory_space<vmem>>, vector<256x128xbf16>
    %c0_1 = arith.constant 0 : index
    %c0_2 = arith.constant 0 : index
    %1 = vector.load %arg2[%c0_1, %c0_2] : memref<128x128xbf16, #tpu.memory_space<vmem>>, vector<128x128xbf16>
    %cst = arith.constant dense<0.000000e+00> : vector<256x128xf32>
    %2 = tpu.matmul %0, %1, %cst {dimension_numbers = #tpu.dot_dimension_numbers<[1], [0], [0], [1], [0, 0, 1, 1], [], []>} : vector<256x128xbf16>, vector<128x128xbf16>, vector<256x128xf32> -> vector<256x128xf32>
    %c0_3 = arith.constant 0 : index
    %c0_4 = arith.constant 0 : index
    %3 = vector.load %arg3[%c0_3, %c0_4] : memref<1x128xf32, #tpu.memory_space<vmem>>, vector<1x128xf32>
    %4 = vector.broadcast %3 : vector<1x128xf32> to vector<256x128xf32>
    %5 = arith.addf %2, %4 : vector<256x128xf32>
    %6 = arith.negf %5 : vector<256x128xf32>
    %7 = math.exp %6 : vector<256x128xf32>
    %cst_5 = arith.constant 1.000000e+00 : f32
    %8 = vector.broadcast %cst_5 : f32 to vector<256x128xf32>
    %9 = arith.addf %8, %7 : vector<256x128xf32>
    %10 = arith.divf %8, %9 : vector<256x128xf32>
    %11 = arith.mulf %5, %10 : vector<256x128xf32>
    %12 = arith.truncf %11 : vector<256x128xf32> to vector<256x128xbf16>
    %c0_6 = arith.constant 0 : index
    %c0_7 = arith.constant 0 : index
    %13 = vector.load %arg4[%c0_6, %c0_7] : memref<256x128xbf16, #tpu.memory_space<vmem>>, vector<256x128xbf16>
    tpu.vector_store %arg4[%c0_6, %c0_7], %12 {strides = array<i32>} : memref<256x128xbf16, #tpu.memory_space<vmem>>, vector<256x128xbf16>,
    return
  }
  func.func @transform_0(%arg0: i32) -> (i32, i32) {
    %c0_i32 = arith.constant 0 : i32
    %c0_i32_0 = arith.constant 0 : i32
    return %arg0, %c0_i32 : i32, i32
  }
  func.func @transform_1(%arg0: i32) -> (i32, i32) {
    %c0_i32 = arith.constant 0 : i32
    %c0_i32_0 = arith.constant 0 : i32
    %c0_i32_1 = arith.constant 0 : i32
    return %c0_i32, %c0_i32_0 : i32, i32
  }
  func.func @transform_2(%arg0: i32) -> (i32, i32) {
    %c0_i32 = arith.constant 0 : i32
    %c0_i32_0 = arith.constant 0 : i32
    %c0_i32_1 = arith.constant 0 : i32
    return %c0_i32, %c0_i32_0 : i32, i32
  }
  func.func @transform_3(%arg0: i32) -> (i32, i32) {
    %c0_i32 = arith.constant 0 : i32
    %c0_i32_0 = arith.constant 0 : i32
    return %arg0, %c0_i32 : i32, i32
  }
}

module attributes {stable_mosaic.version = 11 : i64} {
  func.func @_mm2_bias_silu_kernel(%arg0: i32, %arg1: memref<256x128xbf16, #tpu.memory_space<vmem>>, %arg2: memref<256x128xbf16, #tpu.memory_space<vmem>>, %arg3: memref<128x128xbf16, #tpu.memory_space<vmem>>, %arg4: memref<128x128xbf16, #tpu.memory_space<vmem>>, %arg5: memref<1x128xf32, #tpu.memory_space<vmem>>, %arg6: memref<256x128xbf16, #tpu.memory_space<vmem>>) attributes {dimension_semantics = [#tpu.dimension_semantics<parallel>], iteration_bounds = array<i64: 2>, scalar_prefetch = 0 : i64, scratch_operands = 0 : i64, tpu.core_type = #tpu.core_type<tc>, window_params = [{transform_indices = @transform_0, window_bounds = array<i64: 256, 128>}, {transform_indices = @transform_1, window_bounds = array<i64: 256, 128>}, {pipeline_mode = #tpu.pipeline_mode<synchronous>, transform_indices = @transform_2, window_bounds = array<i64: 128, 128>}, {pipeline_mode = #tpu.pipeline_mode<synchronous>, transform_indices = @transform_3, window_bounds = array<i64: 128, 128>}, {pipeline_mode = #tpu.pipeline_mode<synchronous>, transform_indices = @transform_4, window_bounds = array<i64: 1, 128>}, {transform_indices = @transform_5, window_bounds = array<i64: 256, 128>}]} {
    %c0 = arith.constant 0 : index
    %c0_0 = arith.constant 0 : index
    %0 = vector.load %arg1[%c0, %c0_0] : memref<256x128xbf16, #tpu.memory_space<vmem>>, vector<256x128xbf16>
    %c0_1 = arith.constant 0 : index
    %c0_2 = arith.constant 0 : index
    %1 = vector.load %arg3[%c0_1, %c0_2] : memref<128x128xbf16, #tpu.memory_space<vmem>>, vector<128x128xbf16>
    %cst = arith.constant dense<0.000000e+00> : vector<256x128xf32>
    %2 = tpu.matmul %0, %1, %cst {dimension_numbers = #tpu.dot_dimension_numbers<[1], [0], [0], [1], [0, 0, 1, 1], [], []>} : vector<256x128xbf16>, vector<128x128xbf16>, vector<256x128xf32> -> vector<256x128xf32>
    %c0_3 = arith.constant 0 : index
    %c0_4 = arith.constant 0 : index
    %3 = vector.load %arg2[%c0_3, %c0_4] : memref<256x128xbf16, #tpu.memory_space<vmem>>, vector<256x128xbf16>
    %c0_5 = arith.constant 0 : index
    %c0_6 = arith.constant 0 : index
    %4 = vector.load %arg4[%c0_5, %c0_6] : memref<128x128xbf16, #tpu.memory_space<vmem>>, vector<128x128xbf16>
    %cst_7 = arith.constant dense<0.000000e+00> : vector<256x128xf32>
    %5 = tpu.matmul %3, %4, %cst_7 {dimension_numbers = #tpu.dot_dimension_numbers<[1], [0], [0], [1], [0, 0, 1, 1], [], []>} : vector<256x128xbf16>, vector<128x128xbf16>, vector<256x128xf32> -> vector<256x128xf32>
    %6 = arith.addf %2, %5 : vector<256x128xf32>
    %c0_8 = arith.constant 0 : index
    %c0_9 = arith.constant 0 : index
    %7 = vector.load %arg5[%c0_8, %c0_9] : memref<1x128xf32, #tpu.memory_space<vmem>>, vector<1x128xf32>
    %8 = vector.broadcast %7 : vector<1x128xf32> to vector<256x128xf32>
    %9 = arith.addf %6, %8 : vector<256x128xf32>
    %10 = arith.negf %9 : vector<256x128xf32>
    %11 = math.exp %10 : vector<256x128xf32>
    %cst_10 = arith.constant 1.000000e+00 : f32
    %12 = vector.broadcast %cst_10 : f32 to vector<256x128xf32>
    %13 = arith.addf %12, %11 : vector<256x128xf32>
    %14 = arith.divf %12, %13 : vector<256x128xf32>
    %15 = arith.mulf %9, %14 : vector<256x128xf32>
    %16 = arith.truncf %15 : vector<256x128xf32> to vector<256x128xbf16>
    %c0_11 = arith.constant 0 : index
    %c0_12 = arith.constant 0 : index
    %17 = vector.load %arg6[%c0_11, %c0_12] : memref<256x128xbf16, #tpu.memory_space<vmem>>, vector<256x128xbf16>
    tpu.vector_store %arg6[%c0_11, %c0_12], %16 {strides = array<i32>} : memref<256x128xbf16, #tpu.memory_space<vmem>>, vector<256x128xbf16>,
    return
  }
  func.func @transform_0(%arg0: i32) -> (i32, i32) {
    %c0_i32 = arith.constant 0 : i32
    %c0_i32_0 = arith.constant 0 : i32
    return %arg0, %c0_i32 : i32, i32
  }
  func.func @transform_1(%arg0: i32) -> (i32, i32) {
    %c0_i32 = arith.constant 0 : i32
    %c0_i32_0 = arith.constant 0 : i32
    return %arg0, %c0_i32 : i32, i32
  }
  func.func @transform_2(%arg0: i32) -> (i32, i32) {
    %c0_i32 = arith.constant 0 : i32
    %c0_i32_0 = arith.constant 0 : i32
    %c0_i32_1 = arith.constant 0 : i32
    return %c0_i32, %c0_i32_0 : i32, i32
  }
  func.func @transform_3(%arg0: i32) -> (i32, i32) {
    %c0_i32 = arith.constant 0 : i32
    %c0_i32_0 = arith.constant 0 : i32
    %c0_i32_1 = arith.constant 0 : i32
    return %c0_i32, %c0_i32_0 : i32, i32
  }
  func.func @transform_4(%arg0: i32) -> (i32, i32) {
    %c0_i32 = arith.constant 0 : i32
    %c0_i32_0 = arith.constant 0 : i32
    %c0_i32_1 = arith.constant 0 : i32
    return %c0_i32, %c0_i32_0 : i32, i32
  }
  func.func @transform_5(%arg0: i32) -> (i32, i32) {
    %c0_i32 = arith.constant 0 : i32
    %c0_i32_0 = arith.constant 0 : i32
    return %arg0, %c0_i32 : i32, i32
  }
}

</mosaic_0001>

<llo_original>
// kernel: c3_forward.4
$region0: #{c3_forward.4}
  #allocation0 [shape = 'u32[]', space=smem, size = 0x4, offset = 0x4, fixed_abs, tag = 'smem constant byte address 0x4 - core index']
  #allocation1 [shape = 'u32[144,128]{1,0:T(1,128)}', space=vmem, size = 0x12000, scoped, tag = 'internal scratch']
  %s0 = inlined_call_operand.vmem [shape: bf16[512,128], index: 0, kind: input, shape index: {}]
  %s1 = inlined_call_operand.vmem [shape: bf16[128,128], index: 1, kind: input, shape index: {}]
  %s2 = inlined_call_operand.vmem [shape: f32[1,128], index: 2, kind: input, shape index: {}]
  %s3 = inlined_call_operand.vmem [shape: bf16[128,128], index: 3, kind: input, shape index: {}]
  %s4 = inlined_call_operand.vmem [shape: f32[1,128], index: 4, kind: input, shape index: {}]
  %s5 = inlined_call_operand.vmem [shape: bf16[512,128], index: 5, kind: output, shape index: {0}]
  %s6 = inlined_call_operand.vmem [shape: bf16[512,128], index: 6, kind: output, shape index: {1}]
  %7 = xla_tuple %s5, %s6
  %s8 = sld [smem:[#allocation0]]
  $region61: #{c3_forward.4} parent=0
    _
  %s10 = ssub.s32 1, %s8
  %s11 = scalar_select 0, %s10, %s8
  loop: start=0, step=1, limit=4
  $region2: #{c3_forward.4} parent=0 // loop_pre_header
    _
  $region3: #{c3_forward.4} parent=0 // loop_header
    %s13 = sphi 0, %s17
    %p14 = scmp.ge.s32.totalorder %s13, 4
    %s23 = sphi 0, %s25
    %s26 = sphi 0, %s23
    %s27 = sphi 0, %s26
    %s43 = sphi 0, %s27
    %s47 = sphi 0, %s47
    %s49 = sphi 0, %s47
    %s50 = sphi 0, %s49
    %s64 = sphi 0, %s50
    %s68 = sphi 0, %s68
    %s70 = sphi 0, %s68
    %s71 = sphi 0, %s70
    %s85 = sphi 0, %s71
    %s89 = sphi 0, %s89
    %s91 = sphi 0, %s89
    %s92 = sphi 0, %s91
    %s106 = sphi 0, %s92
    %s110 = sphi 0, %s110
    %s112 = sphi 0, %s110
    %s113 = sphi 0, %s112
    %s127 = sphi 0, %s113
    %s133 = sphi 0, %s135
    %s136 = sphi 0, %s133
    %s137 = sphi 0, %s136
    %s153 = sphi 0, %s137
    %s159 = sphi 0, %s161
    %s162 = sphi 0, %s159
    %s163 = sphi 0, %s162
    %s179 = sphi 0, %s163
  $region4: #{c3_forward.4} parent=0 // loop_header_branch
    %16 = sbr.rel (%p14) target = $region8
  $region5: #{c3_forward.4} parent=0 // loop_body
    %s18 = ssub.s32 %s13, 1
    %s19 = ssub.s32 %s13, 2
    %s20 = sadd.s32 %s13, 1
    %s21 = ssub.s32 %s13, %s20
    %p22 = scmp.eq.s32.totalorder %s21, 0
    %s24 = sadd.s32 %s23, 1
    %s25 = scalar_select %p22, %s23, %s24
    %p28 = pneg %p22
    %p29 = scmp.eq.s32.totalorder %s13, 1
    %p30 = por %p28, %p29
    %p31 = scmp.ne.s32.totalorder %s23, %s26
    %p32 = scmp.eq.s32.totalorder %s13, 0
    %p33 = por %p31, %p32
    %p34 = scmp.ne.s32.totalorder %s23, %s26
    %p35 = scmp.eq.s32.totalorder %s18, 1
    %p36 = por %p34, %p35
    %p37 = scmp.ne.s32.totalorder %s26, %s27
    %p38 = scmp.eq.s32.totalorder %s18, 0
    %p39 = por %p37, %p38
    %p40 = scmp.ne.s32.totalorder %s26, %s27
    %p41 = scmp.eq.s32.totalorder %s19, 1
    %p42 = por %p40, %p41
    %p44 = scmp.ne.s32.totalorder %s27, %s43
    %p45 = scmp.eq.s32.totalorder %s19, 0
    %p46 = por %p44, %p45
    %s48 = sadd.s32 %s47, 1
    %p51 = scmp.eq.s32.totalorder %s13, 1
    %p52 = scmp.ne.s32.totalorder %s47, %s49
    %p53 = scmp.eq.s32.totalorder %s13, 0
    %p54 = por %p52, %p53
    %p55 = scmp.ne.s32.totalorder %s47, %s49
    %p56 = scmp.eq.s32.totalorder %s18, 1
    %p57 = por %p55, %p56
    %p58 = scmp.ne.s32.totalorder %s49, %s50
    %p59 = scmp.eq.s32.totalorder %s18, 0
    %p60 = por %p58, %p59
    %p61 = scmp.ne.s32.totalorder %s49, %s50
    %p62 = scmp.eq.s32.totalorder %s19, 1
    %p63 = por %p61, %p62
    %p65 = scmp.ne.s32.totalorder %s50, %s64
    %p66 = scmp.eq.s32.totalorder %s19, 0
    %p67 = por %p65, %p66
    %s69 = sadd.s32 %s68, 1
    %p72 = scmp.eq.s32.totalorder %s13, 1
    %p73 = scmp.ne.s32.totalorder %s68, %s70
    %p74 = scmp.eq.s32.totalorder %s13, 0
    %p75 = por %p73, %p74
    %p76 = scmp.ne.s32.totalorder %s68, %s70
    %p77 = scmp.eq.s32.totalorder %s18, 1
    %p78 = por %p76, %p77
    %p79 = scmp.ne.s32.totalorder %s70, %s71
    %p80 = scmp.eq.s32.totalorder %s18, 0
    %p81 = por %p79, %p80
    %p82 = scmp.ne.s32.totalorder %s70, %s71
    %p83 = scmp.eq.s32.totalorder %s19, 1
    %p84 = por %p82, %p83
    %p86 = scmp.ne.s32.totalorder %s71, %s85
    %p87 = scmp.eq.s32.totalorder %s19, 0
    %p88 = por %p86, %p87
    %s90 = sadd.s32 %s89, 1
    %p93 = scmp.eq.s32.totalorder %s13, 1
    %p94 = scmp.ne.s32.totalorder %s89, %s91
    %p95 = scmp.eq.s32.totalorder %s13, 0
    %p96 = por %p94, %p95
    %p97 = scmp.ne.s32.totalorder %s89, %s91
    %p98 = scmp.eq.s32.totalorder %s18, 1
    %p99 = por %p97, %p98
    %p100 = scmp.ne.s32.totalorder %s91, %s92
    %p101 = scmp.eq.s32.totalorder %s18, 0
    %p102 = por %p100, %p101
    %p103 = scmp.ne.s32.totalorder %s91, %s92
    %p104 = scmp.eq.s32.totalorder %s19, 1
    %p105 = por %p103, %p104
    %p107 = scmp.ne.s32.totalorder %s92, %s106
    %p108 = scmp.eq.s32.totalorder %s19, 0
    %p109 = por %p107, %p108
    %s111 = sadd.s32 %s110, 1
    %p114 = scmp.eq.s32.totalorder %s13, 1
    %p115 = scmp.ne.s32.totalorder %s110, %s112
    %p116 = scmp.eq.s32.totalorder %s13, 0
    %p117 = por %p115, %p116
    %p118 = scmp.ne.s32.totalorder %s110, %s112
    %p119 = scmp.eq.s32.totalorder %s18, 1
    %p120 = por %p118, %p119
    %p121 = scmp.ne.s32.totalorder %s112, %s113
    %p122 = scmp.eq.s32.totalorder %s18, 0
    %p123 = por %p121, %p122
    %p124 = scmp.ne.s32.totalorder %s112, %s113
    %p125 = scmp.eq.s32.totalorder %s19, 1
    %p126 = por %p124, %p125
    %p128 = scmp.ne.s32.totalorder %s113, %s127
    %p129 = scmp.eq.s32.totalorder %s19, 0
    %p130 = por %p128, %p129
    %s131 = ssub.s32 %s13, %s20
    %p132 = scmp.eq.s32.totalorder %s131, 0
    %s134 = sadd.s32 %s133, 1
    %s135 = scalar_select %p132, %s133, %s134
    %p138 = pneg %p132
    %p139 = scmp.eq.s32.totalorder %s13, 1
    %p140 = por %p138, %p139
    %p141 = scmp.ne.s32.totalorder %s133, %s136
    %p142 = scmp.eq.s32.totalorder %s13, 0
    %p143 = por %p141, %p142
    %p144 = scmp.ne.s32.totalorder %s133, %s136
    %p145 = scmp.eq.s32.totalorder %s18, 1
    %p146 = por %p144, %p145
    %p147 = scmp.ne.s32.totalorder %s136, %s137
    %p148 = scmp.eq.s32.totalorder %s18, 0
    %p149 = por %p147, %p148
    %p150 = scmp.ne.s32.totalorder %s136, %s137
    %p151 = scmp.eq.s32.totalorder %s19, 1
    %p152 = por %p150, %p151
    %p154 = scmp.ne.s32.totalorder %s137, %s153
    %p155 = scmp.eq.s32.totalorder %s19, 0
    %p156 = por %p154, %p155
    %s157 = ssub.s32 %s13, %s20
    %p158 = scmp.eq.s32.totalorder %s157, 0
    %s160 = sadd.s32 %s159, 1
    %s161 = scalar_select %p158, %s159, %s160
    %p164 = pneg %p158
    %p165 = scmp.eq.s32.totalorder %s13, 1
    %p166 = por %p164, %p165
    %p167 = scmp.ne.s32.totalorder %s159, %s162
    %p168 = scmp.eq.s32.totalorder %s13, 0
    %p169 = por %p167, %p168
    %p170 = scmp.ne.s32.totalorder %s159, %s162
    %p171 = scmp.eq.s32.totalorder %s18, 1
    %p172 = por %p170, %p171
    %p173 = scmp.ne.s32.totalorder %s162, %s163
    %p174 = scmp.eq.s32.totalorder %s18, 0
    %p175 = por %p173, %p174
    %p176 = scmp.ne.s32.totalorder %s162, %s163
    %p177 = scmp.eq.s32.totalorder %s19, 1
    %p178 = por %p176, %p177
    %p180 = scmp.ne.s32.totalorder %s163, %s179
    %p181 = scmp.eq.s32.totalorder %s19, 0
    %p182 = por %p180, %p181
    %p183 = scmp.le.s32.totalorder 1, %s13
    %p184 = scmp.lt.s32.totalorder %s13, 3
    %p185 = pnand %p183, %p184
    %p186 = pneg %p185
    // Predicated region
    $region9: #{c3_forward.4} parent=5 // pred_check
      _
    $region10: #{c3_forward.4} parent=5 // pred_check_branch
      %188 = sbr.rel (%p185) target = $region12
    $region11: #{c3_forward.4} parent=5 // pred_region
      %s189 = ssub.s32 %s13, 1
      // Predicated region
      $region13: #{c3_forward.4} parent=11 // pred_check
        %p190 = pneg %p60
      $region14: #{c3_forward.4} parent=11 // pred_check_branch
        %192 = sbr.rel (%p190) target = $region16
      $region15: #{c3_forward.4} parent=11 // pred_region
        _
      $region16: #{c3_forward.4} parent=11 // pred_fallthru
        _
      // Predicated region
      $region17: #{c3_forward.4} parent=11 // pred_check
        %p193 = pneg %p81
      $region18: #{c3_forward.4} parent=11 // pred_check_branch
        %195 = sbr.rel (%p193) target = $region20
      $region19: #{c3_forward.4} parent=11 // pred_region
        _
      $region20: #{c3_forward.4} parent=11 // pred_fallthru
        _
      // Predicated region
      $region21: #{c3_forward.4} parent=11 // pred_check
        %p196 = pneg %p102
      $region22: #{c3_forward.4} parent=11 // pred_check_branch
        %198 = sbr.rel (%p196) target = $region24
      $region23: #{c3_forward.4} parent=11 // pred_region
        _
      $region24: #{c3_forward.4} parent=11 // pred_fallthru
        _
      // Predicated region
      $region25: #{c3_forward.4} parent=11 // pred_check
        %p199 = pneg %p123
      $region26: #{c3_forward.4} parent=11 // pred_check_branch
        %201 = sbr.rel (%p199) target = $region28
      $region27: #{c3_forward.4} parent=11 // pred_region
        _
      $region28: #{c3_forward.4} parent=11 // pred_fallthru
        _
    $region12: #{c3_forward.4} parent=5 // pred_fallthru
      _
    %p202 = scmp.lt.s32.totalorder %s13, 2
    // Predicated region
    $region29: #{c3_forward.4} parent=5 // pred_check
      %p203 = pneg %p202
    $region30: #{c3_forward.4} parent=5 // pred_check_branch
      %205 = sbr.rel (%p203) target = $region32
    $region31: #{c3_forward.4} parent=5 // pred_region
      // Predicated region
      $region33: #{c3_forward.4} parent=31 // pred_check
        %p206 = pneg %p33
      $region34: #{c3_forward.4} parent=31 // pred_check_branch
        %208 = sbr.rel (%p206) target = $region36
      $region35: #{c3_forward.4} parent=31 // pred_region
        %s209 = smul.u32 32, %s13
        %p210 = scmp.lt.s32.totalorder %s209, 63
        %s211 = scalar_select %p210, %s209, 63
        %s212 = smul.addr %s211, 4
        %s213 = scalar_lea.vmem %s0, %s212
        %s214 = smul.u32 32, %s13
      $region36: #{c3_forward.4} parent=31 // pred_fallthru
        _
    $region32: #{c3_forward.4} parent=5 // pred_fallthru
      _
    %p215 = scmp.le.s32.totalorder 1, %s13
    %p216 = scmp.lt.s32.totalorder %s13, 3
    %p217 = pnand %p215, %p216
    %p218 = pneg %p217
    // Predicated region
    $region37: #{c3_forward.4} parent=5 // pred_check
      _
    $region38: #{c3_forward.4} parent=5 // pred_check_branch
      %220 = sbr.rel (%p217) target = $region40
    $region39: #{c3_forward.4} parent=5 // pred_region
      %s221 = ssub.s32 %s13, 1
      %s222 = smul.u32 32, %s18
      %p223 = scmp.lt.s32.totalorder %s222, 63
      %s224 = scalar_select %p223, %s222, 63
      %s225 = smul.addr %s224, 4
      %s226 = scalar_lea.vmem %s0, %s225
      %p227 = pneg %p39
      %p228 = pneg %p36
      %p229 = pneg %p60
      %p230 = pneg %p57
      %p231 = pneg %p81
      %p232 = pneg %p78
      %p233 = pneg %p102
      %p234 = pneg %p99
      %p235 = pneg %p123
      %p236 = pneg %p120
      %p237 = pneg %p149
      %p238 = pneg %p146
      %s239 = smul.u32 32, %s18
      %p240 = scmp.lt.s32.totalorder %s239, 63
      %s241 = scalar_select %p240, %s239, 63
      %s242 = smul.addr %s241, 4
      %s243 = scalar_lea.vmem %s5, %s242
      %p244 = pneg %p175
      %p245 = pneg %p172
      %s246 = smul.u32 32, %s18
      %p247 = scmp.lt.s32.totalorder %s246, 63
      %s248 = scalar_select %p247, %s246, 63
      %s249 = smul.addr %s248, 4
      %s250 = scalar_lea.vmem %s6, %s249
      %s251 = smul.u32 32, %s18
      %p252 = scmp.lt.s32.totalorder %s251, 63
      %s253 = scalar_select %p252, %s251, 63
      %s254 = smul.addr %s253, 4
      %s255 = scalar_lea.vmem %s0, %s254
      %s256 = smul.u32 32, %s18
      %s257 = smul.u32 32, %s18
      %p258 = scmp.lt.s32.totalorder %s257, 63
      %s259 = scalar_select %p258, %s257, 63
      %s260 = smul.addr %s259, 4
      %s261 = scalar_lea.vmem %s5, %s260
      %s262 = smul.u32 32, %s18
      %s263 = smul.u32 32, %s18
      %p264 = scmp.lt.s32.totalorder %s263, 63
      %s265 = scalar_select %p264, %s263, 63
      %s266 = smul.addr %s265, 4
      %s267 = scalar_lea.vmem %s6, %s266
      %s268 = smul.u32 32, %s18
      %v270 = vld [vmem:[%s255] sm:$0xf]
      %v271 = vld [vmem:[%s255 + $0x4] sm:$0xf]
      %v272 = vld [vmem:[%s255 + $0x8] sm:$0xf]
      %v273 = vld [vmem:[%s255 + $0xc] sm:$0xf]
      %v274 = vld [vmem:[%s255 + $0x10] sm:$0xf]
      %v275 = vld [vmem:[%s255 + $0x14] sm:$0xf]
      %v276 = vld [vmem:[%s255 + $0x18] sm:$0xf]
      %v277 = vld [vmem:[%s255 + $0x1c] sm:$0xf]
      %v278 = vld [vmem:[%s255 + $0x20] sm:$0xf]
      %v279 = vld [vmem:[%s255 + $0x24] sm:$0xf]
      %v280 = vld [vmem:[%s255 + $0x28] sm:$0xf]
      %v281 = vld [vmem:[%s255 + $0x2c] sm:$0xf]
      %v282 = vld [vmem:[%s255 + $0x30] sm:$0xf]
      %v283 = vld [vmem:[%s255 + $0x34] sm:$0xf]
      %v284 = vld [vmem:[%s255 + $0x38] sm:$0xf]
      %v285 = vld [vmem:[%s255 + $0x3c] sm:$0xf]
      %v286 = vld [vmem:[%s255 + $0x40] sm:$0xf]
      %v287 = vld [vmem:[%s255 + $0x44] sm:$0xf]
      %v288 = vld [vmem:[%s255 + $0x48] sm:$0xf]
      %v289 = vld [vmem:[%s255 + $0x4c] sm:$0xf]
      %v290 = vld [vmem:[%s255 + $0x50] sm:$0xf]
      %v291 = vld [vmem:[%s255 + $0x54] sm:$0xf]
      %v292 = vld [vmem:[%s255 + $0x58] sm:$0xf]
      %v293 = vld [vmem:[%s255 + $0x5c] sm:$0xf]
      %v294 = vld [vmem:[%s255 + $0x60] sm:$0xf]
      %v295 = vld [vmem:[%s255 + $0x64] sm:$0xf]
      %v296 = vld [vmem:[%s255 + $0x68] sm:$0xf]
      %v297 = vld [vmem:[%s255 + $0x6c] sm:$0xf]
      %v298 = vld [vmem:[%s255 + $0x70] sm:$0xf]
      %v299 = vld [vmem:[%s255 + $0x74] sm:$0xf]
      %v300 = vld [vmem:[%s255 + $0x78] sm:$0xf]
      %v301 = vld [vmem:[%s255 + $0x7c] sm:$0xf]
      %v302 = vld [vmem:[%s1] sm:$0xf]
      %v303 = vld [vmem:[%s1 + $0x4] sm:$0xf]
      %v304 = vld [vmem:[%s1 + $0x8] sm:$0xf]
      %v305 = vld [vmem:[%s1 + $0xc] sm:$0xf]
      %v306 = vld [vmem:[%s1 + $0x10] sm:$0xf]
      %v307 = vld [vmem:[%s1 + $0x14] sm:$0xf]
      %v308 = vld [vmem:[%s1 + $0x18] sm:$0xf]
      %v309 = vld [vmem:[%s1 + $0x1c] sm:$0xf]
      %v310 = vld [vmem:[%s1 + $0x20] sm:$0xf]
      %v311 = vld [vmem:[%s1 + $0x24] sm:$0xf]
      %v312 = vld [vmem:[%s1 + $0x28] sm:$0xf]
      %v313 = vld [vmem:[%s1 + $0x2c] sm:$0xf]
      %v314 = vld [vmem:[%s1 + $0x30] sm:$0xf]
      %v315 = vld [vmem:[%s1 + $0x34] sm:$0xf]
      %v316 = vld [vmem:[%s1 + $0x38] sm:$0xf]
      %v317 = vld [vmem:[%s1 + $0x3c] sm:$0xf]
      %v318 = vld [vmem:[%s2] sm:$0x1]
      %v320 = vlaneseq
      %v321 = vshrl.u32 %v320, 7
      %v322 = vsub.s32 0, %v321
      %v323 = vrot.slane %v318, %v322
      %v357 = vunpack.c.l.b16 %v270
      %v358 = vunpack.c.l.b16 %v271
      %v359 = vunpack.c.l.b16 %v272
      %v360 = vunpack.c.l.b16 %v273
      %v361 = vunpack.c.l.b16 %v274
      %v362 = vunpack.c.l.b16 %v275
      %v363 = vunpack.c.l.b16 %v276
      %v364 = vunpack.c.l.b16 %v277
      %v365 = vunpack.c.l.b16 %v278
      %v366 = vunpack.c.l.b16 %v279
      %v367 = vunpack.c.l.b16 %v280
      %v368 = vunpack.c.l.b16 %v281
      %v369 = vunpack.c.l.b16 %v282
      %v370 = vunpack.c.l.b16 %v283
      %v371 = vunpack.c.l.b16 %v284
      %v372 = vunpack.c.l.b16 %v285
      %v373 = vunpack.c.l.b16 %v286
      %v374 = vunpack.c.l.b16 %v287
      %v375 = vunpack.c.l.b16 %v288
      %v376 = vunpack.c.l.b16 %v289
      %v377 = vunpack.c.l.b16 %v290
      %v378 = vunpack.c.l.b16 %v291
      %v379 = vunpack.c.l.b16 %v292
      %v380 = vunpack.c.l.b16 %v293
      %v381 = vunpack.c.l.b16 %v294
      %v382 = vunpack.c.l.b16 %v295
      %v383 = vunpack.c.l.b16 %v296
      %v384 = vunpack.c.l.b16 %v297
      %v385 = vunpack.c.l.b16 %v298
      %v386 = vunpack.c.l.b16 %v299
      %v387 = vunpack.c.l.b16 %v300
      %v388 = vunpack.c.l.b16 %v301
      %v389 = vpack.c.b16 %v358, %v357
      %v390 = vpack.c.b16 %v360, %v359
      %v391 = vpack.c.b16 %v362, %v361
      %v392 = vpack.c.b16 %v364, %v363
      %v393 = vpack.c.b16 %v366, %v365
      %v394 = vpack.c.b16 %v368, %v367
      %v395 = vpack.c.b16 %v370, %v369
      %v396 = vpack.c.b16 %v372, %v371
      %v397 = vpack.c.b16 %v374, %v373
      %v398 = vpack.c.b16 %v376, %v375
      %v399 = vpack.c.b16 %v378, %v377
      %v400 = vpack.c.b16 %v380, %v379
      %v401 = vpack.c.b16 %v382, %v381
      %v402 = vpack.c.b16 %v384, %v383
      %v403 = vpack.c.b16 %v386, %v385
      %v404 = vpack.c.b16 %v388, %v387
      %v437 = vunpack.c.l.b16 %v302
      %v438 = vunpack.c.l.b16 %v303
      %v439 = vunpack.c.l.b16 %v304
      %v440 = vunpack.c.l.b16 %v305
      %v441 = vunpack.c.l.b16 %v306
      %v442 = vunpack.c.l.b16 %v307
      %v443 = vunpack.c.l.b16 %v308
      %v444 = vunpack.c.l.b16 %v309
      %v445 = vunpack.c.l.b16 %v310
      %v446 = vunpack.c.l.b16 %v311
      %v447 = vunpack.c.l.b16 %v312
      %v448 = vunpack.c.l.b16 %v313
      %v449 = vunpack.c.l.b16 %v314
      %v450 = vunpack.c.l.b16 %v315
      %v451 = vunpack.c.l.b16 %v316
      %v452 = vunpack.c.l.b16 %v317
      %v453 = vpack.c.b16 %v438, %v437
      %v454 = vpack.c.b16 %v440, %v439
      %v455 = vpack.c.b16 %v442, %v441
      %v456 = vpack.c.b16 %v444, %v443
      %v457 = vpack.c.b16 %v446, %v445
      %v458 = vpack.c.b16 %v448, %v447
      %v459 = vpack.c.b16 %v450, %v449
      %v460 = vpack.c.b16 %v452, %v451
      %469 = vmatprep.subr.bf16.mxu0 0
      %470 = vmatpush1.bf16.msra.mxu0 %v453
      %471 = vmatprep.subr.bf16.mxu0 0
      %472 = vmatpush1.bf16.msra.mxu0 %v454
      %473 = vmatprep.subr.bf16.mxu0 0
      %474 = vmatpush1.bf16.msra.mxu0 %v455
      %475 = vmatprep.subr.bf16.mxu0 0
      %476 = vmatpush1.bf16.msra.mxu0 %v456
      %477 = vmatprep.subr.bf16.mxu0 0
      %478 = vmatpush1.bf16.msra.mxu0 %v457
      %479 = vmatprep.subr.bf16.mxu0 0
      %480 = vmatpush1.bf16.msra.mxu0 %v458
      %481 = vmatprep.subr.bf16.mxu0 0
      %482 = vmatpush1.bf16.msra.mxu0 %v459
      %483 = vmatprep.subr.bf16.mxu0 0
      %484 = vmatpush1.bf16.msra.mxu0 %v460
      %485 = vmatprep.subr.bf16.mxu0 0
      %486 = vmatpush1.bf16.msra.mxu0 0
      %487 = vmatprep.subr.bf16.mxu0 0
      %488 = vmatpush1.bf16.msra.mxu0 0
      %489 = vmatprep.subr.bf16.mxu0 0
      %490 = vmatpush1.bf16.msra.mxu0 0
      %491 = vmatprep.subr.bf16.mxu0 0
      %492 = vmatpush1.bf16.msra.mxu0 0
      %493 = vmatprep.subr.bf16.mxu0 0
      %494 = vmatpush1.bf16.msra.mxu0 0
      %495 = vmatprep.subr.bf16.mxu0 0
      %496 = vmatpush1.bf16.msra.mxu0 0
      %497 = vmatprep.subr.bf16.mxu0 0
      %498 = vmatpush1.bf16.msra.mxu0 0
      %499 = vmatprep.subr.bf16.mxu0 0
      %500 = vmatpush1.bf16.msra.mxu0 0
      %501 = vmatprep.mubr.bf16.mxu0 0
      %502 = vmatmul.mubr.bf16.gmra.mrb[0].mxu0 %v389
      %v503 = vpop.f32.mrb[0].mxu0
      %v504 = vadd.f32 %v323, %v503
      %v505 = vpop.f32.mrb[0].mxu0
      %v506 = vpop.f32.mrb[0].mxu0
      %v507 = vadd.f32 %v323, %v506
      %v508 = vpop.f32.mrb[0].mxu0
      %509 = vmatprep.mubr.bf16.mxu0 0
      %510 = vmatmul.mubr.bf16.gmra.mrb[0].mxu0 %v390
      %v511 = vpop.f32.mrb[0].mxu0
      %v512 = vadd.f32 %v323, %v511
      %v513 = vpop.f32.mrb[0].mxu0
      %v514 = vpop.f32.mrb[0].mxu0
      %v515 = vadd.f32 %v323, %v514
      %v516 = vpop.f32.mrb[0].mxu0
      %517 = vmatprep.mubr.bf16.mxu0 0
      %518 = vmatmul.mubr.bf16.gmra.mrb[0].mxu0 %v391
      %v519 = vpop.f32.mrb[0].mxu0
      %v520 = vadd.f32 %v323, %v519
      %v521 = vpop.f32.mrb[0].mxu0
      %v522 = vpop.f32.mrb[0].mxu0
      %v523 = vadd.f32 %v323, %v522
      %v524 = vpop.f32.mrb[0].mxu0
      %525 = vmatprep.mubr.bf16.mxu0 0
      %526 = vmatmul.mubr.bf16.gmra.mrb[0].mxu0 %v392
      %v527 = vpop.f32.mrb[0].mxu0
      %v528 = vadd.f32 %v323, %v527
      %v529 = vpop.f32.mrb[0].mxu0
      %v530 = vpop.f32.mrb[0].mxu0
      %v531 = vadd.f32 %v323, %v530
      %v532 = vpop.f32.mrb[0].mxu0
      %533 = vmatprep.mubr.bf16.mxu0 0
      %534 = vmatmul.mubr.bf16.gmra.mrb[0].mxu0 %v393
      %v535 = vpop.f32.mrb[0].mxu0
      %v536 = vadd.f32 %v323, %v535
      %v537 = vpop.f32.mrb[0].mxu0
      %v538 = vpop.f32.mrb[0].mxu0
      %v539 = vadd.f32 %v323, %v538
      %v540 = vpop.f32.mrb[0].mxu0
      %541 = vmatprep.mubr.bf16.mxu0 0
      %542 = vmatmul.mubr.bf16.gmra.mrb[0].mxu0 %v394
      %v543 = vpop.f32.mrb[0].mxu0
      %v544 = vadd.f32 %v323, %v543
      %v545 = vpop.f32.mrb[0].mxu0
      %v546 = vpop.f32.mrb[0].mxu0
      %v547 = vadd.f32 %v323, %v546
      %v548 = vpop.f32.mrb[0].mxu0
      %549 = vmatprep.mubr.bf16.mxu0 0
      %550 = vmatmul.mubr.bf16.gmra.mrb[0].mxu0 %v395
      %v551 = vpop.f32.mrb[0].mxu0
      %v552 = vadd.f32 %v323, %v551
      %v553 = vpop.f32.mrb[0].mxu0
      %v554 = vpop.f32.mrb[0].mxu0
      %v555 = vadd.f32 %v323, %v554
      %v556 = vpop.f32.mrb[0].mxu0
      %557 = vmatprep.mubr.bf16.mxu0 0
      %558 = vmatmul.mubr.bf16.gmra.mrb[0].mxu0 %v396
      %v559 = vpop.f32.mrb[0].mxu0
      %v560 = vadd.f32 %v323, %v559
      %v561 = vpop.f32.mrb[0].mxu0
      %v562 = vpop.f32.mrb[0].mxu0
      %v563 = vadd.f32 %v323, %v562
      %v564 = vpop.f32.mrb[0].mxu0
      %565 = vmatprep.mubr.bf16.mxu0 0
      %566 = vmatmul.mubr.bf16.gmra.mrb[0].mxu0 %v397
      %v567 = vpop.f32.mrb[0].mxu0
      %v568 = vadd.f32 %v323, %v567
      %v569 = vpop.f32.mrb[0].mxu0
      %v570 = vpop.f32.mrb[0].mxu0
      %v571 = vadd.f32 %v323, %v570
      %v572 = vpop.f32.mrb[0].mxu0
      %573 = vmatprep.mubr.bf16.mxu0 0
      %574 = vmatmul.mubr.bf16.gmra.mrb[0].mxu0 %v398
      %v575 = vpop.f32.mrb[0].mxu0
      %v576 = vadd.f32 %v323, %v575
      %v577 = vpop.f32.mrb[0].mxu0
      %v578 = vpop.f32.mrb[0].mxu0
      %v579 = vadd.f32 %v323, %v578
      %v580 = vpop.f32.mrb[0].mxu0
      %581 = vmatprep.mubr.bf16.mxu0 0
      %582 = vmatmul.mubr.bf16.gmra.mrb[0].mxu0 %v399
      %v583 = vpop.f32.mrb[0].mxu0
      %v584 = vadd.f32 %v323, %v583
      %v585 = vpop.f32.mrb[0].mxu0
      %v586 = vpop.f32.mrb[0].mxu0
      %v587 = vadd.f32 %v323, %v586
      %v588 = vpop.f32.mrb[0].mxu0
      %589 = vmatprep.mubr.bf16.mxu0 0
      %590 = vmatmul.mubr.bf16.gmra.mrb[0].mxu0 %v400
      %v591 = vpop.f32.mrb[0].mxu0
      %v592 = vadd.f32 %v323, %v591
      %v593 = vpop.f32.mrb[0].mxu0
      %v594 = vpop.f32.mrb[0].mxu0
      %v595 = vadd.f32 %v323, %v594
      %v596 = vpop.f32.mrb[0].mxu0
      %597 = vmatprep.mubr.bf16.mxu0 0
      %598 = vmatmul.mubr.bf16.gmra.mrb[0].mxu0 %v401
      %v599 = vpop.f32.mrb[0].mxu0
      %v600 = vadd.f32 %v323, %v599
      %v601 = vpop.f32.mrb[0].mxu0
      %v602 = vpop.f32.mrb[0].mxu0
      %v603 = vadd.f32 %v323, %v602
      %v604 = vpop.f32.mrb[0].mxu0
      %605 = vmatprep.mubr.bf16.mxu0 0
      %606 = vmatmul.mubr.bf16.gmra.mrb[0].mxu0 %v402
      %v607 = vpop.f32.mrb[0].mxu0
      %v608 = vadd.f32 %v323, %v607
      %v609 = vpop.f32.mrb[0].mxu0
      %v610 = vpop.f32.mrb[0].mxu0
      %v611 = vadd.f32 %v323, %v610
      %v612 = vpop.f32.mrb[0].mxu0
      %613 = vmatprep.mubr.bf16.mxu0 0
      %614 = vmatmul.mubr.bf16.gmra.mrb[0].mxu0 %v403
      %v615 = vpop.f32.mrb[0].mxu0
      %v616 = vadd.f32 %v323, %v615
      %v617 = vpop.f32.mrb[0].mxu0
      %v618 = vpop.f32.mrb[0].mxu0
      %v619 = vadd.f32 %v323, %v618
      %v620 = vpop.f32.mrb[0].mxu0
      %621 = vmatprep.mubr.bf16.mxu0 0
      %622 = vmatmul.mubr.bf16.gmra.mrb[0].mxu0 %v404
      %v623 = vpop.f32.mrb[0].mxu0
      %v624 = vadd.f32 %v323, %v623
      %v625 = vpop.f32.mrb[0].mxu0
      %v626 = vpop.f32.mrb[0].mxu0
      %v627 = vadd.f32 %v323, %v626
      %v628 = vpop.f32.mrb[0].mxu0
      %629 = vdwg.mxu0
      %v630 = vxor.u32 %v504, 2147483648
      %v631 = vxor.u32 %v507, 2147483648
      %v632 = vxor.u32 %v512, 2147483648
      %v633 = vxor.u32 %v515, 2147483648
      %v634 = vxor.u32 %v520, 2147483648
      %v635 = vxor.u32 %v523, 2147483648
      %v636 = vxor.u32 %v528, 2147483648
      %v637 = vxor.u32 %v531, 2147483648
      %v638 = vxor.u32 %v536, 2147483648
      %v639 = vxor.u32 %v539, 2147483648
      %v640 = vxor.u32 %v544, 2147483648
      %v641 = vxor.u32 %v547, 2147483648
      %v642 = vxor.u32 %v552, 2147483648
      %v643 = vxor.u32 %v555, 2147483648
      %v644 = vxor.u32 %v560, 2147483648
      %v645 = vxor.u32 %v563, 2147483648
      %v646 = vxor.u32 %v568, 2147483648
      %v647 = vxor.u32 %v571, 2147483648
      %v648 = vxor.u32 %v576, 2147483648
      %v649 = vxor.u32 %v579, 2147483648
      %v650 = vxor.u32 %v584, 2147483648
      %v651 = vxor.u32 %v587, 2147483648
      %v652 = vxor.u32 %v592, 2147483648
      %v653 = vxor.u32 %v595, 2147483648
      %v654 = vxor.u32 %v600, 2147483648
      %v655 = vxor.u32 %v603, 2147483648
      %v656 = vxor.u32 %v608, 2147483648
      %v657 = vxor.u32 %v611, 2147483648
      %v658 = vxor.u32 %v616, 2147483648
      %v659 = vxor.u32 %v619, 2147483648
      %v660 = vxor.u32 %v624, 2147483648
      %v661 = vxor.u32 %v627, 2147483648
      %v662 = vmul.f32 %v630, 1.442695
      %v663 = vpow.pop %v662
      %v664 = vmul.f32 %v631, 1.442695
      %v665 = vpow.pop %v664
      %v666 = vmul.f32 %v632, 1.442695
      %v667 = vpow.pop %v666
      %v668 = vmul.f32 %v633, 1.442695
      %v669 = vpow.pop %v668
      %v670 = vmul.f32 %v634, 1.442695
      %v671 = vpow.pop %v670
      %v672 = vmul.f32 %v635, 1.442695
      %v673 = vpow.pop %v672
      %v674 = vmul.f32 %v636, 1.442695
      %v675 = vpow.pop %v674
      %v676 = vmul.f32 %v637, 1.442695
      %v677 = vpow.pop %v676
      %v678 = vmul.f32 %v638, 1.442695
      %v679 = vpow.pop %v678
      %v680 = vmul.f32 %v639, 1.442695
      %v681 = vpow.pop %v680
      %v682 = vmul.f32 %v640, 1.442695
      %v683 = vpow.pop %v682
      %v684 = vmul.f32 %v641, 1.442695
      %v685 = vpow.pop %v684
      %v686 = vmul.f32 %v642, 1.442695
      %v687 = vpow.pop %v686
      %v688 = vmul.f32 %v643, 1.442695
      %v689 = vpow.pop %v688
      %v690 = vmul.f32 %v644, 1.442695
      %v691 = vpow.pop %v690
      %v692 = vmul.f32 %v645, 1.442695
      %v693 = vpow.pop %v692
      %v694 = vmul.f32 %v646, 1.442695
      %v695 = vpow.pop %v694
      %v696 = vmul.f32 %v647, 1.442695
      %v697 = vpow.pop %v696
      %v698 = vmul.f32 %v648, 1.442695
      %v699 = vpow.pop %v698
      %v700 = vmul.f32 %v649, 1.442695
      %v701 = vpow.pop %v700
      %v702 = vmul.f32 %v650, 1.442695
      %v703 = vpow.pop %v702
      %v704 = vmul.f32 %v651, 1.442695
      %v705 = vpow.pop %v704
      %v706 = vmul.f32 %v652, 1.442695
      %v707 = vpow.pop %v706
      %v708 = vmul.f32 %v653, 1.442695
      %v709 = vpow.pop %v708
      %v710 = vmul.f32 %v654, 1.442695
      %v711 = vpow.pop %v710
      %v712 = vmul.f32 %v655, 1.442695
      %v713 = vpow.pop %v712
      %v714 = vmul.f32 %v656, 1.442695
      %v715 = vpow.pop %v714
      %v716 = vmul.f32 %v657, 1.442695
      %v717 = vpow.pop %v716
      %v718 = vmul.f32 %v658, 1.442695
      %v719 = vpow.pop %v718
      %v720 = vmul.f32 %v659, 1.442695
      %v721 = vpow.pop %v720
      %v722 = vmul.f32 %v660, 1.442695
      %v723 = vpow.pop %v722
      %v724 = vmul.f32 %v661, 1.442695
      %v725 = vpow.pop %v724
      %v726 = vadd.f32 %v663, 1.0
      %v727 = vadd.f32 %v665, 1.0
      %v728 = vadd.f32 %v667, 1.0
      %v729 = vadd.f32 %v669, 1.0
      %v730 = vadd.f32 %v671, 1.0
      %v731 = vadd.f32 %v673, 1.0
      %v732 = vadd.f32 %v675, 1.0
      %v733 = vadd.f32 %v677, 1.0
      %v734 = vadd.f32 %v679, 1.0
      %v735 = vadd.f32 %v681, 1.0
      %v736 = vadd.f32 %v683, 1.0
      %v737 = vadd.f32 %v685, 1.0
      %v738 = vadd.f32 %v687, 1.0
      %v739 = vadd.f32 %v689, 1.0
      %v740 = vadd.f32 %v691, 1.0
      %v741 = vadd.f32 %v693, 1.0
      %v742 = vadd.f32 %v695, 1.0
      %v743 = vadd.f32 %v697, 1.0
      %v744 = vadd.f32 %v699, 1.0
      %v745 = vadd.f32 %v701, 1.0
      %v746 = vadd.f32 %v703, 1.0
      %v747 = vadd.f32 %v705, 1.0
      %v748 = vadd.f32 %v707, 1.0
      %v749 = vadd.f32 %v709, 1.0
      %v750 = vadd.f32 %v711, 1.0
      %v751 = vadd.f32 %v713, 1.0
      %v752 = vadd.f32 %v715, 1.0
      %v753 = vadd.f32 %v717, 1.0
      %v754 = vadd.f32 %v719, 1.0
      %v755 = vadd.f32 %v721, 1.0
      %v756 = vadd.f32 %v723, 1.0
      %v757 = vadd.f32 %v725, 1.0
      %v758 = vrcp.pop %v726
      %v759 = vmul.f32 1.0, %v758
      %v760 = vrcp.pop %v727
      %v761 = vmul.f32 1.0, %v760
      %v762 = vrcp.pop %v728
      %v763 = vmul.f32 1.0, %v762
      %v764 = vrcp.pop %v729
      %v765 = vmul.f32 1.0, %v764
      %v766 = vrcp.pop %v730
      %v767 = vmul.f32 1.0, %v766
      %v768 = vrcp.pop %v731
      %v769 = vmul.f32 1.0, %v768
      %v770 = vrcp.pop %v732
      %v771 = vmul.f32 1.0, %v770
      %v772 = vrcp.pop %v733
      %v773 = vmul.f32 1.0, %v772
      %v774 = vrcp.pop %v734
      %v775 = vmul.f32 1.0, %v774
      %v776 = vrcp.pop %v735
      %v777 = vmul.f32 1.0, %v776
      %v778 = vrcp.pop %v736
      %v779 = vmul.f32 1.0, %v778
      %v780 = vrcp.pop %v737
      %v781 = vmul.f32 1.0, %v780
      %v782 = vrcp.pop %v738
      %v783 = vmul.f32 1.0, %v782
      %v784 = vrcp.pop %v739
      %v785 = vmul.f32 1.0, %v784
      %v786 = vrcp.pop %v740
      %v787 = vmul.f32 1.0, %v786
      %v788 = vrcp.pop %v741
      %v789 = vmul.f32 1.0, %v788
      %v790 = vrcp.pop %v742
      %v791 = vmul.f32 1.0, %v790
      %v792 = vrcp.pop %v743
      %v793 = vmul.f32 1.0, %v792
      %v794 = vrcp.pop %v744
      %v795 = vmul.f32 1.0, %v794
      %v796 = vrcp.pop %v745
      %v797 = vmul.f32 1.0, %v796
      %v798 = vrcp.pop %v746
      %v799 = vmul.f32 1.0, %v798
      %v800 = vrcp.pop %v747
      %v801 = vmul.f32 1.0, %v800
      %v802 = vrcp.pop %v748
      %v803 = vmul.f32 1.0, %v802
      %v804 = vrcp.pop %v749
      %v805 = vmul.f32 1.0, %v804
      %v806 = vrcp.pop %v750
      %v807 = vmul.f32 1.0, %v806
      %v808 = vrcp.pop %v751
      %v809 = vmul.f32 1.0, %v808
      %v810 = vrcp.pop %v752
      %v811 = vmul.f32 1.0, %v810
      %v812 = vrcp.pop %v753
      %v813 = vmul.f32 1.0, %v812
      %v814 = vrcp.pop %v754
      %v815 = vmul.f32 1.0, %v814
      %v816 = vrcp.pop %v755
      %v817 = vmul.f32 1.0, %v816
      %v818 = vrcp.pop %v756
      %v819 = vmul.f32 1.0, %v818
      %v820 = vrcp.pop %v757
      %v821 = vmul.f32 1.0, %v820
      %v822 = vmul.f32 %v504, %v759
      %v823 = vmul.f32 %v507, %v761
      %v824 = vmul.f32 %v512, %v763
      %v825 = vmul.f32 %v515, %v765
      %v826 = vmul.f32 %v520, %v767
      %v827 = vmul.f32 %v523, %v769
      %v828 = vmul.f32 %v528, %v771
      %v829 = vmul.f32 %v531, %v773
      %v830 = vmul.f32 %v536, %v775
      %v831 = vmul.f32 %v539, %v777
      %v832 = vmul.f32 %v544, %v779
      %v833 = vmul.f32 %v547, %v781
      %v834 = vmul.f32 %v552, %v783
      %v835 = vmul.f32 %v555, %v785
      %v836 = vmul.f32 %v560, %v787
      %v837 = vmul.f32 %v563, %v789
      %v838 = vmul.f32 %v568, %v791
      %v839 = vmul.f32 %v571, %v793
      %v840 = vmul.f32 %v576, %v795
      %v841 = vmul.f32 %v579, %v797
      %v842 = vmul.f32 %v584, %v799
      %v843 = vmul.f32 %v587, %v801
      %v844 = vmul.f32 %v592, %v803
      %v845 = vmul.f32 %v595, %v805
      %v846 = vmul.f32 %v600, %v807
      %v847 = vmul.f32 %v603, %v809
      %v848 = vmul.f32 %v608, %v811
      %v849 = vmul.f32 %v611, %v813
      %v850 = vmul.f32 %v616, %v815
      %v851 = vmul.f32 %v619, %v817
      %v852 = vmul.f32 %v624, %v819
      %v853 = vmul.f32 %v627, %v821
      %v854 = vpack.c.bf16 %v823, %v822
      %v855 = vpack.c.bf16 %v825, %v824
      %v856 = vpack.c.bf16 %v827, %v826
      %v857 = vpack.c.bf16 %v829, %v828
      %v858 = vpack.c.bf16 %v831, %v830
      %v859 = vpack.c.bf16 %v833, %v832
      %v860 = vpack.c.bf16 %v835, %v834
      %v861 = vpack.c.bf16 %v837, %v836
      %v862 = vpack.c.bf16 %v839, %v838
      %v863 = vpack.c.bf16 %v841, %v840
      %v864 = vpack.c.bf16 %v843, %v842
      %v865 = vpack.c.bf16 %v845, %v844
      %v866 = vpack.c.bf16 %v847, %v846
      %v867 = vpack.c.bf16 %v849, %v848
      %v868 = vpack.c.bf16 %v851, %v850
      %v869 = vpack.c.bf16 %v853, %v852
      %v886 = vunpack.c.l.b16 %v854
      %v887 = vunpack.c.h.b16 %v854
      %v888 = vunpack.c.l.b16 %v855
      %v889 = vunpack.c.h.b16 %v855
      %v890 = vunpack.c.l.b16 %v856
      %v891 = vunpack.c.h.b16 %v856
      %v892 = vunpack.c.l.b16 %v857
      %v893 = vunpack.c.h.b16 %v857
      %v894 = vunpack.c.l.b16 %v858
      %v895 = vunpack.c.h.b16 %v858
      %v896 = vunpack.c.l.b16 %v859
      %v897 = vunpack.c.h.b16 %v859
      %v898 = vunpack.c.l.b16 %v860
      %v899 = vunpack.c.h.b16 %v860
      %v900 = vunpack.c.l.b16 %v861
      %v901 = vunpack.c.h.b16 %v861
      %v902 = vunpack.c.l.b16 %v862
      %v903 = vunpack.c.h.b16 %v862
      %v904 = vunpack.c.l.b16 %v863
      %v905 = vunpack.c.h.b16 %v863
      %v906 = vunpack.c.l.b16 %v864
      %v907 = vunpack.c.h.b16 %v864
      %v908 = vunpack.c.l.b16 %v865
      %v909 = vunpack.c.h.b16 %v865
      %v910 = vunpack.c.l.b16 %v866
      %v911 = vunpack.c.h.b16 %v866
      %v912 = vunpack.c.l.b16 %v867
      %v913 = vunpack.c.h.b16 %v867
      %v914 = vunpack.c.l.b16 %v868
      %v915 = vunpack.c.h.b16 %v868
      %v916 = vunpack.c.l.b16 %v869
      %v917 = vunpack.c.h.b16 %v869
      %v918 = vpack.c.b16 %v886, %v886
      %v919 = vpack.c.b16 %v887, %v887
      %v920 = vpack.c.b16 %v888, %v888
      %v921 = vpack.c.b16 %v889, %v889
      %v922 = vpack.c.b16 %v890, %v890
      %v923 = vpack.c.b16 %v891, %v891
      %v924 = vpack.c.b16 %v892, %v892
      %v925 = vpack.c.b16 %v893, %v893
      %v926 = vpack.c.b16 %v894, %v894
      %v927 = vpack.c.b16 %v895, %v895
      %v928 = vpack.c.b16 %v896, %v896
      %v929 = vpack.c.b16 %v897, %v897
      %v930 = vpack.c.b16 %v898, %v898
      %v931 = vpack.c.b16 %v899, %v899
      %v932 = vpack.c.b16 %v900, %v900
      %v933 = vpack.c.b16 %v901, %v901
      %v934 = vpack.c.b16 %v902, %v902
      %v935 = vpack.c.b16 %v903, %v903
      %v936 = vpack.c.b16 %v904, %v904
      %v937 = vpack.c.b16 %v905, %v905
      %v938 = vpack.c.b16 %v906, %v906
      %v939 = vpack.c.b16 %v907, %v907
      %v940 = vpack.c.b16 %v908, %v908
      %v941 = vpack.c.b16 %v909, %v909
      %v942 = vpack.c.b16 %v910, %v910
      %v943 = vpack.c.b16 %v911, %v911
      %v944 = vpack.c.b16 %v912, %v912
      %v945 = vpack.c.b16 %v913, %v913
      %v946 = vpack.c.b16 %v914, %v914
      %v947 = vpack.c.b16 %v915, %v915
      %v948 = vpack.c.b16 %v916, %v916
      %v949 = vpack.c.b16 %v917, %v917
      %982 = vst [vmem:[%s261] sm:$0xf] %v918
      %983 = vst [vmem:[%s261 + $0x4] sm:$0xf] %v919
      %984 = vst [vmem:[%s261 + $0x8] sm:$0xf] %v920
      %985 = vst [vmem:[%s261 + $0xc] sm:$0xf] %v921
      %986 = vst [vmem:[%s261 + $0x10] sm:$0xf] %v922
      %987 = vst [vmem:[%s261 + $0x14] sm:$0xf] %v923
      %988 = vst [vmem:[%s261 + $0x18] sm:$0xf] %v924
      %989 = vst [vmem:[%s261 + $0x1c] sm:$0xf] %v925
      %990 = vst [vmem:[%s261 + $0x20] sm:$0xf] %v926
      %991 = vst [vmem:[%s261 + $0x24] sm:$0xf] %v927
      %992 = vst [vmem:[%s261 + $0x28] sm:$0xf] %v928
      %993 = vst [vmem:[%s261 + $0x2c] sm:$0xf] %v929
      %994 = vst [vmem:[%s261 + $0x30] sm:$0xf] %v930
      %995 = vst [vmem:[%s261 + $0x34] sm:$0xf] %v931
      %996 = vst [vmem:[%s261 + $0x38] sm:$0xf] %v932
      %997 = vst [vmem:[%s261 + $0x3c] sm:$0xf] %v933
      %998 = vst [vmem:[%s261 + $0x40] sm:$0xf] %v934
      %999 = vst [vmem:[%s261 + $0x44] sm:$0xf] %v935
      %1000 = vst [vmem:[%s261 + $0x48] sm:$0xf] %v936
      %1001 = vst [vmem:[%s261 + $0x4c] sm:$0xf] %v937
      %1002 = vst [vmem:[%s261 + $0x50] sm:$0xf] %v938
      %1003 = vst [vmem:[%s261 + $0x54] sm:$0xf] %v939
      %1004 = vst [vmem:[%s261 + $0x58] sm:$0xf] %v940
      %1005 = vst [vmem:[%s261 + $0x5c] sm:$0xf] %v941
      %1006 = vst [vmem:[%s261 + $0x60] sm:$0xf] %v942
      %1007 = vst [vmem:[%s261 + $0x64] sm:$0xf] %v943
      %1008 = vst [vmem:[%s261 + $0x68] sm:$0xf] %v944
      %1009 = vst [vmem:[%s261 + $0x6c] sm:$0xf] %v945
      %1010 = vst [vmem:[%s261 + $0x70] sm:$0xf] %v946
      %1011 = vst [vmem:[%s261 + $0x74] sm:$0xf] %v947
      %1012 = vst [vmem:[%s261 + $0x78] sm:$0xf] %v948
      %1013 = vst [vmem:[%s261 + $0x7c] sm:$0xf] %v949
      %v1014 = vld [vmem:[%s3] sm:$0xf]
      %v1015 = vld [vmem:[%s3 + $0x4] sm:$0xf]
      %v1016 = vld [vmem:[%s3 + $0x8] sm:$0xf]
      %v1017 = vld [vmem:[%s3 + $0xc] sm:$0xf]
      %v1018 = vld [vmem:[%s3 + $0x10] sm:$0xf]
      %v1019 = vld [vmem:[%s3 + $0x14] sm:$0xf]
      %v1020 = vld [vmem:[%s3 + $0x18] sm:$0xf]
      %v1021 = vld [vmem:[%s3 + $0x1c] sm:$0xf]
      %v1022 = vld [vmem:[%s3 + $0x20] sm:$0xf]
      %v1023 = vld [vmem:[%s3 + $0x24] sm:$0xf]
      %v1024 = vld [vmem:[%s3 + $0x28] sm:$0xf]
      %v1025 = vld [vmem:[%s3 + $0x2c] sm:$0xf]
      %v1026 = vld [vmem:[%s3 + $0x30] sm:$0xf]
      %v1027 = vld [vmem:[%s3 + $0x34] sm:$0xf]
      %v1028 = vld [vmem:[%s3 + $0x38] sm:$0xf]
      %v1029 = vld [vmem:[%s3 + $0x3c] sm:$0xf]
      %v1030 = vld [vmem:[%s4] sm:$0x1]
      %v1032 = vlaneseq
      %v1033 = vshrl.u32 %v1032, 7
      %v1034 = vsub.s32 0, %v1033
      %v1035 = vrot.slane %v1030, %v1034
      %v1053 = vunpack.c.l.b16 %v1014
      %v1054 = vunpack.c.l.b16 %v1015
      %v1055 = vunpack.c.l.b16 %v1016
      %v1056 = vunpack.c.l.b16 %v1017
      %v1057 = vunpack.c.l.b16 %v1018
      %v1058 = vunpack.c.l.b16 %v1019
      %v1059 = vunpack.c.l.b16 %v1020
      %v1060 = vunpack.c.l.b16 %v1021
      %v1061 = vunpack.c.l.b16 %v1022
      %v1062 = vunpack.c.l.b16 %v1023
      %v1063 = vunpack.c.l.b16 %v1024
      %v1064 = vunpack.c.l.b16 %v1025
      %v1065 = vunpack.c.l.b16 %v1026
      %v1066 = vunpack.c.l.b16 %v1027
      %v1067 = vunpack.c.l.b16 %v1028
      %v1068 = vunpack.c.l.b16 %v1029
      %v1069 = vpack.c.b16 %v1054, %v1053
      %v1070 = vpack.c.b16 %v1056, %v1055
      %v1071 = vpack.c.b16 %v1058, %v1057
      %v1072 = vpack.c.b16 %v1060, %v1059
      %v1073 = vpack.c.b16 %v1062, %v1061
      %v1074 = vpack.c.b16 %v1064, %v1063
      %v1075 = vpack.c.b16 %v1066, %v1065
      %v1076 = vpack.c.b16 %v1068, %v1067
      %1085 = vmatprep.subr.bf16.mxu0 0
      %1086 = vmatpush1.bf16.msra.mxu0 %v1069
      %1087 = vmatprep.subr.bf16.mxu0 0
      %1088 = vmatpush1.bf16.msra.mxu0 %v1070
      %1089 = vmatprep.subr.bf16.mxu0 0
      %1090 = vmatpush1.bf16.msra.mxu0 %v1071
      %1091 = vmatprep.subr.bf16.mxu0 0
      %1092 = vmatpush1.bf16.msra.mxu0 %v1072
      %1093 = vmatprep.subr.bf16.mxu0 0
      %1094 = vmatpush1.bf16.msra.mxu0 %v1073
      %1095 = vmatprep.subr.bf16.mxu0 0
      %1096 = vmatpush1.bf16.msra.mxu0 %v1074
      %1097 = vmatprep.subr.bf16.mxu0 0
      %1098 = vmatpush1.bf16.msra.mxu0 %v1075
      %1099 = vmatprep.subr.bf16.mxu0 0
      %1100 = vmatpush1.bf16.msra.mxu0 %v1076
      %1101 = vmatprep.subr.bf16.mxu0 0
      %1102 = vmatpush1.bf16.msra.mxu0 0
      %1103 = vmatprep.subr.bf16.mxu0 0
      %1104 = vmatpush1.bf16.msra.mxu0 0
      %1105 = vmatprep.subr.bf16.mxu0 0
      %1106 = vmatpush1.bf16.msra.mxu0 0
      %1107 = vmatprep.subr.bf16.mxu0 0
      %1108 = vmatpush1.bf16.msra.mxu0 0
      %1109 = vmatprep.subr.bf16.mxu0 0
      %1110 = vmatpush1.bf16.msra.mxu0 0
      %1111 = vmatprep.subr.bf16.mxu0 0
      %1112 = vmatpush1.bf16.msra.mxu0 0
      %1113 = vmatprep.subr.bf16.mxu0 0
      %1114 = vmatpush1.bf16.msra.mxu0 0
      %1115 = vmatprep.subr.bf16.mxu0 0
      %1116 = vmatpush1.bf16.msra.mxu0 0
      %1117 = vmatprep.mubr.bf16.mxu0 0
      %1118 = vmatmul.mubr.bf16.gmra.mrb[0].mxu0 %v389
      %v1119 = vpop.f32.mrb[0].mxu0
      %v1120 = vadd.f32 %v1035, %v1119
      %v1121 = vpop.f32.mrb[0].mxu0
      %v1122 = vpop.f32.mrb[0].mxu0
      %v1123 = vadd.f32 %v1035, %v1122
      %v1124 = vpop.f32.mrb[0].mxu0
      %1125 = vmatprep.mubr.bf16.mxu0 0
      %1126 = vmatmul.mubr.bf16.gmra.mrb[0].mxu0 %v390
      %v1127 = vpop.f32.mrb[0].mxu0
      %v1128 = vadd.f32 %v1035, %v1127
      %v1129 = vpop.f32.mrb[0].mxu0
      %v1130 = vpop.f32.mrb[0].mxu0
      %v1131 = vadd.f32 %v1035, %v1130
      %v1132 = vpop.f32.mrb[0].mxu0
      %1133 = vmatprep.mubr.bf16.mxu0 0
      %1134 = vmatmul.mubr.bf16.gmra.mrb[0].mxu0 %v391
      %v1135 = vpop.f32.mrb[0].mxu0
      %v1136 = vadd.f32 %v1035, %v1135
      %v1137 = vpop.f32.mrb[0].mxu0
      %v1138 = vpop.f32.mrb[0].mxu0
      %v1139 = vadd.f32 %v1035, %v1138
      %v1140 = vpop.f32.mrb[0].mxu0
      %1141 = vmatprep.mubr.bf16.mxu0 0
      %1142 = vmatmul.mubr.bf16.gmra.mrb[0].mxu0 %v392
      %v1143 = vpop.f32.mrb[0].mxu0
      %v1144 = vadd.f32 %v1035, %v1143
      %v1145 = vpop.f32.mrb[0].mxu0
      %v1146 = vpop.f32.mrb[0].mxu0
      %v1147 = vadd.f32 %v1035, %v1146
      %v1148 = vpop.f32.mrb[0].mxu0
      %1149 = vmatprep.mubr.bf16.mxu0 0
      %1150 = vmatmul.mubr.bf16.gmra.mrb[0].mxu0 %v393
      %v1151 = vpop.f32.mrb[0].mxu0
      %v1152 = vadd.f32 %v1035, %v1151
      %v1153 = vpop.f32.mrb[0].mxu0
      %v1154 = vpop.f32.mrb[0].mxu0
      %v1155 = vadd.f32 %v1035, %v1154
      %v1156 = vpop.f32.mrb[0].mxu0
      %1157 = vmatprep.mubr.bf16.mxu0 0
      %1158 = vmatmul.mubr.bf16.gmra.mrb[0].mxu0 %v394
      %v1159 = vpop.f32.mrb[0].mxu0
      %v1160 = vadd.f32 %v1035, %v1159
      %v1161 = vpop.f32.mrb[0].mxu0
      %v1162 = vpop.f32.mrb[0].mxu0
      %v1163 = vadd.f32 %v1035, %v1162
      %v1164 = vpop.f32.mrb[0].mxu0
      %1165 = vmatprep.mubr.bf16.mxu0 0
      %1166 = vmatmul.mubr.bf16.gmra.mrb[0].mxu0 %v395
      %v1167 = vpop.f32.mrb[0].mxu0
      %v1168 = vadd.f32 %v1035, %v1167
      %v1169 = vpop.f32.mrb[0].mxu0
      %v1170 = vpop.f32.mrb[0].mxu0
      %v1171 = vadd.f32 %v1035, %v1170
      %v1172 = vpop.f32.mrb[0].mxu0
      %1173 = vmatprep.mubr.bf16.mxu0 0
      %1174 = vmatmul.mubr.bf16.gmra.mrb[0].mxu0 %v396
      %v1175 = vpop.f32.mrb[0].mxu0
      %v1176 = vadd.f32 %v1035, %v1175
      %v1177 = vpop.f32.mrb[0].mxu0
      %v1178 = vpop.f32.mrb[0].mxu0
      %v1179 = vadd.f32 %v1035, %v1178
      %v1180 = vpop.f32.mrb[0].mxu0
      %1181 = vmatprep.mubr.bf16.mxu0 0
      %1182 = vmatmul.mubr.bf16.gmra.mrb[0].mxu0 %v397
      %v1183 = vpop.f32.mrb[0].mxu0
      %v1184 = vadd.f32 %v1035, %v1183
      %v1185 = vpop.f32.mrb[0].mxu0
      %v1186 = vpop.f32.mrb[0].mxu0
      %v1187 = vadd.f32 %v1035, %v1186
      %v1188 = vpop.f32.mrb[0].mxu0
      %1189 = vmatprep.mubr.bf16.mxu0 0
      %1190 = vmatmul.mubr.bf16.gmra.mrb[0].mxu0 %v398
      %v1191 = vpop.f32.mrb[0].mxu0
      %v1192 = vadd.f32 %v1035, %v1191
      %v1193 = vpop.f32.mrb[0].mxu0
      %v1194 = vpop.f32.mrb[0].mxu0
      %v1195 = vadd.f32 %v1035, %v1194
      %v1196 = vpop.f32.mrb[0].mxu0
      %1197 = vmatprep.mubr.bf16.mxu0 0
      %1198 = vmatmul.mubr.bf16.gmra.mrb[0].mxu0 %v399
      %v1199 = vpop.f32.mrb[0].mxu0
      %v1200 = vadd.f32 %v1035, %v1199
      %v1201 = vpop.f32.mrb[0].mxu0
      %v1202 = vpop.f32.mrb[0].mxu0
      %v1203 = vadd.f32 %v1035, %v1202
      %v1204 = vpop.f32.mrb[0].mxu0
      %1205 = vmatprep.mubr.bf16.mxu0 0
      %1206 = vmatmul.mubr.bf16.gmra.mrb[0].mxu0 %v400
      %v1207 = vpop.f32.mrb[0].mxu0
      %v1208 = vadd.f32 %v1035, %v1207
      %v1209 = vpop.f32.mrb[0].mxu0
      %v1210 = vpop.f32.mrb[0].mxu0
      %v1211 = vadd.f32 %v1035, %v1210
      %v1212 = vpop.f32.mrb[0].mxu0
      %1213 = vmatprep.mubr.bf16.mxu0 0
      %1214 = vmatmul.mubr.bf16.gmra.mrb[0].mxu0 %v401
      %v1215 = vpop.f32.mrb[0].mxu0
      %v1216 = vadd.f32 %v1035, %v1215
      %v1217 = vpop.f32.mrb[0].mxu0
      %v1218 = vpop.f32.mrb[0].mxu0
      %v1219 = vadd.f32 %v1035, %v1218
      %v1220 = vpop.f32.mrb[0].mxu0
      %1221 = vmatprep.mubr.bf16.mxu0 0
      %1222 = vmatmul.mubr.bf16.gmra.mrb[0].mxu0 %v402
      %v1223 = vpop.f32.mrb[0].mxu0
      %v1224 = vadd.f32 %v1035, %v1223
      %v1225 = vpop.f32.mrb[0].mxu0
      %v1226 = vpop.f32.mrb[0].mxu0
      %v1227 = vadd.f32 %v1035, %v1226
      %v1228 = vpop.f32.mrb[0].mxu0
      %1229 = vmatprep.mubr.bf16.mxu0 0
      %1230 = vmatmul.mubr.bf16.gmra.mrb[0].mxu0 %v403
      %v1231 = vpop.f32.mrb[0].mxu0
      %v1232 = vadd.f32 %v1035, %v1231
      %v1233 = vpop.f32.mrb[0].mxu0
      %v1234 = vpop.f32.mrb[0].mxu0
      %v1235 = vadd.f32 %v1035, %v1234
      %v1236 = vpop.f32.mrb[0].mxu0
      %1237 = vmatprep.mubr.bf16.mxu0 0
      %1238 = vmatmul.mubr.bf16.gmra.mrb[0].mxu0 %v404
      %v1239 = vpop.f32.mrb[0].mxu0
      %v1240 = vadd.f32 %v1035, %v1239
      %v1241 = vpop.f32.mrb[0].mxu0
      %v1242 = vpop.f32.mrb[0].mxu0
      %v1243 = vadd.f32 %v1035, %v1242
      %v1244 = vpop.f32.mrb[0].mxu0
      %1245 = vdwg.mxu0
      %v1246 = vxor.u32 %v1120, 2147483648
      %v1247 = vxor.u32 %v1123, 2147483648
      %v1248 = vxor.u32 %v1128, 2147483648
      %v1249 = vxor.u32 %v1131, 2147483648
      %v1250 = vxor.u32 %v1136, 2147483648
      %v1251 = vxor.u32 %v1139, 2147483648
      %v1252 = vxor.u32 %v1144, 2147483648
      %v1253 = vxor.u32 %v1147, 2147483648
      %v1254 = vxor.u32 %v1152, 2147483648
      %v1255 = vxor.u32 %v1155, 2147483648
      %v1256 = vxor.u32 %v1160, 2147483648
      %v1257 = vxor.u32 %v1163, 2147483648
      %v1258 = vxor.u32 %v1168, 2147483648
      %v1259 = vxor.u32 %v1171, 2147483648
      %v1260 = vxor.u32 %v1176, 2147483648
      %v1261 = vxor.u32 %v1179, 2147483648
      %v1262 = vxor.u32 %v1184, 2147483648
      %v1263 = vxor.u32 %v1187, 2147483648
      %v1264 = vxor.u32 %v1192, 2147483648
      %v1265 = vxor.u32 %v1195, 2147483648
      %v1266 = vxor.u32 %v1200, 2147483648
      %v1267 = vxor.u32 %v1203, 2147483648
      %v1268 = vxor.u32 %v1208, 2147483648
      %v1269 = vxor.u32 %v1211, 2147483648
      %v1270 = vxor.u32 %v1216, 2147483648
      %v1271 = vxor.u32 %v1219, 2147483648
      %v1272 = vxor.u32 %v1224, 2147483648
      %v1273 = vxor.u32 %v1227, 2147483648
      %v1274 = vxor.u32 %v1232, 2147483648
      %v1275 = vxor.u32 %v1235, 2147483648
      %v1276 = vxor.u32 %v1240, 2147483648
      %v1277 = vxor.u32 %v1243, 2147483648
      %v1278 = vmul.f32 %v1246, 1.442695
      %v1279 = vpow.pop %v1278
      %v1280 = vmul.f32 %v1247, 1.442695
      %v1281 = vpow.pop %v1280
      %v1282 = vmul.f32 %v1248, 1.442695
      %v1283 = vpow.pop %v1282
      %v1284 = vmul.f32 %v1249, 1.442695
      %v1285 = vpow.pop %v1284
      %v1286 = vmul.f32 %v1250, 1.442695
      %v1287 = vpow.pop %v1286
      %v1288 = vmul.f32 %v1251, 1.442695
      %v1289 = vpow.pop %v1288
      %v1290 = vmul.f32 %v1252, 1.442695
      %v1291 = vpow.pop %v1290
      %v1292 = vmul.f32 %v1253, 1.442695
      %v1293 = vpow.pop %v1292
      %v1294 = vmul.f32 %v1254, 1.442695
      %v1295 = vpow.pop %v1294
      %v1296 = vmul.f32 %v1255, 1.442695
      %v1297 = vpow.pop %v1296
      %v1298 = vmul.f32 %v1256, 1.442695
      %v1299 = vpow.pop %v1298
      %v1300 = vmul.f32 %v1257, 1.442695
      %v1301 = vpow.pop %v1300
      %v1302 = vmul.f32 %v1258, 1.442695
      %v1303 = vpow.pop %v1302
      %v1304 = vmul.f32 %v1259, 1.442695
      %v1305 = vpow.pop %v1304
      %v1306 = vmul.f32 %v1260, 1.442695
      %v1307 = vpow.pop %v1306
      %v1308 = vmul.f32 %v1261, 1.442695
      %v1309 = vpow.pop %v1308
      %v1310 = vmul.f32 %v1262, 1.442695
      %v1311 = vpow.pop %v1310
      %v1312 = vmul.f32 %v1263, 1.442695
      %v1313 = vpow.pop %v1312
      %v1314 = vmul.f32 %v1264, 1.442695
      %v1315 = vpow.pop %v1314
      %v1316 = vmul.f32 %v1265, 1.442695
      %v1317 = vpow.pop %v1316
      %v1318 = vmul.f32 %v1266, 1.442695
      %v1319 = vpow.pop %v1318
      %v1320 = vmul.f32 %v1267, 1.442695
      %v1321 = vpow.pop %v1320
      %v1322 = vmul.f32 %v1268, 1.442695
      %v1323 = vpow.pop %v1322
      %v1324 = vmul.f32 %v1269, 1.442695
      %v1325 = vpow.pop %v1324
      %v1326 = vmul.f32 %v1270, 1.442695
      %v1327 = vpow.pop %v1326
      %v1328 = vmul.f32 %v1271, 1.442695
      %v1329 = vpow.pop %v1328
      %v1330 = vmul.f32 %v1272, 1.442695
      %v1331 = vpow.pop %v1330
      %v1332 = vmul.f32 %v1273, 1.442695
      %v1333 = vpow.pop %v1332
      %v1334 = vmul.f32 %v1274, 1.442695
      %v1335 = vpow.pop %v1334
      %v1336 = vmul.f32 %v1275, 1.442695
      %v1337 = vpow.pop %v1336
      %v1338 = vmul.f32 %v1276, 1.442695
      %v1339 = vpow.pop %v1338
      %v1340 = vmul.f32 %v1277, 1.442695
      %v1341 = vpow.pop %v1340
      %v1342 = vadd.f32 %v1279, 1.0
      %v1343 = vadd.f32 %v1281, 1.0
      %v1344 = vadd.f32 %v1283, 1.0
      %v1345 = vadd.f32 %v1285, 1.0
      %v1346 = vadd.f32 %v1287, 1.0
      %v1347 = vadd.f32 %v1289, 1.0
      %v1348 = vadd.f32 %v1291, 1.0
      %v1349 = vadd.f32 %v1293, 1.0
      %v1350 = vadd.f32 %v1295, 1.0
      %v1351 = vadd.f32 %v1297, 1.0
      %v1352 = vadd.f32 %v1299, 1.0
      %v1353 = vadd.f32 %v1301, 1.0
      %v1354 = vadd.f32 %v1303, 1.0
      %v1355 = vadd.f32 %v1305, 1.0
      %v1356 = vadd.f32 %v1307, 1.0
      %v1357 = vadd.f32 %v1309, 1.0
      %v1358 = vadd.f32 %v1311, 1.0
      %v1359 = vadd.f32 %v1313, 1.0
      %v1360 = vadd.f32 %v1315, 1.0
      %v1361 = vadd.f32 %v1317, 1.0
      %v1362 = vadd.f32 %v1319, 1.0
      %v1363 = vadd.f32 %v1321, 1.0
      %v1364 = vadd.f32 %v1323, 1.0
      %v1365 = vadd.f32 %v1325, 1.0
      %v1366 = vadd.f32 %v1327, 1.0
      %v1367 = vadd.f32 %v1329, 1.0
      %v1368 = vadd.f32 %v1331, 1.0
      %v1369 = vadd.f32 %v1333, 1.0
      %v1370 = vadd.f32 %v1335, 1.0
      %v1371 = vadd.f32 %v1337, 1.0
      %v1372 = vadd.f32 %v1339, 1.0
      %v1373 = vadd.f32 %v1341, 1.0
      %v1374 = vrcp.pop %v1342
      %v1375 = vmul.f32 1.0, %v1374
      %v1376 = vrcp.pop %v1343
      %v1377 = vmul.f32 1.0, %v1376
      %v1378 = vrcp.pop %v1344
      %v1379 = vmul.f32 1.0, %v1378
      %v1380 = vrcp.pop %v1345
      %v1381 = vmul.f32 1.0, %v1380
      %v1382 = vrcp.pop %v1346
      %v1383 = vmul.f32 1.0, %v1382
      %v1384 = vrcp.pop %v1347
      %v1385 = vmul.f32 1.0, %v1384
      %v1386 = vrcp.pop %v1348
      %v1387 = vmul.f32 1.0, %v1386
      %v1388 = vrcp.pop %v1349
      %v1389 = vmul.f32 1.0, %v1388
      %v1390 = vrcp.pop %v1350
      %v1391 = vmul.f32 1.0, %v1390
      %v1392 = vrcp.pop %v1351
      %v1393 = vmul.f32 1.0, %v1392
      %v1394 = vrcp.pop %v1352
      %v1395 = vmul.f32 1.0, %v1394
      %v1396 = vrcp.pop %v1353
      %v1397 = vmul.f32 1.0, %v1396
      %v1398 = vrcp.pop %v1354
      %v1399 = vmul.f32 1.0, %v1398
      %v1400 = vrcp.pop %v1355
      %v1401 = vmul.f32 1.0, %v1400
      %v1402 = vrcp.pop %v1356
      %v1403 = vmul.f32 1.0, %v1402
      %v1404 = vrcp.pop %v1357
      %v1405 = vmul.f32 1.0, %v1404
      %v1406 = vrcp.pop %v1358
      %v1407 = vmul.f32 1.0, %v1406
      %v1408 = vrcp.pop %v1359
      %v1409 = vmul.f32 1.0, %v1408
      %v1410 = vrcp.pop %v1360
      %v1411 = vmul.f32 1.0, %v1410
      %v1412 = vrcp.pop %v1361
      %v1413 = vmul.f32 1.0, %v1412
      %v1414 = vrcp.pop %v1362
      %v1415 = vmul.f32 1.0, %v1414
      %v1416 = vrcp.pop %v1363
      %v1417 = vmul.f32 1.0, %v1416
      %v1418 = vrcp.pop %v1364
      %v1419 = vmul.f32 1.0, %v1418
      %v1420 = vrcp.pop %v1365
      %v1421 = vmul.f32 1.0, %v1420
      %v1422 = vrcp.pop %v1366
      %v1423 = vmul.f32 1.0, %v1422
      %v1424 = vrcp.pop %v1367
      %v1425 = vmul.f32 1.0, %v1424
      %v1426 = vrcp.pop %v1368
      %v1427 = vmul.f32 1.0, %v1426
      %v1428 = vrcp.pop %v1369
      %v1429 = vmul.f32 1.0, %v1428
      %v1430 = vrcp.pop %v1370
      %v1431 = vmul.f32 1.0, %v1430
      %v1432 = vrcp.pop %v1371
      %v1433 = vmul.f32 1.0, %v1432
      %v1434 = vrcp.pop %v1372
      %v1435 = vmul.f32 1.0, %v1434
      %v1436 = vrcp.pop %v1373
      %v1437 = vmul.f32 1.0, %v1436
      %v1438 = vmul.f32 %v1120, %v1375
      %v1439 = vmul.f32 %v1123, %v1377
      %v1440 = vmul.f32 %v1128, %v1379
      %v1441 = vmul.f32 %v1131, %v1381
      %v1442 = vmul.f32 %v1136, %v1383
      %v1443 = vmul.f32 %v1139, %v1385
      %v1444 = vmul.f32 %v1144, %v1387
      %v1445 = vmul.f32 %v1147, %v1389
      %v1446 = vmul.f32 %v1152, %v1391
      %v1447 = vmul.f32 %v1155, %v1393
      %v1448 = vmul.f32 %v1160, %v1395
      %v1449 = vmul.f32 %v1163, %v1397
      %v1450 = vmul.f32 %v1168, %v1399
      %v1451 = vmul.f32 %v1171, %v1401
      %v1452 = vmul.f32 %v1176, %v1403
      %v1453 = vmul.f32 %v1179, %v1405
      %v1454 = vmul.f32 %v1184, %v1407
      %v1455 = vmul.f32 %v1187, %v1409
      %v1456 = vmul.f32 %v1192, %v1411
      %v1457 = vmul.f32 %v1195, %v1413
      %v1458 = vmul.f32 %v1200, %v1415
      %v1459 = vmul.f32 %v1203, %v1417
      %v1460 = vmul.f32 %v1208, %v1419
      %v1461 = vmul.f32 %v1211, %v1421
      %v1462 = vmul.f32 %v1216, %v1423
      %v1463 = vmul.f32 %v1219, %v1425
      %v1464 = vmul.f32 %v1224, %v1427
      %v1465 = vmul.f32 %v1227, %v1429
      %v1466 = vmul.f32 %v1232, %v1431
      %v1467 = vmul.f32 %v1235, %v1433
      %v1468 = vmul.f32 %v1240, %v1435
      %v1469 = vmul.f32 %v1243, %v1437
      %v1470 = vpack.c.bf16 %v1439, %v1438
      %v1471 = vpack.c.bf16 %v1441, %v1440
      %v1472 = vpack.c.bf16 %v1443, %v1442
      %v1473 = vpack.c.bf16 %v1445, %v1444
      %v1474 = vpack.c.bf16 %v1447, %v1446
      %v1475 = vpack.c.bf16 %v1449, %v1448
      %v1476 = vpack.c.bf16 %v1451, %v1450
      %v1477 = vpack.c.bf16 %v1453, %v1452
      %v1478 = vpack.c.bf16 %v1455, %v1454
      %v1479 = vpack.c.bf16 %v1457, %v1456
      %v1480 = vpack.c.bf16 %v1459, %v1458
      %v1481 = vpack.c.bf16 %v1461, %v1460
      %v1482 = vpack.c.bf16 %v1463, %v1462
      %v1483 = vpack.c.bf16 %v1465, %v1464
      %v1484 = vpack.c.bf16 %v1467, %v1466
      %v1485 = vpack.c.bf16 %v1469, %v1468
      %v1502 = vunpack.c.l.b16 %v1470
      %v1503 = vunpack.c.h.b16 %v1470
      %v1504 = vunpack.c.l.b16 %v1471
      %v1505 = vunpack.c.h.b16 %v1471
      %v1506 = vunpack.c.l.b16 %v1472
      %v1507 = vunpack.c.h.b16 %v1472
      %v1508 = vunpack.c.l.b16 %v1473
      %v1509 = vunpack.c.h.b16 %v1473
      %v1510 = vunpack.c.l.b16 %v1474
      %v1511 = vunpack.c.h.b16 %v1474
      %v1512 = vunpack.c.l.b16 %v1475
      %v1513 = vunpack.c.h.b16 %v1475
      %v1514 = vunpack.c.l.b16 %v1476
      %v1515 = vunpack.c.h.b16 %v1476
      %v1516 = vunpack.c.l.b16 %v1477
      %v1517 = vunpack.c.h.b16 %v1477
      %v1518 = vunpack.c.l.b16 %v1478
      %v1519 = vunpack.c.h.b16 %v1478
      %v1520 = vunpack.c.l.b16 %v1479
      %v1521 = vunpack.c.h.b16 %v1479
      %v1522 = vunpack.c.l.b16 %v1480
      %v1523 = vunpack.c.h.b16 %v1480
      %v1524 = vunpack.c.l.b16 %v1481
      %v1525 = vunpack.c.h.b16 %v1481
      %v1526 = vunpack.c.l.b16 %v1482
      %v1527 = vunpack.c.h.b16 %v1482
      %v1528 = vunpack.c.l.b16 %v1483
      %v1529 = vunpack.c.h.b16 %v1483
      %v1530 = vunpack.c.l.b16 %v1484
      %v1531 = vunpack.c.h.b16 %v1484
      %v1532 = vunpack.c.l.b16 %v1485
      %v1533 = vunpack.c.h.b16 %v1485
      %v1534 = vpack.c.b16 %v1502, %v1502
      %v1535 = vpack.c.b16 %v1503, %v1503
      %v1536 = vpack.c.b16 %v1504, %v1504
      %v1537 = vpack.c.b16 %v1505, %v1505
      %v1538 = vpack.c.b16 %v1506, %v1506
      %v1539 = vpack.c.b16 %v1507, %v1507
      %v1540 = vpack.c.b16 %v1508, %v1508
      %v1541 = vpack.c.b16 %v1509, %v1509
      %v1542 = vpack.c.b16 %v1510, %v1510
      %v1543 = vpack.c.b16 %v1511, %v1511
      %v1544 = vpack.c.b16 %v1512, %v1512
      %v1545 = vpack.c.b16 %v1513, %v1513
      %v1546 = vpack.c.b16 %v1514, %v1514
      %v1547 = vpack.c.b16 %v1515, %v1515
      %v1548 = vpack.c.b16 %v1516, %v1516
      %v1549 = vpack.c.b16 %v1517, %v1517
      %v1550 = vpack.c.b16 %v1518, %v1518
      %v1551 = vpack.c.b16 %v1519, %v1519
      %v1552 = vpack.c.b16 %v1520, %v1520
      %v1553 = vpack.c.b16 %v1521, %v1521
      %v1554 = vpack.c.b16 %v1522, %v1522
      %v1555 = vpack.c.b16 %v1523, %v1523
      %v1556 = vpack.c.b16 %v1524, %v1524
      %v1557 = vpack.c.b16 %v1525, %v1525
      %v1558 = vpack.c.b16 %v1526, %v1526
      %v1559 = vpack.c.b16 %v1527, %v1527
      %v1560 = vpack.c.b16 %v1528, %v1528
      %v1561 = vpack.c.b16 %v1529, %v1529
      %v1562 = vpack.c.b16 %v1530, %v1530
      %v1563 = vpack.c.b16 %v1531, %v1531
      %v1564 = vpack.c.b16 %v1532, %v1532
      %v1565 = vpack.c.b16 %v1533, %v1533
      %1598 = vst [vmem:[%s267] sm:$0xf] %v1534
      %1599 = vst [vmem:[%s267 + $0x4] sm:$0xf] %v1535
      %1600 = vst [vmem:[%s267 + $0x8] sm:$0xf] %v1536
      %1601 = vst [vmem:[%s267 + $0xc] sm:$0xf] %v1537
      %1602 = vst [vmem:[%s267 + $0x10] sm:$0xf] %v1538
      %1603 = vst [vmem:[%s267 + $0x14] sm:$0xf] %v1539
      %1604 = vst [vmem:[%s267 + $0x18] sm:$0xf] %v1540
      %1605 = vst [vmem:[%s267 + $0x1c] sm:$0xf] %v1541
      %1606 = vst [vmem:[%s267 + $0x20] sm:$0xf] %v1542
      %1607 = vst [vmem:[%s267 + $0x24] sm:$0xf] %v1543
      %1608 = vst [vmem:[%s267 + $0x28] sm:$0xf] %v1544
      %1609 = vst [vmem:[%s267 + $0x2c] sm:$0xf] %v1545
      %1610 = vst [vmem:[%s267 + $0x30] sm:$0xf] %v1546
      %1611 = vst [vmem:[%s267 + $0x34] sm:$0xf] %v1547
      %1612 = vst [vmem:[%s267 + $0x38] sm:$0xf] %v1548
      %1613 = vst [vmem:[%s267 + $0x3c] sm:$0xf] %v1549
      %1614 = vst [vmem:[%s267 + $0x40] sm:$0xf] %v1550
      %1615 = vst [vmem:[%s267 + $0x44] sm:$0xf] %v1551
      %1616 = vst [vmem:[%s267 + $0x48] sm:$0xf] %v1552
      %1617 = vst [vmem:[%s267 + $0x4c] sm:$0xf] %v1553
      %1618 = vst [vmem:[%s267 + $0x50] sm:$0xf] %v1554
      %1619 = vst [vmem:[%s267 + $0x54] sm:$0xf] %v1555
      %1620 = vst [vmem:[%s267 + $0x58] sm:$0xf] %v1556
      %1621 = vst [vmem:[%s267 + $0x5c] sm:$0xf] %v1557
      %1622 = vst [vmem:[%s267 + $0x60] sm:$0xf] %v1558
      %1623 = vst [vmem:[%s267 + $0x64] sm:$0xf] %v1559
      %1624 = vst [vmem:[%s267 + $0x68] sm:$0xf] %v1560
      %1625 = vst [vmem:[%s267 + $0x6c] sm:$0xf] %v1561
      %1626 = vst [vmem:[%s267 + $0x70] sm:$0xf] %v1562
      %1627 = vst [vmem:[%s267 + $0x74] sm:$0xf] %v1563
      %1628 = vst [vmem:[%s267 + $0x78] sm:$0xf] %v1564
      %1629 = vst [vmem:[%s267 + $0x7c] sm:$0xf] %v1565
      %s1630 = smul.u32 32, %s18
      %p1631 = scmp.lt.s32.totalorder %s1630, 63
      %s1632 = scalar_select %p1631, %s1630, 63
      %s1633 = smul.addr %s1632, 4
      %s1634 = scalar_lea.vmem %s5, %s1633
      %s1635 = smul.u32 32, %s18
      %p1636 = scmp.lt.s32.totalorder %s1635, 63
      %s1637 = scalar_select %p1636, %s1635, 63
      %s1638 = smul.addr %s1637, 4
      %s1639 = scalar_lea.vmem %s6, %s1638
      // Predicated region
      $region41: #{c3_forward.4} parent=39 // pred_check
        %p1640 = pneg %p146
      $region42: #{c3_forward.4} parent=39 // pred_check_branch
        %1642 = sbr.rel (%p1640) target = $region44
      $region43: #{c3_forward.4} parent=39 // pred_region
        %s1643 = smul.u32 32, %s18
      $region44: #{c3_forward.4} parent=39 // pred_fallthru
        _
      // Predicated region
      $region45: #{c3_forward.4} parent=39 // pred_check
        %p1644 = pneg %p172
      $region46: #{c3_forward.4} parent=39 // pred_check_branch
        %1646 = sbr.rel (%p1644) target = $region48
      $region47: #{c3_forward.4} parent=39 // pred_region
        %s1647 = smul.u32 32, %s18
      $region48: #{c3_forward.4} parent=39 // pred_fallthru
        _
    $region40: #{c3_forward.4} parent=5 // pred_fallthru
      _
    %p1648 = scmp.le.s32.totalorder 2, %s13
    // Predicated region
    $region49: #{c3_forward.4} parent=5 // pred_check
      %p1649 = pneg %p1648
    $region50: #{c3_forward.4} parent=5 // pred_check_branch
      %1651 = sbr.rel (%p1649) target = $region52
    $region51: #{c3_forward.4} parent=5 // pred_region
      %s1652 = ssub.s32 %s13, 2
      // Predicated region
      $region53: #{c3_forward.4} parent=51 // pred_check
        %p1653 = pneg %p152
      $region54: #{c3_forward.4} parent=51 // pred_check_branch
        %1655 = sbr.rel (%p1653) target = $region56
      $region55: #{c3_forward.4} parent=51 // pred_region
        %s1656 = smul.u32 32, %s19
        %p1657 = scmp.lt.s32.totalorder %s1656, 63
        %s1658 = scalar_select %p1657, %s1656, 63
        %s1659 = smul.addr %s1658, 4
        %s1660 = scalar_lea.vmem %s5, %s1659
      $region56: #{c3_forward.4} parent=51 // pred_fallthru
        _
      // Predicated region
      $region57: #{c3_forward.4} parent=51 // pred_check
        %p1661 = pneg %p178
      $region58: #{c3_forward.4} parent=51 // pred_check_branch
        %1663 = sbr.rel (%p1661) target = $region60
      $region59: #{c3_forward.4} parent=51 // pred_region
        %s1664 = smul.u32 32, %s19
        %p1665 = scmp.lt.s32.totalorder %s1664, 63
        %s1666 = scalar_select %p1665, %s1664, 63
        %s1667 = smul.addr %s1666, 4
        %s1668 = scalar_lea.vmem %s6, %s1667
      $region60: #{c3_forward.4} parent=51 // pred_fallthru
        _
    $region52: #{c3_forward.4} parent=5 // pred_fallthru
      _
  $region6: #{c3_forward.4} parent=0 // loop_footer
    %s17 = sadd.s32 1, %s13
  $region7: #{c3_forward.4} parent=0 // loop_footer_branch
    %12 = sbr.rel target = $region3
  $region8: #{c3_forward.4} parent=0 // loop_exit
    _

// kernel: c3_forward.5
$region0: #{c3_forward.5}
  #allocation0 [shape = 'u32[]', space=smem, size = 0x4, offset = 0x4, fixed_abs, tag = 'smem constant byte address 0x4 - core index']
  #allocation1 [shape = 'u32[144,128]{1,0:T(1,128)}', space=vmem, size = 0x12000, scoped, tag = 'internal scratch']
  %s0 = inlined_call_operand.vmem [shape: bf16[512,128], index: 0, kind: input, shape index: {}]
  %s1 = inlined_call_operand.vmem [shape: bf16[128,128], index: 1, kind: input, shape index: {}]
  %s2 = inlined_call_operand.vmem [shape: f32[1,128], index: 2, kind: input, shape index: {}]
  %s3 = inlined_call_operand.vmem [shape: bf16[512,128], index: 3, kind: output, shape index: {}]
  %s4 = sld [smem:[#allocation0]]
  $region45: #{c3_forward.5} parent=0
    _
  %s6 = ssub.s32 1, %s4
  %s7 = scalar_select 0, %s6, %s4
  loop: start=0, step=1, limit=4
  $region2: #{c3_forward.5} parent=0 // loop_pre_header
    _
  $region3: #{c3_forward.5} parent=0 // loop_header
    %s9 = sphi 0, %s13
    %p10 = scmp.ge.s32.totalorder %s9, 4
    %s19 = sphi 0, %s21
    %s22 = sphi 0, %s19
    %s23 = sphi 0, %s22
    %s39 = sphi 0, %s23
    %s43 = sphi 0, %s43
    %s45 = sphi 0, %s43
    %s46 = sphi 0, %s45
    %s60 = sphi 0, %s46
    %s64 = sphi 0, %s64
    %s66 = sphi 0, %s64
    %s67 = sphi 0, %s66
    %s81 = sphi 0, %s67
    %s87 = sphi 0, %s89
    %s90 = sphi 0, %s87
    %s91 = sphi 0, %s90
    %s107 = sphi 0, %s91
  $region4: #{c3_forward.5} parent=0 // loop_header_branch
    %12 = sbr.rel (%p10) target = $region8
  $region5: #{c3_forward.5} parent=0 // loop_body
    %s14 = ssub.s32 %s9, 1
    %s15 = ssub.s32 %s9, 2
    %s16 = sadd.s32 %s9, 1
    %s17 = ssub.s32 %s9, %s16
    %p18 = scmp.eq.s32.totalorder %s17, 0
    %s20 = sadd.s32 %s19, 1
    %s21 = scalar_select %p18, %s19, %s20
    %p24 = pneg %p18
    %p25 = scmp.eq.s32.totalorder %s9, 1
    %p26 = por %p24, %p25
    %p27 = scmp.ne.s32.totalorder %s19, %s22
    %p28 = scmp.eq.s32.totalorder %s9, 0
    %p29 = por %p27, %p28
    %p30 = scmp.ne.s32.totalorder %s19, %s22
    %p31 = scmp.eq.s32.totalorder %s14, 1
    %p32 = por %p30, %p31
    %p33 = scmp.ne.s32.totalorder %s22, %s23
    %p34 = scmp.eq.s32.totalorder %s14, 0
    %p35 = por %p33, %p34
    %p36 = scmp.ne.s32.totalorder %s22, %s23
    %p37 = scmp.eq.s32.totalorder %s15, 1
    %p38 = por %p36, %p37
    %p40 = scmp.ne.s32.totalorder %s23, %s39
    %p41 = scmp.eq.s32.totalorder %s15, 0
    %p42 = por %p40, %p41
    %s44 = sadd.s32 %s43, 1
    %p47 = scmp.eq.s32.totalorder %s9, 1
    %p48 = scmp.ne.s32.totalorder %s43, %s45
    %p49 = scmp.eq.s32.totalorder %s9, 0
    %p50 = por %p48, %p49
    %p51 = scmp.ne.s32.totalorder %s43, %s45
    %p52 = scmp.eq.s32.totalorder %s14, 1
    %p53 = por %p51, %p52
    %p54 = scmp.ne.s32.totalorder %s45, %s46
    %p55 = scmp.eq.s32.totalorder %s14, 0
    %p56 = por %p54, %p55
    %p57 = scmp.ne.s32.totalorder %s45, %s46
    %p58 = scmp.eq.s32.totalorder %s15, 1
    %p59 = por %p57, %p58
    %p61 = scmp.ne.s32.totalorder %s46, %s60
    %p62 = scmp.eq.s32.totalorder %s15, 0
    %p63 = por %p61, %p62
    %s65 = sadd.s32 %s64, 1
    %p68 = scmp.eq.s32.totalorder %s9, 1
    %p69 = scmp.ne.s32.totalorder %s64, %s66
    %p70 = scmp.eq.s32.totalorder %s9, 0
    %p71 = por %p69, %p70
    %p72 = scmp.ne.s32.totalorder %s64, %s66
    %p73 = scmp.eq.s32.totalorder %s14, 1
    %p74 = por %p72, %p73
    %p75 = scmp.ne.s32.totalorder %s66, %s67
    %p76 = scmp.eq.s32.totalorder %s14, 0
    %p77 = por %p75, %p76
    %p78 = scmp.ne.s32.totalorder %s66, %s67
    %p79 = scmp.eq.s32.totalorder %s15, 1
    %p80 = por %p78, %p79
    %p82 = scmp.ne.s32.totalorder %s67, %s81
    %p83 = scmp.eq.s32.totalorder %s15, 0
    %p84 = por %p82, %p83
    %s85 = ssub.s32 %s9, %s16
    %p86 = scmp.eq.s32.totalorder %s85, 0
    %s88 = sadd.s32 %s87, 1
    %s89 = scalar_select %p86, %s87, %s88
    %p92 = pneg %p86
    %p93 = scmp.eq.s32.totalorder %s9, 1
    %p94 = por %p92, %p93
    %p95 = scmp.ne.s32.totalorder %s87, %s90
    %p96 = scmp.eq.s32.totalorder %s9, 0
    %p97 = por %p95, %p96
    %p98 = scmp.ne.s32.totalorder %s87, %s90
    %p99 = scmp.eq.s32.totalorder %s14, 1
    %p100 = por %p98, %p99
    %p101 = scmp.ne.s32.totalorder %s90, %s91
    %p102 = scmp.eq.s32.totalorder %s14, 0
    %p103 = por %p101, %p102
    %p104 = scmp.ne.s32.totalorder %s90, %s91
    %p105 = scmp.eq.s32.totalorder %s15, 1
    %p106 = por %p104, %p105
    %p108 = scmp.ne.s32.totalorder %s91, %s107
    %p109 = scmp.eq.s32.totalorder %s15, 0
    %p110 = por %p108, %p109
    %p111 = scmp.le.s32.totalorder 1, %s9
    %p112 = scmp.lt.s32.totalorder %s9, 3
    %p113 = pnand %p111, %p112
    %p114 = pneg %p113
    // Predicated region
    $region9: #{c3_forward.5} parent=5 // pred_check
      _
    $region10: #{c3_forward.5} parent=5 // pred_check_branch
      %116 = sbr.rel (%p113) target = $region12
    $region11: #{c3_forward.5} parent=5 // pred_region
      %s117 = ssub.s32 %s9, 1
      // Predicated region
      $region13: #{c3_forward.5} parent=11 // pred_check
        %p118 = pneg %p56
      $region14: #{c3_forward.5} parent=11 // pred_check_branch
        %120 = sbr.rel (%p118) target = $region16
      $region15: #{c3_forward.5} parent=11 // pred_region
        _
      $region16: #{c3_forward.5} parent=11 // pred_fallthru
        _
      // Predicated region
      $region17: #{c3_forward.5} parent=11 // pred_check
        %p121 = pneg %p77
      $region18: #{c3_forward.5} parent=11 // pred_check_branch
        %123 = sbr.rel (%p121) target = $region20
      $region19: #{c3_forward.5} parent=11 // pred_region
        _
      $region20: #{c3_forward.5} parent=11 // pred_fallthru
        _
    $region12: #{c3_forward.5} parent=5 // pred_fallthru
      _
    %p124 = scmp.lt.s32.totalorder %s9, 2
    // Predicated region
    $region21: #{c3_forward.5} parent=5 // pred_check
      %p125 = pneg %p124
    $region22: #{c3_forward.5} parent=5 // pred_check_branch
      %127 = sbr.rel (%p125) target = $region24
    $region23: #{c3_forward.5} parent=5 // pred_region
      // Predicated region
      $region25: #{c3_forward.5} parent=23 // pred_check
        %p128 = pneg %p29
      $region26: #{c3_forward.5} parent=23 // pred_check_branch
        %130 = sbr.rel (%p128) target = $region28
      $region27: #{c3_forward.5} parent=23 // pred_region
        %s131 = smul.u32 32, %s9
        %p132 = scmp.lt.s32.totalorder %s131, 63
        %s133 = scalar_select %p132, %s131, 63
        %s134 = smul.addr %s133, 4
        %s135 = scalar_lea.vmem %s0, %s134
        %s136 = smul.u32 32, %s9
      $region28: #{c3_forward.5} parent=23 // pred_fallthru
        _
    $region24: #{c3_forward.5} parent=5 // pred_fallthru
      _
    %p137 = scmp.le.s32.totalorder 1, %s9
    %p138 = scmp.lt.s32.totalorder %s9, 3
    %p139 = pnand %p137, %p138
    %p140 = pneg %p139
    // Predicated region
    $region29: #{c3_forward.5} parent=5 // pred_check
      _
    $region30: #{c3_forward.5} parent=5 // pred_check_branch
      %142 = sbr.rel (%p139) target = $region32
    $region31: #{c3_forward.5} parent=5 // pred_region
      %s143 = ssub.s32 %s9, 1
      %s144 = smul.u32 32, %s14
      %p145 = scmp.lt.s32.totalorder %s144, 63
      %s146 = scalar_select %p145, %s144, 63
      %s147 = smul.addr %s146, 4
      %s148 = scalar_lea.vmem %s0, %s147
      %p149 = pneg %p35
      %p150 = pneg %p32
      %p151 = pneg %p56
      %p152 = pneg %p53
      %p153 = pneg %p77
      %p154 = pneg %p74
      %p155 = pneg %p103
      %p156 = pneg %p100
      %s157 = smul.u32 32, %s14
      %p158 = scmp.lt.s32.totalorder %s157, 63
      %s159 = scalar_select %p158, %s157, 63
      %s160 = smul.addr %s159, 4
      %s161 = scalar_lea.vmem %s3, %s160
      %s162 = smul.u32 32, %s14
      %p163 = scmp.lt.s32.totalorder %s162, 63
      %s164 = scalar_select %p163, %s162, 63
      %s165 = smul.addr %s164, 4
      %s166 = scalar_lea.vmem %s0, %s165
      %s167 = smul.u32 32, %s14
      %s168 = smul.u32 32, %s14
      %p169 = scmp.lt.s32.totalorder %s168, 63
      %s170 = scalar_select %p169, %s168, 63
      %s171 = smul.addr %s170, 4
      %s172 = scalar_lea.vmem %s3, %s171
      %s173 = smul.u32 32, %s14
      %v175 = vld [vmem:[%s166] sm:$0xf]
      %v176 = vld [vmem:[%s166 + $0x4] sm:$0xf]
      %v177 = vld [vmem:[%s166 + $0x8] sm:$0xf]
      %v178 = vld [vmem:[%s166 + $0xc] sm:$0xf]
      %v179 = vld [vmem:[%s166 + $0x10] sm:$0xf]
      %v180 = vld [vmem:[%s166 + $0x14] sm:$0xf]
      %v181 = vld [vmem:[%s166 + $0x18] sm:$0xf]
      %v182 = vld [vmem:[%s166 + $0x1c] sm:$0xf]
      %v183 = vld [vmem:[%s166 + $0x20] sm:$0xf]
      %v184 = vld [vmem:[%s166 + $0x24] sm:$0xf]
      %v185 = vld [vmem:[%s166 + $0x28] sm:$0xf]
      %v186 = vld [vmem:[%s166 + $0x2c] sm:$0xf]
      %v187 = vld [vmem:[%s166 + $0x30] sm:$0xf]
      %v188 = vld [vmem:[%s166 + $0x34] sm:$0xf]
      %v189 = vld [vmem:[%s166 + $0x38] sm:$0xf]
      %v190 = vld [vmem:[%s166 + $0x3c] sm:$0xf]
      %v191 = vld [vmem:[%s166 + $0x40] sm:$0xf]
      %v192 = vld [vmem:[%s166 + $0x44] sm:$0xf]
      %v193 = vld [vmem:[%s166 + $0x48] sm:$0xf]
      %v194 = vld [vmem:[%s166 + $0x4c] sm:$0xf]
      %v195 = vld [vmem:[%s166 + $0x50] sm:$0xf]
      %v196 = vld [vmem:[%s166 + $0x54] sm:$0xf]
      %v197 = vld [vmem:[%s166 + $0x58] sm:$0xf]
      %v198 = vld [vmem:[%s166 + $0x5c] sm:$0xf]
      %v199 = vld [vmem:[%s166 + $0x60] sm:$0xf]
      %v200 = vld [vmem:[%s166 + $0x64] sm:$0xf]
      %v201 = vld [vmem:[%s166 + $0x68] sm:$0xf]
      %v202 = vld [vmem:[%s166 + $0x6c] sm:$0xf]
      %v203 = vld [vmem:[%s166 + $0x70] sm:$0xf]
      %v204 = vld [vmem:[%s166 + $0x74] sm:$0xf]
      %v205 = vld [vmem:[%s166 + $0x78] sm:$0xf]
      %v206 = vld [vmem:[%s166 + $0x7c] sm:$0xf]
      %v207 = vld [vmem:[%s1] sm:$0xf]
      %v208 = vld [vmem:[%s1 + $0x4] sm:$0xf]
      %v209 = vld [vmem:[%s1 + $0x8] sm:$0xf]
      %v210 = vld [vmem:[%s1 + $0xc] sm:$0xf]
      %v211 = vld [vmem:[%s1 + $0x10] sm:$0xf]
      %v212 = vld [vmem:[%s1 + $0x14] sm:$0xf]
      %v213 = vld [vmem:[%s1 + $0x18] sm:$0xf]
      %v214 = vld [vmem:[%s1 + $0x1c] sm:$0xf]
      %v215 = vld [vmem:[%s1 + $0x20] sm:$0xf]
      %v216 = vld [vmem:[%s1 + $0x24] sm:$0xf]
      %v217 = vld [vmem:[%s1 + $0x28] sm:$0xf]
      %v218 = vld [vmem:[%s1 + $0x2c] sm:$0xf]
      %v219 = vld [vmem:[%s1 + $0x30] sm:$0xf]
      %v220 = vld [vmem:[%s1 + $0x34] sm:$0xf]
      %v221 = vld [vmem:[%s1 + $0x38] sm:$0xf]
      %v222 = vld [vmem:[%s1 + $0x3c] sm:$0xf]
      %v223 = vld [vmem:[%s2] sm:$0x1]
      %v225 = vlaneseq
      %v226 = vshrl.u32 %v225, 7
      %v227 = vsub.s32 0, %v226
      %v228 = vrot.slane %v223, %v227
      %v262 = vunpack.c.l.b16 %v175
      %v263 = vunpack.c.l.b16 %v176
      %v264 = vunpack.c.l.b16 %v177
      %v265 = vunpack.c.l.b16 %v178
      %v266 = vunpack.c.l.b16 %v179
      %v267 = vunpack.c.l.b16 %v180
      %v268 = vunpack.c.l.b16 %v181
      %v269 = vunpack.c.l.b16 %v182
      %v270 = vunpack.c.l.b16 %v183
      %v271 = vunpack.c.l.b16 %v184
      %v272 = vunpack.c.l.b16 %v185
      %v273 = vunpack.c.l.b16 %v186
      %v274 = vunpack.c.l.b16 %v187
      %v275 = vunpack.c.l.b16 %v188
      %v276 = vunpack.c.l.b16 %v189
      %v277 = vunpack.c.l.b16 %v190
      %v278 = vunpack.c.l.b16 %v191
      %v279 = vunpack.c.l.b16 %v192
      %v280 = vunpack.c.l.b16 %v193
      %v281 = vunpack.c.l.b16 %v194
      %v282 = vunpack.c.l.b16 %v195
      %v283 = vunpack.c.l.b16 %v196
      %v284 = vunpack.c.l.b16 %v197
      %v285 = vunpack.c.l.b16 %v198
      %v286 = vunpack.c.l.b16 %v199
      %v287 = vunpack.c.l.b16 %v200
      %v288 = vunpack.c.l.b16 %v201
      %v289 = vunpack.c.l.b16 %v202
      %v290 = vunpack.c.l.b16 %v203
      %v291 = vunpack.c.l.b16 %v204
      %v292 = vunpack.c.l.b16 %v205
      %v293 = vunpack.c.l.b16 %v206
      %v294 = vpack.c.b16 %v263, %v262
      %v295 = vpack.c.b16 %v265, %v264
      %v296 = vpack.c.b16 %v267, %v266
      %v297 = vpack.c.b16 %v269, %v268
      %v298 = vpack.c.b16 %v271, %v270
      %v299 = vpack.c.b16 %v273, %v272
      %v300 = vpack.c.b16 %v275, %v274
      %v301 = vpack.c.b16 %v277, %v276
      %v302 = vpack.c.b16 %v279, %v278
      %v303 = vpack.c.b16 %v281, %v280
      %v304 = vpack.c.b16 %v283, %v282
      %v305 = vpack.c.b16 %v285, %v284
      %v306 = vpack.c.b16 %v287, %v286
      %v307 = vpack.c.b16 %v289, %v288
      %v308 = vpack.c.b16 %v291, %v290
      %v309 = vpack.c.b16 %v293, %v292
      %v342 = vunpack.c.l.b16 %v207
      %v343 = vunpack.c.l.b16 %v208
      %v344 = vunpack.c.l.b16 %v209
      %v345 = vunpack.c.l.b16 %v210
      %v346 = vunpack.c.l.b16 %v211
      %v347 = vunpack.c.l.b16 %v212
      %v348 = vunpack.c.l.b16 %v213
      %v349 = vunpack.c.l.b16 %v214
      %v350 = vunpack.c.l.b16 %v215
      %v351 = vunpack.c.l.b16 %v216
      %v352 = vunpack.c.l.b16 %v217
      %v353 = vunpack.c.l.b16 %v218
      %v354 = vunpack.c.l.b16 %v219
      %v355 = vunpack.c.l.b16 %v220
      %v356 = vunpack.c.l.b16 %v221
      %v357 = vunpack.c.l.b16 %v222
      %v358 = vpack.c.b16 %v343, %v342
      %v359 = vpack.c.b16 %v345, %v344
      %v360 = vpack.c.b16 %v347, %v346
      %v361 = vpack.c.b16 %v349, %v348
      %v362 = vpack.c.b16 %v351, %v350
      %v363 = vpack.c.b16 %v353, %v352
      %v364 = vpack.c.b16 %v355, %v354
      %v365 = vpack.c.b16 %v357, %v356
      %374 = vmatprep.subr.bf16.mxu0 0
      %375 = vmatpush1.bf16.msra.mxu0 %v358
      %376 = vmatprep.subr.bf16.mxu0 0
      %377 = vmatpush1.bf16.msra.mxu0 %v359
      %378 = vmatprep.subr.bf16.mxu0 0
      %379 = vmatpush1.bf16.msra.mxu0 %v360
      %380 = vmatprep.subr.bf16.mxu0 0
      %381 = vmatpush1.bf16.msra.mxu0 %v361
      %382 = vmatprep.subr.bf16.mxu0 0
      %383 = vmatpush1.bf16.msra.mxu0 %v362
      %384 = vmatprep.subr.bf16.mxu0 0
      %385 = vmatpush1.bf16.msra.mxu0 %v363
      %386 = vmatprep.subr.bf16.mxu0 0
      %387 = vmatpush1.bf16.msra.mxu0 %v364
      %388 = vmatprep.subr.bf16.mxu0 0
      %389 = vmatpush1.bf16.msra.mxu0 %v365
      %390 = vmatprep.subr.bf16.mxu0 0
      %391 = vmatpush1.bf16.msra.mxu0 0
      %392 = vmatprep.subr.bf16.mxu0 0
      %393 = vmatpush1.bf16.msra.mxu0 0
      %394 = vmatprep.subr.bf16.mxu0 0
      %395 = vmatpush1.bf16.msra.mxu0 0
      %396 = vmatprep.subr.bf16.mxu0 0
      %397 = vmatpush1.bf16.msra.mxu0 0
      %398 = vmatprep.subr.bf16.mxu0 0
      %399 = vmatpush1.bf16.msra.mxu0 0
      %400 = vmatprep.subr.bf16.mxu0 0
      %401 = vmatpush1.bf16.msra.mxu0 0
      %402 = vmatprep.subr.bf16.mxu0 0
      %403 = vmatpush1.bf16.msra.mxu0 0
      %404 = vmatprep.subr.bf16.mxu0 0
      %405 = vmatpush1.bf16.msra.mxu0 0
      %406 = vmatprep.mubr.bf16.mxu0 0
      %407 = vmatmul.mubr.bf16.gmra.mrb[0].mxu0 %v294
      %v408 = vpop.f32.mrb[0].mxu0
      %v409 = vadd.f32 %v228, %v408
      %v410 = vpop.f32.mrb[0].mxu0
      %v411 = vpop.f32.mrb[0].mxu0
      %v412 = vadd.f32 %v228, %v411
      %v413 = vpop.f32.mrb[0].mxu0
      %414 = vmatprep.mubr.bf16.mxu0 0
      %415 = vmatmul.mubr.bf16.gmra.mrb[0].mxu0 %v295
      %v416 = vpop.f32.mrb[0].mxu0
      %v417 = vadd.f32 %v228, %v416
      %v418 = vpop.f32.mrb[0].mxu0
      %v419 = vpop.f32.mrb[0].mxu0
      %v420 = vadd.f32 %v228, %v419
      %v421 = vpop.f32.mrb[0].mxu0
      %422 = vmatprep.mubr.bf16.mxu0 0
      %423 = vmatmul.mubr.bf16.gmra.mrb[0].mxu0 %v296
      %v424 = vpop.f32.mrb[0].mxu0
      %v425 = vadd.f32 %v228, %v424
      %v426 = vpop.f32.mrb[0].mxu0
      %v427 = vpop.f32.mrb[0].mxu0
      %v428 = vadd.f32 %v228, %v427
      %v429 = vpop.f32.mrb[0].mxu0
      %430 = vmatprep.mubr.bf16.mxu0 0
      %431 = vmatmul.mubr.bf16.gmra.mrb[0].mxu0 %v297
      %v432 = vpop.f32.mrb[0].mxu0
      %v433 = vadd.f32 %v228, %v432
      %v434 = vpop.f32.mrb[0].mxu0
      %v435 = vpop.f32.mrb[0].mxu0
      %v436 = vadd.f32 %v228, %v435
      %v437 = vpop.f32.mrb[0].mxu0
      %438 = vmatprep.mubr.bf16.mxu0 0
      %439 = vmatmul.mubr.bf16.gmra.mrb[0].mxu0 %v298
      %v440 = vpop.f32.mrb[0].mxu0
      %v441 = vadd.f32 %v228, %v440
      %v442 = vpop.f32.mrb[0].mxu0
      %v443 = vpop.f32.mrb[0].mxu0
      %v444 = vadd.f32 %v228, %v443
      %v445 = vpop.f32.mrb[0].mxu0
      %446 = vmatprep.mubr.bf16.mxu0 0
      %447 = vmatmul.mubr.bf16.gmra.mrb[0].mxu0 %v299
      %v448 = vpop.f32.mrb[0].mxu0
      %v449 = vadd.f32 %v228, %v448
      %v450 = vpop.f32.mrb[0].mxu0
      %v451 = vpop.f32.mrb[0].mxu0
      %v452 = vadd.f32 %v228, %v451
      %v453 = vpop.f32.mrb[0].mxu0
      %454 = vmatprep.mubr.bf16.mxu0 0
      %455 = vmatmul.mubr.bf16.gmra.mrb[0].mxu0 %v300
      %v456 = vpop.f32.mrb[0].mxu0
      %v457 = vadd.f32 %v228, %v456
      %v458 = vpop.f32.mrb[0].mxu0
      %v459 = vpop.f32.mrb[0].mxu0
      %v460 = vadd.f32 %v228, %v459
      %v461 = vpop.f32.mrb[0].mxu0
      %462 = vmatprep.mubr.bf16.mxu0 0
      %463 = vmatmul.mubr.bf16.gmra.mrb[0].mxu0 %v301
      %v464 = vpop.f32.mrb[0].mxu0
      %v465 = vadd.f32 %v228, %v464
      %v466 = vpop.f32.mrb[0].mxu0
      %v467 = vpop.f32.mrb[0].mxu0
      %v468 = vadd.f32 %v228, %v467
      %v469 = vpop.f32.mrb[0].mxu0
      %470 = vmatprep.mubr.bf16.mxu0 0
      %471 = vmatmul.mubr.bf16.gmra.mrb[0].mxu0 %v302
      %v472 = vpop.f32.mrb[0].mxu0
      %v473 = vadd.f32 %v228, %v472
      %v474 = vpop.f32.mrb[0].mxu0
      %v475 = vpop.f32.mrb[0].mxu0
      %v476 = vadd.f32 %v228, %v475
      %v477 = vpop.f32.mrb[0].mxu0
      %478 = vmatprep.mubr.bf16.mxu0 0
      %479 = vmatmul.mubr.bf16.gmra.mrb[0].mxu0 %v303
      %v480 = vpop.f32.mrb[0].mxu0
      %v481 = vadd.f32 %v228, %v480
      %v482 = vpop.f32.mrb[0].mxu0
      %v483 = vpop.f32.mrb[0].mxu0
      %v484 = vadd.f32 %v228, %v483
      %v485 = vpop.f32.mrb[0].mxu0
      %486 = vmatprep.mubr.bf16.mxu0 0
      %487 = vmatmul.mubr.bf16.gmra.mrb[0].mxu0 %v304
      %v488 = vpop.f32.mrb[0].mxu0
      %v489 = vadd.f32 %v228, %v488
      %v490 = vpop.f32.mrb[0].mxu0
      %v491 = vpop.f32.mrb[0].mxu0
      %v492 = vadd.f32 %v228, %v491
      %v493 = vpop.f32.mrb[0].mxu0
      %494 = vmatprep.mubr.bf16.mxu0 0
      %495 = vmatmul.mubr.bf16.gmra.mrb[0].mxu0 %v305
      %v496 = vpop.f32.mrb[0].mxu0
      %v497 = vadd.f32 %v228, %v496
      %v498 = vpop.f32.mrb[0].mxu0
      %v499 = vpop.f32.mrb[0].mxu0
      %v500 = vadd.f32 %v228, %v499
      %v501 = vpop.f32.mrb[0].mxu0
      %502 = vmatprep.mubr.bf16.mxu0 0
      %503 = vmatmul.mubr.bf16.gmra.mrb[0].mxu0 %v306
      %v504 = vpop.f32.mrb[0].mxu0
      %v505 = vadd.f32 %v228, %v504
      %v506 = vpop.f32.mrb[0].mxu0
      %v507 = vpop.f32.mrb[0].mxu0
      %v508 = vadd.f32 %v228, %v507
      %v509 = vpop.f32.mrb[0].mxu0
      %510 = vmatprep.mubr.bf16.mxu0 0
      %511 = vmatmul.mubr.bf16.gmra.mrb[0].mxu0 %v307
      %v512 = vpop.f32.mrb[0].mxu0
      %v513 = vadd.f32 %v228, %v512
      %v514 = vpop.f32.mrb[0].mxu0
      %v515 = vpop.f32.mrb[0].mxu0
      %v516 = vadd.f32 %v228, %v515
      %v517 = vpop.f32.mrb[0].mxu0
      %518 = vmatprep.mubr.bf16.mxu0 0
      %519 = vmatmul.mubr.bf16.gmra.mrb[0].mxu0 %v308
      %v520 = vpop.f32.mrb[0].mxu0
      %v521 = vadd.f32 %v228, %v520
      %v522 = vpop.f32.mrb[0].mxu0
      %v523 = vpop.f32.mrb[0].mxu0
      %v524 = vadd.f32 %v228, %v523
      %v525 = vpop.f32.mrb[0].mxu0
      %526 = vmatprep.mubr.bf16.mxu0 0
      %527 = vmatmul.mubr.bf16.gmra.mrb[0].mxu0 %v309
      %v528 = vpop.f32.mrb[0].mxu0
      %v529 = vadd.f32 %v228, %v528
      %v530 = vpop.f32.mrb[0].mxu0
      %v531 = vpop.f32.mrb[0].mxu0
      %v532 = vadd.f32 %v228, %v531
      %v533 = vpop.f32.mrb[0].mxu0
      %534 = vdwg.mxu0
      %v535 = vxor.u32 %v409, 2147483648
      %v536 = vxor.u32 %v412, 2147483648
      %v537 = vxor.u32 %v417, 2147483648
      %v538 = vxor.u32 %v420, 2147483648
      %v539 = vxor.u32 %v425, 2147483648
      %v540 = vxor.u32 %v428, 2147483648
      %v541 = vxor.u32 %v433, 2147483648
      %v542 = vxor.u32 %v436, 2147483648
      %v543 = vxor.u32 %v441, 2147483648
      %v544 = vxor.u32 %v444, 2147483648
      %v545 = vxor.u32 %v449, 2147483648
      %v546 = vxor.u32 %v452, 2147483648
      %v547 = vxor.u32 %v457, 2147483648
      %v548 = vxor.u32 %v460, 2147483648
      %v549 = vxor.u32 %v465, 2147483648
      %v550 = vxor.u32 %v468, 2147483648
      %v551 = vxor.u32 %v473, 2147483648
      %v552 = vxor.u32 %v476, 2147483648
      %v553 = vxor.u32 %v481, 2147483648
      %v554 = vxor.u32 %v484, 2147483648
      %v555 = vxor.u32 %v489, 2147483648
      %v556 = vxor.u32 %v492, 2147483648
      %v557 = vxor.u32 %v497, 2147483648
      %v558 = vxor.u32 %v500, 2147483648
      %v559 = vxor.u32 %v505, 2147483648
      %v560 = vxor.u32 %v508, 2147483648
      %v561 = vxor.u32 %v513, 2147483648
      %v562 = vxor.u32 %v516, 2147483648
      %v563 = vxor.u32 %v521, 2147483648
      %v564 = vxor.u32 %v524, 2147483648
      %v565 = vxor.u32 %v529, 2147483648
      %v566 = vxor.u32 %v532, 2147483648
      %v567 = vmul.f32 %v535, 1.442695
      %v568 = vpow.pop %v567
      %v569 = vmul.f32 %v536, 1.442695
      %v570 = vpow.pop %v569
      %v571 = vmul.f32 %v537, 1.442695
      %v572 = vpow.pop %v571
      %v573 = vmul.f32 %v538, 1.442695
      %v574 = vpow.pop %v573
      %v575 = vmul.f32 %v539, 1.442695
      %v576 = vpow.pop %v575
      %v577 = vmul.f32 %v540, 1.442695
      %v578 = vpow.pop %v577
      %v579 = vmul.f32 %v541, 1.442695
      %v580 = vpow.pop %v579
      %v581 = vmul.f32 %v542, 1.442695
      %v582 = vpow.pop %v581
      %v583 = vmul.f32 %v543, 1.442695
      %v584 = vpow.pop %v583
      %v585 = vmul.f32 %v544, 1.442695
      %v586 = vpow.pop %v585
      %v587 = vmul.f32 %v545, 1.442695
      %v588 = vpow.pop %v587
      %v589 = vmul.f32 %v546, 1.442695
      %v590 = vpow.pop %v589
      %v591 = vmul.f32 %v547, 1.442695
      %v592 = vpow.pop %v591
      %v593 = vmul.f32 %v548, 1.442695
      %v594 = vpow.pop %v593
      %v595 = vmul.f32 %v549, 1.442695
      %v596 = vpow.pop %v595
      %v597 = vmul.f32 %v550, 1.442695
      %v598 = vpow.pop %v597
      %v599 = vmul.f32 %v551, 1.442695
      %v600 = vpow.pop %v599
      %v601 = vmul.f32 %v552, 1.442695
      %v602 = vpow.pop %v601
      %v603 = vmul.f32 %v553, 1.442695
      %v604 = vpow.pop %v603
      %v605 = vmul.f32 %v554, 1.442695
      %v606 = vpow.pop %v605
      %v607 = vmul.f32 %v555, 1.442695
      %v608 = vpow.pop %v607
      %v609 = vmul.f32 %v556, 1.442695
      %v610 = vpow.pop %v609
      %v611 = vmul.f32 %v557, 1.442695
      %v612 = vpow.pop %v611
      %v613 = vmul.f32 %v558, 1.442695
      %v614 = vpow.pop %v613
      %v615 = vmul.f32 %v559, 1.442695
      %v616 = vpow.pop %v615
      %v617 = vmul.f32 %v560, 1.442695
      %v618 = vpow.pop %v617
      %v619 = vmul.f32 %v561, 1.442695
      %v620 = vpow.pop %v619
      %v621 = vmul.f32 %v562, 1.442695
      %v622 = vpow.pop %v621
      %v623 = vmul.f32 %v563, 1.442695
      %v624 = vpow.pop %v623
      %v625 = vmul.f32 %v564, 1.442695
      %v626 = vpow.pop %v625
      %v627 = vmul.f32 %v565, 1.442695
      %v628 = vpow.pop %v627
      %v629 = vmul.f32 %v566, 1.442695
      %v630 = vpow.pop %v629
      %v631 = vadd.f32 %v568, 1.0
      %v632 = vadd.f32 %v570, 1.0
      %v633 = vadd.f32 %v572, 1.0
      %v634 = vadd.f32 %v574, 1.0
      %v635 = vadd.f32 %v576, 1.0
      %v636 = vadd.f32 %v578, 1.0
      %v637 = vadd.f32 %v580, 1.0
      %v638 = vadd.f32 %v582, 1.0
      %v639 = vadd.f32 %v584, 1.0
      %v640 = vadd.f32 %v586, 1.0
      %v641 = vadd.f32 %v588, 1.0
      %v642 = vadd.f32 %v590, 1.0
      %v643 = vadd.f32 %v592, 1.0
      %v644 = vadd.f32 %v594, 1.0
      %v645 = vadd.f32 %v596, 1.0
      %v646 = vadd.f32 %v598, 1.0
      %v647 = vadd.f32 %v600, 1.0
      %v648 = vadd.f32 %v602, 1.0
      %v649 = vadd.f32 %v604, 1.0
      %v650 = vadd.f32 %v606, 1.0
      %v651 = vadd.f32 %v608, 1.0
      %v652 = vadd.f32 %v610, 1.0
      %v653 = vadd.f32 %v612, 1.0
      %v654 = vadd.f32 %v614, 1.0
      %v655 = vadd.f32 %v616, 1.0
      %v656 = vadd.f32 %v618, 1.0
      %v657 = vadd.f32 %v620, 1.0
      %v658 = vadd.f32 %v622, 1.0
      %v659 = vadd.f32 %v624, 1.0
      %v660 = vadd.f32 %v626, 1.0
      %v661 = vadd.f32 %v628, 1.0
      %v662 = vadd.f32 %v630, 1.0
      %v663 = vrcp.pop %v631
      %v664 = vmul.f32 1.0, %v663
      %v665 = vrcp.pop %v632
      %v666 = vmul.f32 1.0, %v665
      %v667 = vrcp.pop %v633
      %v668 = vmul.f32 1.0, %v667
      %v669 = vrcp.pop %v634
      %v670 = vmul.f32 1.0, %v669
      %v671 = vrcp.pop %v635
      %v672 = vmul.f32 1.0, %v671
      %v673 = vrcp.pop %v636
      %v674 = vmul.f32 1.0, %v673
      %v675 = vrcp.pop %v637
      %v676 = vmul.f32 1.0, %v675
      %v677 = vrcp.pop %v638
      %v678 = vmul.f32 1.0, %v677
      %v679 = vrcp.pop %v639
      %v680 = vmul.f32 1.0, %v679
      %v681 = vrcp.pop %v640
      %v682 = vmul.f32 1.0, %v681
      %v683 = vrcp.pop %v641
      %v684 = vmul.f32 1.0, %v683
      %v685 = vrcp.pop %v642
      %v686 = vmul.f32 1.0, %v685
      %v687 = vrcp.pop %v643
      %v688 = vmul.f32 1.0, %v687
      %v689 = vrcp.pop %v644
      %v690 = vmul.f32 1.0, %v689
      %v691 = vrcp.pop %v645
      %v692 = vmul.f32 1.0, %v691
      %v693 = vrcp.pop %v646
      %v694 = vmul.f32 1.0, %v693
      %v695 = vrcp.pop %v647
      %v696 = vmul.f32 1.0, %v695
      %v697 = vrcp.pop %v648
      %v698 = vmul.f32 1.0, %v697
      %v699 = vrcp.pop %v649
      %v700 = vmul.f32 1.0, %v699
      %v701 = vrcp.pop %v650
      %v702 = vmul.f32 1.0, %v701
      %v703 = vrcp.pop %v651
      %v704 = vmul.f32 1.0, %v703
      %v705 = vrcp.pop %v652
      %v706 = vmul.f32 1.0, %v705
      %v707 = vrcp.pop %v653
      %v708 = vmul.f32 1.0, %v707
      %v709 = vrcp.pop %v654
      %v710 = vmul.f32 1.0, %v709
      %v711 = vrcp.pop %v655
      %v712 = vmul.f32 1.0, %v711
      %v713 = vrcp.pop %v656
      %v714 = vmul.f32 1.0, %v713
      %v715 = vrcp.pop %v657
      %v716 = vmul.f32 1.0, %v715
      %v717 = vrcp.pop %v658
      %v718 = vmul.f32 1.0, %v717
      %v719 = vrcp.pop %v659
      %v720 = vmul.f32 1.0, %v719
      %v721 = vrcp.pop %v660
      %v722 = vmul.f32 1.0, %v721
      %v723 = vrcp.pop %v661
      %v724 = vmul.f32 1.0, %v723
      %v725 = vrcp.pop %v662
      %v726 = vmul.f32 1.0, %v725
      %v727 = vmul.f32 %v409, %v664
      %v728 = vmul.f32 %v412, %v666
      %v729 = vmul.f32 %v417, %v668
      %v730 = vmul.f32 %v420, %v670
      %v731 = vmul.f32 %v425, %v672
      %v732 = vmul.f32 %v428, %v674
      %v733 = vmul.f32 %v433, %v676
      %v734 = vmul.f32 %v436, %v678
      %v735 = vmul.f32 %v441, %v680
      %v736 = vmul.f32 %v444, %v682
      %v737 = vmul.f32 %v449, %v684
      %v738 = vmul.f32 %v452, %v686
      %v739 = vmul.f32 %v457, %v688
      %v740 = vmul.f32 %v460, %v690
      %v741 = vmul.f32 %v465, %v692
      %v742 = vmul.f32 %v468, %v694
      %v743 = vmul.f32 %v473, %v696
      %v744 = vmul.f32 %v476, %v698
      %v745 = vmul.f32 %v481, %v700
      %v746 = vmul.f32 %v484, %v702
      %v747 = vmul.f32 %v489, %v704
      %v748 = vmul.f32 %v492, %v706
      %v749 = vmul.f32 %v497, %v708
      %v750 = vmul.f32 %v500, %v710
      %v751 = vmul.f32 %v505, %v712
      %v752 = vmul.f32 %v508, %v714
      %v753 = vmul.f32 %v513, %v716
      %v754 = vmul.f32 %v516, %v718
      %v755 = vmul.f32 %v521, %v720
      %v756 = vmul.f32 %v524, %v722
      %v757 = vmul.f32 %v529, %v724
      %v758 = vmul.f32 %v532, %v726
      %v759 = vpack.c.bf16 %v728, %v727
      %v760 = vpack.c.bf16 %v730, %v729
      %v761 = vpack.c.bf16 %v732, %v731
      %v762 = vpack.c.bf16 %v734, %v733
      %v763 = vpack.c.bf16 %v736, %v735
      %v764 = vpack.c.bf16 %v738, %v737
      %v765 = vpack.c.bf16 %v740, %v739
      %v766 = vpack.c.bf16 %v742, %v741
      %v767 = vpack.c.bf16 %v744, %v743
      %v768 = vpack.c.bf16 %v746, %v745
      %v769 = vpack.c.bf16 %v748, %v747
      %v770 = vpack.c.bf16 %v750, %v749
      %v771 = vpack.c.bf16 %v752, %v751
      %v772 = vpack.c.bf16 %v754, %v753
      %v773 = vpack.c.bf16 %v756, %v755
      %v774 = vpack.c.bf16 %v758, %v757
      %v791 = vunpack.c.l.b16 %v759
      %v792 = vunpack.c.h.b16 %v759
      %v793 = vunpack.c.l.b16 %v760
      %v794 = vunpack.c.h.b16 %v760
      %v795 = vunpack.c.l.b16 %v761
      %v796 = vunpack.c.h.b16 %v761
      %v797 = vunpack.c.l.b16 %v762
      %v798 = vunpack.c.h.b16 %v762
      %v799 = vunpack.c.l.b16 %v763
      %v800 = vunpack.c.h.b16 %v763
      %v801 = vunpack.c.l.b16 %v764
      %v802 = vunpack.c.h.b16 %v764
      %v803 = vunpack.c.l.b16 %v765
      %v804 = vunpack.c.h.b16 %v765
      %v805 = vunpack.c.l.b16 %v766
      %v806 = vunpack.c.h.b16 %v766
      %v807 = vunpack.c.l.b16 %v767
      %v808 = vunpack.c.h.b16 %v767
      %v809 = vunpack.c.l.b16 %v768
      %v810 = vunpack.c.h.b16 %v768
      %v811 = vunpack.c.l.b16 %v769
      %v812 = vunpack.c.h.b16 %v769
      %v813 = vunpack.c.l.b16 %v770
      %v814 = vunpack.c.h.b16 %v770
      %v815 = vunpack.c.l.b16 %v771
      %v816 = vunpack.c.h.b16 %v771
      %v817 = vunpack.c.l.b16 %v772
      %v818 = vunpack.c.h.b16 %v772
      %v819 = vunpack.c.l.b16 %v773
      %v820 = vunpack.c.h.b16 %v773
      %v821 = vunpack.c.l.b16 %v774
      %v822 = vunpack.c.h.b16 %v774
      %v823 = vpack.c.b16 %v791, %v791
      %v824 = vpack.c.b16 %v792, %v792
      %v825 = vpack.c.b16 %v793, %v793
      %v826 = vpack.c.b16 %v794, %v794
      %v827 = vpack.c.b16 %v795, %v795
      %v828 = vpack.c.b16 %v796, %v796
      %v829 = vpack.c.b16 %v797, %v797
      %v830 = vpack.c.b16 %v798, %v798
      %v831 = vpack.c.b16 %v799, %v799
      %v832 = vpack.c.b16 %v800, %v800
      %v833 = vpack.c.b16 %v801, %v801
      %v834 = vpack.c.b16 %v802, %v802
      %v835 = vpack.c.b16 %v803, %v803
      %v836 = vpack.c.b16 %v804, %v804
      %v837 = vpack.c.b16 %v805, %v805
      %v838 = vpack.c.b16 %v806, %v806
      %v839 = vpack.c.b16 %v807, %v807
      %v840 = vpack.c.b16 %v808, %v808
      %v841 = vpack.c.b16 %v809, %v809
      %v842 = vpack.c.b16 %v810, %v810
      %v843 = vpack.c.b16 %v811, %v811
      %v844 = vpack.c.b16 %v812, %v812
      %v845 = vpack.c.b16 %v813, %v813
      %v846 = vpack.c.b16 %v814, %v814
      %v847 = vpack.c.b16 %v815, %v815
      %v848 = vpack.c.b16 %v816, %v816
      %v849 = vpack.c.b16 %v817, %v817
      %v850 = vpack.c.b16 %v818, %v818
      %v851 = vpack.c.b16 %v819, %v819
      %v852 = vpack.c.b16 %v820, %v820
      %v853 = vpack.c.b16 %v821, %v821
      %v854 = vpack.c.b16 %v822, %v822
      %887 = vst [vmem:[%s172] sm:$0xf] %v823
      %888 = vst [vmem:[%s172 + $0x4] sm:$0xf] %v824
      %889 = vst [vmem:[%s172 + $0x8] sm:$0xf] %v825
      %890 = vst [vmem:[%s172 + $0xc] sm:$0xf] %v826
      %891 = vst [vmem:[%s172 + $0x10] sm:$0xf] %v827
      %892 = vst [vmem:[%s172 + $0x14] sm:$0xf] %v828
      %893 = vst [vmem:[%s172 + $0x18] sm:$0xf] %v829
      %894 = vst [vmem:[%s172 + $0x1c] sm:$0xf] %v830
      %895 = vst [vmem:[%s172 + $0x20] sm:$0xf] %v831
      %896 = vst [vmem:[%s172 + $0x24] sm:$0xf] %v832
      %897 = vst [vmem:[%s172 + $0x28] sm:$0xf] %v833
      %898 = vst [vmem:[%s172 + $0x2c] sm:$0xf] %v834
      %899 = vst [vmem:[%s172 + $0x30] sm:$0xf] %v835
      %900 = vst [vmem:[%s172 + $0x34] sm:$0xf] %v836
      %901 = vst [vmem:[%s172 + $0x38] sm:$0xf] %v837
      %902 = vst [vmem:[%s172 + $0x3c] sm:$0xf] %v838
      %903 = vst [vmem:[%s172 + $0x40] sm:$0xf] %v839
      %904 = vst [vmem:[%s172 + $0x44] sm:$0xf] %v840
      %905 = vst [vmem:[%s172 + $0x48] sm:$0xf] %v841
      %906 = vst [vmem:[%s172 + $0x4c] sm:$0xf] %v842
      %907 = vst [vmem:[%s172 + $0x50] sm:$0xf] %v843
      %908 = vst [vmem:[%s172 + $0x54] sm:$0xf] %v844
      %909 = vst [vmem:[%s172 + $0x58] sm:$0xf] %v845
      %910 = vst [vmem:[%s172 + $0x5c] sm:$0xf] %v846
      %911 = vst [vmem:[%s172 + $0x60] sm:$0xf] %v847
      %912 = vst [vmem:[%s172 + $0x64] sm:$0xf] %v848
      %913 = vst [vmem:[%s172 + $0x68] sm:$0xf] %v849
      %914 = vst [vmem:[%s172 + $0x6c] sm:$0xf] %v850
      %915 = vst [vmem:[%s172 + $0x70] sm:$0xf] %v851
      %916 = vst [vmem:[%s172 + $0x74] sm:$0xf] %v852
      %917 = vst [vmem:[%s172 + $0x78] sm:$0xf] %v853
      %918 = vst [vmem:[%s172 + $0x7c] sm:$0xf] %v854
      %s919 = smul.u32 32, %s14
      %p920 = scmp.lt.s32.totalorder %s919, 63
      %s921 = scalar_select %p920, %s919, 63
      %s922 = smul.addr %s921, 4
      %s923 = scalar_lea.vmem %s3, %s922
      // Predicated region
      $region33: #{c3_forward.5} parent=31 // pred_check
        %p924 = pneg %p100
      $region34: #{c3_forward.5} parent=31 // pred_check_branch
        %926 = sbr.rel (%p924) target = $region36
      $region35: #{c3_forward.5} parent=31 // pred_region
        %s927 = smul.u32 32, %s14
      $region36: #{c3_forward.5} parent=31 // pred_fallthru
        _
    $region32: #{c3_forward.5} parent=5 // pred_fallthru
      _
    %p928 = scmp.le.s32.totalorder 2, %s9
    // Predicated region
    $region37: #{c3_forward.5} parent=5 // pred_check
      %p929 = pneg %p928
    $region38: #{c3_forward.5} parent=5 // pred_check_branch
      %931 = sbr.rel (%p929) target = $region40
    $region39: #{c3_forward.5} parent=5 // pred_region
      %s932 = ssub.s32 %s9, 2
      // Predicated region
      $region41: #{c3_forward.5} parent=39 // pred_check
        %p933 = pneg %p106
      $region42: #{c3_forward.5} parent=39 // pred_check_branch
        %935 = sbr.rel (%p933) target = $region44
      $region43: #{c3_forward.5} parent=39 // pred_region
        %s936 = smul.u32 32, %s15
        %p937 = scmp.lt.s32.totalorder %s936, 63
        %s938 = scalar_select %p937, %s936, 63
        %s939 = smul.addr %s938, 4
        %s940 = scalar_lea.vmem %s3, %s939
      $region44: #{c3_forward.5} parent=39 // pred_fallthru
        _
    $region40: #{c3_forward.5} parent=5 // pred_fallthru
      _
  $region6: #{c3_forward.5} parent=0 // loop_footer
    %s13 = sadd.s32 1, %s9
  $region7: #{c3_forward.5} parent=0 // loop_footer_branch
    %8 = sbr.rel target = $region3
  $region8: #{c3_forward.5} parent=0 // loop_exit
    _

// kernel: c3_forward.7
$region0: #{c3_forward.7}
  #allocation0 [shape = 'u32[]', space=smem, size = 0x4, offset = 0x4, fixed_abs, tag = 'smem constant byte address 0x4 - core index']
  #allocation1 [shape = 'u32[144,128]{1,0:T(1,128)}', space=vmem, size = 0x12000, scoped, tag = 'internal scratch']
  %s0 = inlined_call_operand.vmem [shape: bf16[512,128], index: 0, kind: input, shape index: {}]
  %s1 = inlined_call_operand.vmem [shape: bf16[512,128], index: 1, kind: input, shape index: {}]
  %s2 = inlined_call_operand.vmem [shape: bf16[128,128], index: 2, kind: input, shape index: {}]
  %s3 = inlined_call_operand.vmem [shape: bf16[128,128], index: 3, kind: input, shape index: {}]
  %s4 = inlined_call_operand.vmem [shape: f32[1,128], index: 4, kind: input, shape index: {}]
  %s5 = inlined_call_operand.vmem [shape: bf16[512,128], index: 5, kind: output, shape index: {}]
  %s6 = sld [smem:[#allocation0]]
  $region53: #{c3_forward.7} parent=0
    _
  %s8 = ssub.s32 1, %s6
  %s9 = scalar_select 0, %s8, %s6
  loop: start=0, step=1, limit=4
  $region2: #{c3_forward.7} parent=0 // loop_pre_header
    _
  $region3: #{c3_forward.7} parent=0 // loop_header
    %s11 = sphi 0, %s15
    %p12 = scmp.ge.s32.totalorder %s11, 4
    %s21 = sphi 0, %s23
    %s24 = sphi 0, %s21
    %s25 = sphi 0, %s24
    %s41 = sphi 0, %s25
    %s47 = sphi 0, %s49
    %s50 = sphi 0, %s47
    %s51 = sphi 0, %s50
    %s67 = sphi 0, %s51
    %s71 = sphi 0, %s71
    %s73 = sphi 0, %s71
    %s74 = sphi 0, %s73
    %s88 = sphi 0, %s74
    %s92 = sphi 0, %s92
    %s94 = sphi 0, %s92
    %s95 = sphi 0, %s94
    %s109 = sphi 0, %s95
    %s113 = sphi 0, %s113
    %s115 = sphi 0, %s113
    %s116 = sphi 0, %s115
    %s130 = sphi 0, %s116
    %s136 = sphi 0, %s138
    %s139 = sphi 0, %s136
    %s140 = sphi 0, %s139
    %s156 = sphi 0, %s140
  $region4: #{c3_forward.7} parent=0 // loop_header_branch
    %14 = sbr.rel (%p12) target = $region8
  $region5: #{c3_forward.7} parent=0 // loop_body
    %s16 = ssub.s32 %s11, 1
    %s17 = ssub.s32 %s11, 2
    %s18 = sadd.s32 %s11, 1
    %s19 = ssub.s32 %s11, %s18
    %p20 = scmp.eq.s32.totalorder %s19, 0
    %s22 = sadd.s32 %s21, 1
    %s23 = scalar_select %p20, %s21, %s22
    %p26 = pneg %p20
    %p27 = scmp.eq.s32.totalorder %s11, 1
    %p28 = por %p26, %p27
    %p29 = scmp.ne.s32.totalorder %s21, %s24
    %p30 = scmp.eq.s32.totalorder %s11, 0
    %p31 = por %p29, %p30
    %p32 = scmp.ne.s32.totalorder %s21, %s24
    %p33 = scmp.eq.s32.totalorder %s16, 1
    %p34 = por %p32, %p33
    %p35 = scmp.ne.s32.totalorder %s24, %s25
    %p36 = scmp.eq.s32.totalorder %s16, 0
    %p37 = por %p35, %p36
    %p38 = scmp.ne.s32.totalorder %s24, %s25
    %p39 = scmp.eq.s32.totalorder %s17, 1
    %p40 = por %p38, %p39
    %p42 = scmp.ne.s32.totalorder %s25, %s41
    %p43 = scmp.eq.s32.totalorder %s17, 0
    %p44 = por %p42, %p43
    %s45 = ssub.s32 %s11, %s18
    %p46 = scmp.eq.s32.totalorder %s45, 0
    %s48 = sadd.s32 %s47, 1
    %s49 = scalar_select %p46, %s47, %s48
    %p52 = pneg %p46
    %p53 = scmp.eq.s32.totalorder %s11, 1
    %p54 = por %p52, %p53
    %p55 = scmp.ne.s32.totalorder %s47, %s50
    %p56 = scmp.eq.s32.totalorder %s11, 0
    %p57 = por %p55, %p56
    %p58 = scmp.ne.s32.totalorder %s47, %s50
    %p59 = scmp.eq.s32.totalorder %s16, 1
    %p60 = por %p58, %p59
    %p61 = scmp.ne.s32.totalorder %s50, %s51
    %p62 = scmp.eq.s32.totalorder %s16, 0
    %p63 = por %p61, %p62
    %p64 = scmp.ne.s32.totalorder %s50, %s51
    %p65 = scmp.eq.s32.totalorder %s17, 1
    %p66 = por %p64, %p65
    %p68 = scmp.ne.s32.totalorder %s51, %s67
    %p69 = scmp.eq.s32.totalorder %s17, 0
    %p70 = por %p68, %p69
    %s72 = sadd.s32 %s71, 1
    %p75 = scmp.eq.s32.totalorder %s11, 1
    %p76 = scmp.ne.s32.totalorder %s71, %s73
    %p77 = scmp.eq.s32.totalorder %s11, 0
    %p78 = por %p76, %p77
    %p79 = scmp.ne.s32.totalorder %s71, %s73
    %p80 = scmp.eq.s32.totalorder %s16, 1
    %p81 = por %p79, %p80
    %p82 = scmp.ne.s32.totalorder %s73, %s74
    %p83 = scmp.eq.s32.totalorder %s16, 0
    %p84 = por %p82, %p83
    %p85 = scmp.ne.s32.totalorder %s73, %s74
    %p86 = scmp.eq.s32.totalorder %s17, 1
    %p87 = por %p85, %p86
    %p89 = scmp.ne.s32.totalorder %s74, %s88
    %p90 = scmp.eq.s32.totalorder %s17, 0
    %p91 = por %p89, %p90
    %s93 = sadd.s32 %s92, 1
    %p96 = scmp.eq.s32.totalorder %s11, 1
    %p97 = scmp.ne.s32.totalorder %s92, %s94
    %p98 = scmp.eq.s32.totalorder %s11, 0
    %p99 = por %p97, %p98
    %p100 = scmp.ne.s32.totalorder %s92, %s94
    %p101 = scmp.eq.s32.totalorder %s16, 1
    %p102 = por %p100, %p101
    %p103 = scmp.ne.s32.totalorder %s94, %s95
    %p104 = scmp.eq.s32.totalorder %s16, 0
    %p105 = por %p103, %p104
    %p106 = scmp.ne.s32.totalorder %s94, %s95
    %p107 = scmp.eq.s32.totalorder %s17, 1
    %p108 = por %p106, %p107
    %p110 = scmp.ne.s32.totalorder %s95, %s109
    %p111 = scmp.eq.s32.totalorder %s17, 0
    %p112 = por %p110, %p111
    %s114 = sadd.s32 %s113, 1
    %p117 = scmp.eq.s32.totalorder %s11, 1
    %p118 = scmp.ne.s32.totalorder %s113, %s115
    %p119 = scmp.eq.s32.totalorder %s11, 0
    %p120 = por %p118, %p119
    %p121 = scmp.ne.s32.totalorder %s113, %s115
    %p122 = scmp.eq.s32.totalorder %s16, 1
    %p123 = por %p121, %p122
    %p124 = scmp.ne.s32.totalorder %s115, %s116
    %p125 = scmp.eq.s32.totalorder %s16, 0
    %p126 = por %p124, %p125
    %p127 = scmp.ne.s32.totalorder %s115, %s116
    %p128 = scmp.eq.s32.totalorder %s17, 1
    %p129 = por %p127, %p128
    %p131 = scmp.ne.s32.totalorder %s116, %s130
    %p132 = scmp.eq.s32.totalorder %s17, 0
    %p133 = por %p131, %p132
    %s134 = ssub.s32 %s11, %s18
    %p135 = scmp.eq.s32.totalorder %s134, 0
    %s137 = sadd.s32 %s136, 1
    %s138 = scalar_select %p135, %s136, %s137
    %p141 = pneg %p135
    %p142 = scmp.eq.s32.totalorder %s11, 1
    %p143 = por %p141, %p142
    %p144 = scmp.ne.s32.totalorder %s136, %s139
    %p145 = scmp.eq.s32.totalorder %s11, 0
    %p146 = por %p144, %p145
    %p147 = scmp.ne.s32.totalorder %s136, %s139
    %p148 = scmp.eq.s32.totalorder %s16, 1
    %p149 = por %p147, %p148
    %p150 = scmp.ne.s32.totalorder %s139, %s140
    %p151 = scmp.eq.s32.totalorder %s16, 0
    %p152 = por %p150, %p151
    %p153 = scmp.ne.s32.totalorder %s139, %s140
    %p154 = scmp.eq.s32.totalorder %s17, 1
    %p155 = por %p153, %p154
    %p157 = scmp.ne.s32.totalorder %s140, %s156
    %p158 = scmp.eq.s32.totalorder %s17, 0
    %p159 = por %p157, %p158
    %p160 = scmp.le.s32.totalorder 1, %s11
    %p161 = scmp.lt.s32.totalorder %s11, 3
    %p162 = pnand %p160, %p161
    %p163 = pneg %p162
    // Predicated region
    $region9: #{c3_forward.7} parent=5 // pred_check
      _
    $region10: #{c3_forward.7} parent=5 // pred_check_branch
      %165 = sbr.rel (%p162) target = $region12
    $region11: #{c3_forward.7} parent=5 // pred_region
      %s166 = ssub.s32 %s11, 1
      // Predicated region
      $region13: #{c3_forward.7} parent=11 // pred_check
        %p167 = pneg %p84
      $region14: #{c3_forward.7} parent=11 // pred_check_branch
        %169 = sbr.rel (%p167) target = $region16
      $region15: #{c3_forward.7} parent=11 // pred_region
        _
      $region16: #{c3_forward.7} parent=11 // pred_fallthru
        _
      // Predicated region
      $region17: #{c3_forward.7} parent=11 // pred_check
        %p170 = pneg %p105
      $region18: #{c3_forward.7} parent=11 // pred_check_branch
        %172 = sbr.rel (%p170) target = $region20
      $region19: #{c3_forward.7} parent=11 // pred_region
        _
      $region20: #{c3_forward.7} parent=11 // pred_fallthru
        _
      // Predicated region
      $region21: #{c3_forward.7} parent=11 // pred_check
        %p173 = pneg %p126
      $region22: #{c3_forward.7} parent=11 // pred_check_branch
        %175 = sbr.rel (%p173) target = $region24
      $region23: #{c3_forward.7} parent=11 // pred_region
        _
      $region24: #{c3_forward.7} parent=11 // pred_fallthru
        _
    $region12: #{c3_forward.7} parent=5 // pred_fallthru
      _
    %p176 = scmp.lt.s32.totalorder %s11, 2
    // Predicated region
    $region25: #{c3_forward.7} parent=5 // pred_check
      %p177 = pneg %p176
    $region26: #{c3_forward.7} parent=5 // pred_check_branch
      %179 = sbr.rel (%p177) target = $region28
    $region27: #{c3_forward.7} parent=5 // pred_region
      // Predicated region
      $region29: #{c3_forward.7} parent=27 // pred_check
        %p180 = pneg %p31
      $region30: #{c3_forward.7} parent=27 // pred_check_branch
        %182 = sbr.rel (%p180) target = $region32
      $region31: #{c3_forward.7} parent=27 // pred_region
        %s183 = smul.u32 32, %s11
        %p184 = scmp.lt.s32.totalorder %s183, 63
        %s185 = scalar_select %p184, %s183, 63
        %s186 = smul.addr %s185, 4
        %s187 = scalar_lea.vmem %s0, %s186
        %s188 = smul.u32 32, %s11
      $region32: #{c3_forward.7} parent=27 // pred_fallthru
        _
      // Predicated region
      $region33: #{c3_forward.7} parent=27 // pred_check
        %p189 = pneg %p57
      $region34: #{c3_forward.7} parent=27 // pred_check_branch
        %191 = sbr.rel (%p189) target = $region36
      $region35: #{c3_forward.7} parent=27 // pred_region
        %s192 = smul.u32 32, %s11
        %p193 = scmp.lt.s32.totalorder %s192, 63
        %s194 = scalar_select %p193, %s192, 63
        %s195 = smul.addr %s194, 4
        %s196 = scalar_lea.vmem %s1, %s195
        %s197 = smul.u32 32, %s11
      $region36: #{c3_forward.7} parent=27 // pred_fallthru
        _
    $region28: #{c3_forward.7} parent=5 // pred_fallthru
      _
    %p198 = scmp.le.s32.totalorder 1, %s11
    %p199 = scmp.lt.s32.totalorder %s11, 3
    %p200 = pnand %p198, %p199
    %p201 = pneg %p200
    // Predicated region
    $region37: #{c3_forward.7} parent=5 // pred_check
      _
    $region38: #{c3_forward.7} parent=5 // pred_check_branch
      %203 = sbr.rel (%p200) target = $region40
    $region39: #{c3_forward.7} parent=5 // pred_region
      %s204 = ssub.s32 %s11, 1
      %s205 = smul.u32 32, %s16
      %p206 = scmp.lt.s32.totalorder %s205, 63
      %s207 = scalar_select %p206, %s205, 63
      %s208 = smul.addr %s207, 4
      %s209 = scalar_lea.vmem %s0, %s208
      %p210 = pneg %p37
      %p211 = pneg %p34
      %s212 = smul.u32 32, %s16
      %p213 = scmp.lt.s32.totalorder %s212, 63
      %s214 = scalar_select %p213, %s212, 63
      %s215 = smul.addr %s214, 4
      %s216 = scalar_lea.vmem %s1, %s215
      %p217 = pneg %p63
      %p218 = pneg %p60
      %p219 = pneg %p84
      %p220 = pneg %p81
      %p221 = pneg %p105
      %p222 = pneg %p102
      %p223 = pneg %p126
      %p224 = pneg %p123
      %p225 = pneg %p152
      %p226 = pneg %p149
      %s227 = smul.u32 32, %s16
      %p228 = scmp.lt.s32.totalorder %s227, 63
      %s229 = scalar_select %p228, %s227, 63
      %s230 = smul.addr %s229, 4
      %s231 = scalar_lea.vmem %s5, %s230
      %s232 = smul.u32 32, %s16
      %p233 = scmp.lt.s32.totalorder %s232, 63
      %s234 = scalar_select %p233, %s232, 63
      %s235 = smul.addr %s234, 4
      %s236 = scalar_lea.vmem %s0, %s235
      %s237 = smul.u32 32, %s16
      %s238 = smul.u32 32, %s16
      %p239 = scmp.lt.s32.totalorder %s238, 63
      %s240 = scalar_select %p239, %s238, 63
      %s241 = smul.addr %s240, 4
      %s242 = scalar_lea.vmem %s1, %s241
      %s243 = smul.u32 32, %s16
      %s244 = smul.u32 32, %s16
      %p245 = scmp.lt.s32.totalorder %s244, 63
      %s246 = scalar_select %p245, %s244, 63
      %s247 = smul.addr %s246, 4
      %s248 = scalar_lea.vmem %s5, %s247
      %s249 = smul.u32 32, %s16
      %v251 = vld [vmem:[%s236] sm:$0xf]
      %v252 = vld [vmem:[%s236 + $0x4] sm:$0xf]
      %v253 = vld [vmem:[%s236 + $0x8] sm:$0xf]
      %v254 = vld [vmem:[%s236 + $0xc] sm:$0xf]
      %v255 = vld [vmem:[%s236 + $0x10] sm:$0xf]
      %v256 = vld [vmem:[%s236 + $0x14] sm:$0xf]
      %v257 = vld [vmem:[%s236 + $0x18] sm:$0xf]
      %v258 = vld [vmem:[%s236 + $0x1c] sm:$0xf]
      %v259 = vld [vmem:[%s236 + $0x20] sm:$0xf]
      %v260 = vld [vmem:[%s236 + $0x24] sm:$0xf]
      %v261 = vld [vmem:[%s236 + $0x28] sm:$0xf]
      %v262 = vld [vmem:[%s236 + $0x2c] sm:$0xf]
      %v263 = vld [vmem:[%s236 + $0x30] sm:$0xf]
      %v264 = vld [vmem:[%s236 + $0x34] sm:$0xf]
      %v265 = vld [vmem:[%s236 + $0x38] sm:$0xf]
      %v266 = vld [vmem:[%s236 + $0x3c] sm:$0xf]
      %v267 = vld [vmem:[%s236 + $0x40] sm:$0xf]
      %v268 = vld [vmem:[%s236 + $0x44] sm:$0xf]
      %v269 = vld [vmem:[%s236 + $0x48] sm:$0xf]
      %v270 = vld [vmem:[%s236 + $0x4c] sm:$0xf]
      %v271 = vld [vmem:[%s236 + $0x50] sm:$0xf]
      %v272 = vld [vmem:[%s236 + $0x54] sm:$0xf]
      %v273 = vld [vmem:[%s236 + $0x58] sm:$0xf]
      %v274 = vld [vmem:[%s236 + $0x5c] sm:$0xf]
      %v275 = vld [vmem:[%s236 + $0x60] sm:$0xf]
      %v276 = vld [vmem:[%s236 + $0x64] sm:$0xf]
      %v277 = vld [vmem:[%s236 + $0x68] sm:$0xf]
      %v278 = vld [vmem:[%s236 + $0x6c] sm:$0xf]
      %v279 = vld [vmem:[%s236 + $0x70] sm:$0xf]
      %v280 = vld [vmem:[%s236 + $0x74] sm:$0xf]
      %v281 = vld [vmem:[%s236 + $0x78] sm:$0xf]
      %v282 = vld [vmem:[%s236 + $0x7c] sm:$0xf]
      %v283 = vld [vmem:[%s2] sm:$0xf]
      %v284 = vld [vmem:[%s2 + $0x4] sm:$0xf]
      %v285 = vld [vmem:[%s2 + $0x8] sm:$0xf]
      %v286 = vld [vmem:[%s2 + $0xc] sm:$0xf]
      %v287 = vld [vmem:[%s2 + $0x10] sm:$0xf]
      %v288 = vld [vmem:[%s2 + $0x14] sm:$0xf]
      %v289 = vld [vmem:[%s2 + $0x18] sm:$0xf]
      %v290 = vld [vmem:[%s2 + $0x1c] sm:$0xf]
      %v291 = vld [vmem:[%s2 + $0x20] sm:$0xf]
      %v292 = vld [vmem:[%s2 + $0x24] sm:$0xf]
      %v293 = vld [vmem:[%s2 + $0x28] sm:$0xf]
      %v294 = vld [vmem:[%s2 + $0x2c] sm:$0xf]
      %v295 = vld [vmem:[%s2 + $0x30] sm:$0xf]
      %v296 = vld [vmem:[%s2 + $0x34] sm:$0xf]
      %v297 = vld [vmem:[%s2 + $0x38] sm:$0xf]
      %v298 = vld [vmem:[%s2 + $0x3c] sm:$0xf]
      %v299 = vld [vmem:[%s242] sm:$0xf]
      %v300 = vld [vmem:[%s242 + $0x4] sm:$0xf]
      %v301 = vld [vmem:[%s242 + $0x8] sm:$0xf]
      %v302 = vld [vmem:[%s242 + $0xc] sm:$0xf]
      %v303 = vld [vmem:[%s242 + $0x10] sm:$0xf]
      %v304 = vld [vmem:[%s242 + $0x14] sm:$0xf]
      %v305 = vld [vmem:[%s242 + $0x18] sm:$0xf]
      %v306 = vld [vmem:[%s242 + $0x1c] sm:$0xf]
      %v307 = vld [vmem:[%s242 + $0x20] sm:$0xf]
      %v308 = vld [vmem:[%s242 + $0x24] sm:$0xf]
      %v309 = vld [vmem:[%s242 + $0x28] sm:$0xf]
      %v310 = vld [vmem:[%s242 + $0x2c] sm:$0xf]
      %v311 = vld [vmem:[%s242 + $0x30] sm:$0xf]
      %v312 = vld [vmem:[%s242 + $0x34] sm:$0xf]
      %v313 = vld [vmem:[%s242 + $0x38] sm:$0xf]
      %v314 = vld [vmem:[%s242 + $0x3c] sm:$0xf]
      %v315 = vld [vmem:[%s242 + $0x40] sm:$0xf]
      %v316 = vld [vmem:[%s242 + $0x44] sm:$0xf]
      %v317 = vld [vmem:[%s242 + $0x48] sm:$0xf]
      %v318 = vld [vmem:[%s242 + $0x4c] sm:$0xf]
      %v319 = vld [vmem:[%s242 + $0x50] sm:$0xf]
      %v320 = vld [vmem:[%s242 + $0x54] sm:$0xf]
      %v321 = vld [vmem:[%s242 + $0x58] sm:$0xf]
      %v322 = vld [vmem:[%s242 + $0x5c] sm:$0xf]
      %v323 = vld [vmem:[%s242 + $0x60] sm:$0xf]
      %v324 = vld [vmem:[%s242 + $0x64] sm:$0xf]
      %v325 = vld [vmem:[%s242 + $0x68] sm:$0xf]
      %v326 = vld [vmem:[%s242 + $0x6c] sm:$0xf]
      %v327 = vld [vmem:[%s242 + $0x70] sm:$0xf]
      %v328 = vld [vmem:[%s242 + $0x74] sm:$0xf]
      %v329 = vld [vmem:[%s242 + $0x78] sm:$0xf]
      %v330 = vld [vmem:[%s242 + $0x7c] sm:$0xf]
      %v331 = vld [vmem:[%s3] sm:$0xf]
      %v332 = vld [vmem:[%s3 + $0x4] sm:$0xf]
      %v333 = vld [vmem:[%s3 + $0x8] sm:$0xf]
      %v334 = vld [vmem:[%s3 + $0xc] sm:$0xf]
      %v335 = vld [vmem:[%s3 + $0x10] sm:$0xf]
      %v336 = vld [vmem:[%s3 + $0x14] sm:$0xf]
      %v337 = vld [vmem:[%s3 + $0x18] sm:$0xf]
      %v338 = vld [vmem:[%s3 + $0x1c] sm:$0xf]
      %v339 = vld [vmem:[%s3 + $0x20] sm:$0xf]
      %v340 = vld [vmem:[%s3 + $0x24] sm:$0xf]
      %v341 = vld [vmem:[%s3 + $0x28] sm:$0xf]
      %v342 = vld [vmem:[%s3 + $0x2c] sm:$0xf]
      %v343 = vld [vmem:[%s3 + $0x30] sm:$0xf]
      %v344 = vld [vmem:[%s3 + $0x34] sm:$0xf]
      %v345 = vld [vmem:[%s3 + $0x38] sm:$0xf]
      %v346 = vld [vmem:[%s3 + $0x3c] sm:$0xf]
      %v379 = vunpack.c.l.b16 %v299
      %v380 = vunpack.c.l.b16 %v300
      %v381 = vunpack.c.l.b16 %v301
      %v382 = vunpack.c.l.b16 %v302
      %v383 = vunpack.c.l.b16 %v303
      %v384 = vunpack.c.l.b16 %v304
      %v385 = vunpack.c.l.b16 %v305
      %v386 = vunpack.c.l.b16 %v306
      %v387 = vunpack.c.l.b16 %v307
      %v388 = vunpack.c.l.b16 %v308
      %v389 = vunpack.c.l.b16 %v309
      %v390 = vunpack.c.l.b16 %v310
      %v391 = vunpack.c.l.b16 %v311
      %v392 = vunpack.c.l.b16 %v312
      %v393 = vunpack.c.l.b16 %v313
      %v394 = vunpack.c.l.b16 %v314
      %v395 = vunpack.c.l.b16 %v315
      %v396 = vunpack.c.l.b16 %v316
      %v397 = vunpack.c.l.b16 %v317
      %v398 = vunpack.c.l.b16 %v318
      %v399 = vunpack.c.l.b16 %v319
      %v400 = vunpack.c.l.b16 %v320
      %v401 = vunpack.c.l.b16 %v321
      %v402 = vunpack.c.l.b16 %v322
      %v403 = vunpack.c.l.b16 %v323
      %v404 = vunpack.c.l.b16 %v324
      %v405 = vunpack.c.l.b16 %v325
      %v406 = vunpack.c.l.b16 %v326
      %v407 = vunpack.c.l.b16 %v327
      %v408 = vunpack.c.l.b16 %v328
      %v409 = vunpack.c.l.b16 %v329
      %v410 = vunpack.c.l.b16 %v330
      %v411 = vpack.c.b16 %v380, %v379
      %v412 = vpack.c.b16 %v382, %v381
      %v413 = vpack.c.b16 %v384, %v383
      %v414 = vpack.c.b16 %v386, %v385
      %v415 = vpack.c.b16 %v388, %v387
      %v416 = vpack.c.b16 %v390, %v389
      %v417 = vpack.c.b16 %v392, %v391
      %v418 = vpack.c.b16 %v394, %v393
      %v419 = vpack.c.b16 %v396, %v395
      %v420 = vpack.c.b16 %v398, %v397
      %v421 = vpack.c.b16 %v400, %v399
      %v422 = vpack.c.b16 %v402, %v401
      %v423 = vpack.c.b16 %v404, %v403
      %v424 = vpack.c.b16 %v406, %v405
      %v425 = vpack.c.b16 %v408, %v407
      %v426 = vpack.c.b16 %v410, %v409
      %v459 = vunpack.c.l.b16 %v331
      %v460 = vunpack.c.l.b16 %v332
      %v461 = vunpack.c.l.b16 %v333
      %v462 = vunpack.c.l.b16 %v334
      %v463 = vunpack.c.l.b16 %v335
      %v464 = vunpack.c.l.b16 %v336
      %v465 = vunpack.c.l.b16 %v337
      %v466 = vunpack.c.l.b16 %v338
      %v467 = vunpack.c.l.b16 %v339
      %v468 = vunpack.c.l.b16 %v340
      %v469 = vunpack.c.l.b16 %v341
      %v470 = vunpack.c.l.b16 %v342
      %v471 = vunpack.c.l.b16 %v343
      %v472 = vunpack.c.l.b16 %v344
      %v473 = vunpack.c.l.b16 %v345
      %v474 = vunpack.c.l.b16 %v346
      %v475 = vpack.c.b16 %v460, %v459
      %v476 = vpack.c.b16 %v462, %v461
      %v477 = vpack.c.b16 %v464, %v463
      %v478 = vpack.c.b16 %v466, %v465
      %v479 = vpack.c.b16 %v468, %v467
      %v480 = vpack.c.b16 %v470, %v469
      %v481 = vpack.c.b16 %v472, %v471
      %v482 = vpack.c.b16 %v474, %v473
      %491 = vmatprep.subr.bf16.mxu0 0
      %492 = vmatpush1.bf16.msra.mxu0 %v475
      %493 = vmatprep.subr.bf16.mxu0 0
      %494 = vmatpush1.bf16.msra.mxu0 %v476
      %495 = vmatprep.subr.bf16.mxu0 0
      %496 = vmatpush1.bf16.msra.mxu0 %v477
      %497 = vmatprep.subr.bf16.mxu0 0
      %498 = vmatpush1.bf16.msra.mxu0 %v478
      %499 = vmatprep.subr.bf16.mxu0 0
      %500 = vmatpush1.bf16.msra.mxu0 %v479
      %501 = vmatprep.subr.bf16.mxu0 0
      %502 = vmatpush1.bf16.msra.mxu0 %v480
      %503 = vmatprep.subr.bf16.mxu0 0
      %504 = vmatpush1.bf16.msra.mxu0 %v481
      %505 = vmatprep.subr.bf16.mxu0 0
      %506 = vmatpush1.bf16.msra.mxu0 %v482
      %507 = vmatprep.subr.bf16.mxu0 0
      %508 = vmatpush1.bf16.msra.mxu0 0
      %509 = vmatprep.subr.bf16.mxu0 0
      %510 = vmatpush1.bf16.msra.mxu0 0
      %511 = vmatprep.subr.bf16.mxu0 0
      %512 = vmatpush1.bf16.msra.mxu0 0
      %513 = vmatprep.subr.bf16.mxu0 0
      %514 = vmatpush1.bf16.msra.mxu0 0
      %515 = vmatprep.subr.bf16.mxu0 0
      %516 = vmatpush1.bf16.msra.mxu0 0
      %517 = vmatprep.subr.bf16.mxu0 0
      %518 = vmatpush1.bf16.msra.mxu0 0
      %519 = vmatprep.subr.bf16.mxu0 0
      %520 = vmatpush1.bf16.msra.mxu0 0
      %521 = vmatprep.subr.bf16.mxu0 0
      %522 = vmatpush1.bf16.msra.mxu0 0
      %523 = vmatprep.mubr.bf16.mxu0 0
      %524 = vmatmul.mubr.bf16.gmra.mrb[0].mxu0 %v411
      %v525 = vpop.f32.mrb[0].mxu0
      %v526 = vadd.f32 0.0, %v525
      %v527 = vpop.f32.mrb[0].mxu0
      %v528 = vpop.f32.mrb[0].mxu0
      %v529 = vadd.f32 0.0, %v528
      %v530 = vpop.f32.mrb[0].mxu0
      %531 = vmatprep.mubr.bf16.mxu0 0
      %532 = vmatmul.mubr.bf16.gmra.mrb[0].mxu0 %v412
      %v533 = vpop.f32.mrb[0].mxu0
      %v534 = vadd.f32 0.0, %v533
      %v535 = vpop.f32.mrb[0].mxu0
      %v536 = vpop.f32.mrb[0].mxu0
      %v537 = vadd.f32 0.0, %v536
      %v538 = vpop.f32.mrb[0].mxu0
      %539 = vmatprep.mubr.bf16.mxu0 0
      %540 = vmatmul.mubr.bf16.gmra.mrb[0].mxu0 %v413
      %v541 = vpop.f32.mrb[0].mxu0
      %v542 = vadd.f32 0.0, %v541
      %v543 = vpop.f32.mrb[0].mxu0
      %v544 = vpop.f32.mrb[0].mxu0
      %v545 = vadd.f32 0.0, %v544
      %v546 = vpop.f32.mrb[0].mxu0
      %547 = vmatprep.mubr.bf16.mxu0 0
      %548 = vmatmul.mubr.bf16.gmra.mrb[0].mxu0 %v414
      %v549 = vpop.f32.mrb[0].mxu0
      %v550 = vadd.f32 0.0, %v549
      %v551 = vpop.f32.mrb[0].mxu0
      %v552 = vpop.f32.mrb[0].mxu0
      %v553 = vadd.f32 0.0, %v552
      %v554 = vpop.f32.mrb[0].mxu0
      %555 = vmatprep.mubr.bf16.mxu0 0
      %556 = vmatmul.mubr.bf16.gmra.mrb[0].mxu0 %v415
      %v557 = vpop.f32.mrb[0].mxu0
      %v558 = vadd.f32 0.0, %v557
      %v559 = vpop.f32.mrb[0].mxu0
      %v560 = vpop.f32.mrb[0].mxu0
      %v561 = vadd.f32 0.0, %v560
      %v562 = vpop.f32.mrb[0].mxu0
      %563 = vmatprep.mubr.bf16.mxu0 0
      %564 = vmatmul.mubr.bf16.gmra.mrb[0].mxu0 %v416
      %v565 = vpop.f32.mrb[0].mxu0
      %v566 = vadd.f32 0.0, %v565
      %v567 = vpop.f32.mrb[0].mxu0
      %v568 = vpop.f32.mrb[0].mxu0
      %v569 = vadd.f32 0.0, %v568
      %v570 = vpop.f32.mrb[0].mxu0
      %571 = vmatprep.mubr.bf16.mxu0 0
      %572 = vmatmul.mubr.bf16.gmra.mrb[0].mxu0 %v417
      %v573 = vpop.f32.mrb[0].mxu0
      %v574 = vadd.f32 0.0, %v573
      %v575 = vpop.f32.mrb[0].mxu0
      %v576 = vpop.f32.mrb[0].mxu0
      %v577 = vadd.f32 0.0, %v576
      %v578 = vpop.f32.mrb[0].mxu0
      %579 = vmatprep.mubr.bf16.mxu0 0
      %580 = vmatmul.mubr.bf16.gmra.mrb[0].mxu0 %v418
      %v581 = vpop.f32.mrb[0].mxu0
      %v582 = vadd.f32 0.0, %v581
      %v583 = vpop.f32.mrb[0].mxu0
      %v584 = vpop.f32.mrb[0].mxu0
      %v585 = vadd.f32 0.0, %v584
      %v586 = vpop.f32.mrb[0].mxu0
      %587 = vmatprep.mubr.bf16.mxu0 0
      %588 = vmatmul.mubr.bf16.gmra.mrb[0].mxu0 %v419
      %v589 = vpop.f32.mrb[0].mxu0
      %v590 = vadd.f32 0.0, %v589
      %v591 = vpop.f32.mrb[0].mxu0
      %v592 = vpop.f32.mrb[0].mxu0
      %v593 = vadd.f32 0.0, %v592
      %v594 = vpop.f32.mrb[0].mxu0
      %595 = vmatprep.mubr.bf16.mxu0 0
      %596 = vmatmul.mubr.bf16.gmra.mrb[0].mxu0 %v420
      %v597 = vpop.f32.mrb[0].mxu0
      %v598 = vadd.f32 0.0, %v597
      %v599 = vpop.f32.mrb[0].mxu0
      %v600 = vpop.f32.mrb[0].mxu0
      %v601 = vadd.f32 0.0, %v600
      %v602 = vpop.f32.mrb[0].mxu0
      %603 = vmatprep.mubr.bf16.mxu0 0
      %604 = vmatmul.mubr.bf16.gmra.mrb[0].mxu0 %v421
      %v605 = vpop.f32.mrb[0].mxu0
      %v606 = vadd.f32 0.0, %v605
      %v607 = vpop.f32.mrb[0].mxu0
      %v608 = vpop.f32.mrb[0].mxu0
      %v609 = vadd.f32 0.0, %v608
      %v610 = vpop.f32.mrb[0].mxu0
      %611 = vmatprep.mubr.bf16.mxu0 0
      %612 = vmatmul.mubr.bf16.gmra.mrb[0].mxu0 %v422
      %v613 = vpop.f32.mrb[0].mxu0
      %v614 = vadd.f32 0.0, %v613
      %v615 = vpop.f32.mrb[0].mxu0
      %v616 = vpop.f32.mrb[0].mxu0
      %v617 = vadd.f32 0.0, %v616
      %v618 = vpop.f32.mrb[0].mxu0
      %619 = vmatprep.mubr.bf16.mxu0 0
      %620 = vmatmul.mubr.bf16.gmra.mrb[0].mxu0 %v423
      %v621 = vpop.f32.mrb[0].mxu0
      %v622 = vadd.f32 0.0, %v621
      %v623 = vpop.f32.mrb[0].mxu0
      %v624 = vpop.f32.mrb[0].mxu0
      %v625 = vadd.f32 0.0, %v624
      %v626 = vpop.f32.mrb[0].mxu0
      %627 = vmatprep.mubr.bf16.mxu0 0
      %628 = vmatmul.mubr.bf16.gmra.mrb[0].mxu0 %v424
      %v629 = vpop.f32.mrb[0].mxu0
      %v630 = vadd.f32 0.0, %v629
      %v631 = vpop.f32.mrb[0].mxu0
      %v632 = vpop.f32.mrb[0].mxu0
      %v633 = vadd.f32 0.0, %v632
      %v634 = vpop.f32.mrb[0].mxu0
      %635 = vmatprep.mubr.bf16.mxu0 0
      %636 = vmatmul.mubr.bf16.gmra.mrb[0].mxu0 %v425
      %v637 = vpop.f32.mrb[0].mxu0
      %v638 = vadd.f32 0.0, %v637
      %v639 = vpop.f32.mrb[0].mxu0
      %v640 = vpop.f32.mrb[0].mxu0
      %v641 = vadd.f32 0.0, %v640
      %v642 = vpop.f32.mrb[0].mxu0
      %643 = vmatprep.mubr.bf16.mxu0 0
      %644 = vmatmul.mubr.bf16.gmra.mrb[0].mxu0 %v426
      %v645 = vpop.f32.mrb[0].mxu0
      %v646 = vadd.f32 0.0, %v645
      %v647 = vpop.f32.mrb[0].mxu0
      %v648 = vpop.f32.mrb[0].mxu0
      %v649 = vadd.f32 0.0, %v648
      %v650 = vpop.f32.mrb[0].mxu0
      %651 = vdwg.mxu0
      %v684 = vunpack.c.l.b16 %v251
      %v685 = vunpack.c.l.b16 %v252
      %v686 = vunpack.c.l.b16 %v253
      %v687 = vunpack.c.l.b16 %v254
      %v688 = vunpack.c.l.b16 %v255
      %v689 = vunpack.c.l.b16 %v256
      %v690 = vunpack.c.l.b16 %v257
      %v691 = vunpack.c.l.b16 %v258
      %v692 = vunpack.c.l.b16 %v259
      %v693 = vunpack.c.l.b16 %v260
      %v694 = vunpack.c.l.b16 %v261
      %v695 = vunpack.c.l.b16 %v262
      %v696 = vunpack.c.l.b16 %v263
      %v697 = vunpack.c.l.b16 %v264
      %v698 = vunpack.c.l.b16 %v265
      %v699 = vunpack.c.l.b16 %v266
      %v700 = vunpack.c.l.b16 %v267
      %v701 = vunpack.c.l.b16 %v268
      %v702 = vunpack.c.l.b16 %v269
      %v703 = vunpack.c.l.b16 %v270
      %v704 = vunpack.c.l.b16 %v271
      %v705 = vunpack.c.l.b16 %v272
      %v706 = vunpack.c.l.b16 %v273
      %v707 = vunpack.c.l.b16 %v274
      %v708 = vunpack.c.l.b16 %v275
      %v709 = vunpack.c.l.b16 %v276
      %v710 = vunpack.c.l.b16 %v277
      %v711 = vunpack.c.l.b16 %v278
      %v712 = vunpack.c.l.b16 %v279
      %v713 = vunpack.c.l.b16 %v280
      %v714 = vunpack.c.l.b16 %v281
      %v715 = vunpack.c.l.b16 %v282
      %v716 = vpack.c.b16 %v685, %v684
      %v717 = vpack.c.b16 %v687, %v686
      %v718 = vpack.c.b16 %v689, %v688
      %v719 = vpack.c.b16 %v691, %v690
      %v720 = vpack.c.b16 %v693, %v692
      %v721 = vpack.c.b16 %v695, %v694
      %v722 = vpack.c.b16 %v697, %v696
      %v723 = vpack.c.b16 %v699, %v698
      %v724 = vpack.c.b16 %v701, %v700
      %v725 = vpack.c.b16 %v703, %v702
      %v726 = vpack.c.b16 %v705, %v704
      %v727 = vpack.c.b16 %v707, %v706
      %v728 = vpack.c.b16 %v709, %v708
      %v729 = vpack.c.b16 %v711, %v710
      %v730 = vpack.c.b16 %v713, %v712
      %v731 = vpack.c.b16 %v715, %v714
      %v764 = vunpack.c.l.b16 %v283
      %v765 = vunpack.c.l.b16 %v284
      %v766 = vunpack.c.l.b16 %v285
      %v767 = vunpack.c.l.b16 %v286
      %v768 = vunpack.c.l.b16 %v287
      %v769 = vunpack.c.l.b16 %v288
      %v770 = vunpack.c.l.b16 %v289
      %v771 = vunpack.c.l.b16 %v290
      %v772 = vunpack.c.l.b16 %v291
      %v773 = vunpack.c.l.b16 %v292
      %v774 = vunpack.c.l.b16 %v293
      %v775 = vunpack.c.l.b16 %v294
      %v776 = vunpack.c.l.b16 %v295
      %v777 = vunpack.c.l.b16 %v296
      %v778 = vunpack.c.l.b16 %v297
      %v779 = vunpack.c.l.b16 %v298
      %v780 = vpack.c.b16 %v765, %v764
      %v781 = vpack.c.b16 %v767, %v766
      %v782 = vpack.c.b16 %v769, %v768
      %v783 = vpack.c.b16 %v771, %v770
      %v784 = vpack.c.b16 %v773, %v772
      %v785 = vpack.c.b16 %v775, %v774
      %v786 = vpack.c.b16 %v777, %v776
      %v787 = vpack.c.b16 %v779, %v778
      %796 = vmatprep.subr.bf16.mxu0 0
      %797 = vmatpush1.bf16.msra.mxu0 %v780
      %798 = vmatprep.subr.bf16.mxu0 0
      %799 = vmatpush1.bf16.msra.mxu0 %v781
      %800 = vmatprep.subr.bf16.mxu0 0
      %801 = vmatpush1.bf16.msra.mxu0 %v782
      %802 = vmatprep.subr.bf16.mxu0 0
      %803 = vmatpush1.bf16.msra.mxu0 %v783
      %804 = vmatprep.subr.bf16.mxu0 0
      %805 = vmatpush1.bf16.msra.mxu0 %v784
      %806 = vmatprep.subr.bf16.mxu0 0
      %807 = vmatpush1.bf16.msra.mxu0 %v785
      %808 = vmatprep.subr.bf16.mxu0 0
      %809 = vmatpush1.bf16.msra.mxu0 %v786
      %810 = vmatprep.subr.bf16.mxu0 0
      %811 = vmatpush1.bf16.msra.mxu0 %v787
      %812 = vmatprep.subr.bf16.mxu0 0
      %813 = vmatpush1.bf16.msra.mxu0 0
      %814 = vmatprep.subr.bf16.mxu0 0
      %815 = vmatpush1.bf16.msra.mxu0 0
      %816 = vmatprep.subr.bf16.mxu0 0
      %817 = vmatpush1.bf16.msra.mxu0 0
      %818 = vmatprep.subr.bf16.mxu0 0
      %819 = vmatpush1.bf16.msra.mxu0 0
      %820 = vmatprep.subr.bf16.mxu0 0
      %821 = vmatpush1.bf16.msra.mxu0 0
      %822 = vmatprep.subr.bf16.mxu0 0
      %823 = vmatpush1.bf16.msra.mxu0 0
      %824 = vmatprep.subr.bf16.mxu0 0
      %825 = vmatpush1.bf16.msra.mxu0 0
      %826 = vmatprep.subr.bf16.mxu0 0
      %827 = vmatpush1.bf16.msra.mxu0 0
      %828 = vmatprep.mubr.bf16.mxu0 0
      %829 = vmatmul.mubr.bf16.gmra.mrb[0].mxu0 %v716
      %v830 = vpop.f32.mrb[0].mxu0
      %v831 = vadd.f32 %v526, %v830
      %v832 = vpop.f32.mrb[0].mxu0
      %v833 = vpop.f32.mrb[0].mxu0
      %v834 = vadd.f32 %v529, %v833
      %v835 = vpop.f32.mrb[0].mxu0
      %836 = vmatprep.mubr.bf16.mxu0 0
      %837 = vmatmul.mubr.bf16.gmra.mrb[0].mxu0 %v717
      %v838 = vpop.f32.mrb[0].mxu0
      %v839 = vadd.f32 %v534, %v838
      %v840 = vpop.f32.mrb[0].mxu0
      %v841 = vpop.f32.mrb[0].mxu0
      %v842 = vadd.f32 %v537, %v841
      %v843 = vpop.f32.mrb[0].mxu0
      %844 = vmatprep.mubr.bf16.mxu0 0
      %845 = vmatmul.mubr.bf16.gmra.mrb[0].mxu0 %v718
      %v846 = vpop.f32.mrb[0].mxu0
      %v847 = vadd.f32 %v542, %v846
      %v848 = vpop.f32.mrb[0].mxu0
      %v849 = vpop.f32.mrb[0].mxu0
      %v850 = vadd.f32 %v545, %v849
      %v851 = vpop.f32.mrb[0].mxu0
      %852 = vmatprep.mubr.bf16.mxu0 0
      %853 = vmatmul.mubr.bf16.gmra.mrb[0].mxu0 %v719
      %v854 = vpop.f32.mrb[0].mxu0
      %v855 = vadd.f32 %v550, %v854
      %v856 = vpop.f32.mrb[0].mxu0
      %v857 = vpop.f32.mrb[0].mxu0
      %v858 = vadd.f32 %v553, %v857
      %v859 = vpop.f32.mrb[0].mxu0
      %860 = vmatprep.mubr.bf16.mxu0 0
      %861 = vmatmul.mubr.bf16.gmra.mrb[0].mxu0 %v720
      %v862 = vpop.f32.mrb[0].mxu0
      %v863 = vadd.f32 %v558, %v862
      %v864 = vpop.f32.mrb[0].mxu0
      %v865 = vpop.f32.mrb[0].mxu0
      %v866 = vadd.f32 %v561, %v865
      %v867 = vpop.f32.mrb[0].mxu0
      %868 = vmatprep.mubr.bf16.mxu0 0
      %869 = vmatmul.mubr.bf16.gmra.mrb[0].mxu0 %v721
      %v870 = vpop.f32.mrb[0].mxu0
      %v871 = vadd.f32 %v566, %v870
      %v872 = vpop.f32.mrb[0].mxu0
      %v873 = vpop.f32.mrb[0].mxu0
      %v874 = vadd.f32 %v569, %v873
      %v875 = vpop.f32.mrb[0].mxu0
      %876 = vmatprep.mubr.bf16.mxu0 0
      %877 = vmatmul.mubr.bf16.gmra.mrb[0].mxu0 %v722
      %v878 = vpop.f32.mrb[0].mxu0
      %v879 = vadd.f32 %v574, %v878
      %v880 = vpop.f32.mrb[0].mxu0
      %v881 = vpop.f32.mrb[0].mxu0
      %v882 = vadd.f32 %v577, %v881
      %v883 = vpop.f32.mrb[0].mxu0
      %884 = vmatprep.mubr.bf16.mxu0 0
      %885 = vmatmul.mubr.bf16.gmra.mrb[0].mxu0 %v723
      %v886 = vpop.f32.mrb[0].mxu0
      %v887 = vadd.f32 %v582, %v886
      %v888 = vpop.f32.mrb[0].mxu0
      %v889 = vpop.f32.mrb[0].mxu0
      %v890 = vadd.f32 %v585, %v889
      %v891 = vpop.f32.mrb[0].mxu0
      %892 = vmatprep.mubr.bf16.mxu0 0
      %893 = vmatmul.mubr.bf16.gmra.mrb[0].mxu0 %v724
      %v894 = vpop.f32.mrb[0].mxu0
      %v895 = vadd.f32 %v590, %v894
      %v896 = vpop.f32.mrb[0].mxu0
      %v897 = vpop.f32.mrb[0].mxu0
      %v898 = vadd.f32 %v593, %v897
      %v899 = vpop.f32.mrb[0].mxu0
      %900 = vmatprep.mubr.bf16.mxu0 0
      %901 = vmatmul.mubr.bf16.gmra.mrb[0].mxu0 %v725
      %v902 = vpop.f32.mrb[0].mxu0
      %v903 = vadd.f32 %v598, %v902
      %v904 = vpop.f32.mrb[0].mxu0
      %v905 = vpop.f32.mrb[0].mxu0
      %v906 = vadd.f32 %v601, %v905
      %v907 = vpop.f32.mrb[0].mxu0
      %908 = vmatprep.mubr.bf16.mxu0 0
      %909 = vmatmul.mubr.bf16.gmra.mrb[0].mxu0 %v726
      %v910 = vpop.f32.mrb[0].mxu0
      %v911 = vadd.f32 %v606, %v910
      %v912 = vpop.f32.mrb[0].mxu0
      %v913 = vpop.f32.mrb[0].mxu0
      %v914 = vadd.f32 %v609, %v913
      %v915 = vpop.f32.mrb[0].mxu0
      %916 = vmatprep.mubr.bf16.mxu0 0
      %917 = vmatmul.mubr.bf16.gmra.mrb[0].mxu0 %v727
      %v918 = vpop.f32.mrb[0].mxu0
      %v919 = vadd.f32 %v614, %v918
      %v920 = vpop.f32.mrb[0].mxu0
      %v921 = vpop.f32.mrb[0].mxu0
      %v922 = vadd.f32 %v617, %v921
      %v923 = vpop.f32.mrb[0].mxu0
      %924 = vmatprep.mubr.bf16.mxu0 0
      %925 = vmatmul.mubr.bf16.gmra.mrb[0].mxu0 %v728
      %v926 = vpop.f32.mrb[0].mxu0
      %v927 = vadd.f32 %v622, %v926
      %v928 = vpop.f32.mrb[0].mxu0
      %v929 = vpop.f32.mrb[0].mxu0
      %v930 = vadd.f32 %v625, %v929
      %v931 = vpop.f32.mrb[0].mxu0
      %932 = vmatprep.mubr.bf16.mxu0 0
      %933 = vmatmul.mubr.bf16.gmra.mrb[0].mxu0 %v729
      %v934 = vpop.f32.mrb[0].mxu0
      %v935 = vadd.f32 %v630, %v934
      %v936 = vpop.f32.mrb[0].mxu0
      %v937 = vpop.f32.mrb[0].mxu0
      %v938 = vadd.f32 %v633, %v937
      %v939 = vpop.f32.mrb[0].mxu0
      %940 = vmatprep.mubr.bf16.mxu0 0
      %941 = vmatmul.mubr.bf16.gmra.mrb[0].mxu0 %v730
      %v942 = vpop.f32.mrb[0].mxu0
      %v943 = vadd.f32 %v638, %v942
      %v944 = vpop.f32.mrb[0].mxu0
      %v945 = vpop.f32.mrb[0].mxu0
      %v946 = vadd.f32 %v641, %v945
      %v947 = vpop.f32.mrb[0].mxu0
      %948 = vmatprep.mubr.bf16.mxu0 0
      %949 = vmatmul.mubr.bf16.gmra.mrb[0].mxu0 %v731
      %v950 = vpop.f32.mrb[0].mxu0
      %v951 = vadd.f32 %v646, %v950
      %v952 = vpop.f32.mrb[0].mxu0
      %v953 = vpop.f32.mrb[0].mxu0
      %v954 = vadd.f32 %v649, %v953
      %v955 = vpop.f32.mrb[0].mxu0
      %956 = vdwg.mxu0
      %v957 = vld [vmem:[%s4] sm:$0x1]
      %v959 = vlaneseq
      %v960 = vshrl.u32 %v959, 7
      %v961 = vsub.s32 0, %v960
      %v962 = vrot.slane %v957, %v961
      %v964 = vadd.f32 %v831, %v962
      %v965 = vadd.f32 %v834, %v962
      %v966 = vadd.f32 %v839, %v962
      %v967 = vadd.f32 %v842, %v962
      %v968 = vadd.f32 %v847, %v962
      %v969 = vadd.f32 %v850, %v962
      %v970 = vadd.f32 %v855, %v962
      %v971 = vadd.f32 %v858, %v962
      %v972 = vadd.f32 %v863, %v962
      %v973 = vadd.f32 %v866, %v962
      %v974 = vadd.f32 %v871, %v962
      %v975 = vadd.f32 %v874, %v962
      %v976 = vadd.f32 %v879, %v962
      %v977 = vadd.f32 %v882, %v962
      %v978 = vadd.f32 %v887, %v962
      %v979 = vadd.f32 %v890, %v962
      %v980 = vadd.f32 %v895, %v962
      %v981 = vadd.f32 %v898, %v962
      %v982 = vadd.f32 %v903, %v962
      %v983 = vadd.f32 %v906, %v962
      %v984 = vadd.f32 %v911, %v962
      %v985 = vadd.f32 %v914, %v962
      %v986 = vadd.f32 %v919, %v962
      %v987 = vadd.f32 %v922, %v962
      %v988 = vadd.f32 %v927, %v962
      %v989 = vadd.f32 %v930, %v962
      %v990 = vadd.f32 %v935, %v962
      %v991 = vadd.f32 %v938, %v962
      %v992 = vadd.f32 %v943, %v962
      %v993 = vadd.f32 %v946, %v962
      %v994 = vadd.f32 %v951, %v962
      %v995 = vadd.f32 %v954, %v962
      %v996 = vxor.u32 %v964, 2147483648
      %v997 = vxor.u32 %v965, 2147483648
      %v998 = vxor.u32 %v966, 2147483648
      %v999 = vxor.u32 %v967, 2147483648
      %v1000 = vxor.u32 %v968, 2147483648
      %v1001 = vxor.u32 %v969, 2147483648
      %v1002 = vxor.u32 %v970, 2147483648
      %v1003 = vxor.u32 %v971, 2147483648
      %v1004 = vxor.u32 %v972, 2147483648
      %v1005 = vxor.u32 %v973, 2147483648
      %v1006 = vxor.u32 %v974, 2147483648
      %v1007 = vxor.u32 %v975, 2147483648
      %v1008 = vxor.u32 %v976, 2147483648
      %v1009 = vxor.u32 %v977, 2147483648
      %v1010 = vxor.u32 %v978, 2147483648
      %v1011 = vxor.u32 %v979, 2147483648
      %v1012 = vxor.u32 %v980, 2147483648
      %v1013 = vxor.u32 %v981, 2147483648
      %v1014 = vxor.u32 %v982, 2147483648
      %v1015 = vxor.u32 %v983, 2147483648
      %v1016 = vxor.u32 %v984, 2147483648
      %v1017 = vxor.u32 %v985, 2147483648
      %v1018 = vxor.u32 %v986, 2147483648
      %v1019 = vxor.u32 %v987, 2147483648
      %v1020 = vxor.u32 %v988, 2147483648
      %v1021 = vxor.u32 %v989, 2147483648
      %v1022 = vxor.u32 %v990, 2147483648
      %v1023 = vxor.u32 %v991, 2147483648
      %v1024 = vxor.u32 %v992, 2147483648
      %v1025 = vxor.u32 %v993, 2147483648
      %v1026 = vxor.u32 %v994, 2147483648
      %v1027 = vxor.u32 %v995, 2147483648
      %v1028 = vmul.f32 %v996, 1.442695
      %v1029 = vpow.pop %v1028
      %v1030 = vmul.f32 %v997, 1.442695
      %v1031 = vpow.pop %v1030
      %v1032 = vmul.f32 %v998, 1.442695
      %v1033 = vpow.pop %v1032
      %v1034 = vmul.f32 %v999, 1.442695
      %v1035 = vpow.pop %v1034
      %v1036 = vmul.f32 %v1000, 1.442695
      %v1037 = vpow.pop %v1036
      %v1038 = vmul.f32 %v1001, 1.442695
      %v1039 = vpow.pop %v1038
      %v1040 = vmul.f32 %v1002, 1.442695
      %v1041 = vpow.pop %v1040
      %v1042 = vmul.f32 %v1003, 1.442695
      %v1043 = vpow.pop %v1042
      %v1044 = vmul.f32 %v1004, 1.442695
      %v1045 = vpow.pop %v1044
      %v1046 = vmul.f32 %v1005, 1.442695
      %v1047 = vpow.pop %v1046
      %v1048 = vmul.f32 %v1006, 1.442695
      %v1049 = vpow.pop %v1048
      %v1050 = vmul.f32 %v1007, 1.442695
      %v1051 = vpow.pop %v1050
      %v1052 = vmul.f32 %v1008, 1.442695
      %v1053 = vpow.pop %v1052
      %v1054 = vmul.f32 %v1009, 1.442695
      %v1055 = vpow.pop %v1054
      %v1056 = vmul.f32 %v1010, 1.442695
      %v1057 = vpow.pop %v1056
      %v1058 = vmul.f32 %v1011, 1.442695
      %v1059 = vpow.pop %v1058
      %v1060 = vmul.f32 %v1012, 1.442695
      %v1061 = vpow.pop %v1060
      %v1062 = vmul.f32 %v1013, 1.442695
      %v1063 = vpow.pop %v1062
      %v1064 = vmul.f32 %v1014, 1.442695
      %v1065 = vpow.pop %v1064
      %v1066 = vmul.f32 %v1015, 1.442695
      %v1067 = vpow.pop %v1066
      %v1068 = vmul.f32 %v1016, 1.442695
      %v1069 = vpow.pop %v1068
      %v1070 = vmul.f32 %v1017, 1.442695
      %v1071 = vpow.pop %v1070
      %v1072 = vmul.f32 %v1018, 1.442695
      %v1073 = vpow.pop %v1072
      %v1074 = vmul.f32 %v1019, 1.442695
      %v1075 = vpow.pop %v1074
      %v1076 = vmul.f32 %v1020, 1.442695
      %v1077 = vpow.pop %v1076
      %v1078 = vmul.f32 %v1021, 1.442695
      %v1079 = vpow.pop %v1078
      %v1080 = vmul.f32 %v1022, 1.442695
      %v1081 = vpow.pop %v1080
      %v1082 = vmul.f32 %v1023, 1.442695
      %v1083 = vpow.pop %v1082
      %v1084 = vmul.f32 %v1024, 1.442695
      %v1085 = vpow.pop %v1084
      %v1086 = vmul.f32 %v1025, 1.442695
      %v1087 = vpow.pop %v1086
      %v1088 = vmul.f32 %v1026, 1.442695
      %v1089 = vpow.pop %v1088
      %v1090 = vmul.f32 %v1027, 1.442695
      %v1091 = vpow.pop %v1090
      %v1092 = vadd.f32 %v1029, 1.0
      %v1093 = vadd.f32 %v1031, 1.0
      %v1094 = vadd.f32 %v1033, 1.0
      %v1095 = vadd.f32 %v1035, 1.0
      %v1096 = vadd.f32 %v1037, 1.0
      %v1097 = vadd.f32 %v1039, 1.0
      %v1098 = vadd.f32 %v1041, 1.0
      %v1099 = vadd.f32 %v1043, 1.0
      %v1100 = vadd.f32 %v1045, 1.0
      %v1101 = vadd.f32 %v1047, 1.0
      %v1102 = vadd.f32 %v1049, 1.0
      %v1103 = vadd.f32 %v1051, 1.0
      %v1104 = vadd.f32 %v1053, 1.0
      %v1105 = vadd.f32 %v1055, 1.0
      %v1106 = vadd.f32 %v1057, 1.0
      %v1107 = vadd.f32 %v1059, 1.0
      %v1108 = vadd.f32 %v1061, 1.0
      %v1109 = vadd.f32 %v1063, 1.0
      %v1110 = vadd.f32 %v1065, 1.0
      %v1111 = vadd.f32 %v1067, 1.0
      %v1112 = vadd.f32 %v1069, 1.0
      %v1113 = vadd.f32 %v1071, 1.0
      %v1114 = vadd.f32 %v1073, 1.0
      %v1115 = vadd.f32 %v1075, 1.0
      %v1116 = vadd.f32 %v1077, 1.0
      %v1117 = vadd.f32 %v1079, 1.0
      %v1118 = vadd.f32 %v1081, 1.0
      %v1119 = vadd.f32 %v1083, 1.0
      %v1120 = vadd.f32 %v1085, 1.0
      %v1121 = vadd.f32 %v1087, 1.0
      %v1122 = vadd.f32 %v1089, 1.0
      %v1123 = vadd.f32 %v1091, 1.0
      %v1124 = vrcp.pop %v1092
      %v1125 = vmul.f32 1.0, %v1124
      %v1126 = vrcp.pop %v1093
      %v1127 = vmul.f32 1.0, %v1126
      %v1128 = vrcp.pop %v1094
      %v1129 = vmul.f32 1.0, %v1128
      %v1130 = vrcp.pop %v1095
      %v1131 = vmul.f32 1.0, %v1130
      %v1132 = vrcp.pop %v1096
      %v1133 = vmul.f32 1.0, %v1132
      %v1134 = vrcp.pop %v1097
      %v1135 = vmul.f32 1.0, %v1134
      %v1136 = vrcp.pop %v1098
      %v1137 = vmul.f32 1.0, %v1136
      %v1138 = vrcp.pop %v1099
      %v1139 = vmul.f32 1.0, %v1138
      %v1140 = vrcp.pop %v1100
      %v1141 = vmul.f32 1.0, %v1140
      %v1142 = vrcp.pop %v1101
      %v1143 = vmul.f32 1.0, %v1142
      %v1144 = vrcp.pop %v1102
      %v1145 = vmul.f32 1.0, %v1144
      %v1146 = vrcp.pop %v1103
      %v1147 = vmul.f32 1.0, %v1146
      %v1148 = vrcp.pop %v1104
      %v1149 = vmul.f32 1.0, %v1148
      %v1150 = vrcp.pop %v1105
      %v1151 = vmul.f32 1.0, %v1150
      %v1152 = vrcp.pop %v1106
      %v1153 = vmul.f32 1.0, %v1152
      %v1154 = vrcp.pop %v1107
      %v1155 = vmul.f32 1.0, %v1154
      %v1156 = vrcp.pop %v1108
      %v1157 = vmul.f32 1.0, %v1156
      %v1158 = vrcp.pop %v1109
      %v1159 = vmul.f32 1.0, %v1158
      %v1160 = vrcp.pop %v1110
      %v1161 = vmul.f32 1.0, %v1160
      %v1162 = vrcp.pop %v1111
      %v1163 = vmul.f32 1.0, %v1162
      %v1164 = vrcp.pop %v1112
      %v1165 = vmul.f32 1.0, %v1164
      %v1166 = vrcp.pop %v1113
      %v1167 = vmul.f32 1.0, %v1166
      %v1168 = vrcp.pop %v1114
      %v1169 = vmul.f32 1.0, %v1168
      %v1170 = vrcp.pop %v1115
      %v1171 = vmul.f32 1.0, %v1170
      %v1172 = vrcp.pop %v1116
      %v1173 = vmul.f32 1.0, %v1172
      %v1174 = vrcp.pop %v1117
      %v1175 = vmul.f32 1.0, %v1174
      %v1176 = vrcp.pop %v1118
      %v1177 = vmul.f32 1.0, %v1176
      %v1178 = vrcp.pop %v1119
      %v1179 = vmul.f32 1.0, %v1178
      %v1180 = vrcp.pop %v1120
      %v1181 = vmul.f32 1.0, %v1180
      %v1182 = vrcp.pop %v1121
      %v1183 = vmul.f32 1.0, %v1182
      %v1184 = vrcp.pop %v1122
      %v1185 = vmul.f32 1.0, %v1184
      %v1186 = vrcp.pop %v1123
      %v1187 = vmul.f32 1.0, %v1186
      %v1188 = vmul.f32 %v964, %v1125
      %v1189 = vmul.f32 %v965, %v1127
      %v1190 = vmul.f32 %v966, %v1129
      %v1191 = vmul.f32 %v967, %v1131
      %v1192 = vmul.f32 %v968, %v1133
      %v1193 = vmul.f32 %v969, %v1135
      %v1194 = vmul.f32 %v970, %v1137
      %v1195 = vmul.f32 %v971, %v1139
      %v1196 = vmul.f32 %v972, %v1141
      %v1197 = vmul.f32 %v973, %v1143
      %v1198 = vmul.f32 %v974, %v1145
      %v1199 = vmul.f32 %v975, %v1147
      %v1200 = vmul.f32 %v976, %v1149
      %v1201 = vmul.f32 %v977, %v1151
      %v1202 = vmul.f32 %v978, %v1153
      %v1203 = vmul.f32 %v979, %v1155
      %v1204 = vmul.f32 %v980, %v1157
      %v1205 = vmul.f32 %v981, %v1159
      %v1206 = vmul.f32 %v982, %v1161
      %v1207 = vmul.f32 %v983, %v1163
      %v1208 = vmul.f32 %v984, %v1165
      %v1209 = vmul.f32 %v985, %v1167
      %v1210 = vmul.f32 %v986, %v1169
      %v1211 = vmul.f32 %v987, %v1171
      %v1212 = vmul.f32 %v988, %v1173
      %v1213 = vmul.f32 %v989, %v1175
      %v1214 = vmul.f32 %v990, %v1177
      %v1215 = vmul.f32 %v991, %v1179
      %v1216 = vmul.f32 %v992, %v1181
      %v1217 = vmul.f32 %v993, %v1183
      %v1218 = vmul.f32 %v994, %v1185
      %v1219 = vmul.f32 %v995, %v1187
      %v1220 = vpack.c.bf16 %v1189, %v1188
      %v1221 = vpack.c.bf16 %v1191, %v1190
      %v1222 = vpack.c.bf16 %v1193, %v1192
      %v1223 = vpack.c.bf16 %v1195, %v1194
      %v1224 = vpack.c.bf16 %v1197, %v1196
      %v1225 = vpack.c.bf16 %v1199, %v1198
      %v1226 = vpack.c.bf16 %v1201, %v1200
      %v1227 = vpack.c.bf16 %v1203, %v1202
      %v1228 = vpack.c.bf16 %v1205, %v1204
      %v1229 = vpack.c.bf16 %v1207, %v1206
      %v1230 = vpack.c.bf16 %v1209, %v1208
      %v1231 = vpack.c.bf16 %v1211, %v1210
      %v1232 = vpack.c.bf16 %v1213, %v1212
      %v1233 = vpack.c.bf16 %v1215, %v1214
      %v1234 = vpack.c.bf16 %v1217, %v1216
      %v1235 = vpack.c.bf16 %v1219, %v1218
      %v1252 = vunpack.c.l.b16 %v1220
      %v1253 = vunpack.c.h.b16 %v1220
      %v1254 = vunpack.c.l.b16 %v1221
      %v1255 = vunpack.c.h.b16 %v1221
      %v1256 = vunpack.c.l.b16 %v1222
      %v1257 = vunpack.c.h.b16 %v1222
      %v1258 = vunpack.c.l.b16 %v1223
      %v1259 = vunpack.c.h.b16 %v1223
      %v1260 = vunpack.c.l.b16 %v1224
      %v1261 = vunpack.c.h.b16 %v1224
      %v1262 = vunpack.c.l.b16 %v1225
      %v1263 = vunpack.c.h.b16 %v1225
      %v1264 = vunpack.c.l.b16 %v1226
      %v1265 = vunpack.c.h.b16 %v1226
      %v1266 = vunpack.c.l.b16 %v1227
      %v1267 = vunpack.c.h.b16 %v1227
      %v1268 = vunpack.c.l.b16 %v1228
      %v1269 = vunpack.c.h.b16 %v1228
      %v1270 = vunpack.c.l.b16 %v1229
      %v1271 = vunpack.c.h.b16 %v1229
      %v1272 = vunpack.c.l.b16 %v1230
      %v1273 = vunpack.c.h.b16 %v1230
      %v1274 = vunpack.c.l.b16 %v1231
      %v1275 = vunpack.c.h.b16 %v1231
      %v1276 = vunpack.c.l.b16 %v1232
      %v1277 = vunpack.c.h.b16 %v1232
      %v1278 = vunpack.c.l.b16 %v1233
      %v1279 = vunpack.c.h.b16 %v1233
      %v1280 = vunpack.c.l.b16 %v1234
      %v1281 = vunpack.c.h.b16 %v1234
      %v1282 = vunpack.c.l.b16 %v1235
      %v1283 = vunpack.c.h.b16 %v1235
      %v1284 = vpack.c.b16 %v1252, %v1252
      %v1285 = vpack.c.b16 %v1253, %v1253
      %v1286 = vpack.c.b16 %v1254, %v1254
      %v1287 = vpack.c.b16 %v1255, %v1255
      %v1288 = vpack.c.b16 %v1256, %v1256
      %v1289 = vpack.c.b16 %v1257, %v1257
      %v1290 = vpack.c.b16 %v1258, %v1258
      %v1291 = vpack.c.b16 %v1259, %v1259
      %v1292 = vpack.c.b16 %v1260, %v1260
      %v1293 = vpack.c.b16 %v1261, %v1261
      %v1294 = vpack.c.b16 %v1262, %v1262
      %v1295 = vpack.c.b16 %v1263, %v1263
      %v1296 = vpack.c.b16 %v1264, %v1264
      %v1297 = vpack.c.b16 %v1265, %v1265
      %v1298 = vpack.c.b16 %v1266, %v1266
      %v1299 = vpack.c.b16 %v1267, %v1267
      %v1300 = vpack.c.b16 %v1268, %v1268
      %v1301 = vpack.c.b16 %v1269, %v1269
      %v1302 = vpack.c.b16 %v1270, %v1270
      %v1303 = vpack.c.b16 %v1271, %v1271
      %v1304 = vpack.c.b16 %v1272, %v1272
      %v1305 = vpack.c.b16 %v1273, %v1273
      %v1306 = vpack.c.b16 %v1274, %v1274
      %v1307 = vpack.c.b16 %v1275, %v1275
      %v1308 = vpack.c.b16 %v1276, %v1276
      %v1309 = vpack.c.b16 %v1277, %v1277
      %v1310 = vpack.c.b16 %v1278, %v1278
      %v1311 = vpack.c.b16 %v1279, %v1279
      %v1312 = vpack.c.b16 %v1280, %v1280
      %v1313 = vpack.c.b16 %v1281, %v1281
      %v1314 = vpack.c.b16 %v1282, %v1282
      %v1315 = vpack.c.b16 %v1283, %v1283
      %1348 = vst [vmem:[%s248] sm:$0xf] %v1284
      %1349 = vst [vmem:[%s248 + $0x4] sm:$0xf] %v1285
      %1350 = vst [vmem:[%s248 + $0x8] sm:$0xf] %v1286
      %1351 = vst [vmem:[%s248 + $0xc] sm:$0xf] %v1287
      %1352 = vst [vmem:[%s248 + $0x10] sm:$0xf] %v1288
      %1353 = vst [vmem:[%s248 + $0x14] sm:$0xf] %v1289
      %1354 = vst [vmem:[%s248 + $0x18] sm:$0xf] %v1290
      %1355 = vst [vmem:[%s248 + $0x1c] sm:$0xf] %v1291
      %1356 = vst [vmem:[%s248 + $0x20] sm:$0xf] %v1292
      %1357 = vst [vmem:[%s248 + $0x24] sm:$0xf] %v1293
      %1358 = vst [vmem:[%s248 + $0x28] sm:$0xf] %v1294
      %1359 = vst [vmem:[%s248 + $0x2c] sm:$0xf] %v1295
      %1360 = vst [vmem:[%s248 + $0x30] sm:$0xf] %v1296
      %1361 = vst [vmem:[%s248 + $0x34] sm:$0xf] %v1297
      %1362 = vst [vmem:[%s248 + $0x38] sm:$0xf] %v1298
      %1363 = vst [vmem:[%s248 + $0x3c] sm:$0xf] %v1299
      %1364 = vst [vmem:[%s248 + $0x40] sm:$0xf] %v1300
      %1365 = vst [vmem:[%s248 + $0x44] sm:$0xf] %v1301
      %1366 = vst [vmem:[%s248 + $0x48] sm:$0xf] %v1302
      %1367 = vst [vmem:[%s248 + $0x4c] sm:$0xf] %v1303
      %1368 = vst [vmem:[%s248 + $0x50] sm:$0xf] %v1304
      %1369 = vst [vmem:[%s248 + $0x54] sm:$0xf] %v1305
      %1370 = vst [vmem:[%s248 + $0x58] sm:$0xf] %v1306
      %1371 = vst [vmem:[%s248 + $0x5c] sm:$0xf] %v1307
      %1372 = vst [vmem:[%s248 + $0x60] sm:$0xf] %v1308
      %1373 = vst [vmem:[%s248 + $0x64] sm:$0xf] %v1309
      %1374 = vst [vmem:[%s248 + $0x68] sm:$0xf] %v1310
      %1375 = vst [vmem:[%s248 + $0x6c] sm:$0xf] %v1311
      %1376 = vst [vmem:[%s248 + $0x70] sm:$0xf] %v1312
      %1377 = vst [vmem:[%s248 + $0x74] sm:$0xf] %v1313
      %1378 = vst [vmem:[%s248 + $0x78] sm:$0xf] %v1314
      %1379 = vst [vmem:[%s248 + $0x7c] sm:$0xf] %v1315
      %s1380 = smul.u32 32, %s16
      %p1381 = scmp.lt.s32.totalorder %s1380, 63
      %s1382 = scalar_select %p1381, %s1380, 63
      %s1383 = smul.addr %s1382, 4
      %s1384 = scalar_lea.vmem %s5, %s1383
      // Predicated region
      $region41: #{c3_forward.7} parent=39 // pred_check
        %p1385 = pneg %p149
      $region42: #{c3_forward.7} parent=39 // pred_check_branch
        %1387 = sbr.rel (%p1385) target = $region44
      $region43: #{c3_forward.7} parent=39 // pred_region
        %s1388 = smul.u32 32, %s16
      $region44: #{c3_forward.7} parent=39 // pred_fallthru
        _
    $region40: #{c3_forward.7} parent=5 // pred_fallthru
      _
    %p1389 = scmp.le.s32.totalorder 2, %s11
    // Predicated region
    $region45: #{c3_forward.7} parent=5 // pred_check
      %p1390 = pneg %p1389
    $region46: #{c3_forward.7} parent=5 // pred_check_branch
      %1392 = sbr.rel (%p1390) target = $region48
    $region47: #{c3_forward.7} parent=5 // pred_region
      %s1393 = ssub.s32 %s11, 2
      // Predicated region
      $region49: #{c3_forward.7} parent=47 // pred_check
        %p1394 = pneg %p155
      $region50: #{c3_forward.7} parent=47 // pred_check_branch
        %1396 = sbr.rel (%p1394) target = $region52
      $region51: #{c3_forward.7} parent=47 // pred_region
        %s1397 = smul.u32 32, %s17
        %p1398 = scmp.lt.s32.totalorder %s1397, 63
        %s1399 = scalar_select %p1398, %s1397, 63
        %s1400 = smul.addr %s1399, 4
        %s1401 = scalar_lea.vmem %s5, %s1400
      $region52: #{c3_forward.7} parent=47 // pred_fallthru
        _
    $region48: #{c3_forward.7} parent=5 // pred_fallthru
      _
  $region6: #{c3_forward.7} parent=0 // loop_footer
    %s15 = sadd.s32 1, %s11
  $region7: #{c3_forward.7} parent=0 // loop_footer_branch
    %10 = sbr.rel target = $region3
  $region8: #{c3_forward.7} parent=0 // loop_exit
    _

// kernel: c3_forward.6
$region0: #{c3_forward.6}
  #allocation0 [shape = 'u32[]', space=smem, size = 0x4, offset = 0x4, fixed_abs, tag = 'smem constant byte address 0x4 - core index']
  #allocation1 [shape = 'u32[144,128]{1,0:T(1,128)}', space=vmem, size = 0x12000, scoped, tag = 'internal scratch']
  %s0 = inlined_call_operand.vmem [shape: bf16[2,18,18,128], index: 0, kind: input, shape index: {}]
  %s1 = inlined_call_operand.vmem [shape: bf16[9,128,128], index: 1, kind: input, shape index: {}]
  %s2 = inlined_call_operand.vmem [shape: f32[1,128], index: 2, kind: input, shape index: {}]
  %s3 = inlined_call_operand.vmem [shape: bf16[2,16,16,128], index: 3, kind: input, shape index: {}]
  %s4 = inlined_call_operand.vmem [shape: bf16[2,16,16,128], index: 4, kind: output, shape index: {}]
  %s5 = sld [smem:[#allocation0]]
  $region49: #{c3_forward.6} parent=0
    _
  %s7 = ssub.s32 1, %s5
  %s8 = scalar_select 0, %s7, %s5
  loop: start=0, step=1, limit=4
  $region2: #{c3_forward.6} parent=0 // loop_pre_header
    _
  $region3: #{c3_forward.6} parent=0 // loop_header
    %s10 = sphi 0, %s14
    %p11 = scmp.ge.s32.totalorder %s10, 4
    %s20 = sphi 0, %s22
    %s23 = sphi 0, %s20
    %s24 = sphi 0, %s23
    %s40 = sphi 0, %s24
    %s44 = sphi 0, %s44
    %s46 = sphi 0, %s44
    %s47 = sphi 0, %s46
    %s61 = sphi 0, %s47
    %s65 = sphi 0, %s65
    %s67 = sphi 0, %s65
    %s68 = sphi 0, %s67
    %s82 = sphi 0, %s68
    %s88 = sphi 0, %s90
    %s91 = sphi 0, %s88
    %s92 = sphi 0, %s91
    %s108 = sphi 0, %s92
    %s114 = sphi 0, %s116
    %s117 = sphi 0, %s114
    %s118 = sphi 0, %s117
    %s134 = sphi 0, %s118
  $region4: #{c3_forward.6} parent=0 // loop_header_branch
    %13 = sbr.rel (%p11) target = $region8
  $region5: #{c3_forward.6} parent=0 // loop_body
    %s15 = ssub.s32 %s10, 1
    %s16 = ssub.s32 %s10, 2
    %s17 = sadd.s32 %s10, 1
    %s18 = ssub.s32 %s10, %s17
    %p19 = scmp.eq.s32.totalorder %s18, 0
    %s21 = sadd.s32 %s20, 1
    %s22 = scalar_select %p19, %s20, %s21
    %p25 = pneg %p19
    %p26 = scmp.eq.s32.totalorder %s10, 1
    %p27 = por %p25, %p26
    %p28 = scmp.ne.s32.totalorder %s20, %s23
    %p29 = scmp.eq.s32.totalorder %s10, 0
    %p30 = por %p28, %p29
    %p31 = scmp.ne.s32.totalorder %s20, %s23
    %p32 = scmp.eq.s32.totalorder %s15, 1
    %p33 = por %p31, %p32
    %p34 = scmp.ne.s32.totalorder %s23, %s24
    %p35 = scmp.eq.s32.totalorder %s15, 0
    %p36 = por %p34, %p35
    %p37 = scmp.ne.s32.totalorder %s23, %s24
    %p38 = scmp.eq.s32.totalorder %s16, 1
    %p39 = por %p37, %p38
    %p41 = scmp.ne.s32.totalorder %s24, %s40
    %p42 = scmp.eq.s32.totalorder %s16, 0
    %p43 = por %p41, %p42
    %s45 = sadd.s32 %s44, 1
    %p48 = scmp.eq.s32.totalorder %s10, 1
    %p49 = scmp.ne.s32.totalorder %s44, %s46
    %p50 = scmp.eq.s32.totalorder %s10, 0
    %p51 = por %p49, %p50
    %p52 = scmp.ne.s32.totalorder %s44, %s46
    %p53 = scmp.eq.s32.totalorder %s15, 1
    %p54 = por %p52, %p53
    %p55 = scmp.ne.s32.totalorder %s46, %s47
    %p56 = scmp.eq.s32.totalorder %s15, 0
    %p57 = por %p55, %p56
    %p58 = scmp.ne.s32.totalorder %s46, %s47
    %p59 = scmp.eq.s32.totalorder %s16, 1
    %p60 = por %p58, %p59
    %p62 = scmp.ne.s32.totalorder %s47, %s61
    %p63 = scmp.eq.s32.totalorder %s16, 0
    %p64 = por %p62, %p63
    %s66 = sadd.s32 %s65, 1
    %p69 = scmp.eq.s32.totalorder %s10, 1
    %p70 = scmp.ne.s32.totalorder %s65, %s67
    %p71 = scmp.eq.s32.totalorder %s10, 0
    %p72 = por %p70, %p71
    %p73 = scmp.ne.s32.totalorder %s65, %s67
    %p74 = scmp.eq.s32.totalorder %s15, 1
    %p75 = por %p73, %p74
    %p76 = scmp.ne.s32.totalorder %s67, %s68
    %p77 = scmp.eq.s32.totalorder %s15, 0
    %p78 = por %p76, %p77
    %p79 = scmp.ne.s32.totalorder %s67, %s68
    %p80 = scmp.eq.s32.totalorder %s16, 1
    %p81 = por %p79, %p80
    %p83 = scmp.ne.s32.totalorder %s68, %s82
    %p84 = scmp.eq.s32.totalorder %s16, 0
    %p85 = por %p83, %p84
    %s86 = ssub.s32 %s10, %s17
    %p87 = scmp.eq.s32.totalorder %s86, 0
    %s89 = sadd.s32 %s88, 1
    %s90 = scalar_select %p87, %s88, %s89
    %p93 = pneg %p87
    %p94 = scmp.eq.s32.totalorder %s10, 1
    %p95 = por %p93, %p94
    %p96 = scmp.ne.s32.totalorder %s88, %s91
    %p97 = scmp.eq.s32.totalorder %s10, 0
    %p98 = por %p96, %p97
    %p99 = scmp.ne.s32.totalorder %s88, %s91
    %p100 = scmp.eq.s32.totalorder %s15, 1
    %p101 = por %p99, %p100
    %p102 = scmp.ne.s32.totalorder %s91, %s92
    %p103 = scmp.eq.s32.totalorder %s15, 0
    %p104 = por %p102, %p103
    %p105 = scmp.ne.s32.totalorder %s91, %s92
    %p106 = scmp.eq.s32.totalorder %s16, 1
    %p107 = por %p105, %p106
    %p109 = scmp.ne.s32.totalorder %s92, %s108
    %p110 = scmp.eq.s32.totalorder %s16, 0
    %p111 = por %p109, %p110
    %s112 = ssub.s32 %s10, %s17
    %p113 = scmp.eq.s32.totalorder %s112, 0
    %s115 = sadd.s32 %s114, 1
    %s116 = scalar_select %p113, %s114, %s115
    %p119 = pneg %p113
    %p120 = scmp.eq.s32.totalorder %s10, 1
    %p121 = por %p119, %p120
    %p122 = scmp.ne.s32.totalorder %s114, %s117
    %p123 = scmp.eq.s32.totalorder %s10, 0
    %p124 = por %p122, %p123
    %p125 = scmp.ne.s32.totalorder %s114, %s117
    %p126 = scmp.eq.s32.totalorder %s15, 1
    %p127 = por %p125, %p126
    %p128 = scmp.ne.s32.totalorder %s117, %s118
    %p129 = scmp.eq.s32.totalorder %s15, 0
    %p130 = por %p128, %p129
    %p131 = scmp.ne.s32.totalorder %s117, %s118
    %p132 = scmp.eq.s32.totalorder %s16, 1
    %p133 = por %p131, %p132
    %p135 = scmp.ne.s32.totalorder %s118, %s134
    %p136 = scmp.eq.s32.totalorder %s16, 0
    %p137 = por %p135, %p136
    %p138 = scmp.le.s32.totalorder 1, %s10
    %p139 = scmp.lt.s32.totalorder %s10, 3
    %p140 = pnand %p138, %p139
    %p141 = pneg %p140
    // Predicated region
    $region9: #{c3_forward.6} parent=5 // pred_check
      _
    $region10: #{c3_forward.6} parent=5 // pred_check_branch
      %143 = sbr.rel (%p140) target = $region12
    $region11: #{c3_forward.6} parent=5 // pred_region
      %s144 = ssub.s32 %s10, 1
      // Predicated region
      $region13: #{c3_forward.6} parent=11 // pred_check
        %p145 = pneg %p57
      $region14: #{c3_forward.6} parent=11 // pred_check_branch
        %147 = sbr.rel (%p145) target = $region16
      $region15: #{c3_forward.6} parent=11 // pred_region
        _
      $region16: #{c3_forward.6} parent=11 // pred_fallthru
        _
      // Predicated region
      $region17: #{c3_forward.6} parent=11 // pred_check
        %p148 = pneg %p78
      $region18: #{c3_forward.6} parent=11 // pred_check_branch
        %150 = sbr.rel (%p148) target = $region20
      $region19: #{c3_forward.6} parent=11 // pred_region
        _
      $region20: #{c3_forward.6} parent=11 // pred_fallthru
        _
    $region12: #{c3_forward.6} parent=5 // pred_fallthru
      _
    %p151 = scmp.lt.s32.totalorder %s10, 2
    // Predicated region
    $region21: #{c3_forward.6} parent=5 // pred_check
      %p152 = pneg %p151
    $region22: #{c3_forward.6} parent=5 // pred_check_branch
      %154 = sbr.rel (%p152) target = $region24
    $region23: #{c3_forward.6} parent=5 // pred_region
      // Predicated region
      $region25: #{c3_forward.6} parent=23 // pred_check
        %p155 = pneg %p30
      $region26: #{c3_forward.6} parent=23 // pred_check_branch
        %157 = sbr.rel (%p155) target = $region28
      $region27: #{c3_forward.6} parent=23 // pred_region
        %p158 = scmp.lt.s32.totalorder %s10, 1
        %s159 = scalar_select %p158, %s10, 1
        %s160 = smul.addr %s159, 54
        %s161 = smul.addr %s160, 4
        %s162 = scalar_lea.vmem %s0, %s161
      $region28: #{c3_forward.6} parent=23 // pred_fallthru
        _
      // Predicated region
      $region29: #{c3_forward.6} parent=23 // pred_check
        %p163 = pneg %p98
      $region30: #{c3_forward.6} parent=23 // pred_check_branch
        %165 = sbr.rel (%p163) target = $region32
      $region31: #{c3_forward.6} parent=23 // pred_region
        %p166 = scmp.lt.s32.totalorder %s10, 1
        %s167 = scalar_select %p166, %s10, 1
        %s168 = smul.addr %s167, 32
        %s169 = smul.addr %s168, 4
        %s170 = scalar_lea.vmem %s3, %s169
      $region32: #{c3_forward.6} parent=23 // pred_fallthru
        _
    $region24: #{c3_forward.6} parent=5 // pred_fallthru
      _
    %p171 = scmp.le.s32.totalorder 1, %s10
    %p172 = scmp.lt.s32.totalorder %s10, 3
    %p173 = pnand %p171, %p172
    %p174 = pneg %p173
    // Predicated region
    $region33: #{c3_forward.6} parent=5 // pred_check
      _
    $region34: #{c3_forward.6} parent=5 // pred_check_branch
      %176 = sbr.rel (%p173) target = $region36
    $region35: #{c3_forward.6} parent=5 // pred_region
      %s177 = ssub.s32 %s10, 1
      %p178 = scmp.lt.s32.totalorder %s15, 1
      %s179 = scalar_select %p178, %s15, 1
      %s180 = smul.addr %s179, 54
      %s181 = smul.addr %s180, 4
      %s182 = scalar_lea.vmem %s0, %s181
      %p183 = pneg %p36
      %p184 = pneg %p33
      %p185 = pneg %p57
      %p186 = pneg %p54
      %p187 = pneg %p78
      %p188 = pneg %p75
      %p189 = scmp.lt.s32.totalorder %s15, 1
      %s190 = scalar_select %p189, %s15, 1
      %s191 = smul.addr %s190, 32
      %s192 = smul.addr %s191, 4
      %s193 = scalar_lea.vmem %s3, %s192
      %p194 = pneg %p104
      %p195 = pneg %p101
      %p196 = pneg %p130
      %p197 = pneg %p127
      %p198 = scmp.lt.s32.totalorder %s15, 1
      %s199 = scalar_select %p198, %s15, 1
      %s200 = smul.addr %s199, 32
      %s201 = smul.addr %s200, 4
      %s202 = scalar_lea.vmem %s4, %s201
      %p203 = scmp.lt.s32.totalorder %s15, 1
      %s204 = scalar_select %p203, %s15, 1
      %s205 = smul.addr %s204, 54
      %s206 = smul.addr %s205, 4
      %s207 = scalar_lea.vmem %s0, %s206
      %p208 = scmp.lt.s32.totalorder %s15, 1
      %s209 = scalar_select %p208, %s15, 1
      %s210 = smul.addr %s209, 32
      %s211 = smul.addr %s210, 4
      %s212 = scalar_lea.vmem %s3, %s211
      %p213 = scmp.lt.s32.totalorder %s15, 1
      %s214 = scalar_select %p213, %s15, 1
      %s215 = smul.addr %s214, 32
      %s216 = smul.addr %s215, 4
      %s217 = scalar_lea.vmem %s4, %s216
      %v219 = vld [vmem:[%s207] sm:$0xf]
      %v220 = vld [vmem:[%s207 + $0x4] sm:$0xf]
      %v221 = vld [vmem:[%s207 + $0xc] sm:$0xf]
      %v222 = vld [vmem:[%s207 + $0x10] sm:$0xf]
      %v223 = vld [vmem:[%s207 + $0x18] sm:$0xf]
      %v224 = vld [vmem:[%s207 + $0x1c] sm:$0xf]
      %v225 = vld [vmem:[%s207 + $0x24] sm:$0xf]
      %v226 = vld [vmem:[%s207 + $0x28] sm:$0xf]
      %v227 = vld [vmem:[%s207 + $0x30] sm:$0xf]
      %v228 = vld [vmem:[%s207 + $0x34] sm:$0xf]
      %v229 = vld [vmem:[%s207 + $0x3c] sm:$0xf]
      %v230 = vld [vmem:[%s207 + $0x40] sm:$0xf]
      %v231 = vld [vmem:[%s207 + $0x48] sm:$0xf]
      %v232 = vld [vmem:[%s207 + $0x4c] sm:$0xf]
      %v233 = vld [vmem:[%s207 + $0x54] sm:$0xf]
      %v234 = vld [vmem:[%s207 + $0x58] sm:$0xf]
      %v235 = vld [vmem:[%s207 + $0x60] sm:$0xf]
      %v236 = vld [vmem:[%s207 + $0x64] sm:$0xf]
      %v237 = vld [vmem:[%s207 + $0x6c] sm:$0xf]
      %v238 = vld [vmem:[%s207 + $0x70] sm:$0xf]
      %v239 = vld [vmem:[%s207 + $0x78] sm:$0xf]
      %v240 = vld [vmem:[%s207 + $0x7c] sm:$0xf]
      %v241 = vld [vmem:[%s207 + $0x84] sm:$0xf]
      %v242 = vld [vmem:[%s207 + $0x88] sm:$0xf]
      %v243 = vld [vmem:[%s207 + $0x90] sm:$0xf]
      %v244 = vld [vmem:[%s207 + $0x94] sm:$0xf]
      %v245 = vld [vmem:[%s207 + $0x9c] sm:$0xf]
      %v246 = vld [vmem:[%s207 + $0xa0] sm:$0xf]
      %v247 = vld [vmem:[%s207 + $0xa8] sm:$0xf]
      %v248 = vld [vmem:[%s207 + $0xac] sm:$0xf]
      %v249 = vld [vmem:[%s207 + $0xb4] sm:$0xf]
      %v250 = vld [vmem:[%s207 + $0xb8] sm:$0xf]
      %v251 = vld [vmem:[%s1] sm:$0xf]
      %v252 = vld [vmem:[%s1 + $0x4] sm:$0xf]
      %v253 = vld [vmem:[%s1 + $0x8] sm:$0xf]
      %v254 = vld [vmem:[%s1 + $0xc] sm:$0xf]
      %v255 = vld [vmem:[%s1 + $0x10] sm:$0xf]
      %v256 = vld [vmem:[%s1 + $0x14] sm:$0xf]
      %v257 = vld [vmem:[%s1 + $0x18] sm:$0xf]
      %v258 = vld [vmem:[%s1 + $0x1c] sm:$0xf]
      %v259 = vld [vmem:[%s1 + $0x20] sm:$0xf]
      %v260 = vld [vmem:[%s1 + $0x24] sm:$0xf]
      %v261 = vld [vmem:[%s1 + $0x28] sm:$0xf]
      %v262 = vld [vmem:[%s1 + $0x2c] sm:$0xf]
      %v263 = vld [vmem:[%s1 + $0x30] sm:$0xf]
      %v264 = vld [vmem:[%s1 + $0x34] sm:$0xf]
      %v265 = vld [vmem:[%s1 + $0x38] sm:$0xf]
      %v266 = vld [vmem:[%s1 + $0x3c] sm:$0xf]
      %v267 = vld [vmem:[%s207 + $0x8] sm:$0x1]
      %v268 = vld [vmem:[%s207 + $0x14] sm:$0x1]
      %v269 = vld [vmem:[%s207 + $0x20] sm:$0x1]
      %v270 = vld [vmem:[%s207 + $0x2c] sm:$0x1]
      %v271 = vld [vmem:[%s207 + $0x38] sm:$0x1]
      %v272 = vld [vmem:[%s207 + $0x44] sm:$0x1]
      %v273 = vld [vmem:[%s207 + $0x50] sm:$0x1]
      %v274 = vld [vmem:[%s207 + $0x5c] sm:$0x1]
      %v275 = vld [vmem:[%s207 + $0x68] sm:$0x1]
      %v276 = vld [vmem:[%s207 + $0x74] sm:$0x1]
      %v277 = vld [vmem:[%s207 + $0x80] sm:$0x1]
      %v278 = vld [vmem:[%s207 + $0x8c] sm:$0x1]
      %v279 = vld [vmem:[%s207 + $0x98] sm:$0x1]
      %v280 = vld [vmem:[%s207 + $0xa4] sm:$0x1]
      %v281 = vld [vmem:[%s207 + $0xb0] sm:$0x1]
      %v282 = vld [vmem:[%s207 + $0xbc] sm:$0x1]
      %vm283 = vsmask.f32 3328
      %vm284 = vsmask.f32 7440
      %vm285 = vmor %vm283, %vm284
      %v287 = vshrl.u32 %v219, 16
      %v289 = vrot.slane %v287, 4
      %v290 = vshll.u32 %v219, 16
      %v292 = vrot.slane %v290, 5
      %v293 = vor.u32 %v289, %v292
      %v294 = vrot.slane %v293, 4
      %v296 = vshll.u32 %v220, 16
      %v298 = vrot.slane %v296, 5
      %v299 = vsel %vm285, %v294, %v298
      %v300 = vshrl.u32 %v220, 16
      %v302 = vrot.slane %v300, 4
      %v303 = vor.u32 %v302, %v298
      %v304 = vrot.slane %v303, 4
      %v306 = vshll.u32 %v267, 16
      %v308 = vrot.slane %v306, 5
      %v309 = vsel %vm285, %v304, %v308
      %v311 = vshrl.u32 %v221, 16
      %v313 = vrot.slane %v311, 4
      %v314 = vshll.u32 %v221, 16
      %v316 = vrot.slane %v314, 5
      %v317 = vor.u32 %v313, %v316
      %v318 = vrot.slane %v317, 4
      %v320 = vshll.u32 %v222, 16
      %v322 = vrot.slane %v320, 5
      %v323 = vsel %vm285, %v318, %v322
      %v324 = vshrl.u32 %v222, 16
      %v326 = vrot.slane %v324, 4
      %v327 = vor.u32 %v326, %v322
      %v328 = vrot.slane %v327, 4
      %v330 = vshll.u32 %v268, 16
      %v332 = vrot.slane %v330, 5
      %v333 = vsel %vm285, %v328, %v332
      %v335 = vshrl.u32 %v223, 16
      %v337 = vrot.slane %v335, 4
      %v338 = vshll.u32 %v223, 16
      %v340 = vrot.slane %v338, 5
      %v341 = vor.u32 %v337, %v340
      %v342 = vrot.slane %v341, 4
      %v344 = vshll.u32 %v224, 16
      %v346 = vrot.slane %v344, 5
      %v347 = vsel %vm285, %v342, %v346
      %v348 = vshrl.u32 %v224, 16
      %v350 = vrot.slane %v348, 4
      %v351 = vor.u32 %v350, %v346
      %v352 = vrot.slane %v351, 4
      %v354 = vshll.u32 %v269, 16
      %v356 = vrot.slane %v354, 5
      %v357 = vsel %vm285, %v352, %v356
      %v359 = vshrl.u32 %v225, 16
      %v361 = vrot.slane %v359, 4
      %v362 = vshll.u32 %v225, 16
      %v364 = vrot.slane %v362, 5
      %v365 = vor.u32 %v361, %v364
      %v366 = vrot.slane %v365, 4
      %v368 = vshll.u32 %v226, 16
      %v370 = vrot.slane %v368, 5
      %v371 = vsel %vm285, %v366, %v370
      %v372 = vshrl.u32 %v226, 16
      %v374 = vrot.slane %v372, 4
      %v375 = vor.u32 %v374, %v370
      %v376 = vrot.slane %v375, 4
      %v378 = vshll.u32 %v270, 16
      %v380 = vrot.slane %v378, 5
      %v381 = vsel %vm285, %v376, %v380
      %v383 = vshrl.u32 %v227, 16
      %v385 = vrot.slane %v383, 4
      %v386 = vshll.u32 %v227, 16
      %v388 = vrot.slane %v386, 5
      %v389 = vor.u32 %v385, %v388
      %v390 = vrot.slane %v389, 4
      %v392 = vshll.u32 %v228, 16
      %v394 = vrot.slane %v392, 5
      %v395 = vsel %vm285, %v390, %v394
      %v396 = vshrl.u32 %v228, 16
      %v398 = vrot.slane %v396, 4
      %v399 = vor.u32 %v398, %v394
      %v400 = vrot.slane %v399, 4
      %v402 = vshll.u32 %v271, 16
      %v404 = vrot.slane %v402, 5
      %v405 = vsel %vm285, %v400, %v404
      %v407 = vshrl.u32 %v229, 16
      %v409 = vrot.slane %v407, 4
      %v410 = vshll.u32 %v229, 16
      %v412 = vrot.slane %v410, 5
      %v413 = vor.u32 %v409, %v412
      %v414 = vrot.slane %v413, 4
      %v416 = vshll.u32 %v230, 16
      %v418 = vrot.slane %v416, 5
      %v419 = vsel %vm285, %v414, %v418
      %v420 = vshrl.u32 %v230, 16
      %v422 = vrot.slane %v420, 4
      %v423 = vor.u32 %v422, %v418
      %v424 = vrot.slane %v423, 4
      %v426 = vshll.u32 %v272, 16
      %v428 = vrot.slane %v426, 5
      %v429 = vsel %vm285, %v424, %v428
      %v431 = vshrl.u32 %v231, 16
      %v433 = vrot.slane %v431, 4
      %v434 = vshll.u32 %v231, 16
      %v436 = vrot.slane %v434, 5
      %v437 = vor.u32 %v433, %v436
      %v438 = vrot.slane %v437, 4
      %v440 = vshll.u32 %v232, 16
      %v442 = vrot.slane %v440, 5
      %v443 = vsel %vm285, %v438, %v442
      %v444 = vshrl.u32 %v232, 16
      %v446 = vrot.slane %v444, 4
      %v447 = vor.u32 %v446, %v442
      %v448 = vrot.slane %v447, 4
      %v450 = vshll.u32 %v273, 16
      %v452 = vrot.slane %v450, 5
      %v453 = vsel %vm285, %v448, %v452
      %v455 = vshrl.u32 %v233, 16
      %v457 = vrot.slane %v455, 4
      %v458 = vshll.u32 %v233, 16
      %v460 = vrot.slane %v458, 5
      %v461 = vor.u32 %v457, %v460
      %v462 = vrot.slane %v461, 4
      %v464 = vshll.u32 %v234, 16
      %v466 = vrot.slane %v464, 5
      %v467 = vsel %vm285, %v462, %v466
      %v468 = vshrl.u32 %v234, 16
      %v470 = vrot.slane %v468, 4
      %v471 = vor.u32 %v470, %v466
      %v472 = vrot.slane %v471, 4
      %v474 = vshll.u32 %v274, 16
      %v476 = vrot.slane %v474, 5
      %v477 = vsel %vm285, %v472, %v476
      %v479 = vshrl.u32 %v235, 16
      %v481 = vrot.slane %v479, 4
      %v482 = vshll.u32 %v235, 16
      %v484 = vrot.slane %v482, 5
      %v485 = vor.u32 %v481, %v484
      %v486 = vrot.slane %v485, 4
      %v488 = vshll.u32 %v236, 16
      %v490 = vrot.slane %v488, 5
      %v491 = vsel %vm285, %v486, %v490
      %v492 = vshrl.u32 %v236, 16
      %v494 = vrot.slane %v492, 4
      %v495 = vor.u32 %v494, %v490
      %v496 = vrot.slane %v495, 4
      %v498 = vshll.u32 %v275, 16
      %v500 = vrot.slane %v498, 5
      %v501 = vsel %vm285, %v496, %v500
      %v503 = vshrl.u32 %v237, 16
      %v505 = vrot.slane %v503, 4
      %v506 = vshll.u32 %v237, 16
      %v508 = vrot.slane %v506, 5
      %v509 = vor.u32 %v505, %v508
      %v510 = vrot.slane %v509, 4
      %v512 = vshll.u32 %v238, 16
      %v514 = vrot.slane %v512, 5
      %v515 = vsel %vm285, %v510, %v514
      %v516 = vshrl.u32 %v238, 16
      %v518 = vrot.slane %v516, 4
      %v519 = vor.u32 %v518, %v514
      %v520 = vrot.slane %v519, 4
      %v522 = vshll.u32 %v276, 16
      %v524 = vrot.slane %v522, 5
      %v525 = vsel %vm285, %v520, %v524
      %v527 = vshrl.u32 %v239, 16
      %v529 = vrot.slane %v527, 4
      %v530 = vshll.u32 %v239, 16
      %v532 = vrot.slane %v530, 5
      %v533 = vor.u32 %v529, %v532
      %v534 = vrot.slane %v533, 4
      %v536 = vshll.u32 %v240, 16
      %v538 = vrot.slane %v536, 5
      %v539 = vsel %vm285, %v534, %v538
      %v540 = vshrl.u32 %v240, 16
      %v542 = vrot.slane %v540, 4
      %v543 = vor.u32 %v542, %v538
      %v544 = vrot.slane %v543, 4
      %v546 = vshll.u32 %v277, 16
      %v548 = vrot.slane %v546, 5
      %v549 = vsel %vm285, %v544, %v548
      %v551 = vshrl.u32 %v241, 16
      %v553 = vrot.slane %v551, 4
      %v554 = vshll.u32 %v241, 16
      %v556 = vrot.slane %v554, 5
      %v557 = vor.u32 %v553, %v556
      %v558 = vrot.slane %v557, 4
      %v560 = vshll.u32 %v242, 16
      %v562 = vrot.slane %v560, 5
      %v563 = vsel %vm285, %v558, %v562
      %v564 = vshrl.u32 %v242, 16
      %v566 = vrot.slane %v564, 4
      %v567 = vor.u32 %v566, %v562
      %v568 = vrot.slane %v567, 4
      %v570 = vshll.u32 %v278, 16
      %v572 = vrot.slane %v570, 5
      %v573 = vsel %vm285, %v568, %v572
      %v575 = vshrl.u32 %v243, 16
      %v577 = vrot.slane %v575, 4
      %v578 = vshll.u32 %v243, 16
      %v580 = vrot.slane %v578, 5
      %v581 = vor.u32 %v577, %v580
      %v582 = vrot.slane %v581, 4
      %v584 = vshll.u32 %v244, 16
      %v586 = vrot.slane %v584, 5
      %v587 = vsel %vm285, %v582, %v586
      %v588 = vshrl.u32 %v244, 16
      %v590 = vrot.slane %v588, 4
      %v591 = vor.u32 %v590, %v586
      %v592 = vrot.slane %v591, 4
      %v594 = vshll.u32 %v279, 16
      %v596 = vrot.slane %v594, 5
      %v597 = vsel %vm285, %v592, %v596
      %v599 = vshrl.u32 %v245, 16
      %v601 = vrot.slane %v599, 4
      %v602 = vshll.u32 %v245, 16
      %v604 = vrot.slane %v602, 5
      %v605 = vor.u32 %v601, %v604
      %v606 = vrot.slane %v605, 4
      %v608 = vshll.u32 %v246, 16
      %v610 = vrot.slane %v608, 5
      %v611 = vsel %vm285, %v606, %v610
      %v612 = vshrl.u32 %v246, 16
      %v614 = vrot.slane %v612, 4
      %v615 = vor.u32 %v614, %v610
      %v616 = vrot.slane %v615, 4
      %v618 = vshll.u32 %v280, 16
      %v620 = vrot.slane %v618, 5
      %v621 = vsel %vm285, %v616, %v620
      %v623 = vshrl.u32 %v247, 16
      %v625 = vrot.slane %v623, 4
      %v626 = vshll.u32 %v247, 16
      %v628 = vrot.slane %v626, 5
      %v629 = vor.u32 %v625, %v628
      %v630 = vrot.slane %v629, 4
      %v632 = vshll.u32 %v248, 16
      %v634 = vrot.slane %v632, 5
      %v635 = vsel %vm285, %v630, %v634
      %v636 = vshrl.u32 %v248, 16
      %v638 = vrot.slane %v636, 4
      %v639 = vor.u32 %v638, %v634
      %v640 = vrot.slane %v639, 4
      %v642 = vshll.u32 %v281, 16
      %v644 = vrot.slane %v642, 5
      %v645 = vsel %vm285, %v640, %v644
      %v647 = vshrl.u32 %v249, 16
      %v649 = vrot.slane %v647, 4
      %v650 = vshll.u32 %v249, 16
      %v652 = vrot.slane %v650, 5
      %v653 = vor.u32 %v649, %v652
      %v654 = vrot.slane %v653, 4
      %v656 = vshll.u32 %v250, 16
      %v658 = vrot.slane %v656, 5
      %v659 = vsel %vm285, %v654, %v658
      %v660 = vshrl.u32 %v250, 16
      %v662 = vrot.slane %v660, 4
      %v663 = vor.u32 %v662, %v658
      %v664 = vrot.slane %v663, 4
      %v666 = vshll.u32 %v282, 16
      %v668 = vrot.slane %v666, 5
      %v669 = vsel %vm285, %v664, %v668
      %s670 = scalar_lea.vmem %s1, 64
      %v671 = vld [vmem:[%s670] sm:$0xf]
      %v672 = vld [vmem:[%s670 + $0x4] sm:$0xf]
      %v673 = vld [vmem:[%s670 + $0x8] sm:$0xf]
      %v674 = vld [vmem:[%s670 + $0xc] sm:$0xf]
      %v675 = vld [vmem:[%s670 + $0x10] sm:$0xf]
      %v676 = vld [vmem:[%s670 + $0x14] sm:$0xf]
      %v677 = vld [vmem:[%s670 + $0x18] sm:$0xf]
      %v678 = vld [vmem:[%s670 + $0x1c] sm:$0xf]
      %v679 = vld [vmem:[%s670 + $0x20] sm:$0xf]
      %v680 = vld [vmem:[%s670 + $0x24] sm:$0xf]
      %v681 = vld [vmem:[%s670 + $0x28] sm:$0xf]
      %v682 = vld [vmem:[%s670 + $0x2c] sm:$0xf]
      %v683 = vld [vmem:[%s670 + $0x30] sm:$0xf]
      %v684 = vld [vmem:[%s670 + $0x34] sm:$0xf]
      %v685 = vld [vmem:[%s670 + $0x38] sm:$0xf]
      %v686 = vld [vmem:[%s670 + $0x3c] sm:$0xf]
      %v687 = vunpack.c.l.b16 %v299
      %v688 = vunpack.c.l.b16 %v309
      %v689 = vunpack.c.l.b16 %v323
      %v690 = vunpack.c.l.b16 %v333
      %v691 = vunpack.c.l.b16 %v347
      %v692 = vunpack.c.l.b16 %v357
      %v693 = vunpack.c.l.b16 %v371
      %v694 = vunpack.c.l.b16 %v381
      %v695 = vunpack.c.l.b16 %v395
      %v696 = vunpack.c.l.b16 %v405
      %v697 = vunpack.c.l.b16 %v419
      %v698 = vunpack.c.l.b16 %v429
      %v699 = vunpack.c.l.b16 %v443
      %v700 = vunpack.c.l.b16 %v453
      %v701 = vunpack.c.l.b16 %v467
      %v702 = vunpack.c.l.b16 %v477
      %v703 = vunpack.c.l.b16 %v491
      %v704 = vunpack.c.l.b16 %v501
      %v705 = vunpack.c.l.b16 %v515
      %v706 = vunpack.c.l.b16 %v525
      %v707 = vunpack.c.l.b16 %v539
      %v708 = vunpack.c.l.b16 %v549
      %v709 = vunpack.c.l.b16 %v563
      %v710 = vunpack.c.l.b16 %v573
      %v711 = vunpack.c.l.b16 %v587
      %v712 = vunpack.c.l.b16 %v597
      %v713 = vunpack.c.l.b16 %v611
      %v714 = vunpack.c.l.b16 %v621
      %v715 = vunpack.c.l.b16 %v635
      %v716 = vunpack.c.l.b16 %v645
      %v717 = vunpack.c.l.b16 %v659
      %v718 = vunpack.c.l.b16 %v669
      %v719 = vpack.c.b16 %v688, %v687
      %v720 = vpack.c.b16 %v690, %v689
      %v721 = vpack.c.b16 %v692, %v691
      %v722 = vpack.c.b16 %v694, %v693
      %v723 = vpack.c.b16 %v696, %v695
      %v724 = vpack.c.b16 %v698, %v697
      %v725 = vpack.c.b16 %v700, %v699
      %v726 = vpack.c.b16 %v702, %v701
      %v727 = vpack.c.b16 %v704, %v703
      %v728 = vpack.c.b16 %v706, %v705
      %v729 = vpack.c.b16 %v708, %v707
      %v730 = vpack.c.b16 %v710, %v709
      %v731 = vpack.c.b16 %v712, %v711
      %v732 = vpack.c.b16 %v714, %v713
      %v733 = vpack.c.b16 %v716, %v715
      %v734 = vpack.c.b16 %v718, %v717
      %v767 = vunpack.c.l.b16 %v671
      %v768 = vunpack.c.l.b16 %v672
      %v769 = vunpack.c.l.b16 %v673
      %v770 = vunpack.c.l.b16 %v674
      %v771 = vunpack.c.l.b16 %v675
      %v772 = vunpack.c.l.b16 %v676
      %v773 = vunpack.c.l.b16 %v677
      %v774 = vunpack.c.l.b16 %v678
      %v775 = vunpack.c.l.b16 %v679
      %v776 = vunpack.c.l.b16 %v680
      %v777 = vunpack.c.l.b16 %v681
      %v778 = vunpack.c.l.b16 %v682
      %v779 = vunpack.c.l.b16 %v683
      %v780 = vunpack.c.l.b16 %v684
      %v781 = vunpack.c.l.b16 %v685
      %v782 = vunpack.c.l.b16 %v686
      %v783 = vpack.c.b16 %v768, %v767
      %v784 = vpack.c.b16 %v770, %v769
      %v785 = vpack.c.b16 %v772, %v771
      %v786 = vpack.c.b16 %v774, %v773
      %v787 = vpack.c.b16 %v776, %v775
      %v788 = vpack.c.b16 %v778, %v777
      %v789 = vpack.c.b16 %v780, %v779
      %v790 = vpack.c.b16 %v782, %v781
      %799 = vmatprep.subr.bf16.mxu0 0
      %800 = vmatpush1.bf16.msra.mxu0 %v783
      %801 = vmatprep.subr.bf16.mxu0 0
      %802 = vmatpush1.bf16.msra.mxu0 %v784
      %803 = vmatprep.subr.bf16.mxu0 0
      %804 = vmatpush1.bf16.msra.mxu0 %v785
      %805 = vmatprep.subr.bf16.mxu0 0
      %806 = vmatpush1.bf16.msra.mxu0 %v786
      %807 = vmatprep.subr.bf16.mxu0 0
      %808 = vmatpush1.bf16.msra.mxu0 %v787
      %809 = vmatprep.subr.bf16.mxu0 0
      %810 = vmatpush1.bf16.msra.mxu0 %v788
      %811 = vmatprep.subr.bf16.mxu0 0
      %812 = vmatpush1.bf16.msra.mxu0 %v789
      %813 = vmatprep.subr.bf16.mxu0 0
      %814 = vmatpush1.bf16.msra.mxu0 %v790
      %815 = vmatprep.subr.bf16.mxu0 0
      %816 = vmatpush1.bf16.msra.mxu0 0
      %817 = vmatprep.subr.bf16.mxu0 0
      %818 = vmatpush1.bf16.msra.mxu0 0
      %819 = vmatprep.subr.bf16.mxu0 0
      %820 = vmatpush1.bf16.msra.mxu0 0
      %821 = vmatprep.subr.bf16.mxu0 0
      %822 = vmatpush1.bf16.msra.mxu0 0
      %823 = vmatprep.subr.bf16.mxu0 0
      %824 = vmatpush1.bf16.msra.mxu0 0
      %825 = vmatprep.subr.bf16.mxu0 0
      %826 = vmatpush1.bf16.msra.mxu0 0
      %827 = vmatprep.subr.bf16.mxu0 0
      %828 = vmatpush1.bf16.msra.mxu0 0
      %829 = vmatprep.subr.bf16.mxu0 0
      %830 = vmatpush1.bf16.msra.mxu0 0
      %831 = vmatprep.mubr.bf16.mxu0 0
      %832 = vmatmul.mubr.bf16.gmra.mrb[0].mxu0 %v719
      %v833 = vpop.f32.mrb[0].mxu0
      %v834 = vadd.f32 0.0, %v833
      %v835 = vpop.f32.mrb[0].mxu0
      %v836 = vpop.f32.mrb[0].mxu0
      %v837 = vadd.f32 0.0, %v836
      %v838 = vpop.f32.mrb[0].mxu0
      %839 = vmatprep.mubr.bf16.mxu0 0
      %840 = vmatmul.mubr.bf16.gmra.mrb[0].mxu0 %v720
      %v841 = vpop.f32.mrb[0].mxu0
      %v842 = vadd.f32 0.0, %v841
      %v843 = vpop.f32.mrb[0].mxu0
      %v844 = vpop.f32.mrb[0].mxu0
      %v845 = vadd.f32 0.0, %v844
      %v846 = vpop.f32.mrb[0].mxu0
      %847 = vmatprep.mubr.bf16.mxu0 0
      %848 = vmatmul.mubr.bf16.gmra.mrb[0].mxu0 %v721
      %v849 = vpop.f32.mrb[0].mxu0
      %v850 = vadd.f32 0.0, %v849
      %v851 = vpop.f32.mrb[0].mxu0
      %v852 = vpop.f32.mrb[0].mxu0
      %v853 = vadd.f32 0.0, %v852
      %v854 = vpop.f32.mrb[0].mxu0
      %855 = vmatprep.mubr.bf16.mxu0 0
      %856 = vmatmul.mubr.bf16.gmra.mrb[0].mxu0 %v722
      %v857 = vpop.f32.mrb[0].mxu0
      %v858 = vadd.f32 0.0, %v857
      %v859 = vpop.f32.mrb[0].mxu0
      %v860 = vpop.f32.mrb[0].mxu0
      %v861 = vadd.f32 0.0, %v860
      %v862 = vpop.f32.mrb[0].mxu0
      %863 = vmatprep.mubr.bf16.mxu0 0
      %864 = vmatmul.mubr.bf16.gmra.mrb[0].mxu0 %v723
      %v865 = vpop.f32.mrb[0].mxu0
      %v866 = vadd.f32 0.0, %v865
      %v867 = vpop.f32.mrb[0].mxu0
      %v868 = vpop.f32.mrb[0].mxu0
      %v869 = vadd.f32 0.0, %v868
      %v870 = vpop.f32.mrb[0].mxu0
      %871 = vmatprep.mubr.bf16.mxu0 0
      %872 = vmatmul.mubr.bf16.gmra.mrb[0].mxu0 %v724
      %v873 = vpop.f32.mrb[0].mxu0
      %v874 = vadd.f32 0.0, %v873
      %v875 = vpop.f32.mrb[0].mxu0
      %v876 = vpop.f32.mrb[0].mxu0
      %v877 = vadd.f32 0.0, %v876
      %v878 = vpop.f32.mrb[0].mxu0
      %879 = vmatprep.mubr.bf16.mxu0 0
      %880 = vmatmul.mubr.bf16.gmra.mrb[0].mxu0 %v725
      %v881 = vpop.f32.mrb[0].mxu0
      %v882 = vadd.f32 0.0, %v881
      %v883 = vpop.f32.mrb[0].mxu0
      %v884 = vpop.f32.mrb[0].mxu0
      %v885 = vadd.f32 0.0, %v884
      %v886 = vpop.f32.mrb[0].mxu0
      %887 = vmatprep.mubr.bf16.mxu0 0
      %888 = vmatmul.mubr.bf16.gmra.mrb[0].mxu0 %v726
      %v889 = vpop.f32.mrb[0].mxu0
      %v890 = vadd.f32 0.0, %v889
      %v891 = vpop.f32.mrb[0].mxu0
      %v892 = vpop.f32.mrb[0].mxu0
      %v893 = vadd.f32 0.0, %v892
      %v894 = vpop.f32.mrb[0].mxu0
      %895 = vmatprep.mubr.bf16.mxu0 0
      %896 = vmatmul.mubr.bf16.gmra.mrb[0].mxu0 %v727
      %v897 = vpop.f32.mrb[0].mxu0
      %v898 = vadd.f32 0.0, %v897
      %v899 = vpop.f32.mrb[0].mxu0
      %v900 = vpop.f32.mrb[0].mxu0
      %v901 = vadd.f32 0.0, %v900
      %v902 = vpop.f32.mrb[0].mxu0
      %903 = vmatprep.mubr.bf16.mxu0 0
      %904 = vmatmul.mubr.bf16.gmra.mrb[0].mxu0 %v728
      %v905 = vpop.f32.mrb[0].mxu0
      %v906 = vadd.f32 0.0, %v905
      %v907 = vpop.f32.mrb[0].mxu0
      %v908 = vpop.f32.mrb[0].mxu0
      %v909 = vadd.f32 0.0, %v908
      %v910 = vpop.f32.mrb[0].mxu0
      %911 = vmatprep.mubr.bf16.mxu0 0
      %912 = vmatmul.mubr.bf16.gmra.mrb[0].mxu0 %v729
      %v913 = vpop.f32.mrb[0].mxu0
      %v914 = vadd.f32 0.0, %v913
      %v915 = vpop.f32.mrb[0].mxu0
      %v916 = vpop.f32.mrb[0].mxu0
      %v917 = vadd.f32 0.0, %v916
      %v918 = vpop.f32.mrb[0].mxu0
      %919 = vmatprep.mubr.bf16.mxu0 0
      %920 = vmatmul.mubr.bf16.gmra.mrb[0].mxu0 %v730
      %v921 = vpop.f32.mrb[0].mxu0
      %v922 = vadd.f32 0.0, %v921
      %v923 = vpop.f32.mrb[0].mxu0
      %v924 = vpop.f32.mrb[0].mxu0
      %v925 = vadd.f32 0.0, %v924
      %v926 = vpop.f32.mrb[0].mxu0
      %927 = vmatprep.mubr.bf16.mxu0 0
      %928 = vmatmul.mubr.bf16.gmra.mrb[0].mxu0 %v731
      %v929 = vpop.f32.mrb[0].mxu0
      %v930 = vadd.f32 0.0, %v929
      %v931 = vpop.f32.mrb[0].mxu0
      %v932 = vpop.f32.mrb[0].mxu0
      %v933 = vadd.f32 0.0, %v932
      %v934 = vpop.f32.mrb[0].mxu0
      %935 = vmatprep.mubr.bf16.mxu0 0
      %936 = vmatmul.mubr.bf16.gmra.mrb[0].mxu0 %v732
      %v937 = vpop.f32.mrb[0].mxu0
      %v938 = vadd.f32 0.0, %v937
      %v939 = vpop.f32.mrb[0].mxu0
      %v940 = vpop.f32.mrb[0].mxu0
      %v941 = vadd.f32 0.0, %v940
      %v942 = vpop.f32.mrb[0].mxu0
      %943 = vmatprep.mubr.bf16.mxu0 0
      %944 = vmatmul.mubr.bf16.gmra.mrb[0].mxu0 %v733
      %v945 = vpop.f32.mrb[0].mxu0
      %v946 = vadd.f32 0.0, %v945
      %v947 = vpop.f32.mrb[0].mxu0
      %v948 = vpop.f32.mrb[0].mxu0
      %v949 = vadd.f32 0.0, %v948
      %v950 = vpop.f32.mrb[0].mxu0
      %951 = vmatprep.mubr.bf16.mxu0 0
      %952 = vmatmul.mubr.bf16.gmra.mrb[0].mxu0 %v734
      %v953 = vpop.f32.mrb[0].mxu0
      %v954 = vadd.f32 0.0, %v953
      %v955 = vpop.f32.mrb[0].mxu0
      %v956 = vpop.f32.mrb[0].mxu0
      %v957 = vadd.f32 0.0, %v956
      %v958 = vpop.f32.mrb[0].mxu0
      %959 = vdwg.mxu0
      %v992 = vunpack.c.l.b16 %v219
      %v993 = vunpack.c.l.b16 %v220
      %v994 = vunpack.c.l.b16 %v221
      %v995 = vunpack.c.l.b16 %v222
      %v996 = vunpack.c.l.b16 %v223
      %v997 = vunpack.c.l.b16 %v224
      %v998 = vunpack.c.l.b16 %v225
      %v999 = vunpack.c.l.b16 %v226
      %v1000 = vunpack.c.l.b16 %v227
      %v1001 = vunpack.c.l.b16 %v228
      %v1002 = vunpack.c.l.b16 %v229
      %v1003 = vunpack.c.l.b16 %v230
      %v1004 = vunpack.c.l.b16 %v231
      %v1005 = vunpack.c.l.b16 %v232
      %v1006 = vunpack.c.l.b16 %v233
      %v1007 = vunpack.c.l.b16 %v234
      %v1008 = vunpack.c.l.b16 %v235
      %v1009 = vunpack.c.l.b16 %v236
      %v1010 = vunpack.c.l.b16 %v237
      %v1011 = vunpack.c.l.b16 %v238
      %v1012 = vunpack.c.l.b16 %v239
      %v1013 = vunpack.c.l.b16 %v240
      %v1014 = vunpack.c.l.b16 %v241
      %v1015 = vunpack.c.l.b16 %v242
      %v1016 = vunpack.c.l.b16 %v243
      %v1017 = vunpack.c.l.b16 %v244
      %v1018 = vunpack.c.l.b16 %v245
      %v1019 = vunpack.c.l.b16 %v246
      %v1020 = vunpack.c.l.b16 %v247
      %v1021 = vunpack.c.l.b16 %v248
      %v1022 = vunpack.c.l.b16 %v249
      %v1023 = vunpack.c.l.b16 %v250
      %v1024 = vpack.c.b16 %v993, %v992
      %v1025 = vpack.c.b16 %v995, %v994
      %v1026 = vpack.c.b16 %v997, %v996
      %v1027 = vpack.c.b16 %v999, %v998
      %v1028 = vpack.c.b16 %v1001, %v1000
      %v1029 = vpack.c.b16 %v1003, %v1002
      %v1030 = vpack.c.b16 %v1005, %v1004
      %v1031 = vpack.c.b16 %v1007, %v1006
      %v1032 = vpack.c.b16 %v1009, %v1008
      %v1033 = vpack.c.b16 %v1011, %v1010
      %v1034 = vpack.c.b16 %v1013, %v1012
      %v1035 = vpack.c.b16 %v1015, %v1014
      %v1036 = vpack.c.b16 %v1017, %v1016
      %v1037 = vpack.c.b16 %v1019, %v1018
      %v1038 = vpack.c.b16 %v1021, %v1020
      %v1039 = vpack.c.b16 %v1023, %v1022
      %v1072 = vunpack.c.l.b16 %v251
      %v1073 = vunpack.c.l.b16 %v252
      %v1074 = vunpack.c.l.b16 %v253
      %v1075 = vunpack.c.l.b16 %v254
      %v1076 = vunpack.c.l.b16 %v255
      %v1077 = vunpack.c.l.b16 %v256
      %v1078 = vunpack.c.l.b16 %v257
      %v1079 = vunpack.c.l.b16 %v258
      %v1080 = vunpack.c.l.b16 %v259
      %v1081 = vunpack.c.l.b16 %v260
      %v1082 = vunpack.c.l.b16 %v261
      %v1083 = vunpack.c.l.b16 %v262
      %v1084 = vunpack.c.l.b16 %v263
      %v1085 = vunpack.c.l.b16 %v264
      %v1086 = vunpack.c.l.b16 %v265
      %v1087 = vunpack.c.l.b16 %v266
      %v1088 = vpack.c.b16 %v1073, %v1072
      %v1089 = vpack.c.b16 %v1075, %v1074
      %v1090 = vpack.c.b16 %v1077, %v1076
      %v1091 = vpack.c.b16 %v1079, %v1078
      %v1092 = vpack.c.b16 %v1081, %v1080
      %v1093 = vpack.c.b16 %v1083, %v1082
      %v1094 = vpack.c.b16 %v1085, %v1084
      %v1095 = vpack.c.b16 %v1087, %v1086
      %1104 = vmatprep.subr.bf16.mxu0 0
      %1105 = vmatpush1.bf16.msra.mxu0 %v1088
      %1106 = vmatprep.subr.bf16.mxu0 0
      %1107 = vmatpush1.bf16.msra.mxu0 %v1089
      %1108 = vmatprep.subr.bf16.mxu0 0
      %1109 = vmatpush1.bf16.msra.mxu0 %v1090
      %1110 = vmatprep.subr.bf16.mxu0 0
      %1111 = vmatpush1.bf16.msra.mxu0 %v1091
      %1112 = vmatprep.subr.bf16.mxu0 0
      %1113 = vmatpush1.bf16.msra.mxu0 %v1092
      %1114 = vmatprep.subr.bf16.mxu0 0
      %1115 = vmatpush1.bf16.msra.mxu0 %v1093
      %1116 = vmatprep.subr.bf16.mxu0 0
      %1117 = vmatpush1.bf16.msra.mxu0 %v1094
      %1118 = vmatprep.subr.bf16.mxu0 0
      %1119 = vmatpush1.bf16.msra.mxu0 %v1095
      %1120 = vmatprep.subr.bf16.mxu0 0
      %1121 = vmatpush1.bf16.msra.mxu0 0
      %1122 = vmatprep.subr.bf16.mxu0 0
      %1123 = vmatpush1.bf16.msra.mxu0 0
      %1124 = vmatprep.subr.bf16.mxu0 0
      %1125 = vmatpush1.bf16.msra.mxu0 0
      %1126 = vmatprep.subr.bf16.mxu0 0
      %1127 = vmatpush1.bf16.msra.mxu0 0
      %1128 = vmatprep.subr.bf16.mxu0 0
      %1129 = vmatpush1.bf16.msra.mxu0 0
      %1130 = vmatprep.subr.bf16.mxu0 0
      %1131 = vmatpush1.bf16.msra.mxu0 0
      %1132 = vmatprep.subr.bf16.mxu0 0
      %1133 = vmatpush1.bf16.msra.mxu0 0
      %1134 = vmatprep.subr.bf16.mxu0 0
      %1135 = vmatpush1.bf16.msra.mxu0 0
      %1136 = vmatprep.mubr.bf16.mxu0 0
      %1137 = vmatmul.mubr.bf16.gmra.mrb[0].mxu0 %v1024
      %v1138 = vpop.f32.mrb[0].mxu0
      %v1139 = vadd.f32 %v834, %v1138
      %v1140 = vpop.f32.mrb[0].mxu0
      %v1141 = vpop.f32.mrb[0].mxu0
      %v1142 = vadd.f32 %v837, %v1141
      %v1143 = vpop.f32.mrb[0].mxu0
      %1144 = vmatprep.mubr.bf16.mxu0 0
      %1145 = vmatmul.mubr.bf16.gmra.mrb[0].mxu0 %v1025
      %v1146 = vpop.f32.mrb[0].mxu0
      %v1147 = vadd.f32 %v842, %v1146
      %v1148 = vpop.f32.mrb[0].mxu0
      %v1149 = vpop.f32.mrb[0].mxu0
      %v1150 = vadd.f32 %v845, %v1149
      %v1151 = vpop.f32.mrb[0].mxu0
      %1152 = vmatprep.mubr.bf16.mxu0 0
      %1153 = vmatmul.mubr.bf16.gmra.mrb[0].mxu0 %v1026
      %v1154 = vpop.f32.mrb[0].mxu0
      %v1155 = vadd.f32 %v850, %v1154
      %v1156 = vpop.f32.mrb[0].mxu0
      %v1157 = vpop.f32.mrb[0].mxu0
      %v1158 = vadd.f32 %v853, %v1157
      %v1159 = vpop.f32.mrb[0].mxu0
      %1160 = vmatprep.mubr.bf16.mxu0 0
      %1161 = vmatmul.mubr.bf16.gmra.mrb[0].mxu0 %v1027
      %v1162 = vpop.f32.mrb[0].mxu0
      %v1163 = vadd.f32 %v858, %v1162
      %v1164 = vpop.f32.mrb[0].mxu0
      %v1165 = vpop.f32.mrb[0].mxu0
      %v1166 = vadd.f32 %v861, %v1165
      %v1167 = vpop.f32.mrb[0].mxu0
      %1168 = vmatprep.mubr.bf16.mxu0 0
      %1169 = vmatmul.mubr.bf16.gmra.mrb[0].mxu0 %v1028
      %v1170 = vpop.f32.mrb[0].mxu0
      %v1171 = vadd.f32 %v866, %v1170
      %v1172 = vpop.f32.mrb[0].mxu0
      %v1173 = vpop.f32.mrb[0].mxu0
      %v1174 = vadd.f32 %v869, %v1173
      %v1175 = vpop.f32.mrb[0].mxu0
      %1176 = vmatprep.mubr.bf16.mxu0 0
      %1177 = vmatmul.mubr.bf16.gmra.mrb[0].mxu0 %v1029
      %v1178 = vpop.f32.mrb[0].mxu0
      %v1179 = vadd.f32 %v874, %v1178
      %v1180 = vpop.f32.mrb[0].mxu0
      %v1181 = vpop.f32.mrb[0].mxu0
      %v1182 = vadd.f32 %v877, %v1181
      %v1183 = vpop.f32.mrb[0].mxu0
      %1184 = vmatprep.mubr.bf16.mxu0 0
      %1185 = vmatmul.mubr.bf16.gmra.mrb[0].mxu0 %v1030
      %v1186 = vpop.f32.mrb[0].mxu0
      %v1187 = vadd.f32 %v882, %v1186
      %v1188 = vpop.f32.mrb[0].mxu0
      %v1189 = vpop.f32.mrb[0].mxu0
      %v1190 = vadd.f32 %v885, %v1189
      %v1191 = vpop.f32.mrb[0].mxu0
      %1192 = vmatprep.mubr.bf16.mxu0 0
      %1193 = vmatmul.mubr.bf16.gmra.mrb[0].mxu0 %v1031
      %v1194 = vpop.f32.mrb[0].mxu0
      %v1195 = vadd.f32 %v890, %v1194
      %v1196 = vpop.f32.mrb[0].mxu0
      %v1197 = vpop.f32.mrb[0].mxu0
      %v1198 = vadd.f32 %v893, %v1197
      %v1199 = vpop.f32.mrb[0].mxu0
      %1200 = vmatprep.mubr.bf16.mxu0 0
      %1201 = vmatmul.mubr.bf16.gmra.mrb[0].mxu0 %v1032
      %v1202 = vpop.f32.mrb[0].mxu0
      %v1203 = vadd.f32 %v898, %v1202
      %v1204 = vpop.f32.mrb[0].mxu0
      %v1205 = vpop.f32.mrb[0].mxu0
      %v1206 = vadd.f32 %v901, %v1205
      %v1207 = vpop.f32.mrb[0].mxu0
      %1208 = vmatprep.mubr.bf16.mxu0 0
      %1209 = vmatmul.mubr.bf16.gmra.mrb[0].mxu0 %v1033
      %v1210 = vpop.f32.mrb[0].mxu0
      %v1211 = vadd.f32 %v906, %v1210
      %v1212 = vpop.f32.mrb[0].mxu0
      %v1213 = vpop.f32.mrb[0].mxu0
      %v1214 = vadd.f32 %v909, %v1213
      %v1215 = vpop.f32.mrb[0].mxu0
      %1216 = vmatprep.mubr.bf16.mxu0 0
      %1217 = vmatmul.mubr.bf16.gmra.mrb[0].mxu0 %v1034
      %v1218 = vpop.f32.mrb[0].mxu0
      %v1219 = vadd.f32 %v914, %v1218
      %v1220 = vpop.f32.mrb[0].mxu0
      %v1221 = vpop.f32.mrb[0].mxu0
      %v1222 = vadd.f32 %v917, %v1221
      %v1223 = vpop.f32.mrb[0].mxu0
      %1224 = vmatprep.mubr.bf16.mxu0 0
      %1225 = vmatmul.mubr.bf16.gmra.mrb[0].mxu0 %v1035
      %v1226 = vpop.f32.mrb[0].mxu0
      %v1227 = vadd.f32 %v922, %v1226
      %v1228 = vpop.f32.mrb[0].mxu0
      %v1229 = vpop.f32.mrb[0].mxu0
      %v1230 = vadd.f32 %v925, %v1229
      %v1231 = vpop.f32.mrb[0].mxu0
      %1232 = vmatprep.mubr.bf16.mxu0 0
      %1233 = vmatmul.mubr.bf16.gmra.mrb[0].mxu0 %v1036
      %v1234 = vpop.f32.mrb[0].mxu0
      %v1235 = vadd.f32 %v930, %v1234
      %v1236 = vpop.f32.mrb[0].mxu0
      %v1237 = vpop.f32.mrb[0].mxu0
      %v1238 = vadd.f32 %v933, %v1237
      %v1239 = vpop.f32.mrb[0].mxu0
      %1240 = vmatprep.mubr.bf16.mxu0 0
      %1241 = vmatmul.mubr.bf16.gmra.mrb[0].mxu0 %v1037
      %v1242 = vpop.f32.mrb[0].mxu0
      %v1243 = vadd.f32 %v938, %v1242
      %v1244 = vpop.f32.mrb[0].mxu0
      %v1245 = vpop.f32.mrb[0].mxu0
      %v1246 = vadd.f32 %v941, %v1245
      %v1247 = vpop.f32.mrb[0].mxu0
      %1248 = vmatprep.mubr.bf16.mxu0 0
      %1249 = vmatmul.mubr.bf16.gmra.mrb[0].mxu0 %v1038
      %v1250 = vpop.f32.mrb[0].mxu0
      %v1251 = vadd.f32 %v946, %v1250
      %v1252 = vpop.f32.mrb[0].mxu0
      %v1253 = vpop.f32.mrb[0].mxu0
      %v1254 = vadd.f32 %v949, %v1253
      %v1255 = vpop.f32.mrb[0].mxu0
      %1256 = vmatprep.mubr.bf16.mxu0 0
      %1257 = vmatmul.mubr.bf16.gmra.mrb[0].mxu0 %v1039
      %v1258 = vpop.f32.mrb[0].mxu0
      %v1259 = vadd.f32 %v954, %v1258
      %v1260 = vpop.f32.mrb[0].mxu0
      %v1261 = vpop.f32.mrb[0].mxu0
      %v1262 = vadd.f32 %v957, %v1261
      %v1263 = vpop.f32.mrb[0].mxu0
      %1264 = vdwg.mxu0
      %v1265 = vld [vmem:[%s207] sm:$0xe]
      %v1266 = vld [vmem:[%s207 + $0xc] sm:$0xe]
      %v1267 = vld [vmem:[%s207 + $0x18] sm:$0xe]
      %v1268 = vld [vmem:[%s207 + $0x24] sm:$0xe]
      %v1269 = vld [vmem:[%s207 + $0x30] sm:$0xe]
      %v1270 = vld [vmem:[%s207 + $0x3c] sm:$0xe]
      %v1271 = vld [vmem:[%s207 + $0x48] sm:$0xe]
      %v1272 = vld [vmem:[%s207 + $0x54] sm:$0xe]
      %v1273 = vld [vmem:[%s207 + $0x60] sm:$0xe]
      %v1274 = vld [vmem:[%s207 + $0x6c] sm:$0xe]
      %v1275 = vld [vmem:[%s207 + $0x78] sm:$0xe]
      %v1276 = vld [vmem:[%s207 + $0x84] sm:$0xe]
      %v1277 = vld [vmem:[%s207 + $0x90] sm:$0xe]
      %v1278 = vld [vmem:[%s207 + $0x9c] sm:$0xe]
      %v1279 = vld [vmem:[%s207 + $0xa8] sm:$0xe]
      %v1280 = vld [vmem:[%s207 + $0xb4] sm:$0xe]
      %vm1313 = vcmask 1042432
      %vm1314 = vcmask 1046532
      %vm1315 = vmor %vm1313, %vm1314
      %v1316 = vrot.slane %v1265, 5
      %v1317 = vrot.slane %v1316, 4
      %v1318 = vrot.slane %v220, 5
      %v1319 = vsel %vm1315, %v1317, %v1318
      %v1320 = vrot.slane %v1318, 4
      %v1321 = vrot.slane %v267, 5
      %v1322 = vsel %vm1315, %v1320, %v1321
      %v1323 = vrot.slane %v1266, 5
      %v1324 = vrot.slane %v1323, 4
      %v1325 = vrot.slane %v222, 5
      %v1326 = vsel %vm1315, %v1324, %v1325
      %v1327 = vrot.slane %v1325, 4
      %v1328 = vrot.slane %v268, 5
      %v1329 = vsel %vm1315, %v1327, %v1328
      %v1330 = vrot.slane %v1267, 5
      %v1331 = vrot.slane %v1330, 4
      %v1332 = vrot.slane %v224, 5
      %v1333 = vsel %vm1315, %v1331, %v1332
      %v1334 = vrot.slane %v1332, 4
      %v1335 = vrot.slane %v269, 5
      %v1336 = vsel %vm1315, %v1334, %v1335
      %v1337 = vrot.slane %v1268, 5
      %v1338 = vrot.slane %v1337, 4
      %v1339 = vrot.slane %v226, 5
      %v1340 = vsel %vm1315, %v1338, %v1339
      %v1341 = vrot.slane %v1339, 4
      %v1342 = vrot.slane %v270, 5
      %v1343 = vsel %vm1315, %v1341, %v1342
      %v1344 = vrot.slane %v1269, 5
      %v1345 = vrot.slane %v1344, 4
      %v1346 = vrot.slane %v228, 5
      %v1347 = vsel %vm1315, %v1345, %v1346
      %v1348 = vrot.slane %v1346, 4
      %v1349 = vrot.slane %v271, 5
      %v1350 = vsel %vm1315, %v1348, %v1349
      %v1351 = vrot.slane %v1270, 5
      %v1352 = vrot.slane %v1351, 4
      %v1353 = vrot.slane %v230, 5
      %v1354 = vsel %vm1315, %v1352, %v1353
      %v1355 = vrot.slane %v1353, 4
      %v1356 = vrot.slane %v272, 5
      %v1357 = vsel %vm1315, %v1355, %v1356
      %v1358 = vrot.slane %v1271, 5
      %v1359 = vrot.slane %v1358, 4
      %v1360 = vrot.slane %v232, 5
      %v1361 = vsel %vm1315, %v1359, %v1360
      %v1362 = vrot.slane %v1360, 4
      %v1363 = vrot.slane %v273, 5
      %v1364 = vsel %vm1315, %v1362, %v1363
      %v1365 = vrot.slane %v1272, 5
      %v1366 = vrot.slane %v1365, 4
      %v1367 = vrot.slane %v234, 5
      %v1368 = vsel %vm1315, %v1366, %v1367
      %v1369 = vrot.slane %v1367, 4
      %v1370 = vrot.slane %v274, 5
      %v1371 = vsel %vm1315, %v1369, %v1370
      %v1372 = vrot.slane %v1273, 5
      %v1373 = vrot.slane %v1372, 4
      %v1374 = vrot.slane %v236, 5
      %v1375 = vsel %vm1315, %v1373, %v1374
      %v1376 = vrot.slane %v1374, 4
      %v1377 = vrot.slane %v275, 5
      %v1378 = vsel %vm1315, %v1376, %v1377
      %v1379 = vrot.slane %v1274, 5
      %v1380 = vrot.slane %v1379, 4
      %v1381 = vrot.slane %v238, 5
      %v1382 = vsel %vm1315, %v1380, %v1381
      %v1383 = vrot.slane %v1381, 4
      %v1384 = vrot.slane %v276, 5
      %v1385 = vsel %vm1315, %v1383, %v1384
      %v1386 = vrot.slane %v1275, 5
      %v1387 = vrot.slane %v1386, 4
      %v1388 = vrot.slane %v240, 5
      %v1389 = vsel %vm1315, %v1387, %v1388
      %v1390 = vrot.slane %v1388, 4
      %v1391 = vrot.slane %v277, 5
      %v1392 = vsel %vm1315, %v1390, %v1391
      %v1393 = vrot.slane %v1276, 5
      %v1394 = vrot.slane %v1393, 4
      %v1395 = vrot.slane %v242, 5
      %v1396 = vsel %vm1315, %v1394, %v1395
      %v1397 = vrot.slane %v1395, 4
      %v1398 = vrot.slane %v278, 5
      %v1399 = vsel %vm1315, %v1397, %v1398
      %v1400 = vrot.slane %v1277, 5
      %v1401 = vrot.slane %v1400, 4
      %v1402 = vrot.slane %v244, 5
      %v1403 = vsel %vm1315, %v1401, %v1402
      %v1404 = vrot.slane %v1402, 4
      %v1405 = vrot.slane %v279, 5
      %v1406 = vsel %vm1315, %v1404, %v1405
      %v1407 = vrot.slane %v1278, 5
      %v1408 = vrot.slane %v1407, 4
      %v1409 = vrot.slane %v246, 5
      %v1410 = vsel %vm1315, %v1408, %v1409
      %v1411 = vrot.slane %v1409, 4
      %v1412 = vrot.slane %v280, 5
      %v1413 = vsel %vm1315, %v1411, %v1412
      %v1414 = vrot.slane %v1279, 5
      %v1415 = vrot.slane %v1414, 4
      %v1416 = vrot.slane %v248, 5
      %v1417 = vsel %vm1315, %v1415, %v1416
      %v1418 = vrot.slane %v1416, 4
      %v1419 = vrot.slane %v281, 5
      %v1420 = vsel %vm1315, %v1418, %v1419
      %v1421 = vrot.slane %v1280, 5
      %v1422 = vrot.slane %v1421, 4
      %v1423 = vrot.slane %v250, 5
      %v1424 = vsel %vm1315, %v1422, %v1423
      %v1425 = vrot.slane %v1423, 4
      %v1426 = vrot.slane %v282, 5
      %v1427 = vsel %vm1315, %v1425, %v1426
      %s1428 = scalar_lea.vmem %s1, 128
      %v1429 = vld [vmem:[%s1428] sm:$0xf]
      %v1430 = vld [vmem:[%s1428 + $0x4] sm:$0xf]
      %v1431 = vld [vmem:[%s1428 + $0x8] sm:$0xf]
      %v1432 = vld [vmem:[%s1428 + $0xc] sm:$0xf]
      %v1433 = vld [vmem:[%s1428 + $0x10] sm:$0xf]
      %v1434 = vld [vmem:[%s1428 + $0x14] sm:$0xf]
      %v1435 = vld [vmem:[%s1428 + $0x18] sm:$0xf]
      %v1436 = vld [vmem:[%s1428 + $0x1c] sm:$0xf]
      %v1437 = vld [vmem:[%s1428 + $0x20] sm:$0xf]
      %v1438 = vld [vmem:[%s1428 + $0x24] sm:$0xf]
      %v1439 = vld [vmem:[%s1428 + $0x28] sm:$0xf]
      %v1440 = vld [vmem:[%s1428 + $0x2c] sm:$0xf]
      %v1441 = vld [vmem:[%s1428 + $0x30] sm:$0xf]
      %v1442 = vld [vmem:[%s1428 + $0x34] sm:$0xf]
      %v1443 = vld [vmem:[%s1428 + $0x38] sm:$0xf]
      %v1444 = vld [vmem:[%s1428 + $0x3c] sm:$0xf]
      %v1445 = vunpack.c.l.b16 %v1319
      %v1446 = vunpack.c.l.b16 %v1322
      %v1447 = vunpack.c.l.b16 %v1326
      %v1448 = vunpack.c.l.b16 %v1329
      %v1449 = vunpack.c.l.b16 %v1333
      %v1450 = vunpack.c.l.b16 %v1336
      %v1451 = vunpack.c.l.b16 %v1340
      %v1452 = vunpack.c.l.b16 %v1343
      %v1453 = vunpack.c.l.b16 %v1347
      %v1454 = vunpack.c.l.b16 %v1350
      %v1455 = vunpack.c.l.b16 %v1354
      %v1456 = vunpack.c.l.b16 %v1357
      %v1457 = vunpack.c.l.b16 %v1361
      %v1458 = vunpack.c.l.b16 %v1364
      %v1459 = vunpack.c.l.b16 %v1368
      %v1460 = vunpack.c.l.b16 %v1371
      %v1461 = vunpack.c.l.b16 %v1375
      %v1462 = vunpack.c.l.b16 %v1378
      %v1463 = vunpack.c.l.b16 %v1382
      %v1464 = vunpack.c.l.b16 %v1385
      %v1465 = vunpack.c.l.b16 %v1389
      %v1466 = vunpack.c.l.b16 %v1392
      %v1467 = vunpack.c.l.b16 %v1396
      %v1468 = vunpack.c.l.b16 %v1399
      %v1469 = vunpack.c.l.b16 %v1403
      %v1470 = vunpack.c.l.b16 %v1406
      %v1471 = vunpack.c.l.b16 %v1410
      %v1472 = vunpack.c.l.b16 %v1413
      %v1473 = vunpack.c.l.b16 %v1417
      %v1474 = vunpack.c.l.b16 %v1420
      %v1475 = vunpack.c.l.b16 %v1424
      %v1476 = vunpack.c.l.b16 %v1427
      %v1477 = vpack.c.b16 %v1446, %v1445
      %v1478 = vpack.c.b16 %v1448, %v1447
      %v1479 = vpack.c.b16 %v1450, %v1449
      %v1480 = vpack.c.b16 %v1452, %v1451
      %v1481 = vpack.c.b16 %v1454, %v1453
      %v1482 = vpack.c.b16 %v1456, %v1455
      %v1483 = vpack.c.b16 %v1458, %v1457
      %v1484 = vpack.c.b16 %v1460, %v1459
      %v1485 = vpack.c.b16 %v1462, %v1461
      %v1486 = vpack.c.b16 %v1464, %v1463
      %v1487 = vpack.c.b16 %v1466, %v1465
      %v1488 = vpack.c.b16 %v1468, %v1467
      %v1489 = vpack.c.b16 %v1470, %v1469
      %v1490 = vpack.c.b16 %v1472, %v1471
      %v1491 = vpack.c.b16 %v1474, %v1473
      %v1492 = vpack.c.b16 %v1476, %v1475
      %v1525 = vunpack.c.l.b16 %v1429
      %v1526 = vunpack.c.l.b16 %v1430
      %v1527 = vunpack.c.l.b16 %v1431
      %v1528 = vunpack.c.l.b16 %v1432
      %v1529 = vunpack.c.l.b16 %v1433
      %v1530 = vunpack.c.l.b16 %v1434
      %v1531 = vunpack.c.l.b16 %v1435
      %v1532 = vunpack.c.l.b16 %v1436
      %v1533 = vunpack.c.l.b16 %v1437
      %v1534 = vunpack.c.l.b16 %v1438
      %v1535 = vunpack.c.l.b16 %v1439
      %v1536 = vunpack.c.l.b16 %v1440
      %v1537 = vunpack.c.l.b16 %v1441
      %v1538 = vunpack.c.l.b16 %v1442
      %v1539 = vunpack.c.l.b16 %v1443
      %v1540 = vunpack.c.l.b16 %v1444
      %v1541 = vpack.c.b16 %v1526, %v1525
      %v1542 = vpack.c.b16 %v1528, %v1527
      %v1543 = vpack.c.b16 %v1530, %v1529
      %v1544 = vpack.c.b16 %v1532, %v1531
      %v1545 = vpack.c.b16 %v1534, %v1533
      %v1546 = vpack.c.b16 %v1536, %v1535
      %v1547 = vpack.c.b16 %v1538, %v1537
      %v1548 = vpack.c.b16 %v1540, %v1539
      %1557 = vmatprep.subr.bf16.mxu0 0
      %1558 = vmatpush1.bf16.msra.mxu0 %v1541
      %1559 = vmatprep.subr.bf16.mxu0 0
      %1560 = vmatpush1.bf16.msra.mxu0 %v1542
      %1561 = vmatprep.subr.bf16.mxu0 0
      %1562 = vmatpush1.bf16.msra.mxu0 %v1543
      %1563 = vmatprep.subr.bf16.mxu0 0
      %1564 = vmatpush1.bf16.msra.mxu0 %v1544
      %1565 = vmatprep.subr.bf16.mxu0 0
      %1566 = vmatpush1.bf16.msra.mxu0 %v1545
      %1567 = vmatprep.subr.bf16.mxu0 0
      %1568 = vmatpush1.bf16.msra.mxu0 %v1546
      %1569 = vmatprep.subr.bf16.mxu0 0
      %1570 = vmatpush1.bf16.msra.mxu0 %v1547
      %1571 = vmatprep.subr.bf16.mxu0 0
      %1572 = vmatpush1.bf16.msra.mxu0 %v1548
      %1573 = vmatprep.subr.bf16.mxu0 0
      %1574 = vmatpush1.bf16.msra.mxu0 0
      %1575 = vmatprep.subr.bf16.mxu0 0
      %1576 = vmatpush1.bf16.msra.mxu0 0
      %1577 = vmatprep.subr.bf16.mxu0 0
      %1578 = vmatpush1.bf16.msra.mxu0 0
      %1579 = vmatprep.subr.bf16.mxu0 0
      %1580 = vmatpush1.bf16.msra.mxu0 0
      %1581 = vmatprep.subr.bf16.mxu0 0
      %1582 = vmatpush1.bf16.msra.mxu0 0
      %1583 = vmatprep.subr.bf16.mxu0 0
      %1584 = vmatpush1.bf16.msra.mxu0 0
      %1585 = vmatprep.subr.bf16.mxu0 0
      %1586 = vmatpush1.bf16.msra.mxu0 0
      %1587 = vmatprep.subr.bf16.mxu0 0
      %1588 = vmatpush1.bf16.msra.mxu0 0
      %1589 = vmatprep.mubr.bf16.mxu0 0
      %1590 = vmatmul.mubr.bf16.gmra.mrb[0].mxu0 %v1477
      %v1591 = vpop.f32.mrb[0].mxu0
      %v1592 = vadd.f32 0.0, %v1591
      %v1593 = vpop.f32.mrb[0].mxu0
      %v1594 = vpop.f32.mrb[0].mxu0
      %v1595 = vadd.f32 0.0, %v1594
      %v1596 = vpop.f32.mrb[0].mxu0
      %1597 = vmatprep.mubr.bf16.mxu0 0
      %1598 = vmatmul.mubr.bf16.gmra.mrb[0].mxu0 %v1478
      %v1599 = vpop.f32.mrb[0].mxu0
      %v1600 = vadd.f32 0.0, %v1599
      %v1601 = vpop.f32.mrb[0].mxu0
      %v1602 = vpop.f32.mrb[0].mxu0
      %v1603 = vadd.f32 0.0, %v1602
      %v1604 = vpop.f32.mrb[0].mxu0
      %1605 = vmatprep.mubr.bf16.mxu0 0
      %1606 = vmatmul.mubr.bf16.gmra.mrb[0].mxu0 %v1479
      %v1607 = vpop.f32.mrb[0].mxu0
      %v1608 = vadd.f32 0.0, %v1607
      %v1609 = vpop.f32.mrb[0].mxu0
      %v1610 = vpop.f32.mrb[0].mxu0
      %v1611 = vadd.f32 0.0, %v1610
      %v1612 = vpop.f32.mrb[0].mxu0
      %1613 = vmatprep.mubr.bf16.mxu0 0
      %1614 = vmatmul.mubr.bf16.gmra.mrb[0].mxu0 %v1480
      %v1615 = vpop.f32.mrb[0].mxu0
      %v1616 = vadd.f32 0.0, %v1615
      %v1617 = vpop.f32.mrb[0].mxu0
      %v1618 = vpop.f32.mrb[0].mxu0
      %v1619 = vadd.f32 0.0, %v1618
      %v1620 = vpop.f32.mrb[0].mxu0
      %1621 = vmatprep.mubr.bf16.mxu0 0
      %1622 = vmatmul.mubr.bf16.gmra.mrb[0].mxu0 %v1481
      %v1623 = vpop.f32.mrb[0].mxu0
      %v1624 = vadd.f32 0.0, %v1623
      %v1625 = vpop.f32.mrb[0].mxu0
      %v1626 = vpop.f32.mrb[0].mxu0
      %v1627 = vadd.f32 0.0, %v1626
      %v1628 = vpop.f32.mrb[0].mxu0
      %1629 = vmatprep.mubr.bf16.mxu0 0
      %1630 = vmatmul.mubr.bf16.gmra.mrb[0].mxu0 %v1482
      %v1631 = vpop.f32.mrb[0].mxu0
      %v1632 = vadd.f32 0.0, %v1631
      %v1633 = vpop.f32.mrb[0].mxu0
      %v1634 = vpop.f32.mrb[0].mxu0
      %v1635 = vadd.f32 0.0, %v1634
      %v1636 = vpop.f32.mrb[0].mxu0
      %1637 = vmatprep.mubr.bf16.mxu0 0
      %1638 = vmatmul.mubr.bf16.gmra.mrb[0].mxu0 %v1483
      %v1639 = vpop.f32.mrb[0].mxu0
      %v1640 = vadd.f32 0.0, %v1639
      %v1641 = vpop.f32.mrb[0].mxu0
      %v1642 = vpop.f32.mrb[0].mxu0
      %v1643 = vadd.f32 0.0, %v1642
      %v1644 = vpop.f32.mrb[0].mxu0
      %1645 = vmatprep.mubr.bf16.mxu0 0
      %1646 = vmatmul.mubr.bf16.gmra.mrb[0].mxu0 %v1484
      %v1647 = vpop.f32.mrb[0].mxu0
      %v1648 = vadd.f32 0.0, %v1647
      %v1649 = vpop.f32.mrb[0].mxu0
      %v1650 = vpop.f32.mrb[0].mxu0
      %v1651 = vadd.f32 0.0, %v1650
      %v1652 = vpop.f32.mrb[0].mxu0
      %1653 = vmatprep.mubr.bf16.mxu0 0
      %1654 = vmatmul.mubr.bf16.gmra.mrb[0].mxu0 %v1485
      %v1655 = vpop.f32.mrb[0].mxu0
      %v1656 = vadd.f32 0.0, %v1655
      %v1657 = vpop.f32.mrb[0].mxu0
      %v1658 = vpop.f32.mrb[0].mxu0
      %v1659 = vadd.f32 0.0, %v1658
      %v1660 = vpop.f32.mrb[0].mxu0
      %1661 = vmatprep.mubr.bf16.mxu0 0
      %1662 = vmatmul.mubr.bf16.gmra.mrb[0].mxu0 %v1486
      %v1663 = vpop.f32.mrb[0].mxu0
      %v1664 = vadd.f32 0.0, %v1663
      %v1665 = vpop.f32.mrb[0].mxu0
      %v1666 = vpop.f32.mrb[0].mxu0
      %v1667 = vadd.f32 0.0, %v1666
      %v1668 = vpop.f32.mrb[0].mxu0
      %1669 = vmatprep.mubr.bf16.mxu0 0
      %1670 = vmatmul.mubr.bf16.gmra.mrb[0].mxu0 %v1487
      %v1671 = vpop.f32.mrb[0].mxu0
      %v1672 = vadd.f32 0.0, %v1671
      %v1673 = vpop.f32.mrb[0].mxu0
      %v1674 = vpop.f32.mrb[0].mxu0
      %v1675 = vadd.f32 0.0, %v1674
      %v1676 = vpop.f32.mrb[0].mxu0
      %1677 = vmatprep.mubr.bf16.mxu0 0
      %1678 = vmatmul.mubr.bf16.gmra.mrb[0].mxu0 %v1488
      %v1679 = vpop.f32.mrb[0].mxu0
      %v1680 = vadd.f32 0.0, %v1679
      %v1681 = vpop.f32.mrb[0].mxu0
      %v1682 = vpop.f32.mrb[0].mxu0
      %v1683 = vadd.f32 0.0, %v1682
      %v1684 = vpop.f32.mrb[0].mxu0
      %1685 = vmatprep.mubr.bf16.mxu0 0
      %1686 = vmatmul.mubr.bf16.gmra.mrb[0].mxu0 %v1489
      %v1687 = vpop.f32.mrb[0].mxu0
      %v1688 = vadd.f32 0.0, %v1687
      %v1689 = vpop.f32.mrb[0].mxu0
      %v1690 = vpop.f32.mrb[0].mxu0
      %v1691 = vadd.f32 0.0, %v1690
      %v1692 = vpop.f32.mrb[0].mxu0
      %1693 = vmatprep.mubr.bf16.mxu0 0
      %1694 = vmatmul.mubr.bf16.gmra.mrb[0].mxu0 %v1490
      %v1695 = vpop.f32.mrb[0].mxu0
      %v1696 = vadd.f32 0.0, %v1695
      %v1697 = vpop.f32.mrb[0].mxu0
      %v1698 = vpop.f32.mrb[0].mxu0
      %v1699 = vadd.f32 0.0, %v1698
      %v1700 = vpop.f32.mrb[0].mxu0
      %1701 = vmatprep.mubr.bf16.mxu0 0
      %1702 = vmatmul.mubr.bf16.gmra.mrb[0].mxu0 %v1491
      %v1703 = vpop.f32.mrb[0].mxu0
      %v1704 = vadd.f32 0.0, %v1703
      %v1705 = vpop.f32.mrb[0].mxu0
      %v1706 = vpop.f32.mrb[0].mxu0
      %v1707 = vadd.f32 0.0, %v1706
      %v1708 = vpop.f32.mrb[0].mxu0
      %1709 = vmatprep.mubr.bf16.mxu0 0
      %1710 = vmatmul.mubr.bf16.gmra.mrb[0].mxu0 %v1492
      %v1711 = vpop.f32.mrb[0].mxu0
      %v1712 = vadd.f32 0.0, %v1711
      %v1713 = vpop.f32.mrb[0].mxu0
      %v1714 = vpop.f32.mrb[0].mxu0
      %v1715 = vadd.f32 0.0, %v1714
      %v1716 = vpop.f32.mrb[0].mxu0
      %1717 = vdwg.mxu0
      %v1718 = vadd.f32 %v1139, %v1592
      %v1719 = vadd.f32 %v1142, %v1595
      %v1720 = vadd.f32 %v1147, %v1600
      %v1721 = vadd.f32 %v1150, %v1603
      %v1722 = vadd.f32 %v1155, %v1608
      %v1723 = vadd.f32 %v1158, %v1611
      %v1724 = vadd.f32 %v1163, %v1616
      %v1725 = vadd.f32 %v1166, %v1619
      %v1726 = vadd.f32 %v1171, %v1624
      %v1727 = vadd.f32 %v1174, %v1627
      %v1728 = vadd.f32 %v1179, %v1632
      %v1729 = vadd.f32 %v1182, %v1635
      %v1730 = vadd.f32 %v1187, %v1640
      %v1731 = vadd.f32 %v1190, %v1643
      %v1732 = vadd.f32 %v1195, %v1648
      %v1733 = vadd.f32 %v1198, %v1651
      %v1734 = vadd.f32 %v1203, %v1656
      %v1735 = vadd.f32 %v1206, %v1659
      %v1736 = vadd.f32 %v1211, %v1664
      %v1737 = vadd.f32 %v1214, %v1667
      %v1738 = vadd.f32 %v1219, %v1672
      %v1739 = vadd.f32 %v1222, %v1675
      %v1740 = vadd.f32 %v1227, %v1680
      %v1741 = vadd.f32 %v1230, %v1683
      %v1742 = vadd.f32 %v1235, %v1688
      %v1743 = vadd.f32 %v1238, %v1691
      %v1744 = vadd.f32 %v1243, %v1696
      %v1745 = vadd.f32 %v1246, %v1699
      %v1746 = vadd.f32 %v1251, %v1704
      %v1747 = vadd.f32 %v1254, %v1707
      %v1748 = vadd.f32 %v1259, %v1712
      %v1749 = vadd.f32 %v1262, %v1715
      %s1750 = scalar_lea.vmem %s207, 12
      %v1751 = vld [vmem:[%s1750] sm:$0xf]
      %v1752 = vld [vmem:[%s1750 + $0x4] sm:$0xf]
      %v1753 = vld [vmem:[%s1750 + $0xc] sm:$0xf]
      %v1754 = vld [vmem:[%s1750 + $0x10] sm:$0xf]
      %v1755 = vld [vmem:[%s1750 + $0x18] sm:$0xf]
      %v1756 = vld [vmem:[%s1750 + $0x1c] sm:$0xf]
      %v1757 = vld [vmem:[%s1750 + $0x24] sm:$0xf]
      %v1758 = vld [vmem:[%s1750 + $0x28] sm:$0xf]
      %v1759 = vld [vmem:[%s1750 + $0x30] sm:$0xf]
      %v1760 = vld [vmem:[%s1750 + $0x34] sm:$0xf]
      %v1761 = vld [vmem:[%s1750 + $0x3c] sm:$0xf]
      %v1762 = vld [vmem:[%s1750 + $0x40] sm:$0xf]
      %v1763 = vld [vmem:[%s1750 + $0x48] sm:$0xf]
      %v1764 = vld [vmem:[%s1750 + $0x4c] sm:$0xf]
      %v1765 = vld [vmem:[%s1750 + $0x54] sm:$0xf]
      %v1766 = vld [vmem:[%s1750 + $0x58] sm:$0xf]
      %v1767 = vld [vmem:[%s1750 + $0x60] sm:$0xf]
      %v1768 = vld [vmem:[%s1750 + $0x64] sm:$0xf]
      %v1769 = vld [vmem:[%s1750 + $0x6c] sm:$0xf]
      %v1770 = vld [vmem:[%s1750 + $0x70] sm:$0xf]
      %v1771 = vld [vmem:[%s1750 + $0x78] sm:$0xf]
      %v1772 = vld [vmem:[%s1750 + $0x7c] sm:$0xf]
      %v1773 = vld [vmem:[%s1750 + $0x84] sm:$0xf]
      %v1774 = vld [vmem:[%s1750 + $0x88] sm:$0xf]
      %v1775 = vld [vmem:[%s1750 + $0x90] sm:$0xf]
      %v1776 = vld [vmem:[%s1750 + $0x94] sm:$0xf]
      %v1777 = vld [vmem:[%s1750 + $0x9c] sm:$0xf]
      %v1778 = vld [vmem:[%s1750 + $0xa0] sm:$0xf]
      %v1779 = vld [vmem:[%s1750 + $0xa8] sm:$0xf]
      %v1780 = vld [vmem:[%s1750 + $0xac] sm:$0xf]
      %v1781 = vld [vmem:[%s1750 + $0xb4] sm:$0xf]
      %v1782 = vld [vmem:[%s1750 + $0xb8] sm:$0xf]
      %s1783 = scalar_lea.vmem %s1, 192
      %v1784 = vld [vmem:[%s1783] sm:$0xf]
      %v1785 = vld [vmem:[%s1783 + $0x4] sm:$0xf]
      %v1786 = vld [vmem:[%s1783 + $0x8] sm:$0xf]
      %v1787 = vld [vmem:[%s1783 + $0xc] sm:$0xf]
      %v1788 = vld [vmem:[%s1783 + $0x10] sm:$0xf]
      %v1789 = vld [vmem:[%s1783 + $0x14] sm:$0xf]
      %v1790 = vld [vmem:[%s1783 + $0x18] sm:$0xf]
      %v1791 = vld [vmem:[%s1783 + $0x1c] sm:$0xf]
      %v1792 = vld [vmem:[%s1783 + $0x20] sm:$0xf]
      %v1793 = vld [vmem:[%s1783 + $0x24] sm:$0xf]
      %v1794 = vld [vmem:[%s1783 + $0x28] sm:$0xf]
      %v1795 = vld [vmem:[%s1783 + $0x2c] sm:$0xf]
      %v1796 = vld [vmem:[%s1783 + $0x30] sm:$0xf]
      %v1797 = vld [vmem:[%s1783 + $0x34] sm:$0xf]
      %v1798 = vld [vmem:[%s1783 + $0x38] sm:$0xf]
      %v1799 = vld [vmem:[%s1783 + $0x3c] sm:$0xf]
      %v1832 = vunpack.c.l.b16 %v1751
      %v1833 = vunpack.c.l.b16 %v1752
      %v1834 = vunpack.c.l.b16 %v1753
      %v1835 = vunpack.c.l.b16 %v1754
      %v1836 = vunpack.c.l.b16 %v1755
      %v1837 = vunpack.c.l.b16 %v1756
      %v1838 = vunpack.c.l.b16 %v1757
      %v1839 = vunpack.c.l.b16 %v1758
      %v1840 = vunpack.c.l.b16 %v1759
      %v1841 = vunpack.c.l.b16 %v1760
      %v1842 = vunpack.c.l.b16 %v1761
      %v1843 = vunpack.c.l.b16 %v1762
      %v1844 = vunpack.c.l.b16 %v1763
      %v1845 = vunpack.c.l.b16 %v1764
      %v1846 = vunpack.c.l.b16 %v1765
      %v1847 = vunpack.c.l.b16 %v1766
      %v1848 = vunpack.c.l.b16 %v1767
      %v1849 = vunpack.c.l.b16 %v1768
      %v1850 = vunpack.c.l.b16 %v1769
      %v1851 = vunpack.c.l.b16 %v1770
      %v1852 = vunpack.c.l.b16 %v1771
      %v1853 = vunpack.c.l.b16 %v1772
      %v1854 = vunpack.c.l.b16 %v1773
      %v1855 = vunpack.c.l.b16 %v1774
      %v1856 = vunpack.c.l.b16 %v1775
      %v1857 = vunpack.c.l.b16 %v1776
      %v1858 = vunpack.c.l.b16 %v1777
      %v1859 = vunpack.c.l.b16 %v1778
      %v1860 = vunpack.c.l.b16 %v1779
      %v1861 = vunpack.c.l.b16 %v1780
      %v1862 = vunpack.c.l.b16 %v1781
      %v1863 = vunpack.c.l.b16 %v1782
      %v1864 = vpack.c.b16 %v1833, %v1832
      %v1865 = vpack.c.b16 %v1835, %v1834
      %v1866 = vpack.c.b16 %v1837, %v1836
      %v1867 = vpack.c.b16 %v1839, %v1838
      %v1868 = vpack.c.b16 %v1841, %v1840
      %v1869 = vpack.c.b16 %v1843, %v1842
      %v1870 = vpack.c.b16 %v1845, %v1844
      %v1871 = vpack.c.b16 %v1847, %v1846
      %v1872 = vpack.c.b16 %v1849, %v1848
      %v1873 = vpack.c.b16 %v1851, %v1850
      %v1874 = vpack.c.b16 %v1853, %v1852
      %v1875 = vpack.c.b16 %v1855, %v1854
      %v1876 = vpack.c.b16 %v1857, %v1856
      %v1877 = vpack.c.b16 %v1859, %v1858
      %v1878 = vpack.c.b16 %v1861, %v1860
      %v1879 = vpack.c.b16 %v1863, %v1862
      %v1912 = vunpack.c.l.b16 %v1784
      %v1913 = vunpack.c.l.b16 %v1785
      %v1914 = vunpack.c.l.b16 %v1786
      %v1915 = vunpack.c.l.b16 %v1787
      %v1916 = vunpack.c.l.b16 %v1788
      %v1917 = vunpack.c.l.b16 %v1789
      %v1918 = vunpack.c.l.b16 %v1790
      %v1919 = vunpack.c.l.b16 %v1791
      %v1920 = vunpack.c.l.b16 %v1792
      %v1921 = vunpack.c.l.b16 %v1793
      %v1922 = vunpack.c.l.b16 %v1794
      %v1923 = vunpack.c.l.b16 %v1795
      %v1924 = vunpack.c.l.b16 %v1796
      %v1925 = vunpack.c.l.b16 %v1797
      %v1926 = vunpack.c.l.b16 %v1798
      %v1927 = vunpack.c.l.b16 %v1799
      %v1928 = vpack.c.b16 %v1913, %v1912
      %v1929 = vpack.c.b16 %v1915, %v1914
      %v1930 = vpack.c.b16 %v1917, %v1916
      %v1931 = vpack.c.b16 %v1919, %v1918
      %v1932 = vpack.c.b16 %v1921, %v1920
      %v1933 = vpack.c.b16 %v1923, %v1922
      %v1934 = vpack.c.b16 %v1925, %v1924
      %v1935 = vpack.c.b16 %v1927, %v1926
      %1944 = vmatprep.subr.bf16.mxu0 0
      %1945 = vmatpush1.bf16.msra.mxu0 %v1928
      %1946 = vmatprep.subr.bf16.mxu0 0
      %1947 = vmatpush1.bf16.msra.mxu0 %v1929
      %1948 = vmatprep.subr.bf16.mxu0 0
      %1949 = vmatpush1.bf16.msra.mxu0 %v1930
      %1950 = vmatprep.subr.bf16.mxu0 0
      %1951 = vmatpush1.bf16.msra.mxu0 %v1931
      %1952 = vmatprep.subr.bf16.mxu0 0
      %1953 = vmatpush1.bf16.msra.mxu0 %v1932
      %1954 = vmatprep.subr.bf16.mxu0 0
      %1955 = vmatpush1.bf16.msra.mxu0 %v1933
      %1956 = vmatprep.subr.bf16.mxu0 0
      %1957 = vmatpush1.bf16.msra.mxu0 %v1934
      %1958 = vmatprep.subr.bf16.mxu0 0
      %1959 = vmatpush1.bf16.msra.mxu0 %v1935
      %1960 = vmatprep.subr.bf16.mxu0 0
      %1961 = vmatpush1.bf16.msra.mxu0 0
      %1962 = vmatprep.subr.bf16.mxu0 0
      %1963 = vmatpush1.bf16.msra.mxu0 0
      %1964 = vmatprep.subr.bf16.mxu0 0
      %1965 = vmatpush1.bf16.msra.mxu0 0
      %1966 = vmatprep.subr.bf16.mxu0 0
      %1967 = vmatpush1.bf16.msra.mxu0 0
      %1968 = vmatprep.subr.bf16.mxu0 0
      %1969 = vmatpush1.bf16.msra.mxu0 0
      %1970 = vmatprep.subr.bf16.mxu0 0
      %1971 = vmatpush1.bf16.msra.mxu0 0
      %1972 = vmatprep.subr.bf16.mxu0 0
      %1973 = vmatpush1.bf16.msra.mxu0 0
      %1974 = vmatprep.subr.bf16.mxu0 0
      %1975 = vmatpush1.bf16.msra.mxu0 0
      %1976 = vmatprep.mubr.bf16.mxu0 0
      %1977 = vmatmul.mubr.bf16.gmra.mrb[0].mxu0 %v1864
      %v1978 = vpop.f32.mrb[0].mxu0
      %v1979 = vadd.f32 0.0, %v1978
      %v1980 = vpop.f32.mrb[0].mxu0
      %v1981 = vpop.f32.mrb[0].mxu0
      %v1982 = vadd.f32 0.0, %v1981
      %v1983 = vpop.f32.mrb[0].mxu0
      %1984 = vmatprep.mubr.bf16.mxu0 0
      %1985 = vmatmul.mubr.bf16.gmra.mrb[0].mxu0 %v1865
      %v1986 = vpop.f32.mrb[0].mxu0
      %v1987 = vadd.f32 0.0, %v1986
      %v1988 = vpop.f32.mrb[0].mxu0
      %v1989 = vpop.f32.mrb[0].mxu0
      %v1990 = vadd.f32 0.0, %v1989
      %v1991 = vpop.f32.mrb[0].mxu0
      %1992 = vmatprep.mubr.bf16.mxu0 0
      %1993 = vmatmul.mubr.bf16.gmra.mrb[0].mxu0 %v1866
      %v1994 = vpop.f32.mrb[0].mxu0
      %v1995 = vadd.f32 0.0, %v1994
      %v1996 = vpop.f32.mrb[0].mxu0
      %v1997 = vpop.f32.mrb[0].mxu0
      %v1998 = vadd.f32 0.0, %v1997
      %v1999 = vpop.f32.mrb[0].mxu0
      %2000 = vmatprep.mubr.bf16.mxu0 0
      %2001 = vmatmul.mubr.bf16.gmra.mrb[0].mxu0 %v1867
      %v2002 = vpop.f32.mrb[0].mxu0
      %v2003 = vadd.f32 0.0, %v2002
      %v2004 = vpop.f32.mrb[0].mxu0
      %v2005 = vpop.f32.mrb[0].mxu0
      %v2006 = vadd.f32 0.0, %v2005
      %v2007 = vpop.f32.mrb[0].mxu0
      %2008 = vmatprep.mubr.bf16.mxu0 0
      %2009 = vmatmul.mubr.bf16.gmra.mrb[0].mxu0 %v1868
      %v2010 = vpop.f32.mrb[0].mxu0
      %v2011 = vadd.f32 0.0, %v2010
      %v2012 = vpop.f32.mrb[0].mxu0
      %v2013 = vpop.f32.mrb[0].mxu0
      %v2014 = vadd.f32 0.0, %v2013
      %v2015 = vpop.f32.mrb[0].mxu0
      %2016 = vmatprep.mubr.bf16.mxu0 0
      %2017 = vmatmul.mubr.bf16.gmra.mrb[0].mxu0 %v1869
      %v2018 = vpop.f32.mrb[0].mxu0
      %v2019 = vadd.f32 0.0, %v2018
      %v2020 = vpop.f32.mrb[0].mxu0
      %v2021 = vpop.f32.mrb[0].mxu0
      %v2022 = vadd.f32 0.0, %v2021
      %v2023 = vpop.f32.mrb[0].mxu0
      %2024 = vmatprep.mubr.bf16.mxu0 0
      %2025 = vmatmul.mubr.bf16.gmra.mrb[0].mxu0 %v1870
      %v2026 = vpop.f32.mrb[0].mxu0
      %v2027 = vadd.f32 0.0, %v2026
      %v2028 = vpop.f32.mrb[0].mxu0
      %v2029 = vpop.f32.mrb[0].mxu0
      %v2030 = vadd.f32 0.0, %v2029
      %v2031 = vpop.f32.mrb[0].mxu0
      %2032 = vmatprep.mubr.bf16.mxu0 0
      %2033 = vmatmul.mubr.bf16.gmra.mrb[0].mxu0 %v1871
      %v2034 = vpop.f32.mrb[0].mxu0
      %v2035 = vadd.f32 0.0, %v2034
      %v2036 = vpop.f32.mrb[0].mxu0
      %v2037 = vpop.f32.mrb[0].mxu0
      %v2038 = vadd.f32 0.0, %v2037
      %v2039 = vpop.f32.mrb[0].mxu0
      %2040 = vmatprep.mubr.bf16.mxu0 0
      %2041 = vmatmul.mubr.bf16.gmra.mrb[0].mxu0 %v1872
      %v2042 = vpop.f32.mrb[0].mxu0
      %v2043 = vadd.f32 0.0, %v2042
      %v2044 = vpop.f32.mrb[0].mxu0
      %v2045 = vpop.f32.mrb[0].mxu0
      %v2046 = vadd.f32 0.0, %v2045
      %v2047 = vpop.f32.mrb[0].mxu0
      %2048 = vmatprep.mubr.bf16.mxu0 0
      %2049 = vmatmul.mubr.bf16.gmra.mrb[0].mxu0 %v1873
      %v2050 = vpop.f32.mrb[0].mxu0
      %v2051 = vadd.f32 0.0, %v2050
      %v2052 = vpop.f32.mrb[0].mxu0
      %v2053 = vpop.f32.mrb[0].mxu0
      %v2054 = vadd.f32 0.0, %v2053
      %v2055 = vpop.f32.mrb[0].mxu0
      %2056 = vmatprep.mubr.bf16.mxu0 0
      %2057 = vmatmul.mubr.bf16.gmra.mrb[0].mxu0 %v1874
      %v2058 = vpop.f32.mrb[0].mxu0
      %v2059 = vadd.f32 0.0, %v2058
      %v2060 = vpop.f32.mrb[0].mxu0
      %v2061 = vpop.f32.mrb[0].mxu0
      %v2062 = vadd.f32 0.0, %v2061
      %v2063 = vpop.f32.mrb[0].mxu0
      %2064 = vmatprep.mubr.bf16.mxu0 0
      %2065 = vmatmul.mubr.bf16.gmra.mrb[0].mxu0 %v1875
      %v2066 = vpop.f32.mrb[0].mxu0
      %v2067 = vadd.f32 0.0, %v2066
      %v2068 = vpop.f32.mrb[0].mxu0
      %v2069 = vpop.f32.mrb[0].mxu0
      %v2070 = vadd.f32 0.0, %v2069
      %v2071 = vpop.f32.mrb[0].mxu0
      %2072 = vmatprep.mubr.bf16.mxu0 0
      %2073 = vmatmul.mubr.bf16.gmra.mrb[0].mxu0 %v1876
      %v2074 = vpop.f32.mrb[0].mxu0
      %v2075 = vadd.f32 0.0, %v2074
      %v2076 = vpop.f32.mrb[0].mxu0
      %v2077 = vpop.f32.mrb[0].mxu0
      %v2078 = vadd.f32 0.0, %v2077
      %v2079 = vpop.f32.mrb[0].mxu0
      %2080 = vmatprep.mubr.bf16.mxu0 0
      %2081 = vmatmul.mubr.bf16.gmra.mrb[0].mxu0 %v1877
      %v2082 = vpop.f32.mrb[0].mxu0
      %v2083 = vadd.f32 0.0, %v2082
      %v2084 = vpop.f32.mrb[0].mxu0
      %v2085 = vpop.f32.mrb[0].mxu0
      %v2086 = vadd.f32 0.0, %v2085
      %v2087 = vpop.f32.mrb[0].mxu0
      %2088 = vmatprep.mubr.bf16.mxu0 0
      %2089 = vmatmul.mubr.bf16.gmra.mrb[0].mxu0 %v1878
      %v2090 = vpop.f32.mrb[0].mxu0
      %v2091 = vadd.f32 0.0, %v2090
      %v2092 = vpop.f32.mrb[0].mxu0
      %v2093 = vpop.f32.mrb[0].mxu0
      %v2094 = vadd.f32 0.0, %v2093
      %v2095 = vpop.f32.mrb[0].mxu0
      %2096 = vmatprep.mubr.bf16.mxu0 0
      %2097 = vmatmul.mubr.bf16.gmra.mrb[0].mxu0 %v1879
      %v2098 = vpop.f32.mrb[0].mxu0
      %v2099 = vadd.f32 0.0, %v2098
      %v2100 = vpop.f32.mrb[0].mxu0
      %v2101 = vpop.f32.mrb[0].mxu0
      %v2102 = vadd.f32 0.0, %v2101
      %v2103 = vpop.f32.mrb[0].mxu0
      %2104 = vdwg.mxu0
      %v2105 = vadd.f32 %v1718, %v1979
      %v2106 = vadd.f32 %v1719, %v1982
      %v2107 = vadd.f32 %v1720, %v1987
      %v2108 = vadd.f32 %v1721, %v1990
      %v2109 = vadd.f32 %v1722, %v1995
      %v2110 = vadd.f32 %v1723, %v1998
      %v2111 = vadd.f32 %v1724, %v2003
      %v2112 = vadd.f32 %v1725, %v2006
      %v2113 = vadd.f32 %v1726, %v2011
      %v2114 = vadd.f32 %v1727, %v2014
      %v2115 = vadd.f32 %v1728, %v2019
      %v2116 = vadd.f32 %v1729, %v2022
      %v2117 = vadd.f32 %v1730, %v2027
      %v2118 = vadd.f32 %v1731, %v2030
      %v2119 = vadd.f32 %v1732, %v2035
      %v2120 = vadd.f32 %v1733, %v2038
      %v2121 = vadd.f32 %v1734, %v2043
      %v2122 = vadd.f32 %v1735, %v2046
      %v2123 = vadd.f32 %v1736, %v2051
      %v2124 = vadd.f32 %v1737, %v2054
      %v2125 = vadd.f32 %v1738, %v2059
      %v2126 = vadd.f32 %v1739, %v2062
      %v2127 = vadd.f32 %v1740, %v2067
      %v2128 = vadd.f32 %v1741, %v2070
      %v2129 = vadd.f32 %v1742, %v2075
      %v2130 = vadd.f32 %v1743, %v2078
      %v2131 = vadd.f32 %v1744, %v2083
      %v2132 = vadd.f32 %v1745, %v2086
      %v2133 = vadd.f32 %v1746, %v2091
      %v2134 = vadd.f32 %v1747, %v2094
      %v2135 = vadd.f32 %v1748, %v2099
      %v2136 = vadd.f32 %v1749, %v2102
      %v2137 = vld [vmem:[%s1750] sm:$0xf]
      %v2138 = vld [vmem:[%s1750 + $0x4] sm:$0xf]
      %v2139 = vld [vmem:[%s1750 + $0x8] sm:$0x1]
      %v2140 = vld [vmem:[%s1750 + $0xc] sm:$0xf]
      %v2141 = vld [vmem:[%s1750 + $0x10] sm:$0xf]
      %v2142 = vld [vmem:[%s1750 + $0x14] sm:$0x1]
      %v2143 = vld [vmem:[%s1750 + $0x18] sm:$0xf]
      %v2144 = vld [vmem:[%s1750 + $0x1c] sm:$0xf]
      %v2145 = vld [vmem:[%s1750 + $0x20] sm:$0x1]
      %v2146 = vld [vmem:[%s1750 + $0x24] sm:$0xf]
      %v2147 = vld [vmem:[%s1750 + $0x28] sm:$0xf]
      %v2148 = vld [vmem:[%s1750 + $0x2c] sm:$0x1]
      %v2149 = vld [vmem:[%s1750 + $0x30] sm:$0xf]
      %v2150 = vld [vmem:[%s1750 + $0x34] sm:$0xf]
      %v2151 = vld [vmem:[%s1750 + $0x38] sm:$0x1]
      %v2152 = vld [vmem:[%s1750 + $0x3c] sm:$0xf]
      %v2153 = vld [vmem:[%s1750 + $0x40] sm:$0xf]
      %v2154 = vld [vmem:[%s1750 + $0x44] sm:$0x1]
      %v2155 = vld [vmem:[%s1750 + $0x48] sm:$0xf]
      %v2156 = vld [vmem:[%s1750 + $0x4c] sm:$0xf]
      %v2157 = vld [vmem:[%s1750 + $0x50] sm:$0x1]
      %v2158 = vld [vmem:[%s1750 + $0x54] sm:$0xf]
      %v2159 = vld [vmem:[%s1750 + $0x58] sm:$0xf]
      %v2160 = vld [vmem:[%s1750 + $0x5c] sm:$0x1]
      %v2161 = vld [vmem:[%s1750 + $0x60] sm:$0xf]
      %v2162 = vld [vmem:[%s1750 + $0x64] sm:$0xf]
      %v2163 = vld [vmem:[%s1750 + $0x68] sm:$0x1]
      %v2164 = vld [vmem:[%s1750 + $0x6c] sm:$0xf]
      %v2165 = vld [vmem:[%s1750 + $0x70] sm:$0xf]
      %v2166 = vld [vmem:[%s1750 + $0x74] sm:$0x1]
      %v2167 = vld [vmem:[%s1750 + $0x78] sm:$0xf]
      %v2168 = vld [vmem:[%s1750 + $0x7c] sm:$0xf]
      %v2169 = vld [vmem:[%s1750 + $0x80] sm:$0x1]
      %v2170 = vld [vmem:[%s1750 + $0x84] sm:$0xf]
      %v2171 = vld [vmem:[%s1750 + $0x88] sm:$0xf]
      %v2172 = vld [vmem:[%s1750 + $0x8c] sm:$0x1]
      %v2173 = vld [vmem:[%s1750 + $0x90] sm:$0xf]
      %v2174 = vld [vmem:[%s1750 + $0x94] sm:$0xf]
      %v2175 = vld [vmem:[%s1750 + $0x98] sm:$0x1]
      %v2176 = vld [vmem:[%s1750 + $0x9c] sm:$0xf]
      %v2177 = vld [vmem:[%s1750 + $0xa0] sm:$0xf]
      %v2178 = vld [vmem:[%s1750 + $0xa4] sm:$0x1]
      %v2179 = vld [vmem:[%s1750 + $0xa8] sm:$0xf]
      %v2180 = vld [vmem:[%s1750 + $0xac] sm:$0xf]
      %v2181 = vld [vmem:[%s1750 + $0xb0] sm:$0x1]
      %v2182 = vld [vmem:[%s1750 + $0xb4] sm:$0xf]
      %v2183 = vld [vmem:[%s1750 + $0xb8] sm:$0xf]
      %v2184 = vld [vmem:[%s1750 + $0xbc] sm:$0x1]
      %v2186 = vshrl.u32 %v2137, 16
      %v2188 = vrot.slane %v2186, 4
      %v2189 = vshll.u32 %v2137, 16
      %v2191 = vrot.slane %v2189, 5
      %v2192 = vor.u32 %v2188, %v2191
      %v2193 = vrot.slane %v2192, 4
      %v2195 = vshll.u32 %v2138, 16
      %v2197 = vrot.slane %v2195, 5
      %v2198 = vsel %vm285, %v2193, %v2197
      %v2199 = vshrl.u32 %v2138, 16
      %v2201 = vrot.slane %v2199, 4
      %v2202 = vor.u32 %v2201, %v2197
      %v2203 = vrot.slane %v2202, 4
      %v2205 = vshll.u32 %v2139, 16
      %v2207 = vrot.slane %v2205, 5
      %v2208 = vsel %vm285, %v2203, %v2207
      %v2210 = vshrl.u32 %v2140, 16
      %v2212 = vrot.slane %v2210, 4
      %v2213 = vshll.u32 %v2140, 16
      %v2215 = vrot.slane %v2213, 5
      %v2216 = vor.u32 %v2212, %v2215
      %v2217 = vrot.slane %v2216, 4
      %v2219 = vshll.u32 %v2141, 16
      %v2221 = vrot.slane %v2219, 5
      %v2222 = vsel %vm285, %v2217, %v2221
      %v2223 = vshrl.u32 %v2141, 16
      %v2225 = vrot.slane %v2223, 4
      %v2226 = vor.u32 %v2225, %v2221
      %v2227 = vrot.slane %v2226, 4
      %v2229 = vshll.u32 %v2142, 16
      %v2231 = vrot.slane %v2229, 5
      %v2232 = vsel %vm285, %v2227, %v2231
      %v2234 = vshrl.u32 %v2143, 16
      %v2236 = vrot.slane %v2234, 4
      %v2237 = vshll.u32 %v2143, 16
      %v2239 = vrot.slane %v2237, 5
      %v2240 = vor.u32 %v2236, %v2239
      %v2241 = vrot.slane %v2240, 4
      %v2243 = vshll.u32 %v2144, 16
      %v2245 = vrot.slane %v2243, 5
      %v2246 = vsel %vm285, %v2241, %v2245
      %v2247 = vshrl.u32 %v2144, 16
      %v2249 = vrot.slane %v2247, 4
      %v2250 = vor.u32 %v2249, %v2245
      %v2251 = vrot.slane %v2250, 4
      %v2253 = vshll.u32 %v2145, 16
      %v2255 = vrot.slane %v2253, 5
      %v2256 = vsel %vm285, %v2251, %v2255
      %v2258 = vshrl.u32 %v2146, 16
      %v2260 = vrot.slane %v2258, 4
      %v2261 = vshll.u32 %v2146, 16
      %v2263 = vrot.slane %v2261, 5
      %v2264 = vor.u32 %v2260, %v2263
      %v2265 = vrot.slane %v2264, 4
      %v2267 = vshll.u32 %v2147, 16
      %v2269 = vrot.slane %v2267, 5
      %v2270 = vsel %vm285, %v2265, %v2269
      %v2271 = vshrl.u32 %v2147, 16
      %v2273 = vrot.slane %v2271, 4
      %v2274 = vor.u32 %v2273, %v2269
      %v2275 = vrot.slane %v2274, 4
      %v2277 = vshll.u32 %v2148, 16
      %v2279 = vrot.slane %v2277, 5
      %v2280 = vsel %vm285, %v2275, %v2279
      %v2282 = vshrl.u32 %v2149, 16
      %v2284 = vrot.slane %v2282, 4
      %v2285 = vshll.u32 %v2149, 16
      %v2287 = vrot.slane %v2285, 5
      %v2288 = vor.u32 %v2284, %v2287
      %v2289 = vrot.slane %v2288, 4
      %v2291 = vshll.u32 %v2150, 16
      %v2293 = vrot.slane %v2291, 5
      %v2294 = vsel %vm285, %v2289, %v2293
      %v2295 = vshrl.u32 %v2150, 16
      %v2297 = vrot.slane %v2295, 4
      %v2298 = vor.u32 %v2297, %v2293
      %v2299 = vrot.slane %v2298, 4
      %v2301 = vshll.u32 %v2151, 16
      %v2303 = vrot.slane %v2301, 5
      %v2304 = vsel %vm285, %v2299, %v2303
      %v2306 = vshrl.u32 %v2152, 16
      %v2308 = vrot.slane %v2306, 4
      %v2309 = vshll.u32 %v2152, 16
      %v2311 = vrot.slane %v2309, 5
      %v2312 = vor.u32 %v2308, %v2311
      %v2313 = vrot.slane %v2312, 4
      %v2315 = vshll.u32 %v2153, 16
      %v2317 = vrot.slane %v2315, 5
      %v2318 = vsel %vm285, %v2313, %v2317
      %v2319 = vshrl.u32 %v2153, 16
      %v2321 = vrot.slane %v2319, 4
      %v2322 = vor.u32 %v2321, %v2317
      %v2323 = vrot.slane %v2322, 4
      %v2325 = vshll.u32 %v2154, 16
      %v2327 = vrot.slane %v2325, 5
      %v2328 = vsel %vm285, %v2323, %v2327
      %v2330 = vshrl.u32 %v2155, 16
      %v2332 = vrot.slane %v2330, 4
      %v2333 = vshll.u32 %v2155, 16
      %v2335 = vrot.slane %v2333, 5
      %v2336 = vor.u32 %v2332, %v2335
      %v2337 = vrot.slane %v2336, 4
      %v2339 = vshll.u32 %v2156, 16
      %v2341 = vrot.slane %v2339, 5
      %v2342 = vsel %vm285, %v2337, %v2341
      %v2343 = vshrl.u32 %v2156, 16
      %v2345 = vrot.slane %v2343, 4
      %v2346 = vor.u32 %v2345, %v2341
      %v2347 = vrot.slane %v2346, 4
      %v2349 = vshll.u32 %v2157, 16
      %v2351 = vrot.slane %v2349, 5
      %v2352 = vsel %vm285, %v2347, %v2351
      %v2354 = vshrl.u32 %v2158, 16
      %v2356 = vrot.slane %v2354, 4
      %v2357 = vshll.u32 %v2158, 16
      %v2359 = vrot.slane %v2357, 5
      %v2360 = vor.u32 %v2356, %v2359
      %v2361 = vrot.slane %v2360, 4
      %v2363 = vshll.u32 %v2159, 16
      %v2365 = vrot.slane %v2363, 5
      %v2366 = vsel %vm285, %v2361, %v2365
      %v2367 = vshrl.u32 %v2159, 16
      %v2369 = vrot.slane %v2367, 4
      %v2370 = vor.u32 %v2369, %v2365
      %v2371 = vrot.slane %v2370, 4
      %v2373 = vshll.u32 %v2160, 16
      %v2375 = vrot.slane %v2373, 5
      %v2376 = vsel %vm285, %v2371, %v2375
      %v2378 = vshrl.u32 %v2161, 16
      %v2380 = vrot.slane %v2378, 4
      %v2381 = vshll.u32 %v2161, 16
      %v2383 = vrot.slane %v2381, 5
      %v2384 = vor.u32 %v2380, %v2383
      %v2385 = vrot.slane %v2384, 4
      %v2387 = vshll.u32 %v2162, 16
      %v2389 = vrot.slane %v2387, 5
      %v2390 = vsel %vm285, %v2385, %v2389
      %v2391 = vshrl.u32 %v2162, 16
      %v2393 = vrot.slane %v2391, 4
      %v2394 = vor.u32 %v2393, %v2389
      %v2395 = vrot.slane %v2394, 4
      %v2397 = vshll.u32 %v2163, 16
      %v2399 = vrot.slane %v2397, 5
      %v2400 = vsel %vm285, %v2395, %v2399
      %v2402 = vshrl.u32 %v2164, 16
      %v2404 = vrot.slane %v2402, 4
      %v2405 = vshll.u32 %v2164, 16
      %v2407 = vrot.slane %v2405, 5
      %v2408 = vor.u32 %v2404, %v2407
      %v2409 = vrot.slane %v2408, 4
      %v2411 = vshll.u32 %v2165, 16
      %v2413 = vrot.slane %v2411, 5
      %v2414 = vsel %vm285, %v2409, %v2413
      %v2415 = vshrl.u32 %v2165, 16
      %v2417 = vrot.slane %v2415, 4
      %v2418 = vor.u32 %v2417, %v2413
      %v2419 = vrot.slane %v2418, 4
      %v2421 = vshll.u32 %v2166, 16
      %v2423 = vrot.slane %v2421, 5
      %v2424 = vsel %vm285, %v2419, %v2423
      %v2426 = vshrl.u32 %v2167, 16
      %v2428 = vrot.slane %v2426, 4
      %v2429 = vshll.u32 %v2167, 16
      %v2431 = vrot.slane %v2429, 5
      %v2432 = vor.u32 %v2428, %v2431
      %v2433 = vrot.slane %v2432, 4
      %v2435 = vshll.u32 %v2168, 16
      %v2437 = vrot.slane %v2435, 5
      %v2438 = vsel %vm285, %v2433, %v2437
      %v2439 = vshrl.u32 %v2168, 16
      %v2441 = vrot.slane %v2439, 4
      %v2442 = vor.u32 %v2441, %v2437
      %v2443 = vrot.slane %v2442, 4
      %v2445 = vshll.u32 %v2169, 16
      %v2447 = vrot.slane %v2445, 5
      %v2448 = vsel %vm285, %v2443, %v2447
      %v2450 = vshrl.u32 %v2170, 16
      %v2452 = vrot.slane %v2450, 4
      %v2453 = vshll.u32 %v2170, 16
      %v2455 = vrot.slane %v2453, 5
      %v2456 = vor.u32 %v2452, %v2455
      %v2457 = vrot.slane %v2456, 4
      %v2459 = vshll.u32 %v2171, 16
      %v2461 = vrot.slane %v2459, 5
      %v2462 = vsel %vm285, %v2457, %v2461
      %v2463 = vshrl.u32 %v2171, 16
      %v2465 = vrot.slane %v2463, 4
      %v2466 = vor.u32 %v2465, %v2461
      %v2467 = vrot.slane %v2466, 4
      %v2469 = vshll.u32 %v2172, 16
      %v2471 = vrot.slane %v2469, 5
      %v2472 = vsel %vm285, %v2467, %v2471
      %v2474 = vshrl.u32 %v2173, 16
      %v2476 = vrot.slane %v2474, 4
      %v2477 = vshll.u32 %v2173, 16
      %v2479 = vrot.slane %v2477, 5
      %v2480 = vor.u32 %v2476, %v2479
      %v2481 = vrot.slane %v2480, 4
      %v2483 = vshll.u32 %v2174, 16
      %v2485 = vrot.slane %v2483, 5
      %v2486 = vsel %vm285, %v2481, %v2485
      %v2487 = vshrl.u32 %v2174, 16
      %v2489 = vrot.slane %v2487, 4
      %v2490 = vor.u32 %v2489, %v2485
      %v2491 = vrot.slane %v2490, 4
      %v2493 = vshll.u32 %v2175, 16
      %v2495 = vrot.slane %v2493, 5
      %v2496 = vsel %vm285, %v2491, %v2495
      %v2498 = vshrl.u32 %v2176, 16
      %v2500 = vrot.slane %v2498, 4
      %v2501 = vshll.u32 %v2176, 16
      %v2503 = vrot.slane %v2501, 5
      %v2504 = vor.u32 %v2500, %v2503
      %v2505 = vrot.slane %v2504, 4
      %v2507 = vshll.u32 %v2177, 16
      %v2509 = vrot.slane %v2507, 5
      %v2510 = vsel %vm285, %v2505, %v2509
      %v2511 = vshrl.u32 %v2177, 16
      %v2513 = vrot.slane %v2511, 4
      %v2514 = vor.u32 %v2513, %v2509
      %v2515 = vrot.slane %v2514, 4
      %v2517 = vshll.u32 %v2178, 16
      %v2519 = vrot.slane %v2517, 5
      %v2520 = vsel %vm285, %v2515, %v2519
      %v2522 = vshrl.u32 %v2179, 16
      %v2524 = vrot.slane %v2522, 4
      %v2525 = vshll.u32 %v2179, 16
      %v2527 = vrot.slane %v2525, 5
      %v2528 = vor.u32 %v2524, %v2527
      %v2529 = vrot.slane %v2528, 4
      %v2531 = vshll.u32 %v2180, 16
      %v2533 = vrot.slane %v2531, 5
      %v2534 = vsel %vm285, %v2529, %v2533
      %v2535 = vshrl.u32 %v2180, 16
      %v2537 = vrot.slane %v2535, 4
      %v2538 = vor.u32 %v2537, %v2533
      %v2539 = vrot.slane %v2538, 4
      %v2541 = vshll.u32 %v2181, 16
      %v2543 = vrot.slane %v2541, 5
      %v2544 = vsel %vm285, %v2539, %v2543
      %v2546 = vshrl.u32 %v2182, 16
      %v2548 = vrot.slane %v2546, 4
      %v2549 = vshll.u32 %v2182, 16
      %v2551 = vrot.slane %v2549, 5
      %v2552 = vor.u32 %v2548, %v2551
      %v2553 = vrot.slane %v2552, 4
      %v2555 = vshll.u32 %v2183, 16
      %v2557 = vrot.slane %v2555, 5
      %v2558 = vsel %vm285, %v2553, %v2557
      %v2559 = vshrl.u32 %v2183, 16
      %v2561 = vrot.slane %v2559, 4
      %v2562 = vor.u32 %v2561, %v2557
      %v2563 = vrot.slane %v2562, 4
      %v2565 = vshll.u32 %v2184, 16
      %v2567 = vrot.slane %v2565, 5
      %v2568 = vsel %vm285, %v2563, %v2567
      %s2569 = scalar_lea.vmem %s1, 256
      %v2570 = vld [vmem:[%s2569] sm:$0xf]
      %v2571 = vld [vmem:[%s2569 + $0x4] sm:$0xf]
      %v2572 = vld [vmem:[%s2569 + $0x8] sm:$0xf]
      %v2573 = vld [vmem:[%s2569 + $0xc] sm:$0xf]
      %v2574 = vld [vmem:[%s2569 + $0x10] sm:$0xf]
      %v2575 = vld [vmem:[%s2569 + $0x14] sm:$0xf]
      %v2576 = vld [vmem:[%s2569 + $0x18] sm:$0xf]
      %v2577 = vld [vmem:[%s2569 + $0x1c] sm:$0xf]
      %v2578 = vld [vmem:[%s2569 + $0x20] sm:$0xf]
      %v2579 = vld [vmem:[%s2569 + $0x24] sm:$0xf]
      %v2580 = vld [vmem:[%s2569 + $0x28] sm:$0xf]
      %v2581 = vld [vmem:[%s2569 + $0x2c] sm:$0xf]
      %v2582 = vld [vmem:[%s2569 + $0x30] sm:$0xf]
      %v2583 = vld [vmem:[%s2569 + $0x34] sm:$0xf]
      %v2584 = vld [vmem:[%s2569 + $0x38] sm:$0xf]
      %v2585 = vld [vmem:[%s2569 + $0x3c] sm:$0xf]
      %v2586 = vunpack.c.l.b16 %v2198
      %v2587 = vunpack.c.l.b16 %v2208
      %v2588 = vunpack.c.l.b16 %v2222
      %v2589 = vunpack.c.l.b16 %v2232
      %v2590 = vunpack.c.l.b16 %v2246
      %v2591 = vunpack.c.l.b16 %v2256
      %v2592 = vunpack.c.l.b16 %v2270
      %v2593 = vunpack.c.l.b16 %v2280
      %v2594 = vunpack.c.l.b16 %v2294
      %v2595 = vunpack.c.l.b16 %v2304
      %v2596 = vunpack.c.l.b16 %v2318
      %v2597 = vunpack.c.l.b16 %v2328
      %v2598 = vunpack.c.l.b16 %v2342
      %v2599 = vunpack.c.l.b16 %v2352
      %v2600 = vunpack.c.l.b16 %v2366
      %v2601 = vunpack.c.l.b16 %v2376
      %v2602 = vunpack.c.l.b16 %v2390
      %v2603 = vunpack.c.l.b16 %v2400
      %v2604 = vunpack.c.l.b16 %v2414
      %v2605 = vunpack.c.l.b16 %v2424
      %v2606 = vunpack.c.l.b16 %v2438
      %v2607 = vunpack.c.l.b16 %v2448
      %v2608 = vunpack.c.l.b16 %v2462
      %v2609 = vunpack.c.l.b16 %v2472
      %v2610 = vunpack.c.l.b16 %v2486
      %v2611 = vunpack.c.l.b16 %v2496
      %v2612 = vunpack.c.l.b16 %v2510
      %v2613 = vunpack.c.l.b16 %v2520
      %v2614 = vunpack.c.l.b16 %v2534
      %v2615 = vunpack.c.l.b16 %v2544
      %v2616 = vunpack.c.l.b16 %v2558
      %v2617 = vunpack.c.l.b16 %v2568
      %v2618 = vpack.c.b16 %v2587, %v2586
      %v2619 = vpack.c.b16 %v2589, %v2588
      %v2620 = vpack.c.b16 %v2591, %v2590
      %v2621 = vpack.c.b16 %v2593, %v2592
      %v2622 = vpack.c.b16 %v2595, %v2594
      %v2623 = vpack.c.b16 %v2597, %v2596
      %v2624 = vpack.c.b16 %v2599, %v2598
      %v2625 = vpack.c.b16 %v2601, %v2600
      %v2626 = vpack.c.b16 %v2603, %v2602
      %v2627 = vpack.c.b16 %v2605, %v2604
      %v2628 = vpack.c.b16 %v2607, %v2606
      %v2629 = vpack.c.b16 %v2609, %v2608
      %v2630 = vpack.c.b16 %v2611, %v2610
      %v2631 = vpack.c.b16 %v2613, %v2612
      %v2632 = vpack.c.b16 %v2615, %v2614
      %v2633 = vpack.c.b16 %v2617, %v2616
      %v2666 = vunpack.c.l.b16 %v2570
      %v2667 = vunpack.c.l.b16 %v2571
      %v2668 = vunpack.c.l.b16 %v2572
      %v2669 = vunpack.c.l.b16 %v2573
      %v2670 = vunpack.c.l.b16 %v2574
      %v2671 = vunpack.c.l.b16 %v2575
      %v2672 = vunpack.c.l.b16 %v2576
      %v2673 = vunpack.c.l.b16 %v2577
      %v2674 = vunpack.c.l.b16 %v2578
      %v2675 = vunpack.c.l.b16 %v2579
      %v2676 = vunpack.c.l.b16 %v2580
      %v2677 = vunpack.c.l.b16 %v2581
      %v2678 = vunpack.c.l.b16 %v2582
      %v2679 = vunpack.c.l.b16 %v2583
      %v2680 = vunpack.c.l.b16 %v2584
      %v2681 = vunpack.c.l.b16 %v2585
      %v2682 = vpack.c.b16 %v2667, %v2666
      %v2683 = vpack.c.b16 %v2669, %v2668
      %v2684 = vpack.c.b16 %v2671, %v2670
      %v2685 = vpack.c.b16 %v2673, %v2672
      %v2686 = vpack.c.b16 %v2675, %v2674
      %v2687 = vpack.c.b16 %v2677, %v2676
      %v2688 = vpack.c.b16 %v2679, %v2678
      %v2689 = vpack.c.b16 %v2681, %v2680
      %2698 = vmatprep.subr.bf16.mxu0 0
      %2699 = vmatpush1.bf16.msra.mxu0 %v2682
      %2700 = vmatprep.subr.bf16.mxu0 0
      %2701 = vmatpush1.bf16.msra.mxu0 %v2683
      %2702 = vmatprep.subr.bf16.mxu0 0
      %2703 = vmatpush1.bf16.msra.mxu0 %v2684
      %2704 = vmatprep.subr.bf16.mxu0 0
      %2705 = vmatpush1.bf16.msra.mxu0 %v2685
      %2706 = vmatprep.subr.bf16.mxu0 0
      %2707 = vmatpush1.bf16.msra.mxu0 %v2686
      %2708 = vmatprep.subr.bf16.mxu0 0
      %2709 = vmatpush1.bf16.msra.mxu0 %v2687
      %2710 = vmatprep.subr.bf16.mxu0 0
      %2711 = vmatpush1.bf16.msra.mxu0 %v2688
      %2712 = vmatprep.subr.bf16.mxu0 0
      %2713 = vmatpush1.bf16.msra.mxu0 %v2689
      %2714 = vmatprep.subr.bf16.mxu0 0
      %2715 = vmatpush1.bf16.msra.mxu0 0
      %2716 = vmatprep.subr.bf16.mxu0 0
      %2717 = vmatpush1.bf16.msra.mxu0 0
      %2718 = vmatprep.subr.bf16.mxu0 0
      %2719 = vmatpush1.bf16.msra.mxu0 0
      %2720 = vmatprep.subr.bf16.mxu0 0
      %2721 = vmatpush1.bf16.msra.mxu0 0
      %2722 = vmatprep.subr.bf16.mxu0 0
      %2723 = vmatpush1.bf16.msra.mxu0 0
      %2724 = vmatprep.subr.bf16.mxu0 0
      %2725 = vmatpush1.bf16.msra.mxu0 0
      %2726 = vmatprep.subr.bf16.mxu0 0
      %2727 = vmatpush1.bf16.msra.mxu0 0
      %2728 = vmatprep.subr.bf16.mxu0 0
      %2729 = vmatpush1.bf16.msra.mxu0 0
      %2730 = vmatprep.mubr.bf16.mxu0 0
      %2731 = vmatmul.mubr.bf16.gmra.mrb[0].mxu0 %v2618
      %v2732 = vpop.f32.mrb[0].mxu0
      %v2733 = vadd.f32 0.0, %v2732
      %v2734 = vpop.f32.mrb[0].mxu0
      %v2735 = vpop.f32.mrb[0].mxu0
      %v2736 = vadd.f32 0.0, %v2735
      %v2737 = vpop.f32.mrb[0].mxu0
      %2738 = vmatprep.mubr.bf16.mxu0 0
      %2739 = vmatmul.mubr.bf16.gmra.mrb[0].mxu0 %v2619
      %v2740 = vpop.f32.mrb[0].mxu0
      %v2741 = vadd.f32 0.0, %v2740
      %v2742 = vpop.f32.mrb[0].mxu0
      %v2743 = vpop.f32.mrb[0].mxu0
      %v2744 = vadd.f32 0.0, %v2743
      %v2745 = vpop.f32.mrb[0].mxu0
      %2746 = vmatprep.mubr.bf16.mxu0 0
      %2747 = vmatmul.mubr.bf16.gmra.mrb[0].mxu0 %v2620
      %v2748 = vpop.f32.mrb[0].mxu0
      %v2749 = vadd.f32 0.0, %v2748
      %v2750 = vpop.f32.mrb[0].mxu0
      %v2751 = vpop.f32.mrb[0].mxu0
      %v2752 = vadd.f32 0.0, %v2751
      %v2753 = vpop.f32.mrb[0].mxu0
      %2754 = vmatprep.mubr.bf16.mxu0 0
      %2755 = vmatmul.mubr.bf16.gmra.mrb[0].mxu0 %v2621
      %v2756 = vpop.f32.mrb[0].mxu0
      %v2757 = vadd.f32 0.0, %v2756
      %v2758 = vpop.f32.mrb[0].mxu0
      %v2759 = vpop.f32.mrb[0].mxu0
      %v2760 = vadd.f32 0.0, %v2759
      %v2761 = vpop.f32.mrb[0].mxu0
      %2762 = vmatprep.mubr.bf16.mxu0 0
      %2763 = vmatmul.mubr.bf16.gmra.mrb[0].mxu0 %v2622
      %v2764 = vpop.f32.mrb[0].mxu0
      %v2765 = vadd.f32 0.0, %v2764
      %v2766 = vpop.f32.mrb[0].mxu0
      %v2767 = vpop.f32.mrb[0].mxu0
      %v2768 = vadd.f32 0.0, %v2767
      %v2769 = vpop.f32.mrb[0].mxu0
      %2770 = vmatprep.mubr.bf16.mxu0 0
      %2771 = vmatmul.mubr.bf16.gmra.mrb[0].mxu0 %v2623
      %v2772 = vpop.f32.mrb[0].mxu0
      %v2773 = vadd.f32 0.0, %v2772
      %v2774 = vpop.f32.mrb[0].mxu0
      %v2775 = vpop.f32.mrb[0].mxu0
      %v2776 = vadd.f32 0.0, %v2775
      %v2777 = vpop.f32.mrb[0].mxu0
      %2778 = vmatprep.mubr.bf16.mxu0 0
      %2779 = vmatmul.mubr.bf16.gmra.mrb[0].mxu0 %v2624
      %v2780 = vpop.f32.mrb[0].mxu0
      %v2781 = vadd.f32 0.0, %v2780
      %v2782 = vpop.f32.mrb[0].mxu0
      %v2783 = vpop.f32.mrb[0].mxu0
      %v2784 = vadd.f32 0.0, %v2783
      %v2785 = vpop.f32.mrb[0].mxu0
      %2786 = vmatprep.mubr.bf16.mxu0 0
      %2787 = vmatmul.mubr.bf16.gmra.mrb[0].mxu0 %v2625
      %v2788 = vpop.f32.mrb[0].mxu0
      %v2789 = vadd.f32 0.0, %v2788
      %v2790 = vpop.f32.mrb[0].mxu0
      %v2791 = vpop.f32.mrb[0].mxu0
      %v2792 = vadd.f32 0.0, %v2791
      %v2793 = vpop.f32.mrb[0].mxu0
      %2794 = vmatprep.mubr.bf16.mxu0 0
      %2795 = vmatmul.mubr.bf16.gmra.mrb[0].mxu0 %v2626
      %v2796 = vpop.f32.mrb[0].mxu0
      %v2797 = vadd.f32 0.0, %v2796
      %v2798 = vpop.f32.mrb[0].mxu0
      %v2799 = vpop.f32.mrb[0].mxu0
      %v2800 = vadd.f32 0.0, %v2799
      %v2801 = vpop.f32.mrb[0].mxu0
      %2802 = vmatprep.mubr.bf16.mxu0 0
      %2803 = vmatmul.mubr.bf16.gmra.mrb[0].mxu0 %v2627
      %v2804 = vpop.f32.mrb[0].mxu0
      %v2805 = vadd.f32 0.0, %v2804
      %v2806 = vpop.f32.mrb[0].mxu0
      %v2807 = vpop.f32.mrb[0].mxu0
      %v2808 = vadd.f32 0.0, %v2807
      %v2809 = vpop.f32.mrb[0].mxu0
      %2810 = vmatprep.mubr.bf16.mxu0 0
      %2811 = vmatmul.mubr.bf16.gmra.mrb[0].mxu0 %v2628
      %v2812 = vpop.f32.mrb[0].mxu0
      %v2813 = vadd.f32 0.0, %v2812
      %v2814 = vpop.f32.mrb[0].mxu0
      %v2815 = vpop.f32.mrb[0].mxu0
      %v2816 = vadd.f32 0.0, %v2815
      %v2817 = vpop.f32.mrb[0].mxu0
      %2818 = vmatprep.mubr.bf16.mxu0 0
      %2819 = vmatmul.mubr.bf16.gmra.mrb[0].mxu0 %v2629
      %v2820 = vpop.f32.mrb[0].mxu0
      %v2821 = vadd.f32 0.0, %v2820
      %v2822 = vpop.f32.mrb[0].mxu0
      %v2823 = vpop.f32.mrb[0].mxu0
      %v2824 = vadd.f32 0.0, %v2823
      %v2825 = vpop.f32.mrb[0].mxu0
      %2826 = vmatprep.mubr.bf16.mxu0 0
      %2827 = vmatmul.mubr.bf16.gmra.mrb[0].mxu0 %v2630
      %v2828 = vpop.f32.mrb[0].mxu0
      %v2829 = vadd.f32 0.0, %v2828
      %v2830 = vpop.f32.mrb[0].mxu0
      %v2831 = vpop.f32.mrb[0].mxu0
      %v2832 = vadd.f32 0.0, %v2831
      %v2833 = vpop.f32.mrb[0].mxu0
      %2834 = vmatprep.mubr.bf16.mxu0 0
      %2835 = vmatmul.mubr.bf16.gmra.mrb[0].mxu0 %v2631
      %v2836 = vpop.f32.mrb[0].mxu0
      %v2837 = vadd.f32 0.0, %v2836
      %v2838 = vpop.f32.mrb[0].mxu0
      %v2839 = vpop.f32.mrb[0].mxu0
      %v2840 = vadd.f32 0.0, %v2839
      %v2841 = vpop.f32.mrb[0].mxu0
      %2842 = vmatprep.mubr.bf16.mxu0 0
      %2843 = vmatmul.mubr.bf16.gmra.mrb[0].mxu0 %v2632
      %v2844 = vpop.f32.mrb[0].mxu0
      %v2845 = vadd.f32 0.0, %v2844
      %v2846 = vpop.f32.mrb[0].mxu0
      %v2847 = vpop.f32.mrb[0].mxu0
      %v2848 = vadd.f32 0.0, %v2847
      %v2849 = vpop.f32.mrb[0].mxu0
      %2850 = vmatprep.mubr.bf16.mxu0 0
      %2851 = vmatmul.mubr.bf16.gmra.mrb[0].mxu0 %v2633
      %v2852 = vpop.f32.mrb[0].mxu0
      %v2853 = vadd.f32 0.0, %v2852
      %v2854 = vpop.f32.mrb[0].mxu0
      %v2855 = vpop.f32.mrb[0].mxu0
      %v2856 = vadd.f32 0.0, %v2855
      %v2857 = vpop.f32.mrb[0].mxu0
      %2858 = vdwg.mxu0
      %v2859 = vadd.f32 %v2105, %v2733
      %v2860 = vadd.f32 %v2106, %v2736
      %v2861 = vadd.f32 %v2107, %v2741
      %v2862 = vadd.f32 %v2108, %v2744
      %v2863 = vadd.f32 %v2109, %v2749
      %v2864 = vadd.f32 %v2110, %v2752
      %v2865 = vadd.f32 %v2111, %v2757
      %v2866 = vadd.f32 %v2112, %v2760
      %v2867 = vadd.f32 %v2113, %v2765
      %v2868 = vadd.f32 %v2114, %v2768
      %v2869 = vadd.f32 %v2115, %v2773
      %v2870 = vadd.f32 %v2116, %v2776
      %v2871 = vadd.f32 %v2117, %v2781
      %v2872 = vadd.f32 %v2118, %v2784
      %v2873 = vadd.f32 %v2119, %v2789
      %v2874 = vadd.f32 %v2120, %v2792
      %v2875 = vadd.f32 %v2121, %v2797
      %v2876 = vadd.f32 %v2122, %v2800
      %v2877 = vadd.f32 %v2123, %v2805
      %v2878 = vadd.f32 %v2124, %v2808
      %v2879 = vadd.f32 %v2125, %v2813
      %v2880 = vadd.f32 %v2126, %v2816
      %v2881 = vadd.f32 %v2127, %v2821
      %v2882 = vadd.f32 %v2128, %v2824
      %v2883 = vadd.f32 %v2129, %v2829
      %v2884 = vadd.f32 %v2130, %v2832
      %v2885 = vadd.f32 %v2131, %v2837
      %v2886 = vadd.f32 %v2132, %v2840
      %v2887 = vadd.f32 %v2133, %v2845
      %v2888 = vadd.f32 %v2134, %v2848
      %v2889 = vadd.f32 %v2135, %v2853
      %v2890 = vadd.f32 %v2136, %v2856
      %v2891 = vld [vmem:[%s1750] sm:$0xe]
      %v2892 = vld [vmem:[%s1750 + $0xc] sm:$0xe]
      %v2893 = vld [vmem:[%s1750 + $0x18] sm:$0xe]
      %v2894 = vld [vmem:[%s1750 + $0x24] sm:$0xe]
      %v2895 = vld [vmem:[%s1750 + $0x30] sm:$0xe]
      %v2896 = vld [vmem:[%s1750 + $0x3c] sm:$0xe]
      %v2897 = vld [vmem:[%s1750 + $0x48] sm:$0xe]
      %v2898 = vld [vmem:[%s1750 + $0x54] sm:$0xe]
      %v2899 = vld [vmem:[%s1750 + $0x60] sm:$0xe]
      %v2900 = vld [vmem:[%s1750 + $0x6c] sm:$0xe]
      %v2901 = vld [vmem:[%s1750 + $0x78] sm:$0xe]
      %v2902 = vld [vmem:[%s1750 + $0x84] sm:$0xe]
      %v2903 = vld [vmem:[%s1750 + $0x90] sm:$0xe]
      %v2904 = vld [vmem:[%s1750 + $0x9c] sm:$0xe]
      %v2905 = vld [vmem:[%s1750 + $0xa8] sm:$0xe]
      %v2906 = vld [vmem:[%s1750 + $0xb4] sm:$0xe]
      %v2955 = vrot.slane %v2891, 5
      %v2956 = vrot.slane %v2955, 4
      %v2957 = vrot.slane %v2138, 5
      %v2958 = vsel %vm1315, %v2956, %v2957
      %v2959 = vrot.slane %v2957, 4
      %v2960 = vrot.slane %v2139, 5
      %v2961 = vsel %vm1315, %v2959, %v2960
      %v2962 = vrot.slane %v2892, 5
      %v2963 = vrot.slane %v2962, 4
      %v2964 = vrot.slane %v2141, 5
      %v2965 = vsel %vm1315, %v2963, %v2964
      %v2966 = vrot.slane %v2964, 4
      %v2967 = vrot.slane %v2142, 5
      %v2968 = vsel %vm1315, %v2966, %v2967
      %v2969 = vrot.slane %v2893, 5
      %v2970 = vrot.slane %v2969, 4
      %v2971 = vrot.slane %v2144, 5
      %v2972 = vsel %vm1315, %v2970, %v2971
      %v2973 = vrot.slane %v2971, 4
      %v2974 = vrot.slane %v2145, 5
      %v2975 = vsel %vm1315, %v2973, %v2974
      %v2976 = vrot.slane %v2894, 5
      %v2977 = vrot.slane %v2976, 4
      %v2978 = vrot.slane %v2147, 5
      %v2979 = vsel %vm1315, %v2977, %v2978
      %v2980 = vrot.slane %v2978, 4
      %v2981 = vrot.slane %v2148, 5
      %v2982 = vsel %vm1315, %v2980, %v2981
      %v2983 = vrot.slane %v2895, 5
      %v2984 = vrot.slane %v2983, 4
      %v2985 = vrot.slane %v2150, 5
      %v2986 = vsel %vm1315, %v2984, %v2985
      %v2987 = vrot.slane %v2985, 4
      %v2988 = vrot.slane %v2151, 5
      %v2989 = vsel %vm1315, %v2987, %v2988
      %v2990 = vrot.slane %v2896, 5
      %v2991 = vrot.slane %v2990, 4
      %v2992 = vrot.slane %v2153, 5
      %v2993 = vsel %vm1315, %v2991, %v2992
      %v2994 = vrot.slane %v2992, 4
      %v2995 = vrot.slane %v2154, 5
      %v2996 = vsel %vm1315, %v2994, %v2995
      %v2997 = vrot.slane %v2897, 5
      %v2998 = vrot.slane %v2997, 4
      %v2999 = vrot.slane %v2156, 5
      %v3000 = vsel %vm1315, %v2998, %v2999
      %v3001 = vrot.slane %v2999, 4
      %v3002 = vrot.slane %v2157, 5
      %v3003 = vsel %vm1315, %v3001, %v3002
      %v3004 = vrot.slane %v2898, 5
      %v3005 = vrot.slane %v3004, 4
      %v3006 = vrot.slane %v2159, 5
      %v3007 = vsel %vm1315, %v3005, %v3006
      %v3008 = vrot.slane %v3006, 4
      %v3009 = vrot.slane %v2160, 5
      %v3010 = vsel %vm1315, %v3008, %v3009
      %v3011 = vrot.slane %v2899, 5
      %v3012 = vrot.slane %v3011, 4
      %v3013 = vrot.slane %v2162, 5
      %v3014 = vsel %vm1315, %v3012, %v3013
      %v3015 = vrot.slane %v3013, 4
      %v3016 = vrot.slane %v2163, 5
      %v3017 = vsel %vm1315, %v3015, %v3016
      %v3018 = vrot.slane %v2900, 5
      %v3019 = vrot.slane %v3018, 4
      %v3020 = vrot.slane %v2165, 5
      %v3021 = vsel %vm1315, %v3019, %v3020
      %v3022 = vrot.slane %v3020, 4
      %v3023 = vrot.slane %v2166, 5
      %v3024 = vsel %vm1315, %v3022, %v3023
      %v3025 = vrot.slane %v2901, 5
      %v3026 = vrot.slane %v3025, 4
      %v3027 = vrot.slane %v2168, 5
      %v3028 = vsel %vm1315, %v3026, %v3027
      %v3029 = vrot.slane %v3027, 4
      %v3030 = vrot.slane %v2169, 5
      %v3031 = vsel %vm1315, %v3029, %v3030
      %v3032 = vrot.slane %v2902, 5
      %v3033 = vrot.slane %v3032, 4
      %v3034 = vrot.slane %v2171, 5
      %v3035 = vsel %vm1315, %v3033, %v3034
      %v3036 = vrot.slane %v3034, 4
      %v3037 = vrot.slane %v2172, 5
      %v3038 = vsel %vm1315, %v3036, %v3037
      %v3039 = vrot.slane %v2903, 5
      %v3040 = vrot.slane %v3039, 4
      %v3041 = vrot.slane %v2174, 5
      %v3042 = vsel %vm1315, %v3040, %v3041
      %v3043 = vrot.slane %v3041, 4
      %v3044 = vrot.slane %v2175, 5
      %v3045 = vsel %vm1315, %v3043, %v3044
      %v3046 = vrot.slane %v2904, 5
      %v3047 = vrot.slane %v3046, 4
      %v3048 = vrot.slane %v2177, 5
      %v3049 = vsel %vm1315, %v3047, %v3048
      %v3050 = vrot.slane %v3048, 4
      %v3051 = vrot.slane %v2178, 5
      %v3052 = vsel %vm1315, %v3050, %v3051
      %v3053 = vrot.slane %v2905, 5
      %v3054 = vrot.slane %v3053, 4
      %v3055 = vrot.slane %v2180, 5
      %v3056 = vsel %vm1315, %v3054, %v3055
      %v3057 = vrot.slane %v3055, 4
      %v3058 = vrot.slane %v2181, 5
      %v3059 = vsel %vm1315, %v3057, %v3058
      %v3060 = vrot.slane %v2906, 5
      %v3061 = vrot.slane %v3060, 4
      %v3062 = vrot.slane %v2183, 5
      %v3063 = vsel %vm1315, %v3061, %v3062
      %v3064 = vrot.slane %v3062, 4
      %v3065 = vrot.slane %v2184, 5
      %v3066 = vsel %vm1315, %v3064, %v3065
      %s3067 = scalar_lea.vmem %s1, 320
      %v3068 = vld [vmem:[%s3067] sm:$0xf]
      %v3069 = vld [vmem:[%s3067 + $0x4] sm:$0xf]
      %v3070 = vld [vmem:[%s3067 + $0x8] sm:$0xf]
      %v3071 = vld [vmem:[%s3067 + $0xc] sm:$0xf]
      %v3072 = vld [vmem:[%s3067 + $0x10] sm:$0xf]
      %v3073 = vld [vmem:[%s3067 + $0x14] sm:$0xf]
      %v3074 = vld [vmem:[%s3067 + $0x18] sm:$0xf]
      %v3075 = vld [vmem:[%s3067 + $0x1c] sm:$0xf]
      %v3076 = vld [vmem:[%s3067 + $0x20] sm:$0xf]
      %v3077 = vld [vmem:[%s3067 + $0x24] sm:$0xf]
      %v3078 = vld [vmem:[%s3067 + $0x28] sm:$0xf]
      %v3079 = vld [vmem:[%s3067 + $0x2c] sm:$0xf]
      %v3080 = vld [vmem:[%s3067 + $0x30] sm:$0xf]
      %v3081 = vld [vmem:[%s3067 + $0x34] sm:$0xf]
      %v3082 = vld [vmem:[%s3067 + $0x38] sm:$0xf]
      %v3083 = vld [vmem:[%s3067 + $0x3c] sm:$0xf]
      %v3084 = vunpack.c.l.b16 %v2958
      %v3085 = vunpack.c.l.b16 %v2961
      %v3086 = vunpack.c.l.b16 %v2965
      %v3087 = vunpack.c.l.b16 %v2968
      %v3088 = vunpack.c.l.b16 %v2972
      %v3089 = vunpack.c.l.b16 %v2975
      %v3090 = vunpack.c.l.b16 %v2979
      %v3091 = vunpack.c.l.b16 %v2982
      %v3092 = vunpack.c.l.b16 %v2986
      %v3093 = vunpack.c.l.b16 %v2989
      %v3094 = vunpack.c.l.b16 %v2993
      %v3095 = vunpack.c.l.b16 %v2996
      %v3096 = vunpack.c.l.b16 %v3000
      %v3097 = vunpack.c.l.b16 %v3003
      %v3098 = vunpack.c.l.b16 %v3007
      %v3099 = vunpack.c.l.b16 %v3010
      %v3100 = vunpack.c.l.b16 %v3014
      %v3101 = vunpack.c.l.b16 %v3017
      %v3102 = vunpack.c.l.b16 %v3021
      %v3103 = vunpack.c.l.b16 %v3024
      %v3104 = vunpack.c.l.b16 %v3028
      %v3105 = vunpack.c.l.b16 %v3031
      %v3106 = vunpack.c.l.b16 %v3035
      %v3107 = vunpack.c.l.b16 %v3038
      %v3108 = vunpack.c.l.b16 %v3042
      %v3109 = vunpack.c.l.b16 %v3045
      %v3110 = vunpack.c.l.b16 %v3049
      %v3111 = vunpack.c.l.b16 %v3052
      %v3112 = vunpack.c.l.b16 %v3056
      %v3113 = vunpack.c.l.b16 %v3059
      %v3114 = vunpack.c.l.b16 %v3063
      %v3115 = vunpack.c.l.b16 %v3066
      %v3116 = vpack.c.b16 %v3085, %v3084
      %v3117 = vpack.c.b16 %v3087, %v3086
      %v3118 = vpack.c.b16 %v3089, %v3088
      %v3119 = vpack.c.b16 %v3091, %v3090
      %v3120 = vpack.c.b16 %v3093, %v3092
      %v3121 = vpack.c.b16 %v3095, %v3094
      %v3122 = vpack.c.b16 %v3097, %v3096
      %v3123 = vpack.c.b16 %v3099, %v3098
      %v3124 = vpack.c.b16 %v3101, %v3100
      %v3125 = vpack.c.b16 %v3103, %v3102
      %v3126 = vpack.c.b16 %v3105, %v3104
      %v3127 = vpack.c.b16 %v3107, %v3106
      %v3128 = vpack.c.b16 %v3109, %v3108
      %v3129 = vpack.c.b16 %v3111, %v3110
      %v3130 = vpack.c.b16 %v3113, %v3112
      %v3131 = vpack.c.b16 %v3115, %v3114
      %v3164 = vunpack.c.l.b16 %v3068
      %v3165 = vunpack.c.l.b16 %v3069
      %v3166 = vunpack.c.l.b16 %v3070
      %v3167 = vunpack.c.l.b16 %v3071
      %v3168 = vunpack.c.l.b16 %v3072
      %v3169 = vunpack.c.l.b16 %v3073
      %v3170 = vunpack.c.l.b16 %v3074
      %v3171 = vunpack.c.l.b16 %v3075
      %v3172 = vunpack.c.l.b16 %v3076
      %v3173 = vunpack.c.l.b16 %v3077
      %v3174 = vunpack.c.l.b16 %v3078
      %v3175 = vunpack.c.l.b16 %v3079
      %v3176 = vunpack.c.l.b16 %v3080
      %v3177 = vunpack.c.l.b16 %v3081
      %v3178 = vunpack.c.l.b16 %v3082
      %v3179 = vunpack.c.l.b16 %v3083
      %v3180 = vpack.c.b16 %v3165, %v3164
      %v3181 = vpack.c.b16 %v3167, %v3166
      %v3182 = vpack.c.b16 %v3169, %v3168
      %v3183 = vpack.c.b16 %v3171, %v3170
      %v3184 = vpack.c.b16 %v3173, %v3172
      %v3185 = vpack.c.b16 %v3175, %v3174
      %v3186 = vpack.c.b16 %v3177, %v3176
      %v3187 = vpack.c.b16 %v3179, %v3178
      %3196 = vmatprep.subr.bf16.mxu0 0
      %3197 = vmatpush1.bf16.msra.mxu0 %v3180
      %3198 = vmatprep.subr.bf16.mxu0 0
      %3199 = vmatpush1.bf16.msra.mxu0 %v3181
      %3200 = vmatprep.subr.bf16.mxu0 0
      %3201 = vmatpush1.bf16.msra.mxu0 %v3182
      %3202 = vmatprep.subr.bf16.mxu0 0
      %3203 = vmatpush1.bf16.msra.mxu0 %v3183
      %3204 = vmatprep.subr.bf16.mxu0 0
      %3205 = vmatpush1.bf16.msra.mxu0 %v3184
      %3206 = vmatprep.subr.bf16.mxu0 0
      %3207 = vmatpush1.bf16.msra.mxu0 %v3185
      %3208 = vmatprep.subr.bf16.mxu0 0
      %3209 = vmatpush1.bf16.msra.mxu0 %v3186
      %3210 = vmatprep.subr.bf16.mxu0 0
      %3211 = vmatpush1.bf16.msra.mxu0 %v3187
      %3212 = vmatprep.subr.bf16.mxu0 0
      %3213 = vmatpush1.bf16.msra.mxu0 0
      %3214 = vmatprep.subr.bf16.mxu0 0
      %3215 = vmatpush1.bf16.msra.mxu0 0
      %3216 = vmatprep.subr.bf16.mxu0 0
      %3217 = vmatpush1.bf16.msra.mxu0 0
      %3218 = vmatprep.subr.bf16.mxu0 0
      %3219 = vmatpush1.bf16.msra.mxu0 0
      %3220 = vmatprep.subr.bf16.mxu0 0
      %3221 = vmatpush1.bf16.msra.mxu0 0
      %3222 = vmatprep.subr.bf16.mxu0 0
      %3223 = vmatpush1.bf16.msra.mxu0 0
      %3224 = vmatprep.subr.bf16.mxu0 0
      %3225 = vmatpush1.bf16.msra.mxu0 0
      %3226 = vmatprep.subr.bf16.mxu0 0
      %3227 = vmatpush1.bf16.msra.mxu0 0
      %3228 = vmatprep.mubr.bf16.mxu0 0
      %3229 = vmatmul.mubr.bf16.gmra.mrb[0].mxu0 %v3116
      %v3230 = vpop.f32.mrb[0].mxu0
      %v3231 = vadd.f32 0.0, %v3230
      %v3232 = vpop.f32.mrb[0].mxu0
      %v3233 = vpop.f32.mrb[0].mxu0
      %v3234 = vadd.f32 0.0, %v3233
      %v3235 = vpop.f32.mrb[0].mxu0
      %3236 = vmatprep.mubr.bf16.mxu0 0
      %3237 = vmatmul.mubr.bf16.gmra.mrb[0].mxu0 %v3117
      %v3238 = vpop.f32.mrb[0].mxu0
      %v3239 = vadd.f32 0.0, %v3238
      %v3240 = vpop.f32.mrb[0].mxu0
      %v3241 = vpop.f32.mrb[0].mxu0
      %v3242 = vadd.f32 0.0, %v3241
      %v3243 = vpop.f32.mrb[0].mxu0
      %3244 = vmatprep.mubr.bf16.mxu0 0
      %3245 = vmatmul.mubr.bf16.gmra.mrb[0].mxu0 %v3118
      %v3246 = vpop.f32.mrb[0].mxu0
      %v3247 = vadd.f32 0.0, %v3246
      %v3248 = vpop.f32.mrb[0].mxu0
      %v3249 = vpop.f32.mrb[0].mxu0
      %v3250 = vadd.f32 0.0, %v3249
      %v3251 = vpop.f32.mrb[0].mxu0
      %3252 = vmatprep.mubr.bf16.mxu0 0
      %3253 = vmatmul.mubr.bf16.gmra.mrb[0].mxu0 %v3119
      %v3254 = vpop.f32.mrb[0].mxu0
      %v3255 = vadd.f32 0.0, %v3254
      %v3256 = vpop.f32.mrb[0].mxu0
      %v3257 = vpop.f32.mrb[0].mxu0
      %v3258 = vadd.f32 0.0, %v3257
      %v3259 = vpop.f32.mrb[0].mxu0
      %3260 = vmatprep.mubr.bf16.mxu0 0
      %3261 = vmatmul.mubr.bf16.gmra.mrb[0].mxu0 %v3120
      %v3262 = vpop.f32.mrb[0].mxu0
      %v3263 = vadd.f32 0.0, %v3262
      %v3264 = vpop.f32.mrb[0].mxu0
      %v3265 = vpop.f32.mrb[0].mxu0
      %v3266 = vadd.f32 0.0, %v3265
      %v3267 = vpop.f32.mrb[0].mxu0
      %3268 = vmatprep.mubr.bf16.mxu0 0
      %3269 = vmatmul.mubr.bf16.gmra.mrb[0].mxu0 %v3121
      %v3270 = vpop.f32.mrb[0].mxu0
      %v3271 = vadd.f32 0.0, %v3270
      %v3272 = vpop.f32.mrb[0].mxu0
      %v3273 = vpop.f32.mrb[0].mxu0
      %v3274 = vadd.f32 0.0, %v3273
      %v3275 = vpop.f32.mrb[0].mxu0
      %3276 = vmatprep.mubr.bf16.mxu0 0
      %3277 = vmatmul.mubr.bf16.gmra.mrb[0].mxu0 %v3122
      %v3278 = vpop.f32.mrb[0].mxu0
      %v3279 = vadd.f32 0.0, %v3278
      %v3280 = vpop.f32.mrb[0].mxu0
      %v3281 = vpop.f32.mrb[0].mxu0
      %v3282 = vadd.f32 0.0, %v3281
      %v3283 = vpop.f32.mrb[0].mxu0
      %3284 = vmatprep.mubr.bf16.mxu0 0
      %3285 = vmatmul.mubr.bf16.gmra.mrb[0].mxu0 %v3123
      %v3286 = vpop.f32.mrb[0].mxu0
      %v3287 = vadd.f32 0.0, %v3286
      %v3288 = vpop.f32.mrb[0].mxu0
      %v3289 = vpop.f32.mrb[0].mxu0
      %v3290 = vadd.f32 0.0, %v3289
      %v3291 = vpop.f32.mrb[0].mxu0
      %3292 = vmatprep.mubr.bf16.mxu0 0
      %3293 = vmatmul.mubr.bf16.gmra.mrb[0].mxu0 %v3124
      %v3294 = vpop.f32.mrb[0].mxu0
      %v3295 = vadd.f32 0.0, %v3294
      %v3296 = vpop.f32.mrb[0].mxu0
      %v3297 = vpop.f32.mrb[0].mxu0
      %v3298 = vadd.f32 0.0, %v3297
      %v3299 = vpop.f32.mrb[0].mxu0
      %3300 = vmatprep.mubr.bf16.mxu0 0
      %3301 = vmatmul.mubr.bf16.gmra.mrb[0].mxu0 %v3125
      %v3302 = vpop.f32.mrb[0].mxu0
      %v3303 = vadd.f32 0.0, %v3302
      %v3304 = vpop.f32.mrb[0].mxu0
      %v3305 = vpop.f32.mrb[0].mxu0
      %v3306 = vadd.f32 0.0, %v3305
      %v3307 = vpop.f32.mrb[0].mxu0
      %3308 = vmatprep.mubr.bf16.mxu0 0
      %3309 = vmatmul.mubr.bf16.gmra.mrb[0].mxu0 %v3126
      %v3310 = vpop.f32.mrb[0].mxu0
      %v3311 = vadd.f32 0.0, %v3310
      %v3312 = vpop.f32.mrb[0].mxu0
      %v3313 = vpop.f32.mrb[0].mxu0
      %v3314 = vadd.f32 0.0, %v3313
      %v3315 = vpop.f32.mrb[0].mxu0
      %3316 = vmatprep.mubr.bf16.mxu0 0
      %3317 = vmatmul.mubr.bf16.gmra.mrb[0].mxu0 %v3127
      %v3318 = vpop.f32.mrb[0].mxu0
      %v3319 = vadd.f32 0.0, %v3318
      %v3320 = vpop.f32.mrb[0].mxu0
      %v3321 = vpop.f32.mrb[0].mxu0
      %v3322 = vadd.f32 0.0, %v3321
      %v3323 = vpop.f32.mrb[0].mxu0
      %3324 = vmatprep.mubr.bf16.mxu0 0
      %3325 = vmatmul.mubr.bf16.gmra.mrb[0].mxu0 %v3128
      %v3326 = vpop.f32.mrb[0].mxu0
      %v3327 = vadd.f32 0.0, %v3326
      %v3328 = vpop.f32.mrb[0].mxu0
      %v3329 = vpop.f32.mrb[0].mxu0
      %v3330 = vadd.f32 0.0, %v3329
      %v3331 = vpop.f32.mrb[0].mxu0
      %3332 = vmatprep.mubr.bf16.mxu0 0
      %3333 = vmatmul.mubr.bf16.gmra.mrb[0].mxu0 %v3129
      %v3334 = vpop.f32.mrb[0].mxu0
      %v3335 = vadd.f32 0.0, %v3334
      %v3336 = vpop.f32.mrb[0].mxu0
      %v3337 = vpop.f32.mrb[0].mxu0
      %v3338 = vadd.f32 0.0, %v3337
      %v3339 = vpop.f32.mrb[0].mxu0
      %3340 = vmatprep.mubr.bf16.mxu0 0
      %3341 = vmatmul.mubr.bf16.gmra.mrb[0].mxu0 %v3130
      %v3342 = vpop.f32.mrb[0].mxu0
      %v3343 = vadd.f32 0.0, %v3342
      %v3344 = vpop.f32.mrb[0].mxu0
      %v3345 = vpop.f32.mrb[0].mxu0
      %v3346 = vadd.f32 0.0, %v3345
      %v3347 = vpop.f32.mrb[0].mxu0
      %3348 = vmatprep.mubr.bf16.mxu0 0
      %3349 = vmatmul.mubr.bf16.gmra.mrb[0].mxu0 %v3131
      %v3350 = vpop.f32.mrb[0].mxu0
      %v3351 = vadd.f32 0.0, %v3350
      %v3352 = vpop.f32.mrb[0].mxu0
      %v3353 = vpop.f32.mrb[0].mxu0
      %v3354 = vadd.f32 0.0, %v3353
      %v3355 = vpop.f32.mrb[0].mxu0
      %3356 = vdwg.mxu0
      %v3357 = vadd.f32 %v2859, %v3231
      %v3358 = vadd.f32 %v2860, %v3234
      %v3359 = vadd.f32 %v2861, %v3239
      %v3360 = vadd.f32 %v2862, %v3242
      %v3361 = vadd.f32 %v2863, %v3247
      %v3362 = vadd.f32 %v2864, %v3250
      %v3363 = vadd.f32 %v2865, %v3255
      %v3364 = vadd.f32 %v2866, %v3258
      %v3365 = vadd.f32 %v2867, %v3263
      %v3366 = vadd.f32 %v2868, %v3266
      %v3367 = vadd.f32 %v2869, %v3271
      %v3368 = vadd.f32 %v2870, %v3274
      %v3369 = vadd.f32 %v2871, %v3279
      %v3370 = vadd.f32 %v2872, %v3282
      %v3371 = vadd.f32 %v2873, %v3287
      %v3372 = vadd.f32 %v2874, %v3290
      %v3373 = vadd.f32 %v2875, %v3295
      %v3374 = vadd.f32 %v2876, %v3298
      %v3375 = vadd.f32 %v2877, %v3303
      %v3376 = vadd.f32 %v2878, %v3306
      %v3377 = vadd.f32 %v2879, %v3311
      %v3378 = vadd.f32 %v2880, %v3314
      %v3379 = vadd.f32 %v2881, %v3319
      %v3380 = vadd.f32 %v2882, %v3322
      %v3381 = vadd.f32 %v2883, %v3327
      %v3382 = vadd.f32 %v2884, %v3330
      %v3383 = vadd.f32 %v2885, %v3335
      %v3384 = vadd.f32 %v2886, %v3338
      %v3385 = vadd.f32 %v2887, %v3343
      %v3386 = vadd.f32 %v2888, %v3346
      %v3387 = vadd.f32 %v2889, %v3351
      %v3388 = vadd.f32 %v2890, %v3354
      %s3389 = scalar_lea.vmem %s207, 24
      %v3390 = vld [vmem:[%s3389] sm:$0xf]
      %v3391 = vld [vmem:[%s3389 + $0x4] sm:$0xf]
      %v3392 = vld [vmem:[%s3389 + $0xc] sm:$0xf]
      %v3393 = vld [vmem:[%s3389 + $0x10] sm:$0xf]
      %v3394 = vld [vmem:[%s3389 + $0x18] sm:$0xf]
      %v3395 = vld [vmem:[%s3389 + $0x1c] sm:$0xf]
      %v3396 = vld [vmem:[%s3389 + $0x24] sm:$0xf]
      %v3397 = vld [vmem:[%s3389 + $0x28] sm:$0xf]
      %v3398 = vld [vmem:[%s3389 + $0x30] sm:$0xf]
      %v3399 = vld [vmem:[%s3389 + $0x34] sm:$0xf]
      %v3400 = vld [vmem:[%s3389 + $0x3c] sm:$0xf]
      %v3401 = vld [vmem:[%s3389 + $0x40] sm:$0xf]
      %v3402 = vld [vmem:[%s3389 + $0x48] sm:$0xf]
      %v3403 = vld [vmem:[%s3389 + $0x4c] sm:$0xf]
      %v3404 = vld [vmem:[%s3389 + $0x54] sm:$0xf]
      %v3405 = vld [vmem:[%s3389 + $0x58] sm:$0xf]
      %v3406 = vld [vmem:[%s3389 + $0x60] sm:$0xf]
      %v3407 = vld [vmem:[%s3389 + $0x64] sm:$0xf]
      %v3408 = vld [vmem:[%s3389 + $0x6c] sm:$0xf]
      %v3409 = vld [vmem:[%s3389 + $0x70] sm:$0xf]
      %v3410 = vld [vmem:[%s3389 + $0x78] sm:$0xf]
      %v3411 = vld [vmem:[%s3389 + $0x7c] sm:$0xf]
      %v3412 = vld [vmem:[%s3389 + $0x84] sm:$0xf]
      %v3413 = vld [vmem:[%s3389 + $0x88] sm:$0xf]
      %v3414 = vld [vmem:[%s3389 + $0x90] sm:$0xf]
      %v3415 = vld [vmem:[%s3389 + $0x94] sm:$0xf]
      %v3416 = vld [vmem:[%s3389 + $0x9c] sm:$0xf]
      %v3417 = vld [vmem:[%s3389 + $0xa0] sm:$0xf]
      %v3418 = vld [vmem:[%s3389 + $0xa8] sm:$0xf]
      %v3419 = vld [vmem:[%s3389 + $0xac] sm:$0xf]
      %v3420 = vld [vmem:[%s3389 + $0xb4] sm:$0xf]
      %v3421 = vld [vmem:[%s3389 + $0xb8] sm:$0xf]
      %s3422 = scalar_lea.vmem %s1, 384
      %v3423 = vld [vmem:[%s3422] sm:$0xf]
      %v3424 = vld [vmem:[%s3422 + $0x4] sm:$0xf]
      %v3425 = vld [vmem:[%s3422 + $0x8] sm:$0xf]
      %v3426 = vld [vmem:[%s3422 + $0xc] sm:$0xf]
      %v3427 = vld [vmem:[%s3422 + $0x10] sm:$0xf]
      %v3428 = vld [vmem:[%s3422 + $0x14] sm:$0xf]
      %v3429 = vld [vmem:[%s3422 + $0x18] sm:$0xf]
      %v3430 = vld [vmem:[%s3422 + $0x1c] sm:$0xf]
      %v3431 = vld [vmem:[%s3422 + $0x20] sm:$0xf]
      %v3432 = vld [vmem:[%s3422 + $0x24] sm:$0xf]
      %v3433 = vld [vmem:[%s3422 + $0x28] sm:$0xf]
      %v3434 = vld [vmem:[%s3422 + $0x2c] sm:$0xf]
      %v3435 = vld [vmem:[%s3422 + $0x30] sm:$0xf]
      %v3436 = vld [vmem:[%s3422 + $0x34] sm:$0xf]
      %v3437 = vld [vmem:[%s3422 + $0x38] sm:$0xf]
      %v3438 = vld [vmem:[%s3422 + $0x3c] sm:$0xf]
      %v3471 = vunpack.c.l.b16 %v3390
      %v3472 = vunpack.c.l.b16 %v3391
      %v3473 = vunpack.c.l.b16 %v3392
      %v3474 = vunpack.c.l.b16 %v3393
      %v3475 = vunpack.c.l.b16 %v3394
      %v3476 = vunpack.c.l.b16 %v3395
      %v3477 = vunpack.c.l.b16 %v3396
      %v3478 = vunpack.c.l.b16 %v3397
      %v3479 = vunpack.c.l.b16 %v3398
      %v3480 = vunpack.c.l.b16 %v3399
      %v3481 = vunpack.c.l.b16 %v3400
      %v3482 = vunpack.c.l.b16 %v3401
      %v3483 = vunpack.c.l.b16 %v3402
      %v3484 = vunpack.c.l.b16 %v3403
      %v3485 = vunpack.c.l.b16 %v3404
      %v3486 = vunpack.c.l.b16 %v3405
      %v3487 = vunpack.c.l.b16 %v3406
      %v3488 = vunpack.c.l.b16 %v3407
      %v3489 = vunpack.c.l.b16 %v3408
      %v3490 = vunpack.c.l.b16 %v3409
      %v3491 = vunpack.c.l.b16 %v3410
      %v3492 = vunpack.c.l.b16 %v3411
      %v3493 = vunpack.c.l.b16 %v3412
      %v3494 = vunpack.c.l.b16 %v3413
      %v3495 = vunpack.c.l.b16 %v3414
      %v3496 = vunpack.c.l.b16 %v3415
      %v3497 = vunpack.c.l.b16 %v3416
      %v3498 = vunpack.c.l.b16 %v3417
      %v3499 = vunpack.c.l.b16 %v3418
      %v3500 = vunpack.c.l.b16 %v3419
      %v3501 = vunpack.c.l.b16 %v3420
      %v3502 = vunpack.c.l.b16 %v3421
      %v3503 = vpack.c.b16 %v3472, %v3471
      %v3504 = vpack.c.b16 %v3474, %v3473
      %v3505 = vpack.c.b16 %v3476, %v3475
      %v3506 = vpack.c.b16 %v3478, %v3477
      %v3507 = vpack.c.b16 %v3480, %v3479
      %v3508 = vpack.c.b16 %v3482, %v3481
      %v3509 = vpack.c.b16 %v3484, %v3483
      %v3510 = vpack.c.b16 %v3486, %v3485
      %v3511 = vpack.c.b16 %v3488, %v3487
      %v3512 = vpack.c.b16 %v3490, %v3489
      %v3513 = vpack.c.b16 %v3492, %v3491
      %v3514 = vpack.c.b16 %v3494, %v3493
      %v3515 = vpack.c.b16 %v3496, %v3495
      %v3516 = vpack.c.b16 %v3498, %v3497
      %v3517 = vpack.c.b16 %v3500, %v3499
      %v3518 = vpack.c.b16 %v3502, %v3501
      %v3551 = vunpack.c.l.b16 %v3423
      %v3552 = vunpack.c.l.b16 %v3424
      %v3553 = vunpack.c.l.b16 %v3425
      %v3554 = vunpack.c.l.b16 %v3426
      %v3555 = vunpack.c.l.b16 %v3427
      %v3556 = vunpack.c.l.b16 %v3428
      %v3557 = vunpack.c.l.b16 %v3429
      %v3558 = vunpack.c.l.b16 %v3430
      %v3559 = vunpack.c.l.b16 %v3431
      %v3560 = vunpack.c.l.b16 %v3432
      %v3561 = vunpack.c.l.b16 %v3433
      %v3562 = vunpack.c.l.b16 %v3434
      %v3563 = vunpack.c.l.b16 %v3435
      %v3564 = vunpack.c.l.b16 %v3436
      %v3565 = vunpack.c.l.b16 %v3437
      %v3566 = vunpack.c.l.b16 %v3438
      %v3567 = vpack.c.b16 %v3552, %v3551
      %v3568 = vpack.c.b16 %v3554, %v3553
      %v3569 = vpack.c.b16 %v3556, %v3555
      %v3570 = vpack.c.b16 %v3558, %v3557
      %v3571 = vpack.c.b16 %v3560, %v3559
      %v3572 = vpack.c.b16 %v3562, %v3561
      %v3573 = vpack.c.b16 %v3564, %v3563
      %v3574 = vpack.c.b16 %v3566, %v3565
      %3583 = vmatprep.subr.bf16.mxu0 0
      %3584 = vmatpush1.bf16.msra.mxu0 %v3567
      %3585 = vmatprep.subr.bf16.mxu0 0
      %3586 = vmatpush1.bf16.msra.mxu0 %v3568
      %3587 = vmatprep.subr.bf16.mxu0 0
      %3588 = vmatpush1.bf16.msra.mxu0 %v3569
      %3589 = vmatprep.subr.bf16.mxu0 0
      %3590 = vmatpush1.bf16.msra.mxu0 %v3570
      %3591 = vmatprep.subr.bf16.mxu0 0
      %3592 = vmatpush1.bf16.msra.mxu0 %v3571
      %3593 = vmatprep.subr.bf16.mxu0 0
      %3594 = vmatpush1.bf16.msra.mxu0 %v3572
      %3595 = vmatprep.subr.bf16.mxu0 0
      %3596 = vmatpush1.bf16.msra.mxu0 %v3573
      %3597 = vmatprep.subr.bf16.mxu0 0
      %3598 = vmatpush1.bf16.msra.mxu0 %v3574
      %3599 = vmatprep.subr.bf16.mxu0 0
      %3600 = vmatpush1.bf16.msra.mxu0 0
      %3601 = vmatprep.subr.bf16.mxu0 0
      %3602 = vmatpush1.bf16.msra.mxu0 0
      %3603 = vmatprep.subr.bf16.mxu0 0
      %3604 = vmatpush1.bf16.msra.mxu0 0
      %3605 = vmatprep.subr.bf16.mxu0 0
      %3606 = vmatpush1.bf16.msra.mxu0 0
      %3607 = vmatprep.subr.bf16.mxu0 0
      %3608 = vmatpush1.bf16.msra.mxu0 0
      %3609 = vmatprep.subr.bf16.mxu0 0
      %3610 = vmatpush1.bf16.msra.mxu0 0
      %3611 = vmatprep.subr.bf16.mxu0 0
      %3612 = vmatpush1.bf16.msra.mxu0 0
      %3613 = vmatprep.subr.bf16.mxu0 0
      %3614 = vmatpush1.bf16.msra.mxu0 0
      %3615 = vmatprep.mubr.bf16.mxu0 0
      %3616 = vmatmul.mubr.bf16.gmra.mrb[0].mxu0 %v3503
      %v3617 = vpop.f32.mrb[0].mxu0
      %v3618 = vadd.f32 0.0, %v3617
      %v3619 = vpop.f32.mrb[0].mxu0
      %v3620 = vpop.f32.mrb[0].mxu0
      %v3621 = vadd.f32 0.0, %v3620
      %v3622 = vpop.f32.mrb[0].mxu0
      %3623 = vmatprep.mubr.bf16.mxu0 0
      %3624 = vmatmul.mubr.bf16.gmra.mrb[0].mxu0 %v3504
      %v3625 = vpop.f32.mrb[0].mxu0
      %v3626 = vadd.f32 0.0, %v3625
      %v3627 = vpop.f32.mrb[0].mxu0
      %v3628 = vpop.f32.mrb[0].mxu0
      %v3629 = vadd.f32 0.0, %v3628
      %v3630 = vpop.f32.mrb[0].mxu0
      %3631 = vmatprep.mubr.bf16.mxu0 0
      %3632 = vmatmul.mubr.bf16.gmra.mrb[0].mxu0 %v3505
      %v3633 = vpop.f32.mrb[0].mxu0
      %v3634 = vadd.f32 0.0, %v3633
      %v3635 = vpop.f32.mrb[0].mxu0
      %v3636 = vpop.f32.mrb[0].mxu0
      %v3637 = vadd.f32 0.0, %v3636
      %v3638 = vpop.f32.mrb[0].mxu0
      %3639 = vmatprep.mubr.bf16.mxu0 0
      %3640 = vmatmul.mubr.bf16.gmra.mrb[0].mxu0 %v3506
      %v3641 = vpop.f32.mrb[0].mxu0
      %v3642 = vadd.f32 0.0, %v3641
      %v3643 = vpop.f32.mrb[0].mxu0
      %v3644 = vpop.f32.mrb[0].mxu0
      %v3645 = vadd.f32 0.0, %v3644
      %v3646 = vpop.f32.mrb[0].mxu0
      %3647 = vmatprep.mubr.bf16.mxu0 0
      %3648 = vmatmul.mubr.bf16.gmra.mrb[0].mxu0 %v3507
      %v3649 = vpop.f32.mrb[0].mxu0
      %v3650 = vadd.f32 0.0, %v3649
      %v3651 = vpop.f32.mrb[0].mxu0
      %v3652 = vpop.f32.mrb[0].mxu0
      %v3653 = vadd.f32 0.0, %v3652
      %v3654 = vpop.f32.mrb[0].mxu0
      %3655 = vmatprep.mubr.bf16.mxu0 0
      %3656 = vmatmul.mubr.bf16.gmra.mrb[0].mxu0 %v3508
      %v3657 = vpop.f32.mrb[0].mxu0
      %v3658 = vadd.f32 0.0, %v3657
      %v3659 = vpop.f32.mrb[0].mxu0
      %v3660 = vpop.f32.mrb[0].mxu0
      %v3661 = vadd.f32 0.0, %v3660
      %v3662 = vpop.f32.mrb[0].mxu0
      %3663 = vmatprep.mubr.bf16.mxu0 0
      %3664 = vmatmul.mubr.bf16.gmra.mrb[0].mxu0 %v3509
      %v3665 = vpop.f32.mrb[0].mxu0
      %v3666 = vadd.f32 0.0, %v3665
      %v3667 = vpop.f32.mrb[0].mxu0
      %v3668 = vpop.f32.mrb[0].mxu0
      %v3669 = vadd.f32 0.0, %v3668
      %v3670 = vpop.f32.mrb[0].mxu0
      %3671 = vmatprep.mubr.bf16.mxu0 0
      %3672 = vmatmul.mubr.bf16.gmra.mrb[0].mxu0 %v3510
      %v3673 = vpop.f32.mrb[0].mxu0
      %v3674 = vadd.f32 0.0, %v3673
      %v3675 = vpop.f32.mrb[0].mxu0
      %v3676 = vpop.f32.mrb[0].mxu0
      %v3677 = vadd.f32 0.0, %v3676
      %v3678 = vpop.f32.mrb[0].mxu0
      %3679 = vmatprep.mubr.bf16.mxu0 0
      %3680 = vmatmul.mubr.bf16.gmra.mrb[0].mxu0 %v3511
      %v3681 = vpop.f32.mrb[0].mxu0
      %v3682 = vadd.f32 0.0, %v3681
      %v3683 = vpop.f32.mrb[0].mxu0
      %v3684 = vpop.f32.mrb[0].mxu0
      %v3685 = vadd.f32 0.0, %v3684
      %v3686 = vpop.f32.mrb[0].mxu0
      %3687 = vmatprep.mubr.bf16.mxu0 0
      %3688 = vmatmul.mubr.bf16.gmra.mrb[0].mxu0 %v3512
      %v3689 = vpop.f32.mrb[0].mxu0
      %v3690 = vadd.f32 0.0, %v3689
      %v3691 = vpop.f32.mrb[0].mxu0
      %v3692 = vpop.f32.mrb[0].mxu0
      %v3693 = vadd.f32 0.0, %v3692
      %v3694 = vpop.f32.mrb[0].mxu0
      %3695 = vmatprep.mubr.bf16.mxu0 0
      %3696 = vmatmul.mubr.bf16.gmra.mrb[0].mxu0 %v3513
      %v3697 = vpop.f32.mrb[0].mxu0
      %v3698 = vadd.f32 0.0, %v3697
      %v3699 = vpop.f32.mrb[0].mxu0
      %v3700 = vpop.f32.mrb[0].mxu0
      %v3701 = vadd.f32 0.0, %v3700
      %v3702 = vpop.f32.mrb[0].mxu0
      %3703 = vmatprep.mubr.bf16.mxu0 0
      %3704 = vmatmul.mubr.bf16.gmra.mrb[0].mxu0 %v3514
      %v3705 = vpop.f32.mrb[0].mxu0
      %v3706 = vadd.f32 0.0, %v3705
      %v3707 = vpop.f32.mrb[0].mxu0
      %v3708 = vpop.f32.mrb[0].mxu0
      %v3709 = vadd.f32 0.0, %v3708
      %v3710 = vpop.f32.mrb[0].mxu0
      %3711 = vmatprep.mubr.bf16.mxu0 0
      %3712 = vmatmul.mubr.bf16.gmra.mrb[0].mxu0 %v3515
      %v3713 = vpop.f32.mrb[0].mxu0
      %v3714 = vadd.f32 0.0, %v3713
      %v3715 = vpop.f32.mrb[0].mxu0
      %v3716 = vpop.f32.mrb[0].mxu0
      %v3717 = vadd.f32 0.0, %v3716
      %v3718 = vpop.f32.mrb[0].mxu0
      %3719 = vmatprep.mubr.bf16.mxu0 0
      %3720 = vmatmul.mubr.bf16.gmra.mrb[0].mxu0 %v3516
      %v3721 = vpop.f32.mrb[0].mxu0
      %v3722 = vadd.f32 0.0, %v3721
      %v3723 = vpop.f32.mrb[0].mxu0
      %v3724 = vpop.f32.mrb[0].mxu0
      %v3725 = vadd.f32 0.0, %v3724
      %v3726 = vpop.f32.mrb[0].mxu0
      %3727 = vmatprep.mubr.bf16.mxu0 0
      %3728 = vmatmul.mubr.bf16.gmra.mrb[0].mxu0 %v3517
      %v3729 = vpop.f32.mrb[0].mxu0
      %v3730 = vadd.f32 0.0, %v3729
      %v3731 = vpop.f32.mrb[0].mxu0
      %v3732 = vpop.f32.mrb[0].mxu0
      %v3733 = vadd.f32 0.0, %v3732
      %v3734 = vpop.f32.mrb[0].mxu0
      %3735 = vmatprep.mubr.bf16.mxu0 0
      %3736 = vmatmul.mubr.bf16.gmra.mrb[0].mxu0 %v3518
      %v3737 = vpop.f32.mrb[0].mxu0
      %v3738 = vadd.f32 0.0, %v3737
      %v3739 = vpop.f32.mrb[0].mxu0
      %v3740 = vpop.f32.mrb[0].mxu0
      %v3741 = vadd.f32 0.0, %v3740
      %v3742 = vpop.f32.mrb[0].mxu0
      %3743 = vdwg.mxu0
      %v3744 = vadd.f32 %v3357, %v3618
      %v3745 = vadd.f32 %v3358, %v3621
      %v3746 = vadd.f32 %v3359, %v3626
      %v3747 = vadd.f32 %v3360, %v3629
      %v3748 = vadd.f32 %v3361, %v3634
      %v3749 = vadd.f32 %v3362, %v3637
      %v3750 = vadd.f32 %v3363, %v3642
      %v3751 = vadd.f32 %v3364, %v3645
      %v3752 = vadd.f32 %v3365, %v3650
      %v3753 = vadd.f32 %v3366, %v3653
      %v3754 = vadd.f32 %v3367, %v3658
      %v3755 = vadd.f32 %v3368, %v3661
      %v3756 = vadd.f32 %v3369, %v3666
      %v3757 = vadd.f32 %v3370, %v3669
      %v3758 = vadd.f32 %v3371, %v3674
      %v3759 = vadd.f32 %v3372, %v3677
      %v3760 = vadd.f32 %v3373, %v3682
      %v3761 = vadd.f32 %v3374, %v3685
      %v3762 = vadd.f32 %v3375, %v3690
      %v3763 = vadd.f32 %v3376, %v3693
      %v3764 = vadd.f32 %v3377, %v3698
      %v3765 = vadd.f32 %v3378, %v3701
      %v3766 = vadd.f32 %v3379, %v3706
      %v3767 = vadd.f32 %v3380, %v3709
      %v3768 = vadd.f32 %v3381, %v3714
      %v3769 = vadd.f32 %v3382, %v3717
      %v3770 = vadd.f32 %v3383, %v3722
      %v3771 = vadd.f32 %v3384, %v3725
      %v3772 = vadd.f32 %v3385, %v3730
      %v3773 = vadd.f32 %v3386, %v3733
      %v3774 = vadd.f32 %v3387, %v3738
      %v3775 = vadd.f32 %v3388, %v3741
      %v3776 = vld [vmem:[%s3389] sm:$0xf]
      %v3777 = vld [vmem:[%s3389 + $0x4] sm:$0xf]
      %v3778 = vld [vmem:[%s3389 + $0x8] sm:$0x1]
      %v3779 = vld [vmem:[%s3389 + $0xc] sm:$0xf]
      %v3780 = vld [vmem:[%s3389 + $0x10] sm:$0xf]
      %v3781 = vld [vmem:[%s3389 + $0x14] sm:$0x1]
      %v3782 = vld [vmem:[%s3389 + $0x18] sm:$0xf]
      %v3783 = vld [vmem:[%s3389 + $0x1c] sm:$0xf]
      %v3784 = vld [vmem:[%s3389 + $0x20] sm:$0x1]
      %v3785 = vld [vmem:[%s3389 + $0x24] sm:$0xf]
      %v3786 = vld [vmem:[%s3389 + $0x28] sm:$0xf]
      %v3787 = vld [vmem:[%s3389 + $0x2c] sm:$0x1]
      %v3788 = vld [vmem:[%s3389 + $0x30] sm:$0xf]
      %v3789 = vld [vmem:[%s3389 + $0x34] sm:$0xf]
      %v3790 = vld [vmem:[%s3389 + $0x38] sm:$0x1]
      %v3791 = vld [vmem:[%s3389 + $0x3c] sm:$0xf]
      %v3792 = vld [vmem:[%s3389 + $0x40] sm:$0xf]
      %v3793 = vld [vmem:[%s3389 + $0x44] sm:$0x1]
      %v3794 = vld [vmem:[%s3389 + $0x48] sm:$0xf]
      %v3795 = vld [vmem:[%s3389 + $0x4c] sm:$0xf]
      %v3796 = vld [vmem:[%s3389 + $0x50] sm:$0x1]
      %v3797 = vld [vmem:[%s3389 + $0x54] sm:$0xf]
      %v3798 = vld [vmem:[%s3389 + $0x58] sm:$0xf]
      %v3799 = vld [vmem:[%s3389 + $0x5c] sm:$0x1]
      %v3800 = vld [vmem:[%s3389 + $0x60] sm:$0xf]
      %v3801 = vld [vmem:[%s3389 + $0x64] sm:$0xf]
      %v3802 = vld [vmem:[%s3389 + $0x68] sm:$0x1]
      %v3803 = vld [vmem:[%s3389 + $0x6c] sm:$0xf]
      %v3804 = vld [vmem:[%s3389 + $0x70] sm:$0xf]
      %v3805 = vld [vmem:[%s3389 + $0x74] sm:$0x1]
      %v3806 = vld [vmem:[%s3389 + $0x78] sm:$0xf]
      %v3807 = vld [vmem:[%s3389 + $0x7c] sm:$0xf]
      %v3808 = vld [vmem:[%s3389 + $0x80] sm:$0x1]
      %v3809 = vld [vmem:[%s3389 + $0x84] sm:$0xf]
      %v3810 = vld [vmem:[%s3389 + $0x88] sm:$0xf]
      %v3811 = vld [vmem:[%s3389 + $0x8c] sm:$0x1]
      %v3812 = vld [vmem:[%s3389 + $0x90] sm:$0xf]
      %v3813 = vld [vmem:[%s3389 + $0x94] sm:$0xf]
      %v3814 = vld [vmem:[%s3389 + $0x98] sm:$0x1]
      %v3815 = vld [vmem:[%s3389 + $0x9c] sm:$0xf]
      %v3816 = vld [vmem:[%s3389 + $0xa0] sm:$0xf]
      %v3817 = vld [vmem:[%s3389 + $0xa4] sm:$0x1]
      %v3818 = vld [vmem:[%s3389 + $0xa8] sm:$0xf]
      %v3819 = vld [vmem:[%s3389 + $0xac] sm:$0xf]
      %v3820 = vld [vmem:[%s3389 + $0xb0] sm:$0x1]
      %v3821 = vld [vmem:[%s3389 + $0xb4] sm:$0xf]
      %v3822 = vld [vmem:[%s3389 + $0xb8] sm:$0xf]
      %v3823 = vld [vmem:[%s3389 + $0xbc] sm:$0x1]
      %v3825 = vshrl.u32 %v3776, 16
      %v3827 = vrot.slane %v3825, 4
      %v3828 = vshll.u32 %v3776, 16
      %v3830 = vrot.slane %v3828, 5
      %v3831 = vor.u32 %v3827, %v3830
      %v3832 = vrot.slane %v3831, 4
      %v3834 = vshll.u32 %v3777, 16
      %v3836 = vrot.slane %v3834, 5
      %v3837 = vsel %vm285, %v3832, %v3836
      %v3838 = vshrl.u32 %v3777, 16
      %v3840 = vrot.slane %v3838, 4
      %v3841 = vor.u32 %v3840, %v3836
      %v3842 = vrot.slane %v3841, 4
      %v3844 = vshll.u32 %v3778, 16
      %v3846 = vrot.slane %v3844, 5
      %v3847 = vsel %vm285, %v3842, %v3846
      %v3849 = vshrl.u32 %v3779, 16
      %v3851 = vrot.slane %v3849, 4
      %v3852 = vshll.u32 %v3779, 16
      %v3854 = vrot.slane %v3852, 5
      %v3855 = vor.u32 %v3851, %v3854
      %v3856 = vrot.slane %v3855, 4
      %v3858 = vshll.u32 %v3780, 16
      %v3860 = vrot.slane %v3858, 5
      %v3861 = vsel %vm285, %v3856, %v3860
      %v3862 = vshrl.u32 %v3780, 16
      %v3864 = vrot.slane %v3862, 4
      %v3865 = vor.u32 %v3864, %v3860
      %v3866 = vrot.slane %v3865, 4
      %v3868 = vshll.u32 %v3781, 16
      %v3870 = vrot.slane %v3868, 5
      %v3871 = vsel %vm285, %v3866, %v3870
      %v3873 = vshrl.u32 %v3782, 16
      %v3875 = vrot.slane %v3873, 4
      %v3876 = vshll.u32 %v3782, 16
      %v3878 = vrot.slane %v3876, 5
      %v3879 = vor.u32 %v3875, %v3878
      %v3880 = vrot.slane %v3879, 4
      %v3882 = vshll.u32 %v3783, 16
      %v3884 = vrot.slane %v3882, 5
      %v3885 = vsel %vm285, %v3880, %v3884
      %v3886 = vshrl.u32 %v3783, 16
      %v3888 = vrot.slane %v3886, 4
      %v3889 = vor.u32 %v3888, %v3884
      %v3890 = vrot.slane %v3889, 4
      %v3892 = vshll.u32 %v3784, 16
      %v3894 = vrot.slane %v3892, 5
      %v3895 = vsel %vm285, %v3890, %v3894
      %v3897 = vshrl.u32 %v3785, 16
      %v3899 = vrot.slane %v3897, 4
      %v3900 = vshll.u32 %v3785, 16
      %v3902 = vrot.slane %v3900, 5
      %v3903 = vor.u32 %v3899, %v3902
      %v3904 = vrot.slane %v3903, 4
      %v3906 = vshll.u32 %v3786, 16
      %v3908 = vrot.slane %v3906, 5
      %v3909 = vsel %vm285, %v3904, %v3908
      %v3910 = vshrl.u32 %v3786, 16
      %v3912 = vrot.slane %v3910, 4
      %v3913 = vor.u32 %v3912, %v3908
      %v3914 = vrot.slane %v3913, 4
      %v3916 = vshll.u32 %v3787, 16
      %v3918 = vrot.slane %v3916, 5
      %v3919 = vsel %vm285, %v3914, %v3918
      %v3921 = vshrl.u32 %v3788, 16
      %v3923 = vrot.slane %v3921, 4
      %v3924 = vshll.u32 %v3788, 16
      %v3926 = vrot.slane %v3924, 5
      %v3927 = vor.u32 %v3923, %v3926
      %v3928 = vrot.slane %v3927, 4
      %v3930 = vshll.u32 %v3789, 16
      %v3932 = vrot.slane %v3930, 5
      %v3933 = vsel %vm285, %v3928, %v3932
      %v3934 = vshrl.u32 %v3789, 16
      %v3936 = vrot.slane %v3934, 4
      %v3937 = vor.u32 %v3936, %v3932
      %v3938 = vrot.slane %v3937, 4
      %v3940 = vshll.u32 %v3790, 16
      %v3942 = vrot.slane %v3940, 5
      %v3943 = vsel %vm285, %v3938, %v3942
      %v3945 = vshrl.u32 %v3791, 16
      %v3947 = vrot.slane %v3945, 4
      %v3948 = vshll.u32 %v3791, 16
      %v3950 = vrot.slane %v3948, 5
      %v3951 = vor.u32 %v3947, %v3950
      %v3952 = vrot.slane %v3951, 4
      %v3954 = vshll.u32 %v3792, 16
      %v3956 = vrot.slane %v3954, 5
      %v3957 = vsel %vm285, %v3952, %v3956
      %v3958 = vshrl.u32 %v3792, 16
      %v3960 = vrot.slane %v3958, 4
      %v3961 = vor.u32 %v3960, %v3956
      %v3962 = vrot.slane %v3961, 4
      %v3964 = vshll.u32 %v3793, 16
      %v3966 = vrot.slane %v3964, 5
      %v3967 = vsel %vm285, %v3962, %v3966
      %v3969 = vshrl.u32 %v3794, 16
      %v3971 = vrot.slane %v3969, 4
      %v3972 = vshll.u32 %v3794, 16
      %v3974 = vrot.slane %v3972, 5
      %v3975 = vor.u32 %v3971, %v3974
      %v3976 = vrot.slane %v3975, 4
      %v3978 = vshll.u32 %v3795, 16
      %v3980 = vrot.slane %v3978, 5
      %v3981 = vsel %vm285, %v3976, %v3980
      %v3982 = vshrl.u32 %v3795, 16
      %v3984 = vrot.slane %v3982, 4
      %v3985 = vor.u32 %v3984, %v3980
      %v3986 = vrot.slane %v3985, 4
      %v3988 = vshll.u32 %v3796, 16
      %v3990 = vrot.slane %v3988, 5
      %v3991 = vsel %vm285, %v3986, %v3990
      %v3993 = vshrl.u32 %v3797, 16
      %v3995 = vrot.slane %v3993, 4
      %v3996 = vshll.u32 %v3797, 16
      %v3998 = vrot.slane %v3996, 5
      %v3999 = vor.u32 %v3995, %v3998
      %v4000 = vrot.slane %v3999, 4
      %v4002 = vshll.u32 %v3798, 16
      %v4004 = vrot.slane %v4002, 5
      %v4005 = vsel %vm285, %v4000, %v4004
      %v4006 = vshrl.u32 %v3798, 16
      %v4008 = vrot.slane %v4006, 4
      %v4009 = vor.u32 %v4008, %v4004
      %v4010 = vrot.slane %v4009, 4
      %v4012 = vshll.u32 %v3799, 16
      %v4014 = vrot.slane %v4012, 5
      %v4015 = vsel %vm285, %v4010, %v4014
      %v4017 = vshrl.u32 %v3800, 16
      %v4019 = vrot.slane %v4017, 4
      %v4020 = vshll.u32 %v3800, 16
      %v4022 = vrot.slane %v4020, 5
      %v4023 = vor.u32 %v4019, %v4022
      %v4024 = vrot.slane %v4023, 4
      %v4026 = vshll.u32 %v3801, 16
      %v4028 = vrot.slane %v4026, 5
      %v4029 = vsel %vm285, %v4024, %v4028
      %v4030 = vshrl.u32 %v3801, 16
      %v4032 = vrot.slane %v4030, 4
      %v4033 = vor.u32 %v4032, %v4028
      %v4034 = vrot.slane %v4033, 4
      %v4036 = vshll.u32 %v3802, 16
      %v4038 = vrot.slane %v4036, 5
      %v4039 = vsel %vm285, %v4034, %v4038
      %v4041 = vshrl.u32 %v3803, 16
      %v4043 = vrot.slane %v4041, 4
      %v4044 = vshll.u32 %v3803, 16
      %v4046 = vrot.slane %v4044, 5
      %v4047 = vor.u32 %v4043, %v4046
      %v4048 = vrot.slane %v4047, 4
      %v4050 = vshll.u32 %v3804, 16
      %v4052 = vrot.slane %v4050, 5
      %v4053 = vsel %vm285, %v4048, %v4052
      %v4054 = vshrl.u32 %v3804, 16
      %v4056 = vrot.slane %v4054, 4
      %v4057 = vor.u32 %v4056, %v4052
      %v4058 = vrot.slane %v4057, 4
      %v4060 = vshll.u32 %v3805, 16
      %v4062 = vrot.slane %v4060, 5
      %v4063 = vsel %vm285, %v4058, %v4062
      %v4065 = vshrl.u32 %v3806, 16
      %v4067 = vrot.slane %v4065, 4
      %v4068 = vshll.u32 %v3806, 16
      %v4070 = vrot.slane %v4068, 5
      %v4071 = vor.u32 %v4067, %v4070
      %v4072 = vrot.slane %v4071, 4
      %v4074 = vshll.u32 %v3807, 16
      %v4076 = vrot.slane %v4074, 5
      %v4077 = vsel %vm285, %v4072, %v4076
      %v4078 = vshrl.u32 %v3807, 16
      %v4080 = vrot.slane %v4078, 4
      %v4081 = vor.u32 %v4080, %v4076
      %v4082 = vrot.slane %v4081, 4
      %v4084 = vshll.u32 %v3808, 16
      %v4086 = vrot.slane %v4084, 5
      %v4087 = vsel %vm285, %v4082, %v4086
      %v4089 = vshrl.u32 %v3809, 16
      %v4091 = vrot.slane %v4089, 4
      %v4092 = vshll.u32 %v3809, 16
      %v4094 = vrot.slane %v4092, 5
      %v4095 = vor.u32 %v4091, %v4094
      %v4096 = vrot.slane %v4095, 4
      %v4098 = vshll.u32 %v3810, 16
      %v4100 = vrot.slane %v4098, 5
      %v4101 = vsel %vm285, %v4096, %v4100
      %v4102 = vshrl.u32 %v3810, 16
      %v4104 = vrot.slane %v4102, 4
      %v4105 = vor.u32 %v4104, %v4100
      %v4106 = vrot.slane %v4105, 4
      %v4108 = vshll.u32 %v3811, 16
      %v4110 = vrot.slane %v4108, 5
      %v4111 = vsel %vm285, %v4106, %v4110
      %v4113 = vshrl.u32 %v3812, 16
      %v4115 = vrot.slane %v4113, 4
      %v4116 = vshll.u32 %v3812, 16
      %v4118 = vrot.slane %v4116, 5
      %v4119 = vor.u32 %v4115, %v4118
      %v4120 = vrot.slane %v4119, 4
      %v4122 = vshll.u32 %v3813, 16
      %v4124 = vrot.slane %v4122, 5
      %v4125 = vsel %vm285, %v4120, %v4124
      %v4126 = vshrl.u32 %v3813, 16
      %v4128 = vrot.slane %v4126, 4
      %v4129 = vor.u32 %v4128, %v4124
      %v4130 = vrot.slane %v4129, 4
      %v4132 = vshll.u32 %v3814, 16
      %v4134 = vrot.slane %v4132, 5
      %v4135 = vsel %vm285, %v4130, %v4134
      %v4137 = vshrl.u32 %v3815, 16
      %v4139 = vrot.slane %v4137, 4
      %v4140 = vshll.u32 %v3815, 16
      %v4142 = vrot.slane %v4140, 5
      %v4143 = vor.u32 %v4139, %v4142
      %v4144 = vrot.slane %v4143, 4
      %v4146 = vshll.u32 %v3816, 16
      %v4148 = vrot.slane %v4146, 5
      %v4149 = vsel %vm285, %v4144, %v4148
      %v4150 = vshrl.u32 %v3816, 16
      %v4152 = vrot.slane %v4150, 4
      %v4153 = vor.u32 %v4152, %v4148
      %v4154 = vrot.slane %v4153, 4
      %v4156 = vshll.u32 %v3817, 16
      %v4158 = vrot.slane %v4156, 5
      %v4159 = vsel %vm285, %v4154, %v4158
      %v4161 = vshrl.u32 %v3818, 16
      %v4163 = vrot.slane %v4161, 4
      %v4164 = vshll.u32 %v3818, 16
      %v4166 = vrot.slane %v4164, 5
      %v4167 = vor.u32 %v4163, %v4166
      %v4168 = vrot.slane %v4167, 4
      %v4170 = vshll.u32 %v3819, 16
      %v4172 = vrot.slane %v4170, 5
      %v4173 = vsel %vm285, %v4168, %v4172
      %v4174 = vshrl.u32 %v3819, 16
      %v4176 = vrot.slane %v4174, 4
      %v4177 = vor.u32 %v4176, %v4172
      %v4178 = vrot.slane %v4177, 4
      %v4180 = vshll.u32 %v3820, 16
      %v4182 = vrot.slane %v4180, 5
      %v4183 = vsel %vm285, %v4178, %v4182
      %v4185 = vshrl.u32 %v3821, 16
      %v4187 = vrot.slane %v4185, 4
      %v4188 = vshll.u32 %v3821, 16
      %v4190 = vrot.slane %v4188, 5
      %v4191 = vor.u32 %v4187, %v4190
      %v4192 = vrot.slane %v4191, 4
      %v4194 = vshll.u32 %v3822, 16
      %v4196 = vrot.slane %v4194, 5
      %v4197 = vsel %vm285, %v4192, %v4196
      %v4198 = vshrl.u32 %v3822, 16
      %v4200 = vrot.slane %v4198, 4
      %v4201 = vor.u32 %v4200, %v4196
      %v4202 = vrot.slane %v4201, 4
      %v4204 = vshll.u32 %v3823, 16
      %v4206 = vrot.slane %v4204, 5
      %v4207 = vsel %vm285, %v4202, %v4206
      %s4208 = scalar_lea.vmem %s1, 448
      %v4209 = vld [vmem:[%s4208] sm:$0xf]
      %v4210 = vld [vmem:[%s4208 + $0x4] sm:$0xf]
      %v4211 = vld [vmem:[%s4208 + $0x8] sm:$0xf]
      %v4212 = vld [vmem:[%s4208 + $0xc] sm:$0xf]
      %v4213 = vld [vmem:[%s4208 + $0x10] sm:$0xf]
      %v4214 = vld [vmem:[%s4208 + $0x14] sm:$0xf]
      %v4215 = vld [vmem:[%s4208 + $0x18] sm:$0xf]
      %v4216 = vld [vmem:[%s4208 + $0x1c] sm:$0xf]
      %v4217 = vld [vmem:[%s4208 + $0x20] sm:$0xf]
      %v4218 = vld [vmem:[%s4208 + $0x24] sm:$0xf]
      %v4219 = vld [vmem:[%s4208 + $0x28] sm:$0xf]
      %v4220 = vld [vmem:[%s4208 + $0x2c] sm:$0xf]
      %v4221 = vld [vmem:[%s4208 + $0x30] sm:$0xf]
      %v4222 = vld [vmem:[%s4208 + $0x34] sm:$0xf]
      %v4223 = vld [vmem:[%s4208 + $0x38] sm:$0xf]
      %v4224 = vld [vmem:[%s4208 + $0x3c] sm:$0xf]
      %v4225 = vunpack.c.l.b16 %v3837
      %v4226 = vunpack.c.l.b16 %v3847
      %v4227 = vunpack.c.l.b16 %v3861
      %v4228 = vunpack.c.l.b16 %v3871
      %v4229 = vunpack.c.l.b16 %v3885
      %v4230 = vunpack.c.l.b16 %v3895
      %v4231 = vunpack.c.l.b16 %v3909
      %v4232 = vunpack.c.l.b16 %v3919
      %v4233 = vunpack.c.l.b16 %v3933
      %v4234 = vunpack.c.l.b16 %v3943
      %v4235 = vunpack.c.l.b16 %v3957
      %v4236 = vunpack.c.l.b16 %v3967
      %v4237 = vunpack.c.l.b16 %v3981
      %v4238 = vunpack.c.l.b16 %v3991
      %v4239 = vunpack.c.l.b16 %v4005
      %v4240 = vunpack.c.l.b16 %v4015
      %v4241 = vunpack.c.l.b16 %v4029
      %v4242 = vunpack.c.l.b16 %v4039
      %v4243 = vunpack.c.l.b16 %v4053
      %v4244 = vunpack.c.l.b16 %v4063
      %v4245 = vunpack.c.l.b16 %v4077
      %v4246 = vunpack.c.l.b16 %v4087
      %v4247 = vunpack.c.l.b16 %v4101
      %v4248 = vunpack.c.l.b16 %v4111
      %v4249 = vunpack.c.l.b16 %v4125
      %v4250 = vunpack.c.l.b16 %v4135
      %v4251 = vunpack.c.l.b16 %v4149
      %v4252 = vunpack.c.l.b16 %v4159
      %v4253 = vunpack.c.l.b16 %v4173
      %v4254 = vunpack.c.l.b16 %v4183
      %v4255 = vunpack.c.l.b16 %v4197
      %v4256 = vunpack.c.l.b16 %v4207
      %v4257 = vpack.c.b16 %v4226, %v4225
      %v4258 = vpack.c.b16 %v4228, %v4227
      %v4259 = vpack.c.b16 %v4230, %v4229
      %v4260 = vpack.c.b16 %v4232, %v4231
      %v4261 = vpack.c.b16 %v4234, %v4233
      %v4262 = vpack.c.b16 %v4236, %v4235
      %v4263 = vpack.c.b16 %v4238, %v4237
      %v4264 = vpack.c.b16 %v4240, %v4239
      %v4265 = vpack.c.b16 %v4242, %v4241
      %v4266 = vpack.c.b16 %v4244, %v4243
      %v4267 = vpack.c.b16 %v4246, %v4245
      %v4268 = vpack.c.b16 %v4248, %v4247
      %v4269 = vpack.c.b16 %v4250, %v4249
      %v4270 = vpack.c.b16 %v4252, %v4251
      %v4271 = vpack.c.b16 %v4254, %v4253
      %v4272 = vpack.c.b16 %v4256, %v4255
      %v4305 = vunpack.c.l.b16 %v4209
      %v4306 = vunpack.c.l.b16 %v4210
      %v4307 = vunpack.c.l.b16 %v4211
      %v4308 = vunpack.c.l.b16 %v4212
      %v4309 = vunpack.c.l.b16 %v4213
      %v4310 = vunpack.c.l.b16 %v4214
      %v4311 = vunpack.c.l.b16 %v4215
      %v4312 = vunpack.c.l.b16 %v4216
      %v4313 = vunpack.c.l.b16 %v4217
      %v4314 = vunpack.c.l.b16 %v4218
      %v4315 = vunpack.c.l.b16 %v4219
      %v4316 = vunpack.c.l.b16 %v4220
      %v4317 = vunpack.c.l.b16 %v4221
      %v4318 = vunpack.c.l.b16 %v4222
      %v4319 = vunpack.c.l.b16 %v4223
      %v4320 = vunpack.c.l.b16 %v4224
      %v4321 = vpack.c.b16 %v4306, %v4305
      %v4322 = vpack.c.b16 %v4308, %v4307
      %v4323 = vpack.c.b16 %v4310, %v4309
      %v4324 = vpack.c.b16 %v4312, %v4311
      %v4325 = vpack.c.b16 %v4314, %v4313
      %v4326 = vpack.c.b16 %v4316, %v4315
      %v4327 = vpack.c.b16 %v4318, %v4317
      %v4328 = vpack.c.b16 %v4320, %v4319
      %4337 = vmatprep.subr.bf16.mxu0 0
      %4338 = vmatpush1.bf16.msra.mxu0 %v4321
      %4339 = vmatprep.subr.bf16.mxu0 0
      %4340 = vmatpush1.bf16.msra.mxu0 %v4322
      %4341 = vmatprep.subr.bf16.mxu0 0
      %4342 = vmatpush1.bf16.msra.mxu0 %v4323
      %4343 = vmatprep.subr.bf16.mxu0 0
      %4344 = vmatpush1.bf16.msra.mxu0 %v4324
      %4345 = vmatprep.subr.bf16.mxu0 0
      %4346 = vmatpush1.bf16.msra.mxu0 %v4325
      %4347 = vmatprep.subr.bf16.mxu0 0
      %4348 = vmatpush1.bf16.msra.mxu0 %v4326
      %4349 = vmatprep.subr.bf16.mxu0 0
      %4350 = vmatpush1.bf16.msra.mxu0 %v4327
      %4351 = vmatprep.subr.bf16.mxu0 0
      %4352 = vmatpush1.bf16.msra.mxu0 %v4328
      %4353 = vmatprep.subr.bf16.mxu0 0
      %4354 = vmatpush1.bf16.msra.mxu0 0
      %4355 = vmatprep.subr.bf16.mxu0 0
      %4356 = vmatpush1.bf16.msra.mxu0 0
      %4357 = vmatprep.subr.bf16.mxu0 0
      %4358 = vmatpush1.bf16.msra.mxu0 0
      %4359 = vmatprep.subr.bf16.mxu0 0
      %4360 = vmatpush1.bf16.msra.mxu0 0
      %4361 = vmatprep.subr.bf16.mxu0 0
      %4362 = vmatpush1.bf16.msra.mxu0 0
      %4363 = vmatprep.subr.bf16.mxu0 0
      %4364 = vmatpush1.bf16.msra.mxu0 0
      %4365 = vmatprep.subr.bf16.mxu0 0
      %4366 = vmatpush1.bf16.msra.mxu0 0
      %4367 = vmatprep.subr.bf16.mxu0 0
      %4368 = vmatpush1.bf16.msra.mxu0 0
      %4369 = vmatprep.mubr.bf16.mxu0 0
      %4370 = vmatmul.mubr.bf16.gmra.mrb[0].mxu0 %v4257
      %v4371 = vpop.f32.mrb[0].mxu0
      %v4372 = vadd.f32 0.0, %v4371
      %v4373 = vpop.f32.mrb[0].mxu0
      %v4374 = vpop.f32.mrb[0].mxu0
      %v4375 = vadd.f32 0.0, %v4374
      %v4376 = vpop.f32.mrb[0].mxu0
      %4377 = vmatprep.mubr.bf16.mxu0 0
      %4378 = vmatmul.mubr.bf16.gmra.mrb[0].mxu0 %v4258
      %v4379 = vpop.f32.mrb[0].mxu0
      %v4380 = vadd.f32 0.0, %v4379
      %v4381 = vpop.f32.mrb[0].mxu0
      %v4382 = vpop.f32.mrb[0].mxu0
      %v4383 = vadd.f32 0.0, %v4382
      %v4384 = vpop.f32.mrb[0].mxu0
      %4385 = vmatprep.mubr.bf16.mxu0 0
      %4386 = vmatmul.mubr.bf16.gmra.mrb[0].mxu0 %v4259
      %v4387 = vpop.f32.mrb[0].mxu0
      %v4388 = vadd.f32 0.0, %v4387
      %v4389 = vpop.f32.mrb[0].mxu0
      %v4390 = vpop.f32.mrb[0].mxu0
      %v4391 = vadd.f32 0.0, %v4390
      %v4392 = vpop.f32.mrb[0].mxu0
      %4393 = vmatprep.mubr.bf16.mxu0 0
      %4394 = vmatmul.mubr.bf16.gmra.mrb[0].mxu0 %v4260
      %v4395 = vpop.f32.mrb[0].mxu0
      %v4396 = vadd.f32 0.0, %v4395
      %v4397 = vpop.f32.mrb[0].mxu0
      %v4398 = vpop.f32.mrb[0].mxu0
      %v4399 = vadd.f32 0.0, %v4398
      %v4400 = vpop.f32.mrb[0].mxu0
      %4401 = vmatprep.mubr.bf16.mxu0 0
      %4402 = vmatmul.mubr.bf16.gmra.mrb[0].mxu0 %v4261
      %v4403 = vpop.f32.mrb[0].mxu0
      %v4404 = vadd.f32 0.0, %v4403
      %v4405 = vpop.f32.mrb[0].mxu0
      %v4406 = vpop.f32.mrb[0].mxu0
      %v4407 = vadd.f32 0.0, %v4406
      %v4408 = vpop.f32.mrb[0].mxu0
      %4409 = vmatprep.mubr.bf16.mxu0 0
      %4410 = vmatmul.mubr.bf16.gmra.mrb[0].mxu0 %v4262
      %v4411 = vpop.f32.mrb[0].mxu0
      %v4412 = vadd.f32 0.0, %v4411
      %v4413 = vpop.f32.mrb[0].mxu0
      %v4414 = vpop.f32.mrb[0].mxu0
      %v4415 = vadd.f32 0.0, %v4414
      %v4416 = vpop.f32.mrb[0].mxu0
      %4417 = vmatprep.mubr.bf16.mxu0 0
      %4418 = vmatmul.mubr.bf16.gmra.mrb[0].mxu0 %v4263
      %v4419 = vpop.f32.mrb[0].mxu0
      %v4420 = vadd.f32 0.0, %v4419
      %v4421 = vpop.f32.mrb[0].mxu0
      %v4422 = vpop.f32.mrb[0].mxu0
      %v4423 = vadd.f32 0.0, %v4422
      %v4424 = vpop.f32.mrb[0].mxu0
      %4425 = vmatprep.mubr.bf16.mxu0 0
      %4426 = vmatmul.mubr.bf16.gmra.mrb[0].mxu0 %v4264
      %v4427 = vpop.f32.mrb[0].mxu0
      %v4428 = vadd.f32 0.0, %v4427
      %v4429 = vpop.f32.mrb[0].mxu0
      %v4430 = vpop.f32.mrb[0].mxu0
      %v4431 = vadd.f32 0.0, %v4430
      %v4432 = vpop.f32.mrb[0].mxu0
      %4433 = vmatprep.mubr.bf16.mxu0 0
      %4434 = vmatmul.mubr.bf16.gmra.mrb[0].mxu0 %v4265
      %v4435 = vpop.f32.mrb[0].mxu0
      %v4436 = vadd.f32 0.0, %v4435
      %v4437 = vpop.f32.mrb[0].mxu0
      %v4438 = vpop.f32.mrb[0].mxu0
      %v4439 = vadd.f32 0.0, %v4438
      %v4440 = vpop.f32.mrb[0].mxu0
      %4441 = vmatprep.mubr.bf16.mxu0 0
      %4442 = vmatmul.mubr.bf16.gmra.mrb[0].mxu0 %v4266
      %v4443 = vpop.f32.mrb[0].mxu0
      %v4444 = vadd.f32 0.0, %v4443
      %v4445 = vpop.f32.mrb[0].mxu0
      %v4446 = vpop.f32.mrb[0].mxu0
      %v4447 = vadd.f32 0.0, %v4446
      %v4448 = vpop.f32.mrb[0].mxu0
      %4449 = vmatprep.mubr.bf16.mxu0 0
      %4450 = vmatmul.mubr.bf16.gmra.mrb[0].mxu0 %v4267
      %v4451 = vpop.f32.mrb[0].mxu0
      %v4452 = vadd.f32 0.0, %v4451
      %v4453 = vpop.f32.mrb[0].mxu0
      %v4454 = vpop.f32.mrb[0].mxu0
      %v4455 = vadd.f32 0.0, %v4454
      %v4456 = vpop.f32.mrb[0].mxu0
      %4457 = vmatprep.mubr.bf16.mxu0 0
      %4458 = vmatmul.mubr.bf16.gmra.mrb[0].mxu0 %v4268
      %v4459 = vpop.f32.mrb[0].mxu0
      %v4460 = vadd.f32 0.0, %v4459
      %v4461 = vpop.f32.mrb[0].mxu0
      %v4462 = vpop.f32.mrb[0].mxu0
      %v4463 = vadd.f32 0.0, %v4462
      %v4464 = vpop.f32.mrb[0].mxu0
      %4465 = vmatprep.mubr.bf16.mxu0 0
      %4466 = vmatmul.mubr.bf16.gmra.mrb[0].mxu0 %v4269
      %v4467 = vpop.f32.mrb[0].mxu0
      %v4468 = vadd.f32 0.0, %v4467
      %v4469 = vpop.f32.mrb[0].mxu0
      %v4470 = vpop.f32.mrb[0].mxu0
      %v4471 = vadd.f32 0.0, %v4470
      %v4472 = vpop.f32.mrb[0].mxu0
      %4473 = vmatprep.mubr.bf16.mxu0 0
      %4474 = vmatmul.mubr.bf16.gmra.mrb[0].mxu0 %v4270
      %v4475 = vpop.f32.mrb[0].mxu0
      %v4476 = vadd.f32 0.0, %v4475
      %v4477 = vpop.f32.mrb[0].mxu0
      %v4478 = vpop.f32.mrb[0].mxu0
      %v4479 = vadd.f32 0.0, %v4478
      %v4480 = vpop.f32.mrb[0].mxu0
      %4481 = vmatprep.mubr.bf16.mxu0 0
      %4482 = vmatmul.mubr.bf16.gmra.mrb[0].mxu0 %v4271
      %v4483 = vpop.f32.mrb[0].mxu0
      %v4484 = vadd.f32 0.0, %v4483
      %v4485 = vpop.f32.mrb[0].mxu0
      %v4486 = vpop.f32.mrb[0].mxu0
      %v4487 = vadd.f32 0.0, %v4486
      %v4488 = vpop.f32.mrb[0].mxu0
      %4489 = vmatprep.mubr.bf16.mxu0 0
      %4490 = vmatmul.mubr.bf16.gmra.mrb[0].mxu0 %v4272
      %v4491 = vpop.f32.mrb[0].mxu0
      %v4492 = vadd.f32 0.0, %v4491
      %v4493 = vpop.f32.mrb[0].mxu0
      %v4494 = vpop.f32.mrb[0].mxu0
      %v4495 = vadd.f32 0.0, %v4494
      %v4496 = vpop.f32.mrb[0].mxu0
      %4497 = vdwg.mxu0
      %v4498 = vadd.f32 %v3744, %v4372
      %v4499 = vadd.f32 %v3745, %v4375
      %v4500 = vadd.f32 %v3746, %v4380
      %v4501 = vadd.f32 %v3747, %v4383
      %v4502 = vadd.f32 %v3748, %v4388
      %v4503 = vadd.f32 %v3749, %v4391
      %v4504 = vadd.f32 %v3750, %v4396
      %v4505 = vadd.f32 %v3751, %v4399
      %v4506 = vadd.f32 %v3752, %v4404
      %v4507 = vadd.f32 %v3753, %v4407
      %v4508 = vadd.f32 %v3754, %v4412
      %v4509 = vadd.f32 %v3755, %v4415
      %v4510 = vadd.f32 %v3756, %v4420
      %v4511 = vadd.f32 %v3757, %v4423
      %v4512 = vadd.f32 %v3758, %v4428
      %v4513 = vadd.f32 %v3759, %v4431
      %v4514 = vadd.f32 %v3760, %v4436
      %v4515 = vadd.f32 %v3761, %v4439
      %v4516 = vadd.f32 %v3762, %v4444
      %v4517 = vadd.f32 %v3763, %v4447
      %v4518 = vadd.f32 %v3764, %v4452
      %v4519 = vadd.f32 %v3765, %v4455
      %v4520 = vadd.f32 %v3766, %v4460
      %v4521 = vadd.f32 %v3767, %v4463
      %v4522 = vadd.f32 %v3768, %v4468
      %v4523 = vadd.f32 %v3769, %v4471
      %v4524 = vadd.f32 %v3770, %v4476
      %v4525 = vadd.f32 %v3771, %v4479
      %v4526 = vadd.f32 %v3772, %v4484
      %v4527 = vadd.f32 %v3773, %v4487
      %v4528 = vadd.f32 %v3774, %v4492
      %v4529 = vadd.f32 %v3775, %v4495
      %v4530 = vld [vmem:[%s3389] sm:$0xe]
      %v4531 = vld [vmem:[%s3389 + $0xc] sm:$0xe]
      %v4532 = vld [vmem:[%s3389 + $0x18] sm:$0xe]
      %v4533 = vld [vmem:[%s3389 + $0x24] sm:$0xe]
      %v4534 = vld [vmem:[%s3389 + $0x30] sm:$0xe]
      %v4535 = vld [vmem:[%s3389 + $0x3c] sm:$0xe]
      %v4536 = vld [vmem:[%s3389 + $0x48] sm:$0xe]
      %v4537 = vld [vmem:[%s3389 + $0x54] sm:$0xe]
      %v4538 = vld [vmem:[%s3389 + $0x60] sm:$0xe]
      %v4539 = vld [vmem:[%s3389 + $0x6c] sm:$0xe]
      %v4540 = vld [vmem:[%s3389 + $0x78] sm:$0xe]
      %v4541 = vld [vmem:[%s3389 + $0x84] sm:$0xe]
      %v4542 = vld [vmem:[%s3389 + $0x90] sm:$0xe]
      %v4543 = vld [vmem:[%s3389 + $0x9c] sm:$0xe]
      %v4544 = vld [vmem:[%s3389 + $0xa8] sm:$0xe]
      %v4545 = vld [vmem:[%s3389 + $0xb4] sm:$0xe]
      %v4594 = vrot.slane %v4530, 5
      %v4595 = vrot.slane %v4594, 4
      %v4596 = vrot.slane %v3777, 5
      %v4597 = vsel %vm1315, %v4595, %v4596
      %v4598 = vrot.slane %v4596, 4
      %v4599 = vrot.slane %v3778, 5
      %v4600 = vsel %vm1315, %v4598, %v4599
      %v4601 = vrot.slane %v4531, 5
      %v4602 = vrot.slane %v4601, 4
      %v4603 = vrot.slane %v3780, 5
      %v4604 = vsel %vm1315, %v4602, %v4603
      %v4605 = vrot.slane %v4603, 4
      %v4606 = vrot.slane %v3781, 5
      %v4607 = vsel %vm1315, %v4605, %v4606
      %v4608 = vrot.slane %v4532, 5
      %v4609 = vrot.slane %v4608, 4
      %v4610 = vrot.slane %v3783, 5
      %v4611 = vsel %vm1315, %v4609, %v4610
      %v4612 = vrot.slane %v4610, 4
      %v4613 = vrot.slane %v3784, 5
      %v4614 = vsel %vm1315, %v4612, %v4613
      %v4615 = vrot.slane %v4533, 5
      %v4616 = vrot.slane %v4615, 4
      %v4617 = vrot.slane %v3786, 5
      %v4618 = vsel %vm1315, %v4616, %v4617
      %v4619 = vrot.slane %v4617, 4
      %v4620 = vrot.slane %v3787, 5
      %v4621 = vsel %vm1315, %v4619, %v4620
      %v4622 = vrot.slane %v4534, 5
      %v4623 = vrot.slane %v4622, 4
      %v4624 = vrot.slane %v3789, 5
      %v4625 = vsel %vm1315, %v4623, %v4624
      %v4626 = vrot.slane %v4624, 4
      %v4627 = vrot.slane %v3790, 5
      %v4628 = vsel %vm1315, %v4626, %v4627
      %v4629 = vrot.slane %v4535, 5
      %v4630 = vrot.slane %v4629, 4
      %v4631 = vrot.slane %v3792, 5
      %v4632 = vsel %vm1315, %v4630, %v4631
      %v4633 = vrot.slane %v4631, 4
      %v4634 = vrot.slane %v3793, 5
      %v4635 = vsel %vm1315, %v4633, %v4634
      %v4636 = vrot.slane %v4536, 5
      %v4637 = vrot.slane %v4636, 4
      %v4638 = vrot.slane %v3795, 5
      %v4639 = vsel %vm1315, %v4637, %v4638
      %v4640 = vrot.slane %v4638, 4
      %v4641 = vrot.slane %v3796, 5
      %v4642 = vsel %vm1315, %v4640, %v4641
      %v4643 = vrot.slane %v4537, 5
      %v4644 = vrot.slane %v4643, 4
      %v4645 = vrot.slane %v3798, 5
      %v4646 = vsel %vm1315, %v4644, %v4645
      %v4647 = vrot.slane %v4645, 4
      %v4648 = vrot.slane %v3799, 5
      %v4649 = vsel %vm1315, %v4647, %v4648
      %v4650 = vrot.slane %v4538, 5
      %v4651 = vrot.slane %v4650, 4
      %v4652 = vrot.slane %v3801, 5
      %v4653 = vsel %vm1315, %v4651, %v4652
      %v4654 = vrot.slane %v4652, 4
      %v4655 = vrot.slane %v3802, 5
      %v4656 = vsel %vm1315, %v4654, %v4655
      %v4657 = vrot.slane %v4539, 5
      %v4658 = vrot.slane %v4657, 4
      %v4659 = vrot.slane %v3804, 5
      %v4660 = vsel %vm1315, %v4658, %v4659
      %v4661 = vrot.slane %v4659, 4
      %v4662 = vrot.slane %v3805, 5
      %v4663 = vsel %vm1315, %v4661, %v4662
      %v4664 = vrot.slane %v4540, 5
      %v4665 = vrot.slane %v4664, 4
      %v4666 = vrot.slane %v3807, 5
      %v4667 = vsel %vm1315, %v4665, %v4666
      %v4668 = vrot.slane %v4666, 4
      %v4669 = vrot.slane %v3808, 5
      %v4670 = vsel %vm1315, %v4668, %v4669
      %v4671 = vrot.slane %v4541, 5
      %v4672 = vrot.slane %v4671, 4
      %v4673 = vrot.slane %v3810, 5
      %v4674 = vsel %vm1315, %v4672, %v4673
      %v4675 = vrot.slane %v4673, 4
      %v4676 = vrot.slane %v3811, 5
      %v4677 = vsel %vm1315, %v4675, %v4676
      %v4678 = vrot.slane %v4542, 5
      %v4679 = vrot.slane %v4678, 4
      %v4680 = vrot.slane %v3813, 5
      %v4681 = vsel %vm1315, %v4679, %v4680
      %v4682 = vrot.slane %v4680, 4
      %v4683 = vrot.slane %v3814, 5
      %v4684 = vsel %vm1315, %v4682, %v4683
      %v4685 = vrot.slane %v4543, 5
      %v4686 = vrot.slane %v4685, 4
      %v4687 = vrot.slane %v3816, 5
      %v4688 = vsel %vm1315, %v4686, %v4687
      %v4689 = vrot.slane %v4687, 4
      %v4690 = vrot.slane %v3817, 5
      %v4691 = vsel %vm1315, %v4689, %v4690
      %v4692 = vrot.slane %v4544, 5
      %v4693 = vrot.slane %v4692, 4
      %v4694 = vrot.slane %v3819, 5
      %v4695 = vsel %vm1315, %v4693, %v4694
      %v4696 = vrot.slane %v4694, 4
      %v4697 = vrot.slane %v3820, 5
      %v4698 = vsel %vm1315, %v4696, %v4697
      %v4699 = vrot.slane %v4545, 5
      %v4700 = vrot.slane %v4699, 4
      %v4701 = vrot.slane %v3822, 5
      %v4702 = vsel %vm1315, %v4700, %v4701
      %v4703 = vrot.slane %v4701, 4
      %v4704 = vrot.slane %v3823, 5
      %v4705 = vsel %vm1315, %v4703, %v4704
      %s4706 = scalar_lea.vmem %s1, 512
      %v4707 = vld [vmem:[%s4706] sm:$0xf]
      %v4708 = vld [vmem:[%s4706 + $0x4] sm:$0xf]
      %v4709 = vld [vmem:[%s4706 + $0x8] sm:$0xf]
      %v4710 = vld [vmem:[%s4706 + $0xc] sm:$0xf]
      %v4711 = vld [vmem:[%s4706 + $0x10] sm:$0xf]
      %v4712 = vld [vmem:[%s4706 + $0x14] sm:$0xf]
      %v4713 = vld [vmem:[%s4706 + $0x18] sm:$0xf]
      %v4714 = vld [vmem:[%s4706 + $0x1c] sm:$0xf]
      %v4715 = vld [vmem:[%s4706 + $0x20] sm:$0xf]
      %v4716 = vld [vmem:[%s4706 + $0x24] sm:$0xf]
      %v4717 = vld [vmem:[%s4706 + $0x28] sm:$0xf]
      %v4718 = vld [vmem:[%s4706 + $0x2c] sm:$0xf]
      %v4719 = vld [vmem:[%s4706 + $0x30] sm:$0xf]
      %v4720 = vld [vmem:[%s4706 + $0x34] sm:$0xf]
      %v4721 = vld [vmem:[%s4706 + $0x38] sm:$0xf]
      %v4722 = vld [vmem:[%s4706 + $0x3c] sm:$0xf]
      %v4723 = vunpack.c.l.b16 %v4597
      %v4724 = vunpack.c.l.b16 %v4600
      %v4725 = vunpack.c.l.b16 %v4604
      %v4726 = vunpack.c.l.b16 %v4607
      %v4727 = vunpack.c.l.b16 %v4611
      %v4728 = vunpack.c.l.b16 %v4614
      %v4729 = vunpack.c.l.b16 %v4618
      %v4730 = vunpack.c.l.b16 %v4621
      %v4731 = vunpack.c.l.b16 %v4625
      %v4732 = vunpack.c.l.b16 %v4628
      %v4733 = vunpack.c.l.b16 %v4632
      %v4734 = vunpack.c.l.b16 %v4635
      %v4735 = vunpack.c.l.b16 %v4639
      %v4736 = vunpack.c.l.b16 %v4642
      %v4737 = vunpack.c.l.b16 %v4646
      %v4738 = vunpack.c.l.b16 %v4649
      %v4739 = vunpack.c.l.b16 %v4653
      %v4740 = vunpack.c.l.b16 %v4656
      %v4741 = vunpack.c.l.b16 %v4660
      %v4742 = vunpack.c.l.b16 %v4663
      %v4743 = vunpack.c.l.b16 %v4667
      %v4744 = vunpack.c.l.b16 %v4670
      %v4745 = vunpack.c.l.b16 %v4674
      %v4746 = vunpack.c.l.b16 %v4677
      %v4747 = vunpack.c.l.b16 %v4681
      %v4748 = vunpack.c.l.b16 %v4684
      %v4749 = vunpack.c.l.b16 %v4688
      %v4750 = vunpack.c.l.b16 %v4691
      %v4751 = vunpack.c.l.b16 %v4695
      %v4752 = vunpack.c.l.b16 %v4698
      %v4753 = vunpack.c.l.b16 %v4702
      %v4754 = vunpack.c.l.b16 %v4705
      %v4755 = vpack.c.b16 %v4724, %v4723
      %v4756 = vpack.c.b16 %v4726, %v4725
      %v4757 = vpack.c.b16 %v4728, %v4727
      %v4758 = vpack.c.b16 %v4730, %v4729
      %v4759 = vpack.c.b16 %v4732, %v4731
      %v4760 = vpack.c.b16 %v4734, %v4733
      %v4761 = vpack.c.b16 %v4736, %v4735
      %v4762 = vpack.c.b16 %v4738, %v4737
      %v4763 = vpack.c.b16 %v4740, %v4739
      %v4764 = vpack.c.b16 %v4742, %v4741
      %v4765 = vpack.c.b16 %v4744, %v4743
      %v4766 = vpack.c.b16 %v4746, %v4745
      %v4767 = vpack.c.b16 %v4748, %v4747
      %v4768 = vpack.c.b16 %v4750, %v4749
      %v4769 = vpack.c.b16 %v4752, %v4751
      %v4770 = vpack.c.b16 %v4754, %v4753
      %v4803 = vunpack.c.l.b16 %v4707
      %v4804 = vunpack.c.l.b16 %v4708
      %v4805 = vunpack.c.l.b16 %v4709
      %v4806 = vunpack.c.l.b16 %v4710
      %v4807 = vunpack.c.l.b16 %v4711
      %v4808 = vunpack.c.l.b16 %v4712
      %v4809 = vunpack.c.l.b16 %v4713
      %v4810 = vunpack.c.l.b16 %v4714
      %v4811 = vunpack.c.l.b16 %v4715
      %v4812 = vunpack.c.l.b16 %v4716
      %v4813 = vunpack.c.l.b16 %v4717
      %v4814 = vunpack.c.l.b16 %v4718
      %v4815 = vunpack.c.l.b16 %v4719
      %v4816 = vunpack.c.l.b16 %v4720
      %v4817 = vunpack.c.l.b16 %v4721
      %v4818 = vunpack.c.l.b16 %v4722
      %v4819 = vpack.c.b16 %v4804, %v4803
      %v4820 = vpack.c.b16 %v4806, %v4805
      %v4821 = vpack.c.b16 %v4808, %v4807
      %v4822 = vpack.c.b16 %v4810, %v4809
      %v4823 = vpack.c.b16 %v4812, %v4811
      %v4824 = vpack.c.b16 %v4814, %v4813
      %v4825 = vpack.c.b16 %v4816, %v4815
      %v4826 = vpack.c.b16 %v4818, %v4817
      %4835 = vmatprep.subr.bf16.mxu0 0
      %4836 = vmatpush1.bf16.msra.mxu0 %v4819
      %4837 = vmatprep.subr.bf16.mxu0 0
      %4838 = vmatpush1.bf16.msra.mxu0 %v4820
      %4839 = vmatprep.subr.bf16.mxu0 0
      %4840 = vmatpush1.bf16.msra.mxu0 %v4821
      %4841 = vmatprep.subr.bf16.mxu0 0
      %4842 = vmatpush1.bf16.msra.mxu0 %v4822
      %4843 = vmatprep.subr.bf16.mxu0 0
      %4844 = vmatpush1.bf16.msra.mxu0 %v4823
      %4845 = vmatprep.subr.bf16.mxu0 0
      %4846 = vmatpush1.bf16.msra.mxu0 %v4824
      %4847 = vmatprep.subr.bf16.mxu0 0
      %4848 = vmatpush1.bf16.msra.mxu0 %v4825
      %4849 = vmatprep.subr.bf16.mxu0 0
      %4850 = vmatpush1.bf16.msra.mxu0 %v4826
      %4851 = vmatprep.subr.bf16.mxu0 0
      %4852 = vmatpush1.bf16.msra.mxu0 0
      %4853 = vmatprep.subr.bf16.mxu0 0
      %4854 = vmatpush1.bf16.msra.mxu0 0
      %4855 = vmatprep.subr.bf16.mxu0 0
      %4856 = vmatpush1.bf16.msra.mxu0 0
      %4857 = vmatprep.subr.bf16.mxu0 0
      %4858 = vmatpush1.bf16.msra.mxu0 0
      %4859 = vmatprep.subr.bf16.mxu0 0
      %4860 = vmatpush1.bf16.msra.mxu0 0
      %4861 = vmatprep.subr.bf16.mxu0 0
      %4862 = vmatpush1.bf16.msra.mxu0 0
      %4863 = vmatprep.subr.bf16.mxu0 0
      %4864 = vmatpush1.bf16.msra.mxu0 0
      %4865 = vmatprep.subr.bf16.mxu0 0
      %4866 = vmatpush1.bf16.msra.mxu0 0
      %4867 = vmatprep.mubr.bf16.mxu0 0
      %4868 = vmatmul.mubr.bf16.gmra.mrb[0].mxu0 %v4755
      %v4869 = vpop.f32.mrb[0].mxu0
      %v4870 = vadd.f32 0.0, %v4869
      %v4871 = vpop.f32.mrb[0].mxu0
      %v4872 = vpop.f32.mrb[0].mxu0
      %v4873 = vadd.f32 0.0, %v4872
      %v4874 = vpop.f32.mrb[0].mxu0
      %4875 = vmatprep.mubr.bf16.mxu0 0
      %4876 = vmatmul.mubr.bf16.gmra.mrb[0].mxu0 %v4756
      %v4877 = vpop.f32.mrb[0].mxu0
      %v4878 = vadd.f32 0.0, %v4877
      %v4879 = vpop.f32.mrb[0].mxu0
      %v4880 = vpop.f32.mrb[0].mxu0
      %v4881 = vadd.f32 0.0, %v4880
      %v4882 = vpop.f32.mrb[0].mxu0
      %4883 = vmatprep.mubr.bf16.mxu0 0
      %4884 = vmatmul.mubr.bf16.gmra.mrb[0].mxu0 %v4757
      %v4885 = vpop.f32.mrb[0].mxu0
      %v4886 = vadd.f32 0.0, %v4885
      %v4887 = vpop.f32.mrb[0].mxu0
      %v4888 = vpop.f32.mrb[0].mxu0
      %v4889 = vadd.f32 0.0, %v4888
      %v4890 = vpop.f32.mrb[0].mxu0
      %4891 = vmatprep.mubr.bf16.mxu0 0
      %4892 = vmatmul.mubr.bf16.gmra.mrb[0].mxu0 %v4758
      %v4893 = vpop.f32.mrb[0].mxu0
      %v4894 = vadd.f32 0.0, %v4893
      %v4895 = vpop.f32.mrb[0].mxu0
      %v4896 = vpop.f32.mrb[0].mxu0
      %v4897 = vadd.f32 0.0, %v4896
      %v4898 = vpop.f32.mrb[0].mxu0
      %4899 = vmatprep.mubr.bf16.mxu0 0
      %4900 = vmatmul.mubr.bf16.gmra.mrb[0].mxu0 %v4759
      %v4901 = vpop.f32.mrb[0].mxu0
      %v4902 = vadd.f32 0.0, %v4901
      %v4903 = vpop.f32.mrb[0].mxu0
      %v4904 = vpop.f32.mrb[0].mxu0
      %v4905 = vadd.f32 0.0, %v4904
      %v4906 = vpop.f32.mrb[0].mxu0
      %4907 = vmatprep.mubr.bf16.mxu0 0
      %4908 = vmatmul.mubr.bf16.gmra.mrb[0].mxu0 %v4760
      %v4909 = vpop.f32.mrb[0].mxu0
      %v4910 = vadd.f32 0.0, %v4909
      %v4911 = vpop.f32.mrb[0].mxu0
      %v4912 = vpop.f32.mrb[0].mxu0
      %v4913 = vadd.f32 0.0, %v4912
      %v4914 = vpop.f32.mrb[0].mxu0
      %4915 = vmatprep.mubr.bf16.mxu0 0
      %4916 = vmatmul.mubr.bf16.gmra.mrb[0].mxu0 %v4761
      %v4917 = vpop.f32.mrb[0].mxu0
      %v4918 = vadd.f32 0.0, %v4917
      %v4919 = vpop.f32.mrb[0].mxu0
      %v4920 = vpop.f32.mrb[0].mxu0
      %v4921 = vadd.f32 0.0, %v4920
      %v4922 = vpop.f32.mrb[0].mxu0
      %4923 = vmatprep.mubr.bf16.mxu0 0
      %4924 = vmatmul.mubr.bf16.gmra.mrb[0].mxu0 %v4762
      %v4925 = vpop.f32.mrb[0].mxu0
      %v4926 = vadd.f32 0.0, %v4925
      %v4927 = vpop.f32.mrb[0].mxu0
      %v4928 = vpop.f32.mrb[0].mxu0
      %v4929 = vadd.f32 0.0, %v4928
      %v4930 = vpop.f32.mrb[0].mxu0
      %4931 = vmatprep.mubr.bf16.mxu0 0
      %4932 = vmatmul.mubr.bf16.gmra.mrb[0].mxu0 %v4763
      %v4933 = vpop.f32.mrb[0].mxu0
      %v4934 = vadd.f32 0.0, %v4933
      %v4935 = vpop.f32.mrb[0].mxu0
      %v4936 = vpop.f32.mrb[0].mxu0
      %v4937 = vadd.f32 0.0, %v4936
      %v4938 = vpop.f32.mrb[0].mxu0
      %4939 = vmatprep.mubr.bf16.mxu0 0
      %4940 = vmatmul.mubr.bf16.gmra.mrb[0].mxu0 %v4764
      %v4941 = vpop.f32.mrb[0].mxu0
      %v4942 = vadd.f32 0.0, %v4941
      %v4943 = vpop.f32.mrb[0].mxu0
      %v4944 = vpop.f32.mrb[0].mxu0
      %v4945 = vadd.f32 0.0, %v4944
      %v4946 = vpop.f32.mrb[0].mxu0
      %4947 = vmatprep.mubr.bf16.mxu0 0
      %4948 = vmatmul.mubr.bf16.gmra.mrb[0].mxu0 %v4765
      %v4949 = vpop.f32.mrb[0].mxu0
      %v4950 = vadd.f32 0.0, %v4949
      %v4951 = vpop.f32.mrb[0].mxu0
      %v4952 = vpop.f32.mrb[0].mxu0
      %v4953 = vadd.f32 0.0, %v4952
      %v4954 = vpop.f32.mrb[0].mxu0
      %4955 = vmatprep.mubr.bf16.mxu0 0
      %4956 = vmatmul.mubr.bf16.gmra.mrb[0].mxu0 %v4766
      %v4957 = vpop.f32.mrb[0].mxu0
      %v4958 = vadd.f32 0.0, %v4957
      %v4959 = vpop.f32.mrb[0].mxu0
      %v4960 = vpop.f32.mrb[0].mxu0
      %v4961 = vadd.f32 0.0, %v4960
      %v4962 = vpop.f32.mrb[0].mxu0
      %4963 = vmatprep.mubr.bf16.mxu0 0
      %4964 = vmatmul.mubr.bf16.gmra.mrb[0].mxu0 %v4767
      %v4965 = vpop.f32.mrb[0].mxu0
      %v4966 = vadd.f32 0.0, %v4965
      %v4967 = vpop.f32.mrb[0].mxu0
      %v4968 = vpop.f32.mrb[0].mxu0
      %v4969 = vadd.f32 0.0, %v4968
      %v4970 = vpop.f32.mrb[0].mxu0
      %4971 = vmatprep.mubr.bf16.mxu0 0
      %4972 = vmatmul.mubr.bf16.gmra.mrb[0].mxu0 %v4768
      %v4973 = vpop.f32.mrb[0].mxu0
      %v4974 = vadd.f32 0.0, %v4973
      %v4975 = vpop.f32.mrb[0].mxu0
      %v4976 = vpop.f32.mrb[0].mxu0
      %v4977 = vadd.f32 0.0, %v4976
      %v4978 = vpop.f32.mrb[0].mxu0
      %4979 = vmatprep.mubr.bf16.mxu0 0
      %4980 = vmatmul.mubr.bf16.gmra.mrb[0].mxu0 %v4769
      %v4981 = vpop.f32.mrb[0].mxu0
      %v4982 = vadd.f32 0.0, %v4981
      %v4983 = vpop.f32.mrb[0].mxu0
      %v4984 = vpop.f32.mrb[0].mxu0
      %v4985 = vadd.f32 0.0, %v4984
      %v4986 = vpop.f32.mrb[0].mxu0
      %4987 = vmatprep.mubr.bf16.mxu0 0
      %4988 = vmatmul.mubr.bf16.gmra.mrb[0].mxu0 %v4770
      %v4989 = vpop.f32.mrb[0].mxu0
      %v4990 = vadd.f32 0.0, %v4989
      %v4991 = vpop.f32.mrb[0].mxu0
      %v4992 = vpop.f32.mrb[0].mxu0
      %v4993 = vadd.f32 0.0, %v4992
      %v4994 = vpop.f32.mrb[0].mxu0
      %4995 = vdwg.mxu0
      %v4996 = vadd.f32 %v4498, %v4870
      %v4997 = vadd.f32 %v4499, %v4873
      %v4998 = vadd.f32 %v4500, %v4878
      %v4999 = vadd.f32 %v4501, %v4881
      %v5000 = vadd.f32 %v4502, %v4886
      %v5001 = vadd.f32 %v4503, %v4889
      %v5002 = vadd.f32 %v4504, %v4894
      %v5003 = vadd.f32 %v4505, %v4897
      %v5004 = vadd.f32 %v4506, %v4902
      %v5005 = vadd.f32 %v4507, %v4905
      %v5006 = vadd.f32 %v4508, %v4910
      %v5007 = vadd.f32 %v4509, %v4913
      %v5008 = vadd.f32 %v4510, %v4918
      %v5009 = vadd.f32 %v4511, %v4921
      %v5010 = vadd.f32 %v4512, %v4926
      %v5011 = vadd.f32 %v4513, %v4929
      %v5012 = vadd.f32 %v4514, %v4934
      %v5013 = vadd.f32 %v4515, %v4937
      %v5014 = vadd.f32 %v4516, %v4942
      %v5015 = vadd.f32 %v4517, %v4945
      %v5016 = vadd.f32 %v4518, %v4950
      %v5017 = vadd.f32 %v4519, %v4953
      %v5018 = vadd.f32 %v4520, %v4958
      %v5019 = vadd.f32 %v4521, %v4961
      %v5020 = vadd.f32 %v4522, %v4966
      %v5021 = vadd.f32 %v4523, %v4969
      %v5022 = vadd.f32 %v4524, %v4974
      %v5023 = vadd.f32 %v4525, %v4977
      %v5024 = vadd.f32 %v4526, %v4982
      %v5025 = vadd.f32 %v4527, %v4985
      %v5026 = vadd.f32 %v4528, %v4990
      %v5027 = vadd.f32 %v4529, %v4993
      %v5028 = vld [vmem:[%s2] sm:$0x1]
      %v5030 = vlaneseq
      %v5031 = vshrl.u32 %v5030, 7
      %v5032 = vsub.s32 0, %v5031
      %v5033 = vrot.slane %v5028, %v5032
      %v5035 = vadd.f32 %v4996, %v5033
      %v5036 = vadd.f32 %v4997, %v5033
      %v5037 = vadd.f32 %v4998, %v5033
      %v5038 = vadd.f32 %v4999, %v5033
      %v5039 = vadd.f32 %v5000, %v5033
      %v5040 = vadd.f32 %v5001, %v5033
      %v5041 = vadd.f32 %v5002, %v5033
      %v5042 = vadd.f32 %v5003, %v5033
      %v5043 = vadd.f32 %v5004, %v5033
      %v5044 = vadd.f32 %v5005, %v5033
      %v5045 = vadd.f32 %v5006, %v5033
      %v5046 = vadd.f32 %v5007, %v5033
      %v5047 = vadd.f32 %v5008, %v5033
      %v5048 = vadd.f32 %v5009, %v5033
      %v5049 = vadd.f32 %v5010, %v5033
      %v5050 = vadd.f32 %v5011, %v5033
      %v5051 = vadd.f32 %v5012, %v5033
      %v5052 = vadd.f32 %v5013, %v5033
      %v5053 = vadd.f32 %v5014, %v5033
      %v5054 = vadd.f32 %v5015, %v5033
      %v5055 = vadd.f32 %v5016, %v5033
      %v5056 = vadd.f32 %v5017, %v5033
      %v5057 = vadd.f32 %v5018, %v5033
      %v5058 = vadd.f32 %v5019, %v5033
      %v5059 = vadd.f32 %v5020, %v5033
      %v5060 = vadd.f32 %v5021, %v5033
      %v5061 = vadd.f32 %v5022, %v5033
      %v5062 = vadd.f32 %v5023, %v5033
      %v5063 = vadd.f32 %v5024, %v5033
      %v5064 = vadd.f32 %v5025, %v5033
      %v5065 = vadd.f32 %v5026, %v5033
      %v5066 = vadd.f32 %v5027, %v5033
      %v5067 = vxor.u32 %v5035, 2147483648
      %v5068 = vxor.u32 %v5036, 2147483648
      %v5069 = vxor.u32 %v5037, 2147483648
      %v5070 = vxor.u32 %v5038, 2147483648
      %v5071 = vxor.u32 %v5039, 2147483648
      %v5072 = vxor.u32 %v5040, 2147483648
      %v5073 = vxor.u32 %v5041, 2147483648
      %v5074 = vxor.u32 %v5042, 2147483648
      %v5075 = vxor.u32 %v5043, 2147483648
      %v5076 = vxor.u32 %v5044, 2147483648
      %v5077 = vxor.u32 %v5045, 2147483648
      %v5078 = vxor.u32 %v5046, 2147483648
      %v5079 = vxor.u32 %v5047, 2147483648
      %v5080 = vxor.u32 %v5048, 2147483648
      %v5081 = vxor.u32 %v5049, 2147483648
      %v5082 = vxor.u32 %v5050, 2147483648
      %v5083 = vxor.u32 %v5051, 2147483648
      %v5084 = vxor.u32 %v5052, 2147483648
      %v5085 = vxor.u32 %v5053, 2147483648
      %v5086 = vxor.u32 %v5054, 2147483648
      %v5087 = vxor.u32 %v5055, 2147483648
      %v5088 = vxor.u32 %v5056, 2147483648
      %v5089 = vxor.u32 %v5057, 2147483648
      %v5090 = vxor.u32 %v5058, 2147483648
      %v5091 = vxor.u32 %v5059, 2147483648
      %v5092 = vxor.u32 %v5060, 2147483648
      %v5093 = vxor.u32 %v5061, 2147483648
      %v5094 = vxor.u32 %v5062, 2147483648
      %v5095 = vxor.u32 %v5063, 2147483648
      %v5096 = vxor.u32 %v5064, 2147483648
      %v5097 = vxor.u32 %v5065, 2147483648
      %v5098 = vxor.u32 %v5066, 2147483648
      %v5099 = vmul.f32 %v5067, 1.442695
      %v5100 = vpow.pop %v5099
      %v5101 = vmul.f32 %v5068, 1.442695
      %v5102 = vpow.pop %v5101
      %v5103 = vmul.f32 %v5069, 1.442695
      %v5104 = vpow.pop %v5103
      %v5105 = vmul.f32 %v5070, 1.442695
      %v5106 = vpow.pop %v5105
      %v5107 = vmul.f32 %v5071, 1.442695
      %v5108 = vpow.pop %v5107
      %v5109 = vmul.f32 %v5072, 1.442695
      %v5110 = vpow.pop %v5109
      %v5111 = vmul.f32 %v5073, 1.442695
      %v5112 = vpow.pop %v5111
      %v5113 = vmul.f32 %v5074, 1.442695
      %v5114 = vpow.pop %v5113
      %v5115 = vmul.f32 %v5075, 1.442695
      %v5116 = vpow.pop %v5115
      %v5117 = vmul.f32 %v5076, 1.442695
      %v5118 = vpow.pop %v5117
      %v5119 = vmul.f32 %v5077, 1.442695
      %v5120 = vpow.pop %v5119
      %v5121 = vmul.f32 %v5078, 1.442695
      %v5122 = vpow.pop %v5121
      %v5123 = vmul.f32 %v5079, 1.442695
      %v5124 = vpow.pop %v5123
      %v5125 = vmul.f32 %v5080, 1.442695
      %v5126 = vpow.pop %v5125
      %v5127 = vmul.f32 %v5081, 1.442695
      %v5128 = vpow.pop %v5127
      %v5129 = vmul.f32 %v5082, 1.442695
      %v5130 = vpow.pop %v5129
      %v5131 = vmul.f32 %v5083, 1.442695
      %v5132 = vpow.pop %v5131
      %v5133 = vmul.f32 %v5084, 1.442695
      %v5134 = vpow.pop %v5133
      %v5135 = vmul.f32 %v5085, 1.442695
      %v5136 = vpow.pop %v5135
      %v5137 = vmul.f32 %v5086, 1.442695
      %v5138 = vpow.pop %v5137
      %v5139 = vmul.f32 %v5087, 1.442695
      %v5140 = vpow.pop %v5139
      %v5141 = vmul.f32 %v5088, 1.442695
      %v5142 = vpow.pop %v5141
      %v5143 = vmul.f32 %v5089, 1.442695
      %v5144 = vpow.pop %v5143
      %v5145 = vmul.f32 %v5090, 1.442695
      %v5146 = vpow.pop %v5145
      %v5147 = vmul.f32 %v5091, 1.442695
      %v5148 = vpow.pop %v5147
      %v5149 = vmul.f32 %v5092, 1.442695
      %v5150 = vpow.pop %v5149
      %v5151 = vmul.f32 %v5093, 1.442695
      %v5152 = vpow.pop %v5151
      %v5153 = vmul.f32 %v5094, 1.442695
      %v5154 = vpow.pop %v5153
      %v5155 = vmul.f32 %v5095, 1.442695
      %v5156 = vpow.pop %v5155
      %v5157 = vmul.f32 %v5096, 1.442695
      %v5158 = vpow.pop %v5157
      %v5159 = vmul.f32 %v5097, 1.442695
      %v5160 = vpow.pop %v5159
      %v5161 = vmul.f32 %v5098, 1.442695
      %v5162 = vpow.pop %v5161
      %v5163 = vadd.f32 %v5100, 1.0
      %v5164 = vadd.f32 %v5102, 1.0
      %v5165 = vadd.f32 %v5104, 1.0
      %v5166 = vadd.f32 %v5106, 1.0
      %v5167 = vadd.f32 %v5108, 1.0
      %v5168 = vadd.f32 %v5110, 1.0
      %v5169 = vadd.f32 %v5112, 1.0
      %v5170 = vadd.f32 %v5114, 1.0
      %v5171 = vadd.f32 %v5116, 1.0
      %v5172 = vadd.f32 %v5118, 1.0
      %v5173 = vadd.f32 %v5120, 1.0
      %v5174 = vadd.f32 %v5122, 1.0
      %v5175 = vadd.f32 %v5124, 1.0
      %v5176 = vadd.f32 %v5126, 1.0
      %v5177 = vadd.f32 %v5128, 1.0
      %v5178 = vadd.f32 %v5130, 1.0
      %v5179 = vadd.f32 %v5132, 1.0
      %v5180 = vadd.f32 %v5134, 1.0
      %v5181 = vadd.f32 %v5136, 1.0
      %v5182 = vadd.f32 %v5138, 1.0
      %v5183 = vadd.f32 %v5140, 1.0
      %v5184 = vadd.f32 %v5142, 1.0
      %v5185 = vadd.f32 %v5144, 1.0
      %v5186 = vadd.f32 %v5146, 1.0
      %v5187 = vadd.f32 %v5148, 1.0
      %v5188 = vadd.f32 %v5150, 1.0
      %v5189 = vadd.f32 %v5152, 1.0
      %v5190 = vadd.f32 %v5154, 1.0
      %v5191 = vadd.f32 %v5156, 1.0
      %v5192 = vadd.f32 %v5158, 1.0
      %v5193 = vadd.f32 %v5160, 1.0
      %v5194 = vadd.f32 %v5162, 1.0
      %v5195 = vrcp.pop %v5163
      %v5196 = vmul.f32 1.0, %v5195
      %v5197 = vrcp.pop %v5164
      %v5198 = vmul.f32 1.0, %v5197
      %v5199 = vrcp.pop %v5165
      %v5200 = vmul.f32 1.0, %v5199
      %v5201 = vrcp.pop %v5166
      %v5202 = vmul.f32 1.0, %v5201
      %v5203 = vrcp.pop %v5167
      %v5204 = vmul.f32 1.0, %v5203
      %v5205 = vrcp.pop %v5168
      %v5206 = vmul.f32 1.0, %v5205
      %v5207 = vrcp.pop %v5169
      %v5208 = vmul.f32 1.0, %v5207
      %v5209 = vrcp.pop %v5170
      %v5210 = vmul.f32 1.0, %v5209
      %v5211 = vrcp.pop %v5171
      %v5212 = vmul.f32 1.0, %v5211
      %v5213 = vrcp.pop %v5172
      %v5214 = vmul.f32 1.0, %v5213
      %v5215 = vrcp.pop %v5173
      %v5216 = vmul.f32 1.0, %v5215
      %v5217 = vrcp.pop %v5174
      %v5218 = vmul.f32 1.0, %v5217
      %v5219 = vrcp.pop %v5175
      %v5220 = vmul.f32 1.0, %v5219
      %v5221 = vrcp.pop %v5176
      %v5222 = vmul.f32 1.0, %v5221
      %v5223 = vrcp.pop %v5177
      %v5224 = vmul.f32 1.0, %v5223
      %v5225 = vrcp.pop %v5178
      %v5226 = vmul.f32 1.0, %v5225
      %v5227 = vrcp.pop %v5179
      %v5228 = vmul.f32 1.0, %v5227
      %v5229 = vrcp.pop %v5180
      %v5230 = vmul.f32 1.0, %v5229
      %v5231 = vrcp.pop %v5181
      %v5232 = vmul.f32 1.0, %v5231
      %v5233 = vrcp.pop %v5182
      %v5234 = vmul.f32 1.0, %v5233
      %v5235 = vrcp.pop %v5183
      %v5236 = vmul.f32 1.0, %v5235
      %v5237 = vrcp.pop %v5184
      %v5238 = vmul.f32 1.0, %v5237
      %v5239 = vrcp.pop %v5185
      %v5240 = vmul.f32 1.0, %v5239
      %v5241 = vrcp.pop %v5186
      %v5242 = vmul.f32 1.0, %v5241
      %v5243 = vrcp.pop %v5187
      %v5244 = vmul.f32 1.0, %v5243
      %v5245 = vrcp.pop %v5188
      %v5246 = vmul.f32 1.0, %v5245
      %v5247 = vrcp.pop %v5189
      %v5248 = vmul.f32 1.0, %v5247
      %v5249 = vrcp.pop %v5190
      %v5250 = vmul.f32 1.0, %v5249
      %v5251 = vrcp.pop %v5191
      %v5252 = vmul.f32 1.0, %v5251
      %v5253 = vrcp.pop %v5192
      %v5254 = vmul.f32 1.0, %v5253
      %v5255 = vrcp.pop %v5193
      %v5256 = vmul.f32 1.0, %v5255
      %v5257 = vrcp.pop %v5194
      %v5258 = vmul.f32 1.0, %v5257
      %v5259 = vmul.f32 %v5035, %v5196
      %v5260 = vmul.f32 %v5036, %v5198
      %v5261 = vmul.f32 %v5037, %v5200
      %v5262 = vmul.f32 %v5038, %v5202
      %v5263 = vmul.f32 %v5039, %v5204
      %v5264 = vmul.f32 %v5040, %v5206
      %v5265 = vmul.f32 %v5041, %v5208
      %v5266 = vmul.f32 %v5042, %v5210
      %v5267 = vmul.f32 %v5043, %v5212
      %v5268 = vmul.f32 %v5044, %v5214
      %v5269 = vmul.f32 %v5045, %v5216
      %v5270 = vmul.f32 %v5046, %v5218
      %v5271 = vmul.f32 %v5047, %v5220
      %v5272 = vmul.f32 %v5048, %v5222
      %v5273 = vmul.f32 %v5049, %v5224
      %v5274 = vmul.f32 %v5050, %v5226
      %v5275 = vmul.f32 %v5051, %v5228
      %v5276 = vmul.f32 %v5052, %v5230
      %v5277 = vmul.f32 %v5053, %v5232
      %v5278 = vmul.f32 %v5054, %v5234
      %v5279 = vmul.f32 %v5055, %v5236
      %v5280 = vmul.f32 %v5056, %v5238
      %v5281 = vmul.f32 %v5057, %v5240
      %v5282 = vmul.f32 %v5058, %v5242
      %v5283 = vmul.f32 %v5059, %v5244
      %v5284 = vmul.f32 %v5060, %v5246
      %v5285 = vmul.f32 %v5061, %v5248
      %v5286 = vmul.f32 %v5062, %v5250
      %v5287 = vmul.f32 %v5063, %v5252
      %v5288 = vmul.f32 %v5064, %v5254
      %v5289 = vmul.f32 %v5065, %v5256
      %v5290 = vmul.f32 %v5066, %v5258
      %v5291 = vld [vmem:[%s212] sm:$0xf]
      %v5292 = vld [vmem:[%s212 + $0x4] sm:$0xf]
      %v5293 = vld [vmem:[%s212 + $0x8] sm:$0xf]
      %v5294 = vld [vmem:[%s212 + $0xc] sm:$0xf]
      %v5295 = vld [vmem:[%s212 + $0x10] sm:$0xf]
      %v5296 = vld [vmem:[%s212 + $0x14] sm:$0xf]
      %v5297 = vld [vmem:[%s212 + $0x18] sm:$0xf]
      %v5298 = vld [vmem:[%s212 + $0x1c] sm:$0xf]
      %v5299 = vld [vmem:[%s212 + $0x20] sm:$0xf]
      %v5300 = vld [vmem:[%s212 + $0x24] sm:$0xf]
      %v5301 = vld [vmem:[%s212 + $0x28] sm:$0xf]
      %v5302 = vld [vmem:[%s212 + $0x2c] sm:$0xf]
      %v5303 = vld [vmem:[%s212 + $0x30] sm:$0xf]
      %v5304 = vld [vmem:[%s212 + $0x34] sm:$0xf]
      %v5305 = vld [vmem:[%s212 + $0x38] sm:$0xf]
      %v5306 = vld [vmem:[%s212 + $0x3c] sm:$0xf]
      %v5307 = vld [vmem:[%s212 + $0x40] sm:$0xf]
      %v5308 = vld [vmem:[%s212 + $0x44] sm:$0xf]
      %v5309 = vld [vmem:[%s212 + $0x48] sm:$0xf]
      %v5310 = vld [vmem:[%s212 + $0x4c] sm:$0xf]
      %v5311 = vld [vmem:[%s212 + $0x50] sm:$0xf]
      %v5312 = vld [vmem:[%s212 + $0x54] sm:$0xf]
      %v5313 = vld [vmem:[%s212 + $0x58] sm:$0xf]
      %v5314 = vld [vmem:[%s212 + $0x5c] sm:$0xf]
      %v5315 = vld [vmem:[%s212 + $0x60] sm:$0xf]
      %v5316 = vld [vmem:[%s212 + $0x64] sm:$0xf]
      %v5317 = vld [vmem:[%s212 + $0x68] sm:$0xf]
      %v5318 = vld [vmem:[%s212 + $0x6c] sm:$0xf]
      %v5319 = vld [vmem:[%s212 + $0x70] sm:$0xf]
      %v5320 = vld [vmem:[%s212 + $0x74] sm:$0xf]
      %v5321 = vld [vmem:[%s212 + $0x78] sm:$0xf]
      %v5322 = vld [vmem:[%s212 + $0x7c] sm:$0xf]
      %v5323 = vunpack.c.l.bf16 %v5291
      %v5324 = vunpack.c.l.bf16 %v5292
      %v5325 = vunpack.c.l.bf16 %v5293
      %v5326 = vunpack.c.l.bf16 %v5294
      %v5327 = vunpack.c.l.bf16 %v5295
      %v5328 = vunpack.c.l.bf16 %v5296
      %v5329 = vunpack.c.l.bf16 %v5297
      %v5330 = vunpack.c.l.bf16 %v5298
      %v5331 = vunpack.c.l.bf16 %v5299
      %v5332 = vunpack.c.l.bf16 %v5300
      %v5333 = vunpack.c.l.bf16 %v5301
      %v5334 = vunpack.c.l.bf16 %v5302
      %v5335 = vunpack.c.l.bf16 %v5303
      %v5336 = vunpack.c.l.bf16 %v5304
      %v5337 = vunpack.c.l.bf16 %v5305
      %v5338 = vunpack.c.l.bf16 %v5306
      %v5339 = vunpack.c.l.bf16 %v5307
      %v5340 = vunpack.c.l.bf16 %v5308
      %v5341 = vunpack.c.l.bf16 %v5309
      %v5342 = vunpack.c.l.bf16 %v5310
      %v5343 = vunpack.c.l.bf16 %v5311
      %v5344 = vunpack.c.l.bf16 %v5312
      %v5345 = vunpack.c.l.bf16 %v5313
      %v5346 = vunpack.c.l.bf16 %v5314
      %v5347 = vunpack.c.l.bf16 %v5315
      %v5348 = vunpack.c.l.bf16 %v5316
      %v5349 = vunpack.c.l.bf16 %v5317
      %v5350 = vunpack.c.l.bf16 %v5318
      %v5351 = vunpack.c.l.bf16 %v5319
      %v5352 = vunpack.c.l.bf16 %v5320
      %v5353 = vunpack.c.l.bf16 %v5321
      %v5354 = vunpack.c.l.bf16 %v5322
      %v5355 = vadd.f32 %v5259, %v5323
      %v5356 = vadd.f32 %v5260, %v5324
      %v5357 = vadd.f32 %v5261, %v5325
      %v5358 = vadd.f32 %v5262, %v5326
      %v5359 = vadd.f32 %v5263, %v5327
      %v5360 = vadd.f32 %v5264, %v5328
      %v5361 = vadd.f32 %v5265, %v5329
      %v5362 = vadd.f32 %v5266, %v5330
      %v5363 = vadd.f32 %v5267, %v5331
      %v5364 = vadd.f32 %v5268, %v5332
      %v5365 = vadd.f32 %v5269, %v5333
      %v5366 = vadd.f32 %v5270, %v5334
      %v5367 = vadd.f32 %v5271, %v5335
      %v5368 = vadd.f32 %v5272, %v5336
      %v5369 = vadd.f32 %v5273, %v5337
      %v5370 = vadd.f32 %v5274, %v5338
      %v5371 = vadd.f32 %v5275, %v5339
      %v5372 = vadd.f32 %v5276, %v5340
      %v5373 = vadd.f32 %v5277, %v5341
      %v5374 = vadd.f32 %v5278, %v5342
      %v5375 = vadd.f32 %v5279, %v5343
      %v5376 = vadd.f32 %v5280, %v5344
      %v5377 = vadd.f32 %v5281, %v5345
      %v5378 = vadd.f32 %v5282, %v5346
      %v5379 = vadd.f32 %v5283, %v5347
      %v5380 = vadd.f32 %v5284, %v5348
      %v5381 = vadd.f32 %v5285, %v5349
      %v5382 = vadd.f32 %v5286, %v5350
      %v5383 = vadd.f32 %v5287, %v5351
      %v5384 = vadd.f32 %v5288, %v5352
      %v5385 = vadd.f32 %v5289, %v5353
      %v5386 = vadd.f32 %v5290, %v5354
      %v5387 = vpack.c.bf16 %v5356, %v5355
      %v5388 = vpack.c.bf16 %v5358, %v5357
      %v5389 = vpack.c.bf16 %v5360, %v5359
      %v5390 = vpack.c.bf16 %v5362, %v5361
      %v5391 = vpack.c.bf16 %v5364, %v5363
      %v5392 = vpack.c.bf16 %v5366, %v5365
      %v5393 = vpack.c.bf16 %v5368, %v5367
      %v5394 = vpack.c.bf16 %v5370, %v5369
      %v5395 = vpack.c.bf16 %v5372, %v5371
      %v5396 = vpack.c.bf16 %v5374, %v5373
      %v5397 = vpack.c.bf16 %v5376, %v5375
      %v5398 = vpack.c.bf16 %v5378, %v5377
      %v5399 = vpack.c.bf16 %v5380, %v5379
      %v5400 = vpack.c.bf16 %v5382, %v5381
      %v5401 = vpack.c.bf16 %v5384, %v5383
      %v5402 = vpack.c.bf16 %v5386, %v5385
      %v5419 = vunpack.c.l.b16 %v5387
      %v5420 = vunpack.c.h.b16 %v5387
      %v5421 = vunpack.c.l.b16 %v5388
      %v5422 = vunpack.c.h.b16 %v5388
      %v5423 = vunpack.c.l.b16 %v5389
      %v5424 = vunpack.c.h.b16 %v5389
      %v5425 = vunpack.c.l.b16 %v5390
      %v5426 = vunpack.c.h.b16 %v5390
      %v5427 = vunpack.c.l.b16 %v5391
      %v5428 = vunpack.c.h.b16 %v5391
      %v5429 = vunpack.c.l.b16 %v5392
      %v5430 = vunpack.c.h.b16 %v5392
      %v5431 = vunpack.c.l.b16 %v5393
      %v5432 = vunpack.c.h.b16 %v5393
      %v5433 = vunpack.c.l.b16 %v5394
      %v5434 = vunpack.c.h.b16 %v5394
      %v5435 = vunpack.c.l.b16 %v5395
      %v5436 = vunpack.c.h.b16 %v5395
      %v5437 = vunpack.c.l.b16 %v5396
      %v5438 = vunpack.c.h.b16 %v5396
      %v5439 = vunpack.c.l.b16 %v5397
      %v5440 = vunpack.c.h.b16 %v5397
      %v5441 = vunpack.c.l.b16 %v5398
      %v5442 = vunpack.c.h.b16 %v5398
      %v5443 = vunpack.c.l.b16 %v5399
      %v5444 = vunpack.c.h.b16 %v5399
      %v5445 = vunpack.c.l.b16 %v5400
      %v5446 = vunpack.c.h.b16 %v5400
      %v5447 = vunpack.c.l.b16 %v5401
      %v5448 = vunpack.c.h.b16 %v5401
      %v5449 = vunpack.c.l.b16 %v5402
      %v5450 = vunpack.c.h.b16 %v5402
      %v5451 = vpack.c.b16 %v5419, %v5419
      %v5452 = vpack.c.b16 %v5420, %v5420
      %v5453 = vpack.c.b16 %v5421, %v5421
      %v5454 = vpack.c.b16 %v5422, %v5422
      %v5455 = vpack.c.b16 %v5423, %v5423
      %v5456 = vpack.c.b16 %v5424, %v5424
      %v5457 = vpack.c.b16 %v5425, %v5425
      %v5458 = vpack.c.b16 %v5426, %v5426
      %v5459 = vpack.c.b16 %v5427, %v5427
      %v5460 = vpack.c.b16 %v5428, %v5428
      %v5461 = vpack.c.b16 %v5429, %v5429
      %v5462 = vpack.c.b16 %v5430, %v5430
      %v5463 = vpack.c.b16 %v5431, %v5431
      %v5464 = vpack.c.b16 %v5432, %v5432
      %v5465 = vpack.c.b16 %v5433, %v5433
      %v5466 = vpack.c.b16 %v5434, %v5434
      %v5467 = vpack.c.b16 %v5435, %v5435
      %v5468 = vpack.c.b16 %v5436, %v5436
      %v5469 = vpack.c.b16 %v5437, %v5437
      %v5470 = vpack.c.b16 %v5438, %v5438
      %v5471 = vpack.c.b16 %v5439, %v5439
      %v5472 = vpack.c.b16 %v5440, %v5440
      %v5473 = vpack.c.b16 %v5441, %v5441
      %v5474 = vpack.c.b16 %v5442, %v5442
      %v5475 = vpack.c.b16 %v5443, %v5443
      %v5476 = vpack.c.b16 %v5444, %v5444
      %v5477 = vpack.c.b16 %v5445, %v5445
      %v5478 = vpack.c.b16 %v5446, %v5446
      %v5479 = vpack.c.b16 %v5447, %v5447
      %v5480 = vpack.c.b16 %v5448, %v5448
      %v5481 = vpack.c.b16 %v5449, %v5449
      %v5482 = vpack.c.b16 %v5450, %v5450
      %5515 = vst [vmem:[%s217] sm:$0xf] %v5451
      %5516 = vst [vmem:[%s217 + $0x4] sm:$0xf] %v5452
      %5517 = vst [vmem:[%s217 + $0x8] sm:$0xf] %v5453
      %5518 = vst [vmem:[%s217 + $0xc] sm:$0xf] %v5454
      %5519 = vst [vmem:[%s217 + $0x10] sm:$0xf] %v5455
      %5520 = vst [vmem:[%s217 + $0x14] sm:$0xf] %v5456
      %5521 = vst [vmem:[%s217 + $0x18] sm:$0xf] %v5457
      %5522 = vst [vmem:[%s217 + $0x1c] sm:$0xf] %v5458
      %5523 = vst [vmem:[%s217 + $0x20] sm:$0xf] %v5459
      %5524 = vst [vmem:[%s217 + $0x24] sm:$0xf] %v5460
      %5525 = vst [vmem:[%s217 + $0x28] sm:$0xf] %v5461
      %5526 = vst [vmem:[%s217 + $0x2c] sm:$0xf] %v5462
      %5527 = vst [vmem:[%s217 + $0x30] sm:$0xf] %v5463
      %5528 = vst [vmem:[%s217 + $0x34] sm:$0xf] %v5464
      %5529 = vst [vmem:[%s217 + $0x38] sm:$0xf] %v5465
      %5530 = vst [vmem:[%s217 + $0x3c] sm:$0xf] %v5466
      %5531 = vst [vmem:[%s217 + $0x40] sm:$0xf] %v5467
      %5532 = vst [vmem:[%s217 + $0x44] sm:$0xf] %v5468
      %5533 = vst [vmem:[%s217 + $0x48] sm:$0xf] %v5469
      %5534 = vst [vmem:[%s217 + $0x4c] sm:$0xf] %v5470
      %5535 = vst [vmem:[%s217 + $0x50] sm:$0xf] %v5471
      %5536 = vst [vmem:[%s217 + $0x54] sm:$0xf] %v5472
      %5537 = vst [vmem:[%s217 + $0x58] sm:$0xf] %v5473
      %5538 = vst [vmem:[%s217 + $0x5c] sm:$0xf] %v5474
      %5539 = vst [vmem:[%s217 + $0x60] sm:$0xf] %v5475
      %5540 = vst [vmem:[%s217 + $0x64] sm:$0xf] %v5476
      %5541 = vst [vmem:[%s217 + $0x68] sm:$0xf] %v5477
      %5542 = vst [vmem:[%s217 + $0x6c] sm:$0xf] %v5478
      %5543 = vst [vmem:[%s217 + $0x70] sm:$0xf] %v5479
      %5544 = vst [vmem:[%s217 + $0x74] sm:$0xf] %v5480
      %5545 = vst [vmem:[%s217 + $0x78] sm:$0xf] %v5481
      %5546 = vst [vmem:[%s217 + $0x7c] sm:$0xf] %v5482
      %p5547 = scmp.lt.s32.totalorder %s15, 1
      %s5548 = scalar_select %p5547, %s15, 1
      %s5549 = smul.addr %s5548, 32
      %s5550 = smul.addr %s5549, 4
      %s5551 = scalar_lea.vmem %s4, %s5550
      // Predicated region
      $region37: #{c3_forward.6} parent=35 // pred_check
        %p5552 = pneg %p127
      $region38: #{c3_forward.6} parent=35 // pred_check_branch
        %5554 = sbr.rel (%p5552) target = $region40
      $region39: #{c3_forward.6} parent=35 // pred_region
        _
      $region40: #{c3_forward.6} parent=35 // pred_fallthru
        _
    $region36: #{c3_forward.6} parent=5 // pred_fallthru
      _
    %p5555 = scmp.le.s32.totalorder 2, %s10
    // Predicated region
    $region41: #{c3_forward.6} parent=5 // pred_check
      %p5556 = pneg %p5555
    $region42: #{c3_forward.6} parent=5 // pred_check_branch
      %5558 = sbr.rel (%p5556) target = $region44
    $region43: #{c3_forward.6} parent=5 // pred_region
      %s5559 = ssub.s32 %s10, 2
      // Predicated region
      $region45: #{c3_forward.6} parent=43 // pred_check
        %p5560 = pneg %p133
      $region46: #{c3_forward.6} parent=43 // pred_check_branch
        %5562 = sbr.rel (%p5560) target = $region48
      $region47: #{c3_forward.6} parent=43 // pred_region
        %p5563 = scmp.lt.s32.totalorder %s16, 1
        %s5564 = scalar_select %p5563, %s16, 1
        %s5565 = smul.addr %s5564, 32
        %s5566 = smul.addr %s5565, 4
        %s5567 = scalar_lea.vmem %s4, %s5566
      $region48: #{c3_forward.6} parent=43 // pred_fallthru
        _
    $region44: #{c3_forward.6} parent=5 // pred_fallthru
      _
  $region6: #{c3_forward.6} parent=0 // loop_footer
    %s14 = sadd.s32 1, %s10
  $region7: #{c3_forward.6} parent=0 // loop_footer_branch
    %9 = sbr.rel target = $region3
  $region8: #{c3_forward.6} parent=0 // loop_exit
    _

</llo_original>
